<compile_context>
chip_gen: v5e
topology: v5e:2x2
jax: 0.10.0
libtpu: 0.0.40
codegen_flags: <defaults>
</compile_context>

<pallas_src>
import math
import functools

import jax
import jax.numpy as jnp
from jax import lax
from jax.experimental import pallas as pl
from jax.experimental.pallas import tpu as pltpu  # noqa: F401  (TPU backend assumed)

LANE = 128  # TPU lane width; head slabs and feature dims are padded to this.


def _round_up(n, m):
    return ((n + m - 1) // m) * m


# ----------------------------------------------------------------------------
# Fused encoder-stack kernel (single step, everything VMEM resident)
# ----------------------------------------------------------------------------

def _layernorm(x, g, b, lane_valid, d_real):
    # Annotated-Transformer LayerNorm: g*(x-mean)/(std+eps)+b, unbiased std
    # (torch.std default), eps=1e-6 added to std.  `x` has zero padded lanes;
    # g/b are zero-padded so padded lanes stay exactly zero.
    mean = jnp.sum(x, axis=-1, keepdims=True) * (1.0 / d_real)
    xc = jnp.where(lane_valid, x - mean, 0.0)
    var = jnp.sum(xc * xc, axis=-1, keepdims=True) * (1.0 / (d_real - 1))
    inv = 1.0 / (jnp.sqrt(var) + 1e-6)          # exact reciprocal (LN parity)
    return g * (xc * inv) + b


def _encoder_stack_kernel(x_ref, bias_ref,
                          wqkv_ref, bqkv_ref, wo_ref, bo_ref,
                          w1_ref, b1_ref, w2_ref, b2_ref,
                          ln1g_ref, ln1b_ref, ln2g_ref, ln2b_ref,
                          fg_ref, fb_ref,
                          feats_ref,
                          *, d_model, h):
    BS, Dp = x_ref.shape
    L = wqkv_ref.shape[0]
    lane_valid = lax.broadcasted_iota(jnp.int32, (BS, Dp), 1) < d_model

    x = x_ref[...]                       # (BS, Dp) f32, padded lanes zero
    bias = bias_ref[...]                 # (BS, BS) additive attention bias

    # Static unroll over layers; all weights are VMEM resident (full stack).
    for l in range(L):
        # ---- sublayer 1: x + Wo(self_attn(LN1(x))) ----
        xn = _layernorm(x, ln1g_ref[l], ln1b_ref[l], lane_valid, d_model)
        qkv = (jnp.dot(xn.astype(jnp.bfloat16), wqkv_ref[l],
                       preferred_element_type=jnp.float32)
               + bqkv_ref[l]).astype(jnp.bfloat16)      # (BS, 3*h*128), one cast
        attn = jnp.zeros((BS, Dp), jnp.float32)
        for i in range(h):               # 128-lane-aligned head slabs = vreg views
            q = qkv[:, i * LANE:(i + 1) * LANE]
            k = qkv[:, (h + i) * LANE:(h + i + 1) * LANE]
            v = qkv[:, (2 * h + i) * LANE:(2 * h + i + 1) * LANE]
            s = lax.dot_general(q, k, (((1,), (1,)), ((), ())),
                                preferred_element_type=jnp.float32)   # (BS, BS)
            s = s + bias                 # block-diagonal + key mask, precomputed
            s = s - jnp.max(s, axis=-1, keepdims=True)
            p = jnp.exp(s)
            p = p * pl.reciprocal(jnp.sum(p, axis=-1, keepdims=True), approx=True)
            o = jnp.dot(p.astype(jnp.bfloat16), v,
                        preferred_element_type=jnp.float32)           # (BS, 128)
            # Fold this head straight through its Wo slab (no concat/transpose).
            attn = attn + jnp.dot(o.astype(jnp.bfloat16), wo_ref[l, i],
                                  preferred_element_type=jnp.float32)
        x = x + attn + bo_ref[l]

        # ---- sublayer 2: x + FFN(LN2(x)) ----
        xn = _layernorm(x, ln2g_ref[l], ln2b_ref[l], lane_valid, d_model)
        hid = jnp.dot(xn.astype(jnp.bfloat16), w1_ref[l],
                      preferred_element_type=jnp.float32) + b1_ref[l]
        hid = jnp.maximum(hid, 0.0)
        x = x + jnp.dot(hid.astype(jnp.bfloat16), w2_ref[l],
                        preferred_element_type=jnp.float32) + b2_ref[l]

    # Encoder final LayerNorm; single lane-dense (BS, 128) store.
    feats_ref[...] = _layernorm(x, fg_ref[...], fb_ref[...], lane_valid, d_model)


def encoder_stack(x_flat, attn_bias, p, *, d_model, h):
    BS, Dp = x_flat.shape
    kern = functools.partial(_encoder_stack_kernel, d_model=d_model, h=h)
    # No grid / no BlockSpecs: single step, every operand is a whole-array
    # VMEM-resident block fetched exactly once.
    return pl.pallas_call(
        kern,
        out_shape=jax.ShapeDtypeStruct((BS, Dp), jnp.float32),
    )(x_flat, attn_bias,
      p['wqkv'], p['bqkv'], p['wo'], p['bo'],
      p['w1'], p['b1'], p['w2'], p['b2'],
      p['ln1g'], p['ln1b'], p['ln2g'], p['ln2b'],
      p['fg'], p['fb'])


# ----------------------------------------------------------------------------
# Parameter construction (deterministic, in-script, padded & stacked per layer)
# ----------------------------------------------------------------------------

def make_positional_encoding(max_len, d_model):
    pos = jnp.arange(max_len, dtype=jnp.float32)[:, None]
    div = jnp.exp(jnp.arange(0, d_model, 2, dtype=jnp.float32)
                  * -(math.log(10000.0) / d_model))
    pe = jnp.zeros((max_len, d_model), jnp.float32)
    pe = pe.at[:, 0::2].set(jnp.sin(pos * div))
    pe = pe.at[:, 1::2].set(jnp.cos(pos * div))
    return pe


def init_params(key, d_model, d_ff, num_layers, tgt_vocab, num_labels, h,
                max_len=512):
    # TODO(synk): EncoderLayer_grid / EncoderLayer_reg source is not provided;
    # both stacks are implemented as standard pre-norm Transformer encoder
    # layers (num_layers "grid" layers followed by num_layers "reg" layers).
    L = 2 * num_layers
    Dp = _round_up(d_model, LANE)         # lane-dense padded feature dim
    Fp = _round_up(d_ff, LANE)            # lane-dense padded FFN dim
    Dh = d_model // h
    keys = jax.random.split(key, 2 + 6 * L)
    ki = iter(range(2 + 6 * L))

    def w(shape, scale=0.02):
        return scale * jax.random.normal(keys[next(ki)], shape, jnp.float32)

    # Embeddings * sqrt(d_model): scale folded into the table at build time.
    embed = w((tgt_vocab, d_model), 1.0) * math.sqrt(d_model)
    embed = jnp.pad(embed, ((0, 0), (0, Dp - d_model)))
    pe = jnp.pad(make_positional_encoding(max_len, d_model),
                 ((0, 0), (0, Dp - d_model)))

    ones_p = jnp.pad(jnp.ones((1, d_model), jnp.float32),
                     ((0, 0), (0, Dp - d_model)))
    zeros_p = jnp.zeros((1, Dp), jnp.float32)

    wqkv, wo_h, w1, w2 = [], [], [], []
    for _ in range(L):
        wq = w((d_model, d_model)) * (1.0 / math.sqrt(Dh))  # fold 1/sqrt(d_k)
        wk = w((d_model, d_model))
        wv = w((d_model, d_model))
        wo = w((d_model, d_model))
        # Each head's Q/K/V gets its own 128-lane slab (lane-aligned slices).
        qkv_l = jnp.zeros((Dp, 3 * h * LANE), jnp.float32)
        wo_l = jnp.zeros((h, LANE, Dp), jnp.float32)
        for i in range(h):
            qkv_l = qkv_l.at[:d_model, i * LANE:i * LANE + Dh].set(
                wq[:, i * Dh:(i + 1) * Dh])
            qkv_l = qkv_l.at[:d_model, (h + i) * LANE:(h + i) * LANE + Dh].set(
                wk[:, i * Dh:(i + 1) * Dh])
            qkv_l = qkv_l.at[:d_model, (2 * h + i) * LANE:(2 * h + i) * LANE + Dh].set(
                wv[:, i * Dh:(i + 1) * Dh])
            wo_l = wo_l.at[i, :Dh, :d_model].set(wo[i * Dh:(i + 1) * Dh, :])
        wqkv.append(qkv_l)
        wo_h.append(wo_l)
        w1.append(jnp.zeros((Dp, Fp), jnp.float32)
                  .at[:d_model, :d_ff].set(w((d_model, d_ff))))
        w2.append(jnp.zeros((Fp, Dp), jnp.float32)
                  .at[:d_ff, :d_model].set(w((d_ff, d_model))))

    stack = lambda xs: jnp.stack(xs, axis=0)
    tileL = lambda v: jnp.tile(v[None], (L, 1, 1))
    return {
        'embed': embed,                                    # (vocab, Dp) f32
        'pe': pe,                                          # (max_len, Dp) f32
        'wqkv': stack(wqkv).astype(jnp.bfloat16),          # (L, Dp, 3*h*128)
        'bqkv': jnp.zeros((L, 1, 3 * h * LANE), jnp.float32),
        'wo': stack(wo_h).astype(jnp.bfloat16),            # (L, h, 128, Dp)
        'bo': jnp.zeros((L, 1, Dp), jnp.float32),
        'w1': stack(w1).astype(jnp.bfloat16),              # (L, Dp, Fp)
        'b1': jnp.zeros((L, 1, Fp), jnp.float32),
        'w2': stack(w2).astype(jnp.bfloat16),              # (L, Fp, Dp)
        'b2': jnp.zeros((L, 1, Dp), jnp.float32),
        'ln1g': tileL(ones_p), 'ln1b': tileL(zeros_p),
        'ln2g': tileL(ones_p), 'ln2b': tileL(zeros_p),
        'fg': ones_p, 'fb': zeros_p,                       # final LN
        'cls_w': w((d_model, num_labels)),
        'cls_b': jnp.zeros((num_labels,), jnp.float32),
    }


# ----------------------------------------------------------------------------
# Forward pass
# ----------------------------------------------------------------------------

def text_encoder_forward(params, src, *, d_model, h, eos_idx=0, pad_idx=0):
    B, S = src.shape
    Dp = params['embed'].shape[-1]

    # prepare_mask: (seq != eos) & (seq != pad), force position 0 on.
    key_ok = (src != eos_idx) & (src != pad_idx)
    key_ok = key_ok.at[:, 0].set(True)                           # (B, S) bool

    # Batch folded into rows -> additive block-diagonal attention bias
    # (B*S, B*S): query row r attends key col c iff same batch AND key_ok[c].
    rows = jnp.arange(B * S) // S
    same_batch = rows[:, None] == rows[None, :]
    ok = same_batch & key_ok.reshape(B * S)[None, :]
    attn_bias = jnp.where(ok, 0.0, -1e9).astype(jnp.float32)     # (BS, BS)

    # src_embed: Embeddings (sqrt(d_model) pre-folded) + PositionalEncoding.
    # Tiny gather left in XLA; dropout = identity in eval mode.
    x = jnp.take(params['embed'], src, axis=0)                   # (B, S, Dp)
    x = x + params['pe'][None, :S, :]
    x_flat = x.reshape(B * S, Dp)

    feats_p = encoder_stack(x_flat, attn_bias, params, d_model=d_model, h=h)
    feats = feats_p.reshape(B, S, Dp)[:, :, :d_model]            # drop padding
    pooled = feats[:, 0, :]                                      # (B, d_model)
    labels = pooled @ params['cls_w'] + params['cls_b']          # tiny; plain XLA
    return feats, pooled, labels


# ----------------------------------------------------------------------------
# Main
# ----------------------------------------------------------------------------

if __name__ == "__main__":
    d_model, d_ff, num_layers, tgt_vocab, num_labels, h = 48, 96, 2, 20, 14, 3
    B, S = 2, 8

    key = jax.random.PRNGKey(0)
    pkey, dkey = jax.random.split(key)
    params = init_params(pkey, d_model, d_ff, num_layers, tgt_vocab,
                         num_labels, h)

    # token ids; includes some 0s (pad/eos) so the mask path is exercised
    src = jax.random.randint(dkey, (B, S), 0, tgt_vocab, dtype=jnp.int32)

    fwd = jax.jit(functools.partial(text_encoder_forward, d_model=d_model, h=h))
    feats, pooled, labels = fwd(params, src)
    jax.block_until_ready((feats, pooled, labels))

    assert feats.shape == (B, S, d_model)
    assert pooled.shape == (B, d_model)
    assert labels.shape == (B, num_labels)
    assert bool(jnp.all(jnp.isfinite(feats)))
    assert bool(jnp.all(jnp.isfinite(pooled)))
    assert bool(jnp.all(jnp.isfinite(labels)))
    print("KERNEL_OK")
</pallas_src>

<mosaic_0001>
module attributes {stable_mosaic.version = 11 : i64} {
  func.func @_encoder_stack_kernel(%arg0: memref<16x128xf32, #tpu.memory_space<vmem>>, %arg1: memref<16x16xf32, #tpu.memory_space<vmem>>, %arg2: memref<4x128x1152xbf16, #tpu.memory_space<vmem>>, %arg3: memref<4x1x1152xf32, #tpu.memory_space<vmem>>, %arg4: memref<4x3x128x128xbf16, #tpu.memory_space<vmem>>, %arg5: memref<4x1x128xf32, #tpu.memory_space<vmem>>, %arg6: memref<4x128x128xbf16, #tpu.memory_space<vmem>>, %arg7: memref<4x1x128xf32, #tpu.memory_space<vmem>>, %arg8: memref<4x128x128xbf16, #tpu.memory_space<vmem>>, %arg9: memref<4x1x128xf32, #tpu.memory_space<vmem>>, %arg10: memref<4x1x128xf32, #tpu.memory_space<vmem>>, %arg11: memref<4x1x128xf32, #tpu.memory_space<vmem>>, %arg12: memref<4x1x128xf32, #tpu.memory_space<vmem>>, %arg13: memref<4x1x128xf32, #tpu.memory_space<vmem>>, %arg14: memref<1x128xf32, #tpu.memory_space<vmem>>, %arg15: memref<1x128xf32, #tpu.memory_space<vmem>>, %arg16: memref<16x128xf32, #tpu.memory_space<vmem>>) attributes {dimension_semantics = [], scalar_prefetch = 0 : i64, scratch_operands = 0 : i64, tpu.core_type = #tpu.core_type<tc>} {
    %0 = tpu.iota {dimensions = array<i32: 1>} : vector<16x128xi32>
    %c48_i32 = arith.constant 48 : i32
    %1 = vector.broadcast %c48_i32 : i32 to vector<16x128xi32>
    %2 = arith.cmpi slt, %0, %1 : vector<16x128xi32>
    %c0 = arith.constant 0 : index
    %c0_0 = arith.constant 0 : index
    %3 = vector.load %arg0[%c0, %c0_0] : memref<16x128xf32, #tpu.memory_space<vmem>>, vector<16x128xf32>
    %c0_1 = arith.constant 0 : index
    %c0_2 = arith.constant 0 : index
    %4 = vector.load %arg1[%c0_1, %c0_2] : memref<16x16xf32, #tpu.memory_space<vmem>>, vector<16x16xf32>
    %c0_3 = arith.constant 0 : index
    %c0_4 = arith.constant 0 : index
    %c0_5 = arith.constant 0 : index
    %5 = vector.load %arg10[%c0_3, %c0_4, %c0_5] : memref<4x1x128xf32, #tpu.memory_space<vmem>>, vector<1x1x128xf32>
    %6 = vector.shape_cast %5 : vector<1x1x128xf32> to vector<1x128xf32>
    %c0_6 = arith.constant 0 : index
    %c0_7 = arith.constant 0 : index
    %c0_8 = arith.constant 0 : index
    %7 = vector.load %arg11[%c0_6, %c0_7, %c0_8] : memref<4x1x128xf32, #tpu.memory_space<vmem>>, vector<1x1x128xf32>
    %8 = vector.shape_cast %7 : vector<1x1x128xf32> to vector<1x128xf32>
    %cst = arith.constant dense<0.000000e+00> : vector<16xf32>
    %9 = vector.multi_reduction <add>, %3, %cst [1] : vector<16x128xf32> to vector<16xf32>
    %10 = vector.shape_cast %9 : vector<16xf32> to vector<16x1xf32>
    %cst_9 = arith.constant 0.020833334 : f32
    %11 = vector.broadcast %cst_9 : f32 to vector<16x1xf32>
    %12 = arith.mulf %10, %11 : vector<16x1xf32>
    %13 = vector.broadcast %12 : vector<16x1xf32> to vector<16x128xf32>
    %14 = arith.subf %3, %13 : vector<16x128xf32>
    %cst_10 = arith.constant 0.000000e+00 : f32
    %15 = vector.broadcast %cst_10 : f32 to vector<16x128xf32>
    %16 = arith.select %2, %14, %15 : vector<16x128xi1>, vector<16x128xf32>
    %17 = arith.mulf %16, %16 : vector<16x128xf32>
    %cst_11 = arith.constant dense<0.000000e+00> : vector<16xf32>
    %18 = vector.multi_reduction <add>, %17, %cst_11 [1] : vector<16x128xf32> to vector<16xf32>
    %19 = vector.shape_cast %18 : vector<16xf32> to vector<16x1xf32>
    %cst_12 = arith.constant 0.0212765951 : f32
    %20 = vector.broadcast %cst_12 : f32 to vector<16x1xf32>
    %21 = arith.mulf %19, %20 : vector<16x1xf32>
    %22 = math.sqrt %21 : vector<16x1xf32>
    %cst_13 = arith.constant 9.99999997E-7 : f32
    %23 = vector.broadcast %cst_13 : f32 to vector<16x1xf32>
    %24 = arith.addf %22, %23 : vector<16x1xf32>
    %cst_14 = arith.constant 1.000000e+00 : f32
    %25 = vector.broadcast %cst_14 : f32 to vector<16x1xf32>
    %26 = arith.divf %25, %24 : vector<16x1xf32>
    %27 = vector.broadcast %26 : vector<16x1xf32> to vector<16x128xf32>
    %28 = arith.mulf %16, %27 : vector<16x128xf32>
    %29 = vector.broadcast %6 : vector<1x128xf32> to vector<16x128xf32>
    %30 = arith.mulf %29, %28 : vector<16x128xf32>
    %31 = vector.broadcast %8 : vector<1x128xf32> to vector<16x128xf32>
    %32 = arith.addf %30, %31 : vector<16x128xf32>
    %33 = arith.truncf %32 : vector<16x128xf32> to vector<16x128xbf16>
    %c0_15 = arith.constant 0 : index
    %c0_16 = arith.constant 0 : index
    %c0_17 = arith.constant 0 : index
    %34 = vector.load %arg2[%c0_15, %c0_16, %c0_17] : memref<4x128x1152xbf16, #tpu.memory_space<vmem>>, vector<1x128x1152xbf16>
    %35 = vector.shape_cast %34 : vector<1x128x1152xbf16> to vector<128x1152xbf16>
    %cst_18 = arith.constant dense<0.000000e+00> : vector<16x1152xf32>
    %36 = tpu.matmul %33, %35, %cst_18 {dimension_numbers = #tpu.dot_dimension_numbers<[1], [0], [0], [1], [0, 0, 1, 1], [], []>} : vector<16x128xbf16>, vector<128x1152xbf16>, vector<16x1152xf32> -> vector<16x1152xf32>
    %c0_19 = arith.constant 0 : index
    %c0_20 = arith.constant 0 : index
    %c0_21 = arith.constant 0 : index
    %37 = vector.load %arg3[%c0_19, %c0_20, %c0_21] : memref<4x1x1152xf32, #tpu.memory_space<vmem>>, vector<1x1x1152xf32>
    %38 = vector.shape_cast %37 : vector<1x1x1152xf32> to vector<1x1152xf32>
    %39 = vector.broadcast %38 : vector<1x1152xf32> to vector<16x1152xf32>
    %40 = arith.addf %36, %39 : vector<16x1152xf32>
    %41 = arith.truncf %40 : vector<16x1152xf32> to vector<16x1152xbf16>
    %cst_22 = arith.constant 0.000000e+00 : f32
    %42 = vector.broadcast %cst_22 : f32 to vector<16x128xf32>
    %43 = vector.extract_strided_slice %41 {offsets = [0, 0], sizes = [16, 128], strides = [1, 1]} : vector<16x1152xbf16> to vector<16x128xbf16>
    %44 = vector.extract_strided_slice %41 {offsets = [0, 384], sizes = [16, 128], strides = [1, 1]} : vector<16x1152xbf16> to vector<16x128xbf16>
    %45 = vector.extract_strided_slice %41 {offsets = [0, 768], sizes = [16, 128], strides = [1, 1]} : vector<16x1152xbf16> to vector<16x128xbf16>
    %cst_23 = arith.constant dense<0.000000e+00> : vector<16x16xf32>
    %46 = tpu.matmul %43, %44, %cst_23 {dimension_numbers = #tpu.dot_dimension_numbers<[1], [1], [0], [0], [0, 0, 1, 0], [], []>} : vector<16x128xbf16>, vector<16x128xbf16>, vector<16x16xf32> -> vector<16x16xf32>
    %47 = arith.addf %46, %4 : vector<16x16xf32>
    %cst_24 = arith.constant dense<0xFF800000> : vector<16xf32>
    %48 = vector.multi_reduction <maximumf>, %47, %cst_24 [1] : vector<16x16xf32> to vector<16xf32>
    %49 = vector.shape_cast %48 : vector<16xf32> to vector<16x1xf32>
    %50 = vector.broadcast %49 : vector<16x1xf32> to vector<16x16xf32>
    %51 = arith.subf %47, %50 : vector<16x16xf32>
    %52 = math.exp %51 : vector<16x16xf32>
    %cst_25 = arith.constant dense<0.000000e+00> : vector<16xf32>
    %53 = vector.multi_reduction <add>, %52, %cst_25 [1] : vector<16x16xf32> to vector<16xf32>
    %54 = vector.shape_cast %53 : vector<16xf32> to vector<16x1xf32>
    %55 = tpu.reciprocal %54 {approx = true} : vector<16x1xf32> -> vector<16x1xf32>
    %56 = vector.broadcast %55 : vector<16x1xf32> to vector<16x16xf32>
    %57 = arith.mulf %52, %56 : vector<16x16xf32>
    %58 = arith.truncf %57 : vector<16x16xf32> to vector<16x16xbf16>
    %cst_26 = arith.constant dense<0.000000e+00> : vector<16x128xf32>
    %59 = tpu.matmul %58, %45, %cst_26 {dimension_numbers = #tpu.dot_dimension_numbers<[1], [0], [0], [1], [0, 0, 1, 1], [], []>} : vector<16x16xbf16>, vector<16x128xbf16>, vector<16x128xf32> -> vector<16x128xf32>
    %60 = arith.truncf %59 : vector<16x128xf32> to vector<16x128xbf16>
    %c0_27 = arith.constant 0 : index
    %c0_28 = arith.constant 0 : index
    %c0_29 = arith.constant 0 : index
    %c0_30 = arith.constant 0 : index
    %61 = vector.load %arg4[%c0_27, %c0_28, %c0_29, %c0_30] : memref<4x3x128x128xbf16, #tpu.memory_space<vmem>>, vector<1x1x128x128xbf16>
    %62 = vector.shape_cast %61 : vector<1x1x128x128xbf16> to vector<128x128xbf16>
    %cst_31 = arith.constant dense<0.000000e+00> : vector<16x128xf32>
    %63 = tpu.matmul %60, %62, %cst_31 {dimension_numbers = #tpu.dot_dimension_numbers<[1], [0], [0], [1], [0, 0, 1, 1], [], []>} : vector<16x128xbf16>, vector<128x128xbf16>, vector<16x128xf32> -> vector<16x128xf32>
    %64 = arith.addf %42, %63 : vector<16x128xf32>
    %65 = vector.extract_strided_slice %41 {offsets = [0, 128], sizes = [16, 128], strides = [1, 1]} : vector<16x1152xbf16> to vector<16x128xbf16>
    %66 = vector.extract_strided_slice %41 {offsets = [0, 512], sizes = [16, 128], strides = [1, 1]} : vector<16x1152xbf16> to vector<16x128xbf16>
    %67 = vector.extract_strided_slice %41 {offsets = [0, 896], sizes = [16, 128], strides = [1, 1]} : vector<16x1152xbf16> to vector<16x128xbf16>
    %cst_32 = arith.constant dense<0.000000e+00> : vector<16x16xf32>
    %68 = tpu.matmul %65, %66, %cst_32 {dimension_numbers = #tpu.dot_dimension_numbers<[1], [1], [0], [0], [0, 0, 1, 0], [], []>} : vector<16x128xbf16>, vector<16x128xbf16>, vector<16x16xf32> -> vector<16x16xf32>
    %69 = arith.addf %68, %4 : vector<16x16xf32>
    %cst_33 = arith.constant dense<0xFF800000> : vector<16xf32>
    %70 = vector.multi_reduction <maximumf>, %69, %cst_33 [1] : vector<16x16xf32> to vector<16xf32>
    %71 = vector.shape_cast %70 : vector<16xf32> to vector<16x1xf32>
    %72 = vector.broadcast %71 : vector<16x1xf32> to vector<16x16xf32>
    %73 = arith.subf %69, %72 : vector<16x16xf32>
    %74 = math.exp %73 : vector<16x16xf32>
    %cst_34 = arith.constant dense<0.000000e+00> : vector<16xf32>
    %75 = vector.multi_reduction <add>, %74, %cst_34 [1] : vector<16x16xf32> to vector<16xf32>
    %76 = vector.shape_cast %75 : vector<16xf32> to vector<16x1xf32>
    %77 = tpu.reciprocal %76 {approx = true} : vector<16x1xf32> -> vector<16x1xf32>
    %78 = vector.broadcast %77 : vector<16x1xf32> to vector<16x16xf32>
    %79 = arith.mulf %74, %78 : vector<16x16xf32>
    %80 = arith.truncf %79 : vector<16x16xf32> to vector<16x16xbf16>
    %cst_35 = arith.constant dense<0.000000e+00> : vector<16x128xf32>
    %81 = tpu.matmul %80, %67, %cst_35 {dimension_numbers = #tpu.dot_dimension_numbers<[1], [0], [0], [1], [0, 0, 1, 1], [], []>} : vector<16x16xbf16>, vector<16x128xbf16>, vector<16x128xf32> -> vector<16x128xf32>
    %82 = arith.truncf %81 : vector<16x128xf32> to vector<16x128xbf16>
    %c0_36 = arith.constant 0 : index
    %c1 = arith.constant 1 : index
    %c0_37 = arith.constant 0 : index
    %c0_38 = arith.constant 0 : index
    %83 = vector.load %arg4[%c0_36, %c1, %c0_37, %c0_38] : memref<4x3x128x128xbf16, #tpu.memory_space<vmem>>, vector<1x1x128x128xbf16>
    %84 = vector.shape_cast %83 : vector<1x1x128x128xbf16> to vector<128x128xbf16>
    %cst_39 = arith.constant dense<0.000000e+00> : vector<16x128xf32>
    %85 = tpu.matmul %82, %84, %cst_39 {dimension_numbers = #tpu.dot_dimension_numbers<[1], [0], [0], [1], [0, 0, 1, 1], [], []>} : vector<16x128xbf16>, vector<128x128xbf16>, vector<16x128xf32> -> vector<16x128xf32>
    %86 = arith.addf %64, %85 : vector<16x128xf32>
    %87 = vector.extract_strided_slice %41 {offsets = [0, 256], sizes = [16, 128], strides = [1, 1]} : vector<16x1152xbf16> to vector<16x128xbf16>
    %88 = vector.extract_strided_slice %41 {offsets = [0, 640], sizes = [16, 128], strides = [1, 1]} : vector<16x1152xbf16> to vector<16x128xbf16>
    %89 = vector.extract_strided_slice %41 {offsets = [0, 1024], sizes = [16, 128], strides = [1, 1]} : vector<16x1152xbf16> to vector<16x128xbf16>
    %cst_40 = arith.constant dense<0.000000e+00> : vector<16x16xf32>
    %90 = tpu.matmul %87, %88, %cst_40 {dimension_numbers = #tpu.dot_dimension_numbers<[1], [1], [0], [0], [0, 0, 1, 0], [], []>} : vector<16x128xbf16>, vector<16x128xbf16>, vector<16x16xf32> -> vector<16x16xf32>
    %91 = arith.addf %90, %4 : vector<16x16xf32>
    %cst_41 = arith.constant dense<0xFF800000> : vector<16xf32>
    %92 = vector.multi_reduction <maximumf>, %91, %cst_41 [1] : vector<16x16xf32> to vector<16xf32>
    %93 = vector.shape_cast %92 : vector<16xf32> to vector<16x1xf32>
    %94 = vector.broadcast %93 : vector<16x1xf32> to vector<16x16xf32>
    %95 = arith.subf %91, %94 : vector<16x16xf32>
    %96 = math.exp %95 : vector<16x16xf32>
    %cst_42 = arith.constant dense<0.000000e+00> : vector<16xf32>
    %97 = vector.multi_reduction <add>, %96, %cst_42 [1] : vector<16x16xf32> to vector<16xf32>
    %98 = vector.shape_cast %97 : vector<16xf32> to vector<16x1xf32>
    %99 = tpu.reciprocal %98 {approx = true} : vector<16x1xf32> -> vector<16x1xf32>
    %100 = vector.broadcast %99 : vector<16x1xf32> to vector<16x16xf32>
    %101 = arith.mulf %96, %100 : vector<16x16xf32>
    %102 = arith.truncf %101 : vector<16x16xf32> to vector<16x16xbf16>
    %cst_43 = arith.constant dense<0.000000e+00> : vector<16x128xf32>
    %103 = tpu.matmul %102, %89, %cst_43 {dimension_numbers = #tpu.dot_dimension_numbers<[1], [0], [0], [1], [0, 0, 1, 1], [], []>} : vector<16x16xbf16>, vector<16x128xbf16>, vector<16x128xf32> -> vector<16x128xf32>
    %104 = arith.truncf %103 : vector<16x128xf32> to vector<16x128xbf16>
    %c0_44 = arith.constant 0 : index
    %c2 = arith.constant 2 : index
    %c0_45 = arith.constant 0 : index
    %c0_46 = arith.constant 0 : index
    %105 = vector.load %arg4[%c0_44, %c2, %c0_45, %c0_46] : memref<4x3x128x128xbf16, #tpu.memory_space<vmem>>, vector<1x1x128x128xbf16>
    %106 = vector.shape_cast %105 : vector<1x1x128x128xbf16> to vector<128x128xbf16>
    %cst_47 = arith.constant dense<0.000000e+00> : vector<16x128xf32>
    %107 = tpu.matmul %104, %106, %cst_47 {dimension_numbers = #tpu.dot_dimension_numbers<[1], [0], [0], [1], [0, 0, 1, 1], [], []>} : vector<16x128xbf16>, vector<128x128xbf16>, vector<16x128xf32> -> vector<16x128xf32>
    %108 = arith.addf %86, %107 : vector<16x128xf32>
    %109 = arith.addf %3, %108 : vector<16x128xf32>
    %c0_48 = arith.constant 0 : index
    %c0_49 = arith.constant 0 : index
    %c0_50 = arith.constant 0 : index
    %110 = vector.load %arg5[%c0_48, %c0_49, %c0_50] : memref<4x1x128xf32, #tpu.memory_space<vmem>>, vector<1x1x128xf32>
    %111 = vector.shape_cast %110 : vector<1x1x128xf32> to vector<1x128xf32>
    %112 = vector.broadcast %111 : vector<1x128xf32> to vector<16x128xf32>
    %113 = arith.addf %109, %112 : vector<16x128xf32>
    %c0_51 = arith.constant 0 : index
    %c0_52 = arith.constant 0 : index
    %c0_53 = arith.constant 0 : index
    %114 = vector.load %arg12[%c0_51, %c0_52, %c0_53] : memref<4x1x128xf32, #tpu.memory_space<vmem>>, vector<1x1x128xf32>
    %115 = vector.shape_cast %114 : vector<1x1x128xf32> to vector<1x128xf32>
    %c0_54 = arith.constant 0 : index
    %c0_55 = arith.constant 0 : index
    %c0_56 = arith.constant 0 : index
    %116 = vector.load %arg13[%c0_54, %c0_55, %c0_56] : memref<4x1x128xf32, #tpu.memory_space<vmem>>, vector<1x1x128xf32>
    %117 = vector.shape_cast %116 : vector<1x1x128xf32> to vector<1x128xf32>
    %cst_57 = arith.constant dense<0.000000e+00> : vector<16xf32>
    %118 = vector.multi_reduction <add>, %113, %cst_57 [1] : vector<16x128xf32> to vector<16xf32>
    %119 = vector.shape_cast %118 : vector<16xf32> to vector<16x1xf32>
    %cst_58 = arith.constant 0.020833334 : f32
    %120 = vector.broadcast %cst_58 : f32 to vector<16x1xf32>
    %121 = arith.mulf %119, %120 : vector<16x1xf32>
    %122 = vector.broadcast %121 : vector<16x1xf32> to vector<16x128xf32>
    %123 = arith.subf %113, %122 : vector<16x128xf32>
    %cst_59 = arith.constant 0.000000e+00 : f32
    %124 = vector.broadcast %cst_59 : f32 to vector<16x128xf32>
    %125 = arith.select %2, %123, %124 : vector<16x128xi1>, vector<16x128xf32>
    %126 = arith.mulf %125, %125 : vector<16x128xf32>
    %cst_60 = arith.constant dense<0.000000e+00> : vector<16xf32>
    %127 = vector.multi_reduction <add>, %126, %cst_60 [1] : vector<16x128xf32> to vector<16xf32>
    %128 = vector.shape_cast %127 : vector<16xf32> to vector<16x1xf32>
    %cst_61 = arith.constant 0.0212765951 : f32
    %129 = vector.broadcast %cst_61 : f32 to vector<16x1xf32>
    %130 = arith.mulf %128, %129 : vector<16x1xf32>
    %131 = math.sqrt %130 : vector<16x1xf32>
    %cst_62 = arith.constant 9.99999997E-7 : f32
    %132 = vector.broadcast %cst_62 : f32 to vector<16x1xf32>
    %133 = arith.addf %131, %132 : vector<16x1xf32>
    %cst_63 = arith.constant 1.000000e+00 : f32
    %134 = vector.broadcast %cst_63 : f32 to vector<16x1xf32>
    %135 = arith.divf %134, %133 : vector<16x1xf32>
    %136 = vector.broadcast %135 : vector<16x1xf32> to vector<16x128xf32>
    %137 = arith.mulf %125, %136 : vector<16x128xf32>
    %138 = vector.broadcast %115 : vector<1x128xf32> to vector<16x128xf32>
    %139 = arith.mulf %138, %137 : vector<16x128xf32>
    %140 = vector.broadcast %117 : vector<1x128xf32> to vector<16x128xf32>
    %141 = arith.addf %139, %140 : vector<16x128xf32>
    %142 = arith.truncf %141 : vector<16x128xf32> to vector<16x128xbf16>
    %c0_64 = arith.constant 0 : index
    %c0_65 = arith.constant 0 : index
    %c0_66 = arith.constant 0 : index
    %143 = vector.load %arg6[%c0_64, %c0_65, %c0_66] : memref<4x128x128xbf16, #tpu.memory_space<vmem>>, vector<1x128x128xbf16>
    %144 = vector.shape_cast %143 : vector<1x128x128xbf16> to vector<128x128xbf16>
    %cst_67 = arith.constant dense<0.000000e+00> : vector<16x128xf32>
    %145 = tpu.matmul %142, %144, %cst_67 {dimension_numbers = #tpu.dot_dimension_numbers<[1], [0], [0], [1], [0, 0, 1, 1], [], []>} : vector<16x128xbf16>, vector<128x128xbf16>, vector<16x128xf32> -> vector<16x128xf32>
    %c0_68 = arith.constant 0 : index
    %c0_69 = arith.constant 0 : index
    %c0_70 = arith.constant 0 : index
    %146 = vector.load %arg7[%c0_68, %c0_69, %c0_70] : memref<4x1x128xf32, #tpu.memory_space<vmem>>, vector<1x1x128xf32>
    %147 = vector.shape_cast %146 : vector<1x1x128xf32> to vector<1x128xf32>
    %148 = vector.broadcast %147 : vector<1x128xf32> to vector<16x128xf32>
    %149 = arith.addf %145, %148 : vector<16x128xf32>
    %cst_71 = arith.constant 0.000000e+00 : f32
    %150 = vector.broadcast %cst_71 : f32 to vector<16x128xf32>
    %151 = arith.maximumf %149, %150 : vector<16x128xf32>
    %152 = arith.truncf %151 : vector<16x128xf32> to vector<16x128xbf16>
    %c0_72 = arith.constant 0 : index
    %c0_73 = arith.constant 0 : index
    %c0_74 = arith.constant 0 : index
    %153 = vector.load %arg8[%c0_72, %c0_73, %c0_74] : memref<4x128x128xbf16, #tpu.memory_space<vmem>>, vector<1x128x128xbf16>
    %154 = vector.shape_cast %153 : vector<1x128x128xbf16> to vector<128x128xbf16>
    %cst_75 = arith.constant dense<0.000000e+00> : vector<16x128xf32>
    %155 = tpu.matmul %152, %154, %cst_75 {dimension_numbers = #tpu.dot_dimension_numbers<[1], [0], [0], [1], [0, 0, 1, 1], [], []>} : vector<16x128xbf16>, vector<128x128xbf16>, vector<16x128xf32> -> vector<16x128xf32>
    %156 = arith.addf %113, %155 : vector<16x128xf32>
    %c0_76 = arith.constant 0 : index
    %c0_77 = arith.constant 0 : index
    %c0_78 = arith.constant 0 : index
    %157 = vector.load %arg9[%c0_76, %c0_77, %c0_78] : memref<4x1x128xf32, #tpu.memory_space<vmem>>, vector<1x1x128xf32>
    %158 = vector.shape_cast %157 : vector<1x1x128xf32> to vector<1x128xf32>
    %159 = vector.broadcast %158 : vector<1x128xf32> to vector<16x128xf32>
    %160 = arith.addf %156, %159 : vector<16x128xf32>
    %c1_79 = arith.constant 1 : index
    %c0_80 = arith.constant 0 : index
    %c0_81 = arith.constant 0 : index
    %161 = vector.load %arg10[%c1_79, %c0_80, %c0_81] : memref<4x1x128xf32, #tpu.memory_space<vmem>>, vector<1x1x128xf32>
    %162 = vector.shape_cast %161 : vector<1x1x128xf32> to vector<1x128xf32>
    %c1_82 = arith.constant 1 : index
    %c0_83 = arith.constant 0 : index
    %c0_84 = arith.constant 0 : index
    %163 = vector.load %arg11[%c1_82, %c0_83, %c0_84] : memref<4x1x128xf32, #tpu.memory_space<vmem>>, vector<1x1x128xf32>
    %164 = vector.shape_cast %163 : vector<1x1x128xf32> to vector<1x128xf32>
    %cst_85 = arith.constant dense<0.000000e+00> : vector<16xf32>
    %165 = vector.multi_reduction <add>, %160, %cst_85 [1] : vector<16x128xf32> to vector<16xf32>
    %166 = vector.shape_cast %165 : vector<16xf32> to vector<16x1xf32>
    %cst_86 = arith.constant 0.020833334 : f32
    %167 = vector.broadcast %cst_86 : f32 to vector<16x1xf32>
    %168 = arith.mulf %166, %167 : vector<16x1xf32>
    %169 = vector.broadcast %168 : vector<16x1xf32> to vector<16x128xf32>
    %170 = arith.subf %160, %169 : vector<16x128xf32>
    %cst_87 = arith.constant 0.000000e+00 : f32
    %171 = vector.broadcast %cst_87 : f32 to vector<16x128xf32>
    %172 = arith.select %2, %170, %171 : vector<16x128xi1>, vector<16x128xf32>
    %173 = arith.mulf %172, %172 : vector<16x128xf32>
    %cst_88 = arith.constant dense<0.000000e+00> : vector<16xf32>
    %174 = vector.multi_reduction <add>, %173, %cst_88 [1] : vector<16x128xf32> to vector<16xf32>
    %175 = vector.shape_cast %174 : vector<16xf32> to vector<16x1xf32>
    %cst_89 = arith.constant 0.0212765951 : f32
    %176 = vector.broadcast %cst_89 : f32 to vector<16x1xf32>
    %177 = arith.mulf %175, %176 : vector<16x1xf32>
    %178 = math.sqrt %177 : vector<16x1xf32>
    %cst_90 = arith.constant 9.99999997E-7 : f32
    %179 = vector.broadcast %cst_90 : f32 to vector<16x1xf32>
    %180 = arith.addf %178, %179 : vector<16x1xf32>
    %cst_91 = arith.constant 1.000000e+00 : f32
    %181 = vector.broadcast %cst_91 : f32 to vector<16x1xf32>
    %182 = arith.divf %181, %180 : vector<16x1xf32>
    %183 = vector.broadcast %182 : vector<16x1xf32> to vector<16x128xf32>
    %184 = arith.mulf %172, %183 : vector<16x128xf32>
    %185 = vector.broadcast %162 : vector<1x128xf32> to vector<16x128xf32>
    %186 = arith.mulf %185, %184 : vector<16x128xf32>
    %187 = vector.broadcast %164 : vector<1x128xf32> to vector<16x128xf32>
    %188 = arith.addf %186, %187 : vector<16x128xf32>
    %189 = arith.truncf %188 : vector<16x128xf32> to vector<16x128xbf16>
    %c1_92 = arith.constant 1 : index
    %c0_93 = arith.constant 0 : index
    %c0_94 = arith.constant 0 : index
    %190 = vector.load %arg2[%c1_92, %c0_93, %c0_94] : memref<4x128x1152xbf16, #tpu.memory_space<vmem>>, vector<1x128x1152xbf16>
    %191 = vector.shape_cast %190 : vector<1x128x1152xbf16> to vector<128x1152xbf16>
    %cst_95 = arith.constant dense<0.000000e+00> : vector<16x1152xf32>
    %192 = tpu.matmul %189, %191, %cst_95 {dimension_numbers = #tpu.dot_dimension_numbers<[1], [0], [0], [1], [0, 0, 1, 1], [], []>} : vector<16x128xbf16>, vector<128x1152xbf16>, vector<16x1152xf32> -> vector<16x1152xf32>
    %c1_96 = arith.constant 1 : index
    %c0_97 = arith.constant 0 : index
    %c0_98 = arith.constant 0 : index
    %193 = vector.load %arg3[%c1_96, %c0_97, %c0_98] : memref<4x1x1152xf32, #tpu.memory_space<vmem>>, vector<1x1x1152xf32>
    %194 = vector.shape_cast %193 : vector<1x1x1152xf32> to vector<1x1152xf32>
    %195 = vector.broadcast %194 : vector<1x1152xf32> to vector<16x1152xf32>
    %196 = arith.addf %192, %195 : vector<16x1152xf32>
    %197 = arith.truncf %196 : vector<16x1152xf32> to vector<16x1152xbf16>
    %cst_99 = arith.constant 0.000000e+00 : f32
    %198 = vector.broadcast %cst_99 : f32 to vector<16x128xf32>
    %199 = vector.extract_strided_slice %197 {offsets = [0, 0], sizes = [16, 128], strides = [1, 1]} : vector<16x1152xbf16> to vector<16x128xbf16>
    %200 = vector.extract_strided_slice %197 {offsets = [0, 384], sizes = [16, 128], strides = [1, 1]} : vector<16x1152xbf16> to vector<16x128xbf16>
    %201 = vector.extract_strided_slice %197 {offsets = [0, 768], sizes = [16, 128], strides = [1, 1]} : vector<16x1152xbf16> to vector<16x128xbf16>
    %cst_100 = arith.constant dense<0.000000e+00> : vector<16x16xf32>
    %202 = tpu.matmul %199, %200, %cst_100 {dimension_numbers = #tpu.dot_dimension_numbers<[1], [1], [0], [0], [0, 0, 1, 0], [], []>} : vector<16x128xbf16>, vector<16x128xbf16>, vector<16x16xf32> -> vector<16x16xf32>
    %203 = arith.addf %202, %4 : vector<16x16xf32>
    %cst_101 = arith.constant dense<0xFF800000> : vector<16xf32>
    %204 = vector.multi_reduction <maximumf>, %203, %cst_101 [1] : vector<16x16xf32> to vector<16xf32>
    %205 = vector.shape_cast %204 : vector<16xf32> to vector<16x1xf32>
    %206 = vector.broadcast %205 : vector<16x1xf32> to vector<16x16xf32>
    %207 = arith.subf %203, %206 : vector<16x16xf32>
    %208 = math.exp %207 : vector<16x16xf32>
    %cst_102 = arith.constant dense<0.000000e+00> : vector<16xf32>
    %209 = vector.multi_reduction <add>, %208, %cst_102 [1] : vector<16x16xf32> to vector<16xf32>
    %210 = vector.shape_cast %209 : vector<16xf32> to vector<16x1xf32>
    %211 = tpu.reciprocal %210 {approx = true} : vector<16x1xf32> -> vector<16x1xf32>
    %212 = vector.broadcast %211 : vector<16x1xf32> to vector<16x16xf32>
    %213 = arith.mulf %208, %212 : vector<16x16xf32>
    %214 = arith.truncf %213 : vector<16x16xf32> to vector<16x16xbf16>
    %cst_103 = arith.constant dense<0.000000e+00> : vector<16x128xf32>
    %215 = tpu.matmul %214, %201, %cst_103 {dimension_numbers = #tpu.dot_dimension_numbers<[1], [0], [0], [1], [0, 0, 1, 1], [], []>} : vector<16x16xbf16>, vector<16x128xbf16>, vector<16x128xf32> -> vector<16x128xf32>
    %216 = arith.truncf %215 : vector<16x128xf32> to vector<16x128xbf16>
    %c1_104 = arith.constant 1 : index
    %c0_105 = arith.constant 0 : index
    %c0_106 = arith.constant 0 : index
    %c0_107 = arith.constant 0 : index
    %217 = vector.load %arg4[%c1_104, %c0_105, %c0_106, %c0_107] : memref<4x3x128x128xbf16, #tpu.memory_space<vmem>>, vector<1x1x128x128xbf16>
    %218 = vector.shape_cast %217 : vector<1x1x128x128xbf16> to vector<128x128xbf16>
    %cst_108 = arith.constant dense<0.000000e+00> : vector<16x128xf32>
    %219 = tpu.matmul %216, %218, %cst_108 {dimension_numbers = #tpu.dot_dimension_numbers<[1], [0], [0], [1], [0, 0, 1, 1], [], []>} : vector<16x128xbf16>, vector<128x128xbf16>, vector<16x128xf32> -> vector<16x128xf32>
    %220 = arith.addf %198, %219 : vector<16x128xf32>
    %221 = vector.extract_strided_slice %197 {offsets = [0, 128], sizes = [16, 128], strides = [1, 1]} : vector<16x1152xbf16> to vector<16x128xbf16>
    %222 = vector.extract_strided_slice %197 {offsets = [0, 512], sizes = [16, 128], strides = [1, 1]} : vector<16x1152xbf16> to vector<16x128xbf16>
    %223 = vector.extract_strided_slice %197 {offsets = [0, 896], sizes = [16, 128], strides = [1, 1]} : vector<16x1152xbf16> to vector<16x128xbf16>
    %cst_109 = arith.constant dense<0.000000e+00> : vector<16x16xf32>
    %224 = tpu.matmul %221, %222, %cst_109 {dimension_numbers = #tpu.dot_dimension_numbers<[1], [1], [0], [0], [0, 0, 1, 0], [], []>} : vector<16x128xbf16>, vector<16x128xbf16>, vector<16x16xf32> -> vector<16x16xf32>
    %225 = arith.addf %224, %4 : vector<16x16xf32>
    %cst_110 = arith.constant dense<0xFF800000> : vector<16xf32>
    %226 = vector.multi_reduction <maximumf>, %225, %cst_110 [1] : vector<16x16xf32> to vector<16xf32>
    %227 = vector.shape_cast %226 : vector<16xf32> to vector<16x1xf32>
    %228 = vector.broadcast %227 : vector<16x1xf32> to vector<16x16xf32>
    %229 = arith.subf %225, %228 : vector<16x16xf32>
    %230 = math.exp %229 : vector<16x16xf32>
    %cst_111 = arith.constant dense<0.000000e+00> : vector<16xf32>
    %231 = vector.multi_reduction <add>, %230, %cst_111 [1] : vector<16x16xf32> to vector<16xf32>
    %232 = vector.shape_cast %231 : vector<16xf32> to vector<16x1xf32>
    %233 = tpu.reciprocal %232 {approx = true} : vector<16x1xf32> -> vector<16x1xf32>
    %234 = vector.broadcast %233 : vector<16x1xf32> to vector<16x16xf32>
    %235 = arith.mulf %230, %234 : vector<16x16xf32>
    %236 = arith.truncf %235 : vector<16x16xf32> to vector<16x16xbf16>
    %cst_112 = arith.constant dense<0.000000e+00> : vector<16x128xf32>
    %237 = tpu.matmul %236, %223, %cst_112 {dimension_numbers = #tpu.dot_dimension_numbers<[1], [0], [0], [1], [0, 0, 1, 1], [], []>} : vector<16x16xbf16>, vector<16x128xbf16>, vector<16x128xf32> -> vector<16x128xf32>
    %238 = arith.truncf %237 : vector<16x128xf32> to vector<16x128xbf16>
    %c1_113 = arith.constant 1 : index
    %c1_114 = arith.constant 1 : index
    %c0_115 = arith.constant 0 : index
    %c0_116 = arith.constant 0 : index
    %239 = vector.load %arg4[%c1_113, %c1_114, %c0_115, %c0_116] : memref<4x3x128x128xbf16, #tpu.memory_space<vmem>>, vector<1x1x128x128xbf16>
    %240 = vector.shape_cast %239 : vector<1x1x128x128xbf16> to vector<128x128xbf16>
    %cst_117 = arith.constant dense<0.000000e+00> : vector<16x128xf32>
    %241 = tpu.matmul %238, %240, %cst_117 {dimension_numbers = #tpu.dot_dimension_numbers<[1], [0], [0], [1], [0, 0, 1, 1], [], []>} : vector<16x128xbf16>, vector<128x128xbf16>, vector<16x128xf32> -> vector<16x128xf32>
    %242 = arith.addf %220, %241 : vector<16x128xf32>
    %243 = vector.extract_strided_slice %197 {offsets = [0, 256], sizes = [16, 128], strides = [1, 1]} : vector<16x1152xbf16> to vector<16x128xbf16>
    %244 = vector.extract_strided_slice %197 {offsets = [0, 640], sizes = [16, 128], strides = [1, 1]} : vector<16x1152xbf16> to vector<16x128xbf16>
    %245 = vector.extract_strided_slice %197 {offsets = [0, 1024], sizes = [16, 128], strides = [1, 1]} : vector<16x1152xbf16> to vector<16x128xbf16>
    %cst_118 = arith.constant dense<0.000000e+00> : vector<16x16xf32>
    %246 = tpu.matmul %243, %244, %cst_118 {dimension_numbers = #tpu.dot_dimension_numbers<[1], [1], [0], [0], [0, 0, 1, 0], [], []>} : vector<16x128xbf16>, vector<16x128xbf16>, vector<16x16xf32> -> vector<16x16xf32>
    %247 = arith.addf %246, %4 : vector<16x16xf32>
    %cst_119 = arith.constant dense<0xFF800000> : vector<16xf32>
    %248 = vector.multi_reduction <maximumf>, %247, %cst_119 [1] : vector<16x16xf32> to vector<16xf32>
    %249 = vector.shape_cast %248 : vector<16xf32> to vector<16x1xf32>
    %250 = vector.broadcast %249 : vector<16x1xf32> to vector<16x16xf32>
    %251 = arith.subf %247, %250 : vector<16x16xf32>
    %252 = math.exp %251 : vector<16x16xf32>
    %cst_120 = arith.constant dense<0.000000e+00> : vector<16xf32>
    %253 = vector.multi_reduction <add>, %252, %cst_120 [1] : vector<16x16xf32> to vector<16xf32>
    %254 = vector.shape_cast %253 : vector<16xf32> to vector<16x1xf32>
    %255 = tpu.reciprocal %254 {approx = true} : vector<16x1xf32> -> vector<16x1xf32>
    %256 = vector.broadcast %255 : vector<16x1xf32> to vector<16x16xf32>
    %257 = arith.mulf %252, %256 : vector<16x16xf32>
    %258 = arith.truncf %257 : vector<16x16xf32> to vector<16x16xbf16>
    %cst_121 = arith.constant dense<0.000000e+00> : vector<16x128xf32>
    %259 = tpu.matmul %258, %245, %cst_121 {dimension_numbers = #tpu.dot_dimension_numbers<[1], [0], [0], [1], [0, 0, 1, 1], [], []>} : vector<16x16xbf16>, vector<16x128xbf16>, vector<16x128xf32> -> vector<16x128xf32>
    %260 = arith.truncf %259 : vector<16x128xf32> to vector<16x128xbf16>
    %c1_122 = arith.constant 1 : index
    %c2_123 = arith.constant 2 : index
    %c0_124 = arith.constant 0 : index
    %c0_125 = arith.constant 0 : index
    %261 = vector.load %arg4[%c1_122, %c2_123, %c0_124, %c0_125] : memref<4x3x128x128xbf16, #tpu.memory_space<vmem>>, vector<1x1x128x128xbf16>
    %262 = vector.shape_cast %261 : vector<1x1x128x128xbf16> to vector<128x128xbf16>
    %cst_126 = arith.constant dense<0.000000e+00> : vector<16x128xf32>
    %263 = tpu.matmul %260, %262, %cst_126 {dimension_numbers = #tpu.dot_dimension_numbers<[1], [0], [0], [1], [0, 0, 1, 1], [], []>} : vector<16x128xbf16>, vector<128x128xbf16>, vector<16x128xf32> -> vector<16x128xf32>
    %264 = arith.addf %242, %263 : vector<16x128xf32>
    %265 = arith.addf %160, %264 : vector<16x128xf32>
    %c1_127 = arith.constant 1 : index
    %c0_128 = arith.constant 0 : index
    %c0_129 = arith.constant 0 : index
    %266 = vector.load %arg5[%c1_127, %c0_128, %c0_129] : memref<4x1x128xf32, #tpu.memory_space<vmem>>, vector<1x1x128xf32>
    %267 = vector.shape_cast %266 : vector<1x1x128xf32> to vector<1x128xf32>
    %268 = vector.broadcast %267 : vector<1x128xf32> to vector<16x128xf32>
    %269 = arith.addf %265, %268 : vector<16x128xf32>
    %c1_130 = arith.constant 1 : index
    %c0_131 = arith.constant 0 : index
    %c0_132 = arith.constant 0 : index
    %270 = vector.load %arg12[%c1_130, %c0_131, %c0_132] : memref<4x1x128xf32, #tpu.memory_space<vmem>>, vector<1x1x128xf32>
    %271 = vector.shape_cast %270 : vector<1x1x128xf32> to vector<1x128xf32>
    %c1_133 = arith.constant 1 : index
    %c0_134 = arith.constant 0 : index
    %c0_135 = arith.constant 0 : index
    %272 = vector.load %arg13[%c1_133, %c0_134, %c0_135] : memref<4x1x128xf32, #tpu.memory_space<vmem>>, vector<1x1x128xf32>
    %273 = vector.shape_cast %272 : vector<1x1x128xf32> to vector<1x128xf32>
    %cst_136 = arith.constant dense<0.000000e+00> : vector<16xf32>
    %274 = vector.multi_reduction <add>, %269, %cst_136 [1] : vector<16x128xf32> to vector<16xf32>
    %275 = vector.shape_cast %274 : vector<16xf32> to vector<16x1xf32>
    %cst_137 = arith.constant 0.020833334 : f32
    %276 = vector.broadcast %cst_137 : f32 to vector<16x1xf32>
    %277 = arith.mulf %275, %276 : vector<16x1xf32>
    %278 = vector.broadcast %277 : vector<16x1xf32> to vector<16x128xf32>
    %279 = arith.subf %269, %278 : vector<16x128xf32>
    %cst_138 = arith.constant 0.000000e+00 : f32
    %280 = vector.broadcast %cst_138 : f32 to vector<16x128xf32>
    %281 = arith.select %2, %279, %280 : vector<16x128xi1>, vector<16x128xf32>
    %282 = arith.mulf %281, %281 : vector<16x128xf32>
    %cst_139 = arith.constant dense<0.000000e+00> : vector<16xf32>
    %283 = vector.multi_reduction <add>, %282, %cst_139 [1] : vector<16x128xf32> to vector<16xf32>
    %284 = vector.shape_cast %283 : vector<16xf32> to vector<16x1xf32>
    %cst_140 = arith.constant 0.0212765951 : f32
    %285 = vector.broadcast %cst_140 : f32 to vector<16x1xf32>
    %286 = arith.mulf %284, %285 : vector<16x1xf32>
    %287 = math.sqrt %286 : vector<16x1xf32>
    %cst_141 = arith.constant 9.99999997E-7 : f32
    %288 = vector.broadcast %cst_141 : f32 to vector<16x1xf32>
    %289 = arith.addf %287, %288 : vector<16x1xf32>
    %cst_142 = arith.constant 1.000000e+00 : f32
    %290 = vector.broadcast %cst_142 : f32 to vector<16x1xf32>
    %291 = arith.divf %290, %289 : vector<16x1xf32>
    %292 = vector.broadcast %291 : vector<16x1xf32> to vector<16x128xf32>
    %293 = arith.mulf %281, %292 : vector<16x128xf32>
    %294 = vector.broadcast %271 : vector<1x128xf32> to vector<16x128xf32>
    %295 = arith.mulf %294, %293 : vector<16x128xf32>
    %296 = vector.broadcast %273 : vector<1x128xf32> to vector<16x128xf32>
    %297 = arith.addf %295, %296 : vector<16x128xf32>
    %298 = arith.truncf %297 : vector<16x128xf32> to vector<16x128xbf16>
    %c1_143 = arith.constant 1 : index
    %c0_144 = arith.constant 0 : index
    %c0_145 = arith.constant 0 : index
    %299 = vector.load %arg6[%c1_143, %c0_144, %c0_145] : memref<4x128x128xbf16, #tpu.memory_space<vmem>>, vector<1x128x128xbf16>
    %300 = vector.shape_cast %299 : vector<1x128x128xbf16> to vector<128x128xbf16>
    %cst_146 = arith.constant dense<0.000000e+00> : vector<16x128xf32>
    %301 = tpu.matmul %298, %300, %cst_146 {dimension_numbers = #tpu.dot_dimension_numbers<[1], [0], [0], [1], [0, 0, 1, 1], [], []>} : vector<16x128xbf16>, vector<128x128xbf16>, vector<16x128xf32> -> vector<16x128xf32>
    %c1_147 = arith.constant 1 : index
    %c0_148 = arith.constant 0 : index
    %c0_149 = arith.constant 0 : index
    %302 = vector.load %arg7[%c1_147, %c0_148, %c0_149] : memref<4x1x128xf32, #tpu.memory_space<vmem>>, vector<1x1x128xf32>
    %303 = vector.shape_cast %302 : vector<1x1x128xf32> to vector<1x128xf32>
    %304 = vector.broadcast %303 : vector<1x128xf32> to vector<16x128xf32>
    %305 = arith.addf %301, %304 : vector<16x128xf32>
    %cst_150 = arith.constant 0.000000e+00 : f32
    %306 = vector.broadcast %cst_150 : f32 to vector<16x128xf32>
    %307 = arith.maximumf %305, %306 : vector<16x128xf32>
    %308 = arith.truncf %307 : vector<16x128xf32> to vector<16x128xbf16>
    %c1_151 = arith.constant 1 : index
    %c0_152 = arith.constant 0 : index
    %c0_153 = arith.constant 0 : index
    %309 = vector.load %arg8[%c1_151, %c0_152, %c0_153] : memref<4x128x128xbf16, #tpu.memory_space<vmem>>, vector<1x128x128xbf16>
    %310 = vector.shape_cast %309 : vector<1x128x128xbf16> to vector<128x128xbf16>
    %cst_154 = arith.constant dense<0.000000e+00> : vector<16x128xf32>
    %311 = tpu.matmul %308, %310, %cst_154 {dimension_numbers = #tpu.dot_dimension_numbers<[1], [0], [0], [1], [0, 0, 1, 1], [], []>} : vector<16x128xbf16>, vector<128x128xbf16>, vector<16x128xf32> -> vector<16x128xf32>
    %312 = arith.addf %269, %311 : vector<16x128xf32>
    %c1_155 = arith.constant 1 : index
    %c0_156 = arith.constant 0 : index
    %c0_157 = arith.constant 0 : index
    %313 = vector.load %arg9[%c1_155, %c0_156, %c0_157] : memref<4x1x128xf32, #tpu.memory_space<vmem>>, vector<1x1x128xf32>
    %314 = vector.shape_cast %313 : vector<1x1x128xf32> to vector<1x128xf32>
    %315 = vector.broadcast %314 : vector<1x128xf32> to vector<16x128xf32>
    %316 = arith.addf %312, %315 : vector<16x128xf32>
    %c2_158 = arith.constant 2 : index
    %c0_159 = arith.constant 0 : index
    %c0_160 = arith.constant 0 : index
    %317 = vector.load %arg10[%c2_158, %c0_159, %c0_160] : memref<4x1x128xf32, #tpu.memory_space<vmem>>, vector<1x1x128xf32>
    %318 = vector.shape_cast %317 : vector<1x1x128xf32> to vector<1x128xf32>
    %c2_161 = arith.constant 2 : index
    %c0_162 = arith.constant 0 : index
    %c0_163 = arith.constant 0 : index
    %319 = vector.load %arg11[%c2_161, %c0_162, %c0_163] : memref<4x1x128xf32, #tpu.memory_space<vmem>>, vector<1x1x128xf32>
    %320 = vector.shape_cast %319 : vector<1x1x128xf32> to vector<1x128xf32>
    %cst_164 = arith.constant dense<0.000000e+00> : vector<16xf32>
    %321 = vector.multi_reduction <add>, %316, %cst_164 [1] : vector<16x128xf32> to vector<16xf32>
    %322 = vector.shape_cast %321 : vector<16xf32> to vector<16x1xf32>
    %cst_165 = arith.constant 0.020833334 : f32
    %323 = vector.broadcast %cst_165 : f32 to vector<16x1xf32>
    %324 = arith.mulf %322, %323 : vector<16x1xf32>
    %325 = vector.broadcast %324 : vector<16x1xf32> to vector<16x128xf32>
    %326 = arith.subf %316, %325 : vector<16x128xf32>
    %cst_166 = arith.constant 0.000000e+00 : f32
    %327 = vector.broadcast %cst_166 : f32 to vector<16x128xf32>
    %328 = arith.select %2, %326, %327 : vector<16x128xi1>, vector<16x128xf32>
    %329 = arith.mulf %328, %328 : vector<16x128xf32>
    %cst_167 = arith.constant dense<0.000000e+00> : vector<16xf32>
    %330 = vector.multi_reduction <add>, %329, %cst_167 [1] : vector<16x128xf32> to vector<16xf32>
    %331 = vector.shape_cast %330 : vector<16xf32> to vector<16x1xf32>
    %cst_168 = arith.constant 0.0212765951 : f32
    %332 = vector.broadcast %cst_168 : f32 to vector<16x1xf32>
    %333 = arith.mulf %331, %332 : vector<16x1xf32>
    %334 = math.sqrt %333 : vector<16x1xf32>
    %cst_169 = arith.constant 9.99999997E-7 : f32
    %335 = vector.broadcast %cst_169 : f32 to vector<16x1xf32>
    %336 = arith.addf %334, %335 : vector<16x1xf32>
    %cst_170 = arith.constant 1.000000e+00 : f32
    %337 = vector.broadcast %cst_170 : f32 to vector<16x1xf32>
    %338 = arith.divf %337, %336 : vector<16x1xf32>
    %339 = vector.broadcast %338 : vector<16x1xf32> to vector<16x128xf32>
    %340 = arith.mulf %328, %339 : vector<16x128xf32>
    %341 = vector.broadcast %318 : vector<1x128xf32> to vector<16x128xf32>
    %342 = arith.mulf %341, %340 : vector<16x128xf32>
    %343 = vector.broadcast %320 : vector<1x128xf32> to vector<16x128xf32>
    %344 = arith.addf %342, %343 : vector<16x128xf32>
    %345 = arith.truncf %344 : vector<16x128xf32> to vector<16x128xbf16>
    %c2_171 = arith.constant 2 : index
    %c0_172 = arith.constant 0 : index
    %c0_173 = arith.constant 0 : index
    %346 = vector.load %arg2[%c2_171, %c0_172, %c0_173] : memref<4x128x1152xbf16, #tpu.memory_space<vmem>>, vector<1x128x1152xbf16>
    %347 = vector.shape_cast %346 : vector<1x128x1152xbf16> to vector<128x1152xbf16>
    %cst_174 = arith.constant dense<0.000000e+00> : vector<16x1152xf32>
    %348 = tpu.matmul %345, %347, %cst_174 {dimension_numbers = #tpu.dot_dimension_numbers<[1], [0], [0], [1], [0, 0, 1, 1], [], []>} : vector<16x128xbf16>, vector<128x1152xbf16>, vector<16x1152xf32> -> vector<16x1152xf32>
    %c2_175 = arith.constant 2 : index
    %c0_176 = arith.constant 0 : index
    %c0_177 = arith.constant 0 : index
    %349 = vector.load %arg3[%c2_175, %c0_176, %c0_177] : memref<4x1x1152xf32, #tpu.memory_space<vmem>>, vector<1x1x1152xf32>
    %350 = vector.shape_cast %349 : vector<1x1x1152xf32> to vector<1x1152xf32>
    %351 = vector.broadcast %350 : vector<1x1152xf32> to vector<16x1152xf32>
    %352 = arith.addf %348, %351 : vector<16x1152xf32>
    %353 = arith.truncf %352 : vector<16x1152xf32> to vector<16x1152xbf16>
    %cst_178 = arith.constant 0.000000e+00 : f32
    %354 = vector.broadcast %cst_178 : f32 to vector<16x128xf32>
    %355 = vector.extract_strided_slice %353 {offsets = [0, 0], sizes = [16, 128], strides = [1, 1]} : vector<16x1152xbf16> to vector<16x128xbf16>
    %356 = vector.extract_strided_slice %353 {offsets = [0, 384], sizes = [16, 128], strides = [1, 1]} : vector<16x1152xbf16> to vector<16x128xbf16>
    %357 = vector.extract_strided_slice %353 {offsets = [0, 768], sizes = [16, 128], strides = [1, 1]} : vector<16x1152xbf16> to vector<16x128xbf16>
    %cst_179 = arith.constant dense<0.000000e+00> : vector<16x16xf32>
    %358 = tpu.matmul %355, %356, %cst_179 {dimension_numbers = #tpu.dot_dimension_numbers<[1], [1], [0], [0], [0, 0, 1, 0], [], []>} : vector<16x128xbf16>, vector<16x128xbf16>, vector<16x16xf32> -> vector<16x16xf32>
    %359 = arith.addf %358, %4 : vector<16x16xf32>
    %cst_180 = arith.constant dense<0xFF800000> : vector<16xf32>
    %360 = vector.multi_reduction <maximumf>, %359, %cst_180 [1] : vector<16x16xf32> to vector<16xf32>
    %361 = vector.shape_cast %360 : vector<16xf32> to vector<16x1xf32>
    %362 = vector.broadcast %361 : vector<16x1xf32> to vector<16x16xf32>
    %363 = arith.subf %359, %362 : vector<16x16xf32>
    %364 = math.exp %363 : vector<16x16xf32>
    %cst_181 = arith.constant dense<0.000000e+00> : vector<16xf32>
    %365 = vector.multi_reduction <add>, %364, %cst_181 [1] : vector<16x16xf32> to vector<16xf32>
    %366 = vector.shape_cast %365 : vector<16xf32> to vector<16x1xf32>
    %367 = tpu.reciprocal %366 {approx = true} : vector<16x1xf32> -> vector<16x1xf32>
    %368 = vector.broadcast %367 : vector<16x1xf32> to vector<16x16xf32>
    %369 = arith.mulf %364, %368 : vector<16x16xf32>
    %370 = arith.truncf %369 : vector<16x16xf32> to vector<16x16xbf16>
    %cst_182 = arith.constant dense<0.000000e+00> : vector<16x128xf32>
    %371 = tpu.matmul %370, %357, %cst_182 {dimension_numbers = #tpu.dot_dimension_numbers<[1], [0], [0], [1], [0, 0, 1, 1], [], []>} : vector<16x16xbf16>, vector<16x128xbf16>, vector<16x128xf32> -> vector<16x128xf32>
    %372 = arith.truncf %371 : vector<16x128xf32> to vector<16x128xbf16>
    %c2_183 = arith.constant 2 : index
    %c0_184 = arith.constant 0 : index
    %c0_185 = arith.constant 0 : index
    %c0_186 = arith.constant 0 : index
    %373 = vector.load %arg4[%c2_183, %c0_184, %c0_185, %c0_186] : memref<4x3x128x128xbf16, #tpu.memory_space<vmem>>, vector<1x1x128x128xbf16>
    %374 = vector.shape_cast %373 : vector<1x1x128x128xbf16> to vector<128x128xbf16>
    %cst_187 = arith.constant dense<0.000000e+00> : vector<16x128xf32>
    %375 = tpu.matmul %372, %374, %cst_187 {dimension_numbers = #tpu.dot_dimension_numbers<[1], [0], [0], [1], [0, 0, 1, 1], [], []>} : vector<16x128xbf16>, vector<128x128xbf16>, vector<16x128xf32> -> vector<16x128xf32>
    %376 = arith.addf %354, %375 : vector<16x128xf32>
    %377 = vector.extract_strided_slice %353 {offsets = [0, 128], sizes = [16, 128], strides = [1, 1]} : vector<16x1152xbf16> to vector<16x128xbf16>
    %378 = vector.extract_strided_slice %353 {offsets = [0, 512], sizes = [16, 128], strides = [1, 1]} : vector<16x1152xbf16> to vector<16x128xbf16>
    %379 = vector.extract_strided_slice %353 {offsets = [0, 896], sizes = [16, 128], strides = [1, 1]} : vector<16x1152xbf16> to vector<16x128xbf16>
    %cst_188 = arith.constant dense<0.000000e+00> : vector<16x16xf32>
    %380 = tpu.matmul %377, %378, %cst_188 {dimension_numbers = #tpu.dot_dimension_numbers<[1], [1], [0], [0], [0, 0, 1, 0], [], []>} : vector<16x128xbf16>, vector<16x128xbf16>, vector<16x16xf32> -> vector<16x16xf32>
    %381 = arith.addf %380, %4 : vector<16x16xf32>
    %cst_189 = arith.constant dense<0xFF800000> : vector<16xf32>
    %382 = vector.multi_reduction <maximumf>, %381, %cst_189 [1] : vector<16x16xf32> to vector<16xf32>
    %383 = vector.shape_cast %382 : vector<16xf32> to vector<16x1xf32>
    %384 = vector.broadcast %383 : vector<16x1xf32> to vector<16x16xf32>
    %385 = arith.subf %381, %384 : vector<16x16xf32>
    %386 = math.exp %385 : vector<16x16xf32>
    %cst_190 = arith.constant dense<0.000000e+00> : vector<16xf32>
    %387 = vector.multi_reduction <add>, %386, %cst_190 [1] : vector<16x16xf32> to vector<16xf32>
    %388 = vector.shape_cast %387 : vector<16xf32> to vector<16x1xf32>
    %389 = tpu.reciprocal %388 {approx = true} : vector<16x1xf32> -> vector<16x1xf32>
    %390 = vector.broadcast %389 : vector<16x1xf32> to vector<16x16xf32>
    %391 = arith.mulf %386, %390 : vector<16x16xf32>
    %392 = arith.truncf %391 : vector<16x16xf32> to vector<16x16xbf16>
    %cst_191 = arith.constant dense<0.000000e+00> : vector<16x128xf32>
    %393 = tpu.matmul %392, %379, %cst_191 {dimension_numbers = #tpu.dot_dimension_numbers<[1], [0], [0], [1], [0, 0, 1, 1], [], []>} : vector<16x16xbf16>, vector<16x128xbf16>, vector<16x128xf32> -> vector<16x128xf32>
    %394 = arith.truncf %393 : vector<16x128xf32> to vector<16x128xbf16>
    %c2_192 = arith.constant 2 : index
    %c1_193 = arith.constant 1 : index
    %c0_194 = arith.constant 0 : index
    %c0_195 = arith.constant 0 : index
    %395 = vector.load %arg4[%c2_192, %c1_193, %c0_194, %c0_195] : memref<4x3x128x128xbf16, #tpu.memory_space<vmem>>, vector<1x1x128x128xbf16>
    %396 = vector.shape_cast %395 : vector<1x1x128x128xbf16> to vector<128x128xbf16>
    %cst_196 = arith.constant dense<0.000000e+00> : vector<16x128xf32>
    %397 = tpu.matmul %394, %396, %cst_196 {dimension_numbers = #tpu.dot_dimension_numbers<[1], [0], [0], [1], [0, 0, 1, 1], [], []>} : vector<16x128xbf16>, vector<128x128xbf16>, vector<16x128xf32> -> vector<16x128xf32>
    %398 = arith.addf %376, %397 : vector<16x128xf32>
    %399 = vector.extract_strided_slice %353 {offsets = [0, 256], sizes = [16, 128], strides = [1, 1]} : vector<16x1152xbf16> to vector<16x128xbf16>
    %400 = vector.extract_strided_slice %353 {offsets = [0, 640], sizes = [16, 128], strides = [1, 1]} : vector<16x1152xbf16> to vector<16x128xbf16>
    %401 = vector.extract_strided_slice %353 {offsets = [0, 1024], sizes = [16, 128], strides = [1, 1]} : vector<16x1152xbf16> to vector<16x128xbf16>
    %cst_197 = arith.constant dense<0.000000e+00> : vector<16x16xf32>
    %402 = tpu.matmul %399, %400, %cst_197 {dimension_numbers = #tpu.dot_dimension_numbers<[1], [1], [0], [0], [0, 0, 1, 0], [], []>} : vector<16x128xbf16>, vector<16x128xbf16>, vector<16x16xf32> -> vector<16x16xf32>
    %403 = arith.addf %402, %4 : vector<16x16xf32>
    %cst_198 = arith.constant dense<0xFF800000> : vector<16xf32>
    %404 = vector.multi_reduction <maximumf>, %403, %cst_198 [1] : vector<16x16xf32> to vector<16xf32>
    %405 = vector.shape_cast %404 : vector<16xf32> to vector<16x1xf32>
    %406 = vector.broadcast %405 : vector<16x1xf32> to vector<16x16xf32>
    %407 = arith.subf %403, %406 : vector<16x16xf32>
    %408 = math.exp %407 : vector<16x16xf32>
    %cst_199 = arith.constant dense<0.000000e+00> : vector<16xf32>
    %409 = vector.multi_reduction <add>, %408, %cst_199 [1] : vector<16x16xf32> to vector<16xf32>
    %410 = vector.shape_cast %409 : vector<16xf32> to vector<16x1xf32>
    %411 = tpu.reciprocal %410 {approx = true} : vector<16x1xf32> -> vector<16x1xf32>
    %412 = vector.broadcast %411 : vector<16x1xf32> to vector<16x16xf32>
    %413 = arith.mulf %408, %412 : vector<16x16xf32>
    %414 = arith.truncf %413 : vector<16x16xf32> to vector<16x16xbf16>
    %cst_200 = arith.constant dense<0.000000e+00> : vector<16x128xf32>
    %415 = tpu.matmul %414, %401, %cst_200 {dimension_numbers = #tpu.dot_dimension_numbers<[1], [0], [0], [1], [0, 0, 1, 1], [], []>} : vector<16x16xbf16>, vector<16x128xbf16>, vector<16x128xf32> -> vector<16x128xf32>
    %416 = arith.truncf %415 : vector<16x128xf32> to vector<16x128xbf16>
    %c2_201 = arith.constant 2 : index
    %c2_202 = arith.constant 2 : index
    %c0_203 = arith.constant 0 : index
    %c0_204 = arith.constant 0 : index
    %417 = vector.load %arg4[%c2_201, %c2_202, %c0_203, %c0_204] : memref<4x3x128x128xbf16, #tpu.memory_space<vmem>>, vector<1x1x128x128xbf16>
    %418 = vector.shape_cast %417 : vector<1x1x128x128xbf16> to vector<128x128xbf16>
    %cst_205 = arith.constant dense<0.000000e+00> : vector<16x128xf32>
    %419 = tpu.matmul %416, %418, %cst_205 {dimension_numbers = #tpu.dot_dimension_numbers<[1], [0], [0], [1], [0, 0, 1, 1], [], []>} : vector<16x128xbf16>, vector<128x128xbf16>, vector<16x128xf32> -> vector<16x128xf32>
    %420 = arith.addf %398, %419 : vector<16x128xf32>
    %421 = arith.addf %316, %420 : vector<16x128xf32>
    %c2_206 = arith.constant 2 : index
    %c0_207 = arith.constant 0 : index
    %c0_208 = arith.constant 0 : index
    %422 = vector.load %arg5[%c2_206, %c0_207, %c0_208] : memref<4x1x128xf32, #tpu.memory_space<vmem>>, vector<1x1x128xf32>
    %423 = vector.shape_cast %422 : vector<1x1x128xf32> to vector<1x128xf32>
    %424 = vector.broadcast %423 : vector<1x128xf32> to vector<16x128xf32>
    %425 = arith.addf %421, %424 : vector<16x128xf32>
    %c2_209 = arith.constant 2 : index
    %c0_210 = arith.constant 0 : index
    %c0_211 = arith.constant 0 : index
    %426 = vector.load %arg12[%c2_209, %c0_210, %c0_211] : memref<4x1x128xf32, #tpu.memory_space<vmem>>, vector<1x1x128xf32>
    %427 = vector.shape_cast %426 : vector<1x1x128xf32> to vector<1x128xf32>
    %c2_212 = arith.constant 2 : index
    %c0_213 = arith.constant 0 : index
    %c0_214 = arith.constant 0 : index
    %428 = vector.load %arg13[%c2_212, %c0_213, %c0_214] : memref<4x1x128xf32, #tpu.memory_space<vmem>>, vector<1x1x128xf32>
    %429 = vector.shape_cast %428 : vector<1x1x128xf32> to vector<1x128xf32>
    %cst_215 = arith.constant dense<0.000000e+00> : vector<16xf32>
    %430 = vector.multi_reduction <add>, %425, %cst_215 [1] : vector<16x128xf32> to vector<16xf32>
    %431 = vector.shape_cast %430 : vector<16xf32> to vector<16x1xf32>
    %cst_216 = arith.constant 0.020833334 : f32
    %432 = vector.broadcast %cst_216 : f32 to vector<16x1xf32>
    %433 = arith.mulf %431, %432 : vector<16x1xf32>
    %434 = vector.broadcast %433 : vector<16x1xf32> to vector<16x128xf32>
    %435 = arith.subf %425, %434 : vector<16x128xf32>
    %cst_217 = arith.constant 0.000000e+00 : f32
    %436 = vector.broadcast %cst_217 : f32 to vector<16x128xf32>
    %437 = arith.select %2, %435, %436 : vector<16x128xi1>, vector<16x128xf32>
    %438 = arith.mulf %437, %437 : vector<16x128xf32>
    %cst_218 = arith.constant dense<0.000000e+00> : vector<16xf32>
    %439 = vector.multi_reduction <add>, %438, %cst_218 [1] : vector<16x128xf32> to vector<16xf32>
    %440 = vector.shape_cast %439 : vector<16xf32> to vector<16x1xf32>
    %cst_219 = arith.constant 0.0212765951 : f32
    %441 = vector.broadcast %cst_219 : f32 to vector<16x1xf32>
    %442 = arith.mulf %440, %441 : vector<16x1xf32>
    %443 = math.sqrt %442 : vector<16x1xf32>
    %cst_220 = arith.constant 9.99999997E-7 : f32
    %444 = vector.broadcast %cst_220 : f32 to vector<16x1xf32>
    %445 = arith.addf %443, %444 : vector<16x1xf32>
    %cst_221 = arith.constant 1.000000e+00 : f32
    %446 = vector.broadcast %cst_221 : f32 to vector<16x1xf32>
    %447 = arith.divf %446, %445 : vector<16x1xf32>
    %448 = vector.broadcast %447 : vector<16x1xf32> to vector<16x128xf32>
    %449 = arith.mulf %437, %448 : vector<16x128xf32>
    %450 = vector.broadcast %427 : vector<1x128xf32> to vector<16x128xf32>
    %451 = arith.mulf %450, %449 : vector<16x128xf32>
    %452 = vector.broadcast %429 : vector<1x128xf32> to vector<16x128xf32>
    %453 = arith.addf %451, %452 : vector<16x128xf32>
    %454 = arith.truncf %453 : vector<16x128xf32> to vector<16x128xbf16>
    %c2_222 = arith.constant 2 : index
    %c0_223 = arith.constant 0 : index
    %c0_224 = arith.constant 0 : index
    %455 = vector.load %arg6[%c2_222, %c0_223, %c0_224] : memref<4x128x128xbf16, #tpu.memory_space<vmem>>, vector<1x128x128xbf16>
    %456 = vector.shape_cast %455 : vector<1x128x128xbf16> to vector<128x128xbf16>
    %cst_225 = arith.constant dense<0.000000e+00> : vector<16x128xf32>
    %457 = tpu.matmul %454, %456, %cst_225 {dimension_numbers = #tpu.dot_dimension_numbers<[1], [0], [0], [1], [0, 0, 1, 1], [], []>} : vector<16x128xbf16>, vector<128x128xbf16>, vector<16x128xf32> -> vector<16x128xf32>
    %c2_226 = arith.constant 2 : index
    %c0_227 = arith.constant 0 : index
    %c0_228 = arith.constant 0 : index
    %458 = vector.load %arg7[%c2_226, %c0_227, %c0_228] : memref<4x1x128xf32, #tpu.memory_space<vmem>>, vector<1x1x128xf32>
    %459 = vector.shape_cast %458 : vector<1x1x128xf32> to vector<1x128xf32>
    %460 = vector.broadcast %459 : vector<1x128xf32> to vector<16x128xf32>
    %461 = arith.addf %457, %460 : vector<16x128xf32>
    %cst_229 = arith.constant 0.000000e+00 : f32
    %462 = vector.broadcast %cst_229 : f32 to vector<16x128xf32>
    %463 = arith.maximumf %461, %462 : vector<16x128xf32>
    %464 = arith.truncf %463 : vector<16x128xf32> to vector<16x128xbf16>
    %c2_230 = arith.constant 2 : index
    %c0_231 = arith.constant 0 : index
    %c0_232 = arith.constant 0 : index
    %465 = vector.load %arg8[%c2_230, %c0_231, %c0_232] : memref<4x128x128xbf16, #tpu.memory_space<vmem>>, vector<1x128x128xbf16>
    %466 = vector.shape_cast %465 : vector<1x128x128xbf16> to vector<128x128xbf16>
    %cst_233 = arith.constant dense<0.000000e+00> : vector<16x128xf32>
    %467 = tpu.matmul %464, %466, %cst_233 {dimension_numbers = #tpu.dot_dimension_numbers<[1], [0], [0], [1], [0, 0, 1, 1], [], []>} : vector<16x128xbf16>, vector<128x128xbf16>, vector<16x128xf32> -> vector<16x128xf32>
    %468 = arith.addf %425, %467 : vector<16x128xf32>
    %c2_234 = arith.constant 2 : index
    %c0_235 = arith.constant 0 : index
    %c0_236 = arith.constant 0 : index
    %469 = vector.load %arg9[%c2_234, %c0_235, %c0_236] : memref<4x1x128xf32, #tpu.memory_space<vmem>>, vector<1x1x128xf32>
    %470 = vector.shape_cast %469 : vector<1x1x128xf32> to vector<1x128xf32>
    %471 = vector.broadcast %470 : vector<1x128xf32> to vector<16x128xf32>
    %472 = arith.addf %468, %471 : vector<16x128xf32>
    %c3 = arith.constant 3 : index
    %c0_237 = arith.constant 0 : index
    %c0_238 = arith.constant 0 : index
    %473 = vector.load %arg10[%c3, %c0_237, %c0_238] : memref<4x1x128xf32, #tpu.memory_space<vmem>>, vector<1x1x128xf32>
    %474 = vector.shape_cast %473 : vector<1x1x128xf32> to vector<1x128xf32>
    %c3_239 = arith.constant 3 : index
    %c0_240 = arith.constant 0 : index
    %c0_241 = arith.constant 0 : index
    %475 = vector.load %arg11[%c3_239, %c0_240, %c0_241] : memref<4x1x128xf32, #tpu.memory_space<vmem>>, vector<1x1x128xf32>
    %476 = vector.shape_cast %475 : vector<1x1x128xf32> to vector<1x128xf32>
    %cst_242 = arith.constant dense<0.000000e+00> : vector<16xf32>
    %477 = vector.multi_reduction <add>, %472, %cst_242 [1] : vector<16x128xf32> to vector<16xf32>
    %478 = vector.shape_cast %477 : vector<16xf32> to vector<16x1xf32>
    %cst_243 = arith.constant 0.020833334 : f32
    %479 = vector.broadcast %cst_243 : f32 to vector<16x1xf32>
    %480 = arith.mulf %478, %479 : vector<16x1xf32>
    %481 = vector.broadcast %480 : vector<16x1xf32> to vector<16x128xf32>
    %482 = arith.subf %472, %481 : vector<16x128xf32>
    %cst_244 = arith.constant 0.000000e+00 : f32
    %483 = vector.broadcast %cst_244 : f32 to vector<16x128xf32>
    %484 = arith.select %2, %482, %483 : vector<16x128xi1>, vector<16x128xf32>
    %485 = arith.mulf %484, %484 : vector<16x128xf32>
    %cst_245 = arith.constant dense<0.000000e+00> : vector<16xf32>
    %486 = vector.multi_reduction <add>, %485, %cst_245 [1] : vector<16x128xf32> to vector<16xf32>
    %487 = vector.shape_cast %486 : vector<16xf32> to vector<16x1xf32>
    %cst_246 = arith.constant 0.0212765951 : f32
    %488 = vector.broadcast %cst_246 : f32 to vector<16x1xf32>
    %489 = arith.mulf %487, %488 : vector<16x1xf32>
    %490 = math.sqrt %489 : vector<16x1xf32>
    %cst_247 = arith.constant 9.99999997E-7 : f32
    %491 = vector.broadcast %cst_247 : f32 to vector<16x1xf32>
    %492 = arith.addf %490, %491 : vector<16x1xf32>
    %cst_248 = arith.constant 1.000000e+00 : f32
    %493 = vector.broadcast %cst_248 : f32 to vector<16x1xf32>
    %494 = arith.divf %493, %492 : vector<16x1xf32>
    %495 = vector.broadcast %494 : vector<16x1xf32> to vector<16x128xf32>
    %496 = arith.mulf %484, %495 : vector<16x128xf32>
    %497 = vector.broadcast %474 : vector<1x128xf32> to vector<16x128xf32>
    %498 = arith.mulf %497, %496 : vector<16x128xf32>
    %499 = vector.broadcast %476 : vector<1x128xf32> to vector<16x128xf32>
    %500 = arith.addf %498, %499 : vector<16x128xf32>
    %501 = arith.truncf %500 : vector<16x128xf32> to vector<16x128xbf16>
    %c3_249 = arith.constant 3 : index
    %c0_250 = arith.constant 0 : index
    %c0_251 = arith.constant 0 : index
    %502 = vector.load %arg2[%c3_249, %c0_250, %c0_251] : memref<4x128x1152xbf16, #tpu.memory_space<vmem>>, vector<1x128x1152xbf16>
    %503 = vector.shape_cast %502 : vector<1x128x1152xbf16> to vector<128x1152xbf16>
    %cst_252 = arith.constant dense<0.000000e+00> : vector<16x1152xf32>
    %504 = tpu.matmul %501, %503, %cst_252 {dimension_numbers = #tpu.dot_dimension_numbers<[1], [0], [0], [1], [0, 0, 1, 1], [], []>} : vector<16x128xbf16>, vector<128x1152xbf16>, vector<16x1152xf32> -> vector<16x1152xf32>
    %c3_253 = arith.constant 3 : index
    %c0_254 = arith.constant 0 : index
    %c0_255 = arith.constant 0 : index
    %505 = vector.load %arg3[%c3_253, %c0_254, %c0_255] : memref<4x1x1152xf32, #tpu.memory_space<vmem>>, vector<1x1x1152xf32>
    %506 = vector.shape_cast %505 : vector<1x1x1152xf32> to vector<1x1152xf32>
    %507 = vector.broadcast %506 : vector<1x1152xf32> to vector<16x1152xf32>
    %508 = arith.addf %504, %507 : vector<16x1152xf32>
    %509 = arith.truncf %508 : vector<16x1152xf32> to vector<16x1152xbf16>
    %cst_256 = arith.constant 0.000000e+00 : f32
    %510 = vector.broadcast %cst_256 : f32 to vector<16x128xf32>
    %511 = vector.extract_strided_slice %509 {offsets = [0, 0], sizes = [16, 128], strides = [1, 1]} : vector<16x1152xbf16> to vector<16x128xbf16>
    %512 = vector.extract_strided_slice %509 {offsets = [0, 384], sizes = [16, 128], strides = [1, 1]} : vector<16x1152xbf16> to vector<16x128xbf16>
    %513 = vector.extract_strided_slice %509 {offsets = [0, 768], sizes = [16, 128], strides = [1, 1]} : vector<16x1152xbf16> to vector<16x128xbf16>
    %cst_257 = arith.constant dense<0.000000e+00> : vector<16x16xf32>
    %514 = tpu.matmul %511, %512, %cst_257 {dimension_numbers = #tpu.dot_dimension_numbers<[1], [1], [0], [0], [0, 0, 1, 0], [], []>} : vector<16x128xbf16>, vector<16x128xbf16>, vector<16x16xf32> -> vector<16x16xf32>
    %515 = arith.addf %514, %4 : vector<16x16xf32>
    %cst_258 = arith.constant dense<0xFF800000> : vector<16xf32>
    %516 = vector.multi_reduction <maximumf>, %515, %cst_258 [1] : vector<16x16xf32> to vector<16xf32>
    %517 = vector.shape_cast %516 : vector<16xf32> to vector<16x1xf32>
    %518 = vector.broadcast %517 : vector<16x1xf32> to vector<16x16xf32>
    %519 = arith.subf %515, %518 : vector<16x16xf32>
    %520 = math.exp %519 : vector<16x16xf32>
    %cst_259 = arith.constant dense<0.000000e+00> : vector<16xf32>
    %521 = vector.multi_reduction <add>, %520, %cst_259 [1] : vector<16x16xf32> to vector<16xf32>
    %522 = vector.shape_cast %521 : vector<16xf32> to vector<16x1xf32>
    %523 = tpu.reciprocal %522 {approx = true} : vector<16x1xf32> -> vector<16x1xf32>
    %524 = vector.broadcast %523 : vector<16x1xf32> to vector<16x16xf32>
    %525 = arith.mulf %520, %524 : vector<16x16xf32>
    %526 = arith.truncf %525 : vector<16x16xf32> to vector<16x16xbf16>
    %cst_260 = arith.constant dense<0.000000e+00> : vector<16x128xf32>
    %527 = tpu.matmul %526, %513, %cst_260 {dimension_numbers = #tpu.dot_dimension_numbers<[1], [0], [0], [1], [0, 0, 1, 1], [], []>} : vector<16x16xbf16>, vector<16x128xbf16>, vector<16x128xf32> -> vector<16x128xf32>
    %528 = arith.truncf %527 : vector<16x128xf32> to vector<16x128xbf16>
    %c3_261 = arith.constant 3 : index
    %c0_262 = arith.constant 0 : index
    %c0_263 = arith.constant 0 : index
    %c0_264 = arith.constant 0 : index
    %529 = vector.load %arg4[%c3_261, %c0_262, %c0_263, %c0_264] : memref<4x3x128x128xbf16, #tpu.memory_space<vmem>>, vector<1x1x128x128xbf16>
    %530 = vector.shape_cast %529 : vector<1x1x128x128xbf16> to vector<128x128xbf16>
    %cst_265 = arith.constant dense<0.000000e+00> : vector<16x128xf32>
    %531 = tpu.matmul %528, %530, %cst_265 {dimension_numbers = #tpu.dot_dimension_numbers<[1], [0], [0], [1], [0, 0, 1, 1], [], []>} : vector<16x128xbf16>, vector<128x128xbf16>, vector<16x128xf32> -> vector<16x128xf32>
    %532 = arith.addf %510, %531 : vector<16x128xf32>
    %533 = vector.extract_strided_slice %509 {offsets = [0, 128], sizes = [16, 128], strides = [1, 1]} : vector<16x1152xbf16> to vector<16x128xbf16>
    %534 = vector.extract_strided_slice %509 {offsets = [0, 512], sizes = [16, 128], strides = [1, 1]} : vector<16x1152xbf16> to vector<16x128xbf16>
    %535 = vector.extract_strided_slice %509 {offsets = [0, 896], sizes = [16, 128], strides = [1, 1]} : vector<16x1152xbf16> to vector<16x128xbf16>
    %cst_266 = arith.constant dense<0.000000e+00> : vector<16x16xf32>
    %536 = tpu.matmul %533, %534, %cst_266 {dimension_numbers = #tpu.dot_dimension_numbers<[1], [1], [0], [0], [0, 0, 1, 0], [], []>} : vector<16x128xbf16>, vector<16x128xbf16>, vector<16x16xf32> -> vector<16x16xf32>
    %537 = arith.addf %536, %4 : vector<16x16xf32>
    %cst_267 = arith.constant dense<0xFF800000> : vector<16xf32>
    %538 = vector.multi_reduction <maximumf>, %537, %cst_267 [1] : vector<16x16xf32> to vector<16xf32>
    %539 = vector.shape_cast %538 : vector<16xf32> to vector<16x1xf32>
    %540 = vector.broadcast %539 : vector<16x1xf32> to vector<16x16xf32>
    %541 = arith.subf %537, %540 : vector<16x16xf32>
    %542 = math.exp %541 : vector<16x16xf32>
    %cst_268 = arith.constant dense<0.000000e+00> : vector<16xf32>
    %543 = vector.multi_reduction <add>, %542, %cst_268 [1] : vector<16x16xf32> to vector<16xf32>
    %544 = vector.shape_cast %543 : vector<16xf32> to vector<16x1xf32>
    %545 = tpu.reciprocal %544 {approx = true} : vector<16x1xf32> -> vector<16x1xf32>
    %546 = vector.broadcast %545 : vector<16x1xf32> to vector<16x16xf32>
    %547 = arith.mulf %542, %546 : vector<16x16xf32>
    %548 = arith.truncf %547 : vector<16x16xf32> to vector<16x16xbf16>
    %cst_269 = arith.constant dense<0.000000e+00> : vector<16x128xf32>
    %549 = tpu.matmul %548, %535, %cst_269 {dimension_numbers = #tpu.dot_dimension_numbers<[1], [0], [0], [1], [0, 0, 1, 1], [], []>} : vector<16x16xbf16>, vector<16x128xbf16>, vector<16x128xf32> -> vector<16x128xf32>
    %550 = arith.truncf %549 : vector<16x128xf32> to vector<16x128xbf16>
    %c3_270 = arith.constant 3 : index
    %c1_271 = arith.constant 1 : index
    %c0_272 = arith.constant 0 : index
    %c0_273 = arith.constant 0 : index
    %551 = vector.load %arg4[%c3_270, %c1_271, %c0_272, %c0_273] : memref<4x3x128x128xbf16, #tpu.memory_space<vmem>>, vector<1x1x128x128xbf16>
    %552 = vector.shape_cast %551 : vector<1x1x128x128xbf16> to vector<128x128xbf16>
    %cst_274 = arith.constant dense<0.000000e+00> : vector<16x128xf32>
    %553 = tpu.matmul %550, %552, %cst_274 {dimension_numbers = #tpu.dot_dimension_numbers<[1], [0], [0], [1], [0, 0, 1, 1], [], []>} : vector<16x128xbf16>, vector<128x128xbf16>, vector<16x128xf32> -> vector<16x128xf32>
    %554 = arith.addf %532, %553 : vector<16x128xf32>
    %555 = vector.extract_strided_slice %509 {offsets = [0, 256], sizes = [16, 128], strides = [1, 1]} : vector<16x1152xbf16> to vector<16x128xbf16>
    %556 = vector.extract_strided_slice %509 {offsets = [0, 640], sizes = [16, 128], strides = [1, 1]} : vector<16x1152xbf16> to vector<16x128xbf16>
    %557 = vector.extract_strided_slice %509 {offsets = [0, 1024], sizes = [16, 128], strides = [1, 1]} : vector<16x1152xbf16> to vector<16x128xbf16>
    %cst_275 = arith.constant dense<0.000000e+00> : vector<16x16xf32>
    %558 = tpu.matmul %555, %556, %cst_275 {dimension_numbers = #tpu.dot_dimension_numbers<[1], [1], [0], [0], [0, 0, 1, 0], [], []>} : vector<16x128xbf16>, vector<16x128xbf16>, vector<16x16xf32> -> vector<16x16xf32>
    %559 = arith.addf %558, %4 : vector<16x16xf32>
    %cst_276 = arith.constant dense<0xFF800000> : vector<16xf32>
    %560 = vector.multi_reduction <maximumf>, %559, %cst_276 [1] : vector<16x16xf32> to vector<16xf32>
    %561 = vector.shape_cast %560 : vector<16xf32> to vector<16x1xf32>
    %562 = vector.broadcast %561 : vector<16x1xf32> to vector<16x16xf32>
    %563 = arith.subf %559, %562 : vector<16x16xf32>
    %564 = math.exp %563 : vector<16x16xf32>
    %cst_277 = arith.constant dense<0.000000e+00> : vector<16xf32>
    %565 = vector.multi_reduction <add>, %564, %cst_277 [1] : vector<16x16xf32> to vector<16xf32>
    %566 = vector.shape_cast %565 : vector<16xf32> to vector<16x1xf32>
    %567 = tpu.reciprocal %566 {approx = true} : vector<16x1xf32> -> vector<16x1xf32>
    %568 = vector.broadcast %567 : vector<16x1xf32> to vector<16x16xf32>
    %569 = arith.mulf %564, %568 : vector<16x16xf32>
    %570 = arith.truncf %569 : vector<16x16xf32> to vector<16x16xbf16>
    %cst_278 = arith.constant dense<0.000000e+00> : vector<16x128xf32>
    %571 = tpu.matmul %570, %557, %cst_278 {dimension_numbers = #tpu.dot_dimension_numbers<[1], [0], [0], [1], [0, 0, 1, 1], [], []>} : vector<16x16xbf16>, vector<16x128xbf16>, vector<16x128xf32> -> vector<16x128xf32>
    %572 = arith.truncf %571 : vector<16x128xf32> to vector<16x128xbf16>
    %c3_279 = arith.constant 3 : index
    %c2_280 = arith.constant 2 : index
    %c0_281 = arith.constant 0 : index
    %c0_282 = arith.constant 0 : index
    %573 = vector.load %arg4[%c3_279, %c2_280, %c0_281, %c0_282] : memref<4x3x128x128xbf16, #tpu.memory_space<vmem>>, vector<1x1x128x128xbf16>
    %574 = vector.shape_cast %573 : vector<1x1x128x128xbf16> to vector<128x128xbf16>
    %cst_283 = arith.constant dense<0.000000e+00> : vector<16x128xf32>
    %575 = tpu.matmul %572, %574, %cst_283 {dimension_numbers = #tpu.dot_dimension_numbers<[1], [0], [0], [1], [0, 0, 1, 1], [], []>} : vector<16x128xbf16>, vector<128x128xbf16>, vector<16x128xf32> -> vector<16x128xf32>
    %576 = arith.addf %554, %575 : vector<16x128xf32>
    %577 = arith.addf %472, %576 : vector<16x128xf32>
    %c3_284 = arith.constant 3 : index
    %c0_285 = arith.constant 0 : index
    %c0_286 = arith.constant 0 : index
    %578 = vector.load %arg5[%c3_284, %c0_285, %c0_286] : memref<4x1x128xf32, #tpu.memory_space<vmem>>, vector<1x1x128xf32>
    %579 = vector.shape_cast %578 : vector<1x1x128xf32> to vector<1x128xf32>
    %580 = vector.broadcast %579 : vector<1x128xf32> to vector<16x128xf32>
    %581 = arith.addf %577, %580 : vector<16x128xf32>
    %c3_287 = arith.constant 3 : index
    %c0_288 = arith.constant 0 : index
    %c0_289 = arith.constant 0 : index
    %582 = vector.load %arg12[%c3_287, %c0_288, %c0_289] : memref<4x1x128xf32, #tpu.memory_space<vmem>>, vector<1x1x128xf32>
    %583 = vector.shape_cast %582 : vector<1x1x128xf32> to vector<1x128xf32>
    %c3_290 = arith.constant 3 : index
    %c0_291 = arith.constant 0 : index
    %c0_292 = arith.constant 0 : index
    %584 = vector.load %arg13[%c3_290, %c0_291, %c0_292] : memref<4x1x128xf32, #tpu.memory_space<vmem>>, vector<1x1x128xf32>
    %585 = vector.shape_cast %584 : vector<1x1x128xf32> to vector<1x128xf32>
    %cst_293 = arith.constant dense<0.000000e+00> : vector<16xf32>
    %586 = vector.multi_reduction <add>, %581, %cst_293 [1] : vector<16x128xf32> to vector<16xf32>
    %587 = vector.shape_cast %586 : vector<16xf32> to vector<16x1xf32>
    %cst_294 = arith.constant 0.020833334 : f32
    %588 = vector.broadcast %cst_294 : f32 to vector<16x1xf32>
    %589 = arith.mulf %587, %588 : vector<16x1xf32>
    %590 = vector.broadcast %589 : vector<16x1xf32> to vector<16x128xf32>
    %591 = arith.subf %581, %590 : vector<16x128xf32>
    %cst_295 = arith.constant 0.000000e+00 : f32
    %592 = vector.broadcast %cst_295 : f32 to vector<16x128xf32>
    %593 = arith.select %2, %591, %592 : vector<16x128xi1>, vector<16x128xf32>
    %594 = arith.mulf %593, %593 : vector<16x128xf32>
    %cst_296 = arith.constant dense<0.000000e+00> : vector<16xf32>
    %595 = vector.multi_reduction <add>, %594, %cst_296 [1] : vector<16x128xf32> to vector<16xf32>
    %596 = vector.shape_cast %595 : vector<16xf32> to vector<16x1xf32>
    %cst_297 = arith.constant 0.0212765951 : f32
    %597 = vector.broadcast %cst_297 : f32 to vector<16x1xf32>
    %598 = arith.mulf %596, %597 : vector<16x1xf32>
    %599 = math.sqrt %598 : vector<16x1xf32>
    %cst_298 = arith.constant 9.99999997E-7 : f32
    %600 = vector.broadcast %cst_298 : f32 to vector<16x1xf32>
    %601 = arith.addf %599, %600 : vector<16x1xf32>
    %cst_299 = arith.constant 1.000000e+00 : f32
    %602 = vector.broadcast %cst_299 : f32 to vector<16x1xf32>
    %603 = arith.divf %602, %601 : vector<16x1xf32>
    %604 = vector.broadcast %603 : vector<16x1xf32> to vector<16x128xf32>
    %605 = arith.mulf %593, %604 : vector<16x128xf32>
    %606 = vector.broadcast %583 : vector<1x128xf32> to vector<16x128xf32>
    %607 = arith.mulf %606, %605 : vector<16x128xf32>
    %608 = vector.broadcast %585 : vector<1x128xf32> to vector<16x128xf32>
    %609 = arith.addf %607, %608 : vector<16x128xf32>
    %610 = arith.truncf %609 : vector<16x128xf32> to vector<16x128xbf16>
    %c3_300 = arith.constant 3 : index
    %c0_301 = arith.constant 0 : index
    %c0_302 = arith.constant 0 : index
    %611 = vector.load %arg6[%c3_300, %c0_301, %c0_302] : memref<4x128x128xbf16, #tpu.memory_space<vmem>>, vector<1x128x128xbf16>
    %612 = vector.shape_cast %611 : vector<1x128x128xbf16> to vector<128x128xbf16>
    %cst_303 = arith.constant dense<0.000000e+00> : vector<16x128xf32>
    %613 = tpu.matmul %610, %612, %cst_303 {dimension_numbers = #tpu.dot_dimension_numbers<[1], [0], [0], [1], [0, 0, 1, 1], [], []>} : vector<16x128xbf16>, vector<128x128xbf16>, vector<16x128xf32> -> vector<16x128xf32>
    %c3_304 = arith.constant 3 : index
    %c0_305 = arith.constant 0 : index
    %c0_306 = arith.constant 0 : index
    %614 = vector.load %arg7[%c3_304, %c0_305, %c0_306] : memref<4x1x128xf32, #tpu.memory_space<vmem>>, vector<1x1x128xf32>
    %615 = vector.shape_cast %614 : vector<1x1x128xf32> to vector<1x128xf32>
    %616 = vector.broadcast %615 : vector<1x128xf32> to vector<16x128xf32>
    %617 = arith.addf %613, %616 : vector<16x128xf32>
    %cst_307 = arith.constant 0.000000e+00 : f32
    %618 = vector.broadcast %cst_307 : f32 to vector<16x128xf32>
    %619 = arith.maximumf %617, %618 : vector<16x128xf32>
    %620 = arith.truncf %619 : vector<16x128xf32> to vector<16x128xbf16>
    %c3_308 = arith.constant 3 : index
    %c0_309 = arith.constant 0 : index
    %c0_310 = arith.constant 0 : index
    %621 = vector.load %arg8[%c3_308, %c0_309, %c0_310] : memref<4x128x128xbf16, #tpu.memory_space<vmem>>, vector<1x128x128xbf16>
    %622 = vector.shape_cast %621 : vector<1x128x128xbf16> to vector<128x128xbf16>
    %cst_311 = arith.constant dense<0.000000e+00> : vector<16x128xf32>
    %623 = tpu.matmul %620, %622, %cst_311 {dimension_numbers = #tpu.dot_dimension_numbers<[1], [0], [0], [1], [0, 0, 1, 1], [], []>} : vector<16x128xbf16>, vector<128x128xbf16>, vector<16x128xf32> -> vector<16x128xf32>
    %624 = arith.addf %581, %623 : vector<16x128xf32>
    %c3_312 = arith.constant 3 : index
    %c0_313 = arith.constant 0 : index
    %c0_314 = arith.constant 0 : index
    %625 = vector.load %arg9[%c3_312, %c0_313, %c0_314] : memref<4x1x128xf32, #tpu.memory_space<vmem>>, vector<1x1x128xf32>
    %626 = vector.shape_cast %625 : vector<1x1x128xf32> to vector<1x128xf32>
    %627 = vector.broadcast %626 : vector<1x128xf32> to vector<16x128xf32>
    %628 = arith.addf %624, %627 : vector<16x128xf32>
    %c0_315 = arith.constant 0 : index
    %c0_316 = arith.constant 0 : index
    %629 = vector.load %arg14[%c0_315, %c0_316] : memref<1x128xf32, #tpu.memory_space<vmem>>, vector<1x128xf32>
    %c0_317 = arith.constant 0 : index
    %c0_318 = arith.constant 0 : index
    %630 = vector.load %arg15[%c0_317, %c0_318] : memref<1x128xf32, #tpu.memory_space<vmem>>, vector<1x128xf32>
    %cst_319 = arith.constant dense<0.000000e+00> : vector<16xf32>
    %631 = vector.multi_reduction <add>, %628, %cst_319 [1] : vector<16x128xf32> to vector<16xf32>
    %632 = vector.shape_cast %631 : vector<16xf32> to vector<16x1xf32>
    %cst_320 = arith.constant 0.020833334 : f32
    %633 = vector.broadcast %cst_320 : f32 to vector<16x1xf32>
    %634 = arith.mulf %632, %633 : vector<16x1xf32>
    %635 = vector.broadcast %634 : vector<16x1xf32> to vector<16x128xf32>
    %636 = arith.subf %628, %635 : vector<16x128xf32>
    %cst_321 = arith.constant 0.000000e+00 : f32
    %637 = vector.broadcast %cst_321 : f32 to vector<16x128xf32>
    %638 = arith.select %2, %636, %637 : vector<16x128xi1>, vector<16x128xf32>
    %639 = arith.mulf %638, %638 : vector<16x128xf32>
    %cst_322 = arith.constant dense<0.000000e+00> : vector<16xf32>
    %640 = vector.multi_reduction <add>, %639, %cst_322 [1] : vector<16x128xf32> to vector<16xf32>
    %641 = vector.shape_cast %640 : vector<16xf32> to vector<16x1xf32>
    %cst_323 = arith.constant 0.0212765951 : f32
    %642 = vector.broadcast %cst_323 : f32 to vector<16x1xf32>
    %643 = arith.mulf %641, %642 : vector<16x1xf32>
    %644 = math.sqrt %643 : vector<16x1xf32>
    %cst_324 = arith.constant 9.99999997E-7 : f32
    %645 = vector.broadcast %cst_324 : f32 to vector<16x1xf32>
    %646 = arith.addf %644, %645 : vector<16x1xf32>
    %cst_325 = arith.constant 1.000000e+00 : f32
    %647 = vector.broadcast %cst_325 : f32 to vector<16x1xf32>
    %648 = arith.divf %647, %646 : vector<16x1xf32>
    %649 = vector.broadcast %648 : vector<16x1xf32> to vector<16x128xf32>
    %650 = arith.mulf %638, %649 : vector<16x128xf32>
    %651 = vector.broadcast %629 : vector<1x128xf32> to vector<16x128xf32>
    %652 = arith.mulf %651, %650 : vector<16x128xf32>
    %653 = vector.broadcast %630 : vector<1x128xf32> to vector<16x128xf32>
    %654 = arith.addf %652, %653 : vector<16x128xf32>
    %c0_326 = arith.constant 0 : index
    %c0_327 = arith.constant 0 : index
    %655 = vector.load %arg16[%c0_326, %c0_327] : memref<16x128xf32, #tpu.memory_space<vmem>>, vector<16x128xf32>
    tpu.vector_store %arg16[%c0_326, %c0_327], %654 {strides = array<i32>} : memref<16x128xf32, #tpu.memory_space<vmem>>, vector<16x128xf32>,
    return
  }
}

</mosaic_0001>

<llo_original>
// kernel: text_encoder_forward.1
$region0: #{text_encoder_forward.1}
  #allocation0 [shape = 'u32[]', space=smem, size = 0x4, offset = 0x4, fixed_abs, tag = 'smem constant byte address 0x4 - core index']
  #allocation1 [shape = 'u32[72,128]{1,0:T(1,128)}', space=vmem, size = 0x9000, scoped, tag = 'internal scratch']
  %s0 = inlined_call_operand.vmem [shape: f32[16,128], index: 0, kind: input, shape index: {}]
  %s1 = inlined_call_operand.vmem [shape: f32[16,16], index: 1, kind: input, shape index: {}]
  %s2 = inlined_call_operand.hbm [shape: bf16[4,128,1152], index: 2, kind: input, shape index: {}]
  %s3 = inlined_call_operand.hbm [shape: f32[4,1,1152], index: 3, kind: input, shape index: {}]
  %s4 = inlined_call_operand.hbm [shape: bf16[4,3,128,128], index: 4, kind: input, shape index: {}]
  %s5 = inlined_call_operand.hbm [shape: f32[4,1,128], index: 5, kind: input, shape index: {}]
  %s6 = inlined_call_operand.hbm [shape: bf16[4,128,128], index: 6, kind: input, shape index: {}]
  %s7 = inlined_call_operand.hbm [shape: f32[4,1,128], index: 7, kind: input, shape index: {}]
  %s8 = inlined_call_operand.hbm [shape: bf16[4,128,128], index: 8, kind: input, shape index: {}]
  %s9 = inlined_call_operand.hbm [shape: f32[4,1,128], index: 9, kind: input, shape index: {}]
  %s10 = inlined_call_operand.hbm [shape: f32[4,1,128], index: 10, kind: input, shape index: {}]
  %s11 = inlined_call_operand.hbm [shape: f32[4,1,128], index: 11, kind: input, shape index: {}]
  %s12 = inlined_call_operand.hbm [shape: f32[4,1,128], index: 12, kind: input, shape index: {}]
  %s13 = inlined_call_operand.hbm [shape: f32[4,1,128], index: 13, kind: input, shape index: {}]
  %s14 = inlined_call_operand.hbm [shape: f32[1,128], index: 14, kind: input, shape index: {}]
  %s15 = inlined_call_operand.hbm [shape: f32[1,128], index: 15, kind: input, shape index: {}]
  %s16 = inlined_call_operand.vmem [shape: f32[16,128], index: 16, kind: output, shape index: {}]
  %s17 = sld [smem:[#allocation0]]
  $region130: #{text_encoder_forward.1} parent=0
    _
  %s19 = ssub.s32 1, %s17
  %s20 = scalar_select 0, %s19, %s17
  $region1: #{text_encoder_forward.1} parent=0
    #allocation2 [shape = 'u8[1179648]{0}', space=vmem, size = 0x120000, scoped, tag = 'input window, operand 2, single buffered']
    #allocation3 [shape = 's32[1]{0}', space=sflag, size = 0x4, scoped, tag = 'scoped memory for text_encoder_forward.1']
    #allocation4 [shape = 'u8[18432]{0}', space=vmem, size = 0x4800, scoped, tag = 'input window, operand 3, single buffered']
    #allocation5 [shape = 's32[1]{0}', space=sflag, size = 0x4, scoped, tag = 'scoped memory for text_encoder_forward.1']
    #allocation6 [shape = 'u8[393216]{0}', space=vmem, size = 0x60000, scoped, tag = 'input window, operand 4, single buffered']
    #allocation7 [shape = 'u8[2048]{0}', space=vmem, size = 0x800, scoped, tag = 'input window, operand 5, single buffered']
    #allocation8 [shape = 's32[1]{0}', space=sflag, size = 0x4, scoped, tag = 'scoped memory for text_encoder_forward.1']
    #allocation9 [shape = 'u8[131072]{0}', space=vmem, size = 0x20000, scoped, tag = 'input window, operand 6, single buffered']
    #allocation10 [shape = 'u8[2048]{0}', space=vmem, size = 0x800, scoped, tag = 'input window, operand 7, single buffered']
    #allocation11 [shape = 's32[1]{0}', space=sflag, size = 0x4, scoped, tag = 'scoped memory for text_encoder_forward.1']
    #allocation12 [shape = 'u8[131072]{0}', space=vmem, size = 0x20000, scoped, tag = 'input window, operand 8, single buffered']
    #allocation13 [shape = 'u8[2048]{0}', space=vmem, size = 0x800, scoped, tag = 'input window, operand 9, single buffered']
    #allocation14 [shape = 's32[1]{0}', space=sflag, size = 0x4, scoped, tag = 'scoped memory for text_encoder_forward.1']
    #allocation15 [shape = 'u8[2048]{0}', space=vmem, size = 0x800, scoped, tag = 'input window, operand 10, single buffered']
    #allocation16 [shape = 'u8[2048]{0}', space=vmem, size = 0x800, scoped, tag = 'input window, operand 11, single buffered']
    #allocation17 [shape = 's32[1]{0}', space=sflag, size = 0x4, scoped, tag = 'scoped memory for text_encoder_forward.1']
    #allocation18 [shape = 'u8[2048]{0}', space=vmem, size = 0x800, scoped, tag = 'input window, operand 12, single buffered']
    #allocation19 [shape = 'u8[2048]{0}', space=vmem, size = 0x800, scoped, tag = 'input window, operand 13, single buffered']
    #allocation20 [shape = 's32[1]{0}', space=sflag, size = 0x4, scoped, tag = 'scoped memory for text_encoder_forward.1']
    #allocation21 [shape = 'u8[512]{0}', space=vmem, size = 0x400, scoped, tag = 'input window, operand 14, single buffered']
    #allocation22 [shape = 'u8[512]{0}', space=vmem, size = 0x400, scoped, tag = 'input window, operand 15, single buffered']
    #allocation23 [shape = 's32[1]{0}', space=sflag, size = 0x4, scoped, tag = 'scoped memory for text_encoder_forward.1']
    %21 = vsyncpa [#allocation3], 0
    %22 = vsyncpa [#allocation5], 0
    %23 = vsyncpa [#allocation8], 0
    %24 = vsyncpa [#allocation11], 0
    %25 = vsyncpa [#allocation14], 0
    %26 = vsyncpa [#allocation17], 0
    %27 = vsyncpa [#allocation20], 0
    %28 = vsyncpa [#allocation23], 0
    // Predicated region
    $region2: #{text_encoder_forward.1} parent=1 // pred_check
      _
    $region3: #{text_encoder_forward.1} parent=1 // pred_check_branch
      %30 = sbr.rel (0) target = $region5
    $region4: #{text_encoder_forward.1} parent=1 // pred_region
      _
    $region5: #{text_encoder_forward.1} parent=1 // pred_fallthru
      _
    // Predicated region
    $region6: #{text_encoder_forward.1} parent=1 // pred_check
      _
    $region7: #{text_encoder_forward.1} parent=1 // pred_check_branch
      %32 = sbr.rel (0) target = $region9
    $region8: #{text_encoder_forward.1} parent=1 // pred_region
      _
    $region9: #{text_encoder_forward.1} parent=1 // pred_fallthru
      _
    // Predicated region
    $region10: #{text_encoder_forward.1} parent=1 // pred_check
      _
    $region11: #{text_encoder_forward.1} parent=1 // pred_check_branch
      %34 = sbr.rel (0) target = $region13
    $region12: #{text_encoder_forward.1} parent=1 // pred_region
      %36 = vsyncadd [#allocation3], 0
      %s37 = sshll.u32 %s2, 4
      %s38 = int_to_ptr.hbm [resolvable:$true] %s37
      %s39 = sshll.u32 [#allocation2], 4
      %s40 = int_to_ptr.vmem [resolvable:$true] %s39
      %45 = dma.hbm_to_vmem [thread:$0]  %s38, 36864, %s40, [#allocation3], 576, 576, 36
    $region13: #{text_encoder_forward.1} parent=1 // pred_fallthru
      _
    // Predicated region
    $region14: #{text_encoder_forward.1} parent=1 // pred_check
      _
    $region15: #{text_encoder_forward.1} parent=1 // pred_check_branch
      %47 = sbr.rel (0) target = $region17
    $region16: #{text_encoder_forward.1} parent=1 // pred_region
      %49 = vsyncadd [#allocation5], 0
      %s50 = sshll.u32 %s3, 4
      %s51 = int_to_ptr.hbm [resolvable:$true] %s50
      %s52 = sshll.u32 [#allocation4], 4
      %s53 = int_to_ptr.vmem [resolvable:$true] %s52
      %58 = dma.hbm_to_vmem [thread:$0]  %s51, 576, %s53, [#allocation5], 144, 144, 9
    $region17: #{text_encoder_forward.1} parent=1 // pred_fallthru
      _
    // Predicated region
    $region18: #{text_encoder_forward.1} parent=1 // pred_check
      _
    $region19: #{text_encoder_forward.1} parent=1 // pred_check_branch
      %60 = sbr.rel (0) target = $region21
    $region20: #{text_encoder_forward.1} parent=1 // pred_region
      %62 = vsyncadd [#allocation5], 0
      %s63 = sshll.u32 %s4, 4
      %s64 = int_to_ptr.hbm [resolvable:$true] %s63
      %s65 = sshll.u32 [#allocation6], 4
      %s66 = int_to_ptr.vmem [resolvable:$true] %s65
      %71 = dma.hbm_to_vmem [thread:$0]  %s64, 12288, %s66, [#allocation5], 64, 64, 4
    $region21: #{text_encoder_forward.1} parent=1 // pred_fallthru
      _
    // Predicated region
    $region22: #{text_encoder_forward.1} parent=1 // pred_check
      _
    $region23: #{text_encoder_forward.1} parent=1 // pred_check_branch
      %73 = sbr.rel (0) target = $region25
    $region24: #{text_encoder_forward.1} parent=1 // pred_region
      %75 = vsyncadd [#allocation8], 0
      %s76 = sshll.u32 %s5, 4
      %s77 = int_to_ptr.hbm [resolvable:$true] %s76
      %s78 = sshll.u32 [#allocation7], 4
      %s79 = int_to_ptr.vmem [resolvable:$true] %s78
      %84 = dma.hbm_to_vmem [thread:$0]  %s77, 64, %s79, [#allocation8], 16, 16, 1
    $region25: #{text_encoder_forward.1} parent=1 // pred_fallthru
      _
    // Predicated region
    $region26: #{text_encoder_forward.1} parent=1 // pred_check
      _
    $region27: #{text_encoder_forward.1} parent=1 // pred_check_branch
      %86 = sbr.rel (0) target = $region29
    $region28: #{text_encoder_forward.1} parent=1 // pred_region
      %88 = vsyncadd [#allocation8], 0
      %s89 = sshll.u32 %s6, 4
      %s90 = int_to_ptr.hbm [resolvable:$true] %s89
      %s91 = sshll.u32 [#allocation9], 4
      %s92 = int_to_ptr.vmem [resolvable:$true] %s91
      %97 = dma.hbm_to_vmem [thread:$0]  %s90, 4096, %s92, [#allocation8], 64, 64, 4
    $region29: #{text_encoder_forward.1} parent=1 // pred_fallthru
      _
    // Predicated region
    $region30: #{text_encoder_forward.1} parent=1 // pred_check
      _
    $region31: #{text_encoder_forward.1} parent=1 // pred_check_branch
      %99 = sbr.rel (0) target = $region33
    $region32: #{text_encoder_forward.1} parent=1 // pred_region
      %101 = vsyncadd [#allocation11], 0
      %s102 = sshll.u32 %s7, 4
      %s103 = int_to_ptr.hbm [resolvable:$true] %s102
      %s104 = sshll.u32 [#allocation10], 4
      %s105 = int_to_ptr.vmem [resolvable:$true] %s104
      %110 = dma.hbm_to_vmem [thread:$0]  %s103, 64, %s105, [#allocation11], 16, 16, 1
    $region33: #{text_encoder_forward.1} parent=1 // pred_fallthru
      _
    // Predicated region
    $region34: #{text_encoder_forward.1} parent=1 // pred_check
      _
    $region35: #{text_encoder_forward.1} parent=1 // pred_check_branch
      %112 = sbr.rel (0) target = $region37
    $region36: #{text_encoder_forward.1} parent=1 // pred_region
      %114 = vsyncadd [#allocation11], 0
      %s115 = sshll.u32 %s8, 4
      %s116 = int_to_ptr.hbm [resolvable:$true] %s115
      %s117 = sshll.u32 [#allocation12], 4
      %s118 = int_to_ptr.vmem [resolvable:$true] %s117
      %123 = dma.hbm_to_vmem [thread:$0]  %s116, 4096, %s118, [#allocation11], 64, 64, 4
    $region37: #{text_encoder_forward.1} parent=1 // pred_fallthru
      _
    // Predicated region
    $region38: #{text_encoder_forward.1} parent=1 // pred_check
      _
    $region39: #{text_encoder_forward.1} parent=1 // pred_check_branch
      %125 = sbr.rel (0) target = $region41
    $region40: #{text_encoder_forward.1} parent=1 // pred_region
      %127 = vsyncadd [#allocation14], 0
      %s128 = sshll.u32 %s9, 4
      %s129 = int_to_ptr.hbm [resolvable:$true] %s128
      %s130 = sshll.u32 [#allocation13], 4
      %s131 = int_to_ptr.vmem [resolvable:$true] %s130
      %136 = dma.hbm_to_vmem [thread:$0]  %s129, 64, %s131, [#allocation14], 16, 16, 1
    $region41: #{text_encoder_forward.1} parent=1 // pred_fallthru
      _
    // Predicated region
    $region42: #{text_encoder_forward.1} parent=1 // pred_check
      _
    $region43: #{text_encoder_forward.1} parent=1 // pred_check_branch
      %138 = sbr.rel (0) target = $region45
    $region44: #{text_encoder_forward.1} parent=1 // pred_region
      %140 = vsyncadd [#allocation14], 0
      %s141 = sshll.u32 %s10, 4
      %s142 = int_to_ptr.hbm [resolvable:$true] %s141
      %s143 = sshll.u32 [#allocation15], 4
      %s144 = int_to_ptr.vmem [resolvable:$true] %s143
      %149 = dma.hbm_to_vmem [thread:$0]  %s142, 64, %s144, [#allocation14], 16, 16, 1
    $region45: #{text_encoder_forward.1} parent=1 // pred_fallthru
      _
    // Predicated region
    $region46: #{text_encoder_forward.1} parent=1 // pred_check
      _
    $region47: #{text_encoder_forward.1} parent=1 // pred_check_branch
      %151 = sbr.rel (0) target = $region49
    $region48: #{text_encoder_forward.1} parent=1 // pred_region
      %153 = vsyncadd [#allocation17], 0
      %s154 = sshll.u32 %s11, 4
      %s155 = int_to_ptr.hbm [resolvable:$true] %s154
      %s156 = sshll.u32 [#allocation16], 4
      %s157 = int_to_ptr.vmem [resolvable:$true] %s156
      %162 = dma.hbm_to_vmem [thread:$0]  %s155, 64, %s157, [#allocation17], 16, 16, 1
    $region49: #{text_encoder_forward.1} parent=1 // pred_fallthru
      _
    // Predicated region
    $region50: #{text_encoder_forward.1} parent=1 // pred_check
      _
    $region51: #{text_encoder_forward.1} parent=1 // pred_check_branch
      %164 = sbr.rel (0) target = $region53
    $region52: #{text_encoder_forward.1} parent=1 // pred_region
      %166 = vsyncadd [#allocation17], 0
      %s167 = sshll.u32 %s12, 4
      %s168 = int_to_ptr.hbm [resolvable:$true] %s167
      %s169 = sshll.u32 [#allocation18], 4
      %s170 = int_to_ptr.vmem [resolvable:$true] %s169
      %175 = dma.hbm_to_vmem [thread:$0]  %s168, 64, %s170, [#allocation17], 16, 16, 1
    $region53: #{text_encoder_forward.1} parent=1 // pred_fallthru
      _
    // Predicated region
    $region54: #{text_encoder_forward.1} parent=1 // pred_check
      _
    $region55: #{text_encoder_forward.1} parent=1 // pred_check_branch
      %177 = sbr.rel (0) target = $region57
    $region56: #{text_encoder_forward.1} parent=1 // pred_region
      %179 = vsyncadd [#allocation20], 0
      %s180 = sshll.u32 %s13, 4
      %s181 = int_to_ptr.hbm [resolvable:$true] %s180
      %s182 = sshll.u32 [#allocation19], 4
      %s183 = int_to_ptr.vmem [resolvable:$true] %s182
      %188 = dma.hbm_to_vmem [thread:$0]  %s181, 64, %s183, [#allocation20], 16, 16, 1
    $region57: #{text_encoder_forward.1} parent=1 // pred_fallthru
      _
    // Predicated region
    $region58: #{text_encoder_forward.1} parent=1 // pred_check
      _
    $region59: #{text_encoder_forward.1} parent=1 // pred_check_branch
      %190 = sbr.rel (0) target = $region61
    $region60: #{text_encoder_forward.1} parent=1 // pred_region
      %192 = vsyncadd [#allocation20], 0
      %s194 = sshll.u32 %s14, 4
      %s195 = int_to_ptr.hbm [resolvable:$true] %s194
      %s196 = sshll.u32 [#allocation21], 4
      %s197 = int_to_ptr.vmem [resolvable:$true] %s196
      %199 = dma.hbm_to_vmem [thread:$0]  %s195, 16, %s197, [#allocation20]
    $region61: #{text_encoder_forward.1} parent=1 // pred_fallthru
      _
    // Predicated region
    $region62: #{text_encoder_forward.1} parent=1 // pred_check
      _
    $region63: #{text_encoder_forward.1} parent=1 // pred_check_branch
      %201 = sbr.rel (0) target = $region65
    $region64: #{text_encoder_forward.1} parent=1 // pred_region
      %203 = vsyncadd [#allocation23], 0
      %s205 = sshll.u32 %s15, 4
      %s206 = int_to_ptr.hbm [resolvable:$true] %s205
      %s207 = sshll.u32 [#allocation22], 4
      %s208 = int_to_ptr.vmem [resolvable:$true] %s207
      %210 = dma.hbm_to_vmem [thread:$0]  %s206, 16, %s208, [#allocation23]
    $region65: #{text_encoder_forward.1} parent=1 // pred_fallthru
      _
    // Predicated region
    $region66: #{text_encoder_forward.1} parent=1 // pred_check
      _
    $region67: #{text_encoder_forward.1} parent=1 // pred_check_branch
      %212 = sbr.rel (0) target = $region69
    $region68: #{text_encoder_forward.1} parent=1 // pred_region
      %214 = dma.done [#allocation3], 36864
    $region69: #{text_encoder_forward.1} parent=1 // pred_fallthru
      _
    // Predicated region
    $region70: #{text_encoder_forward.1} parent=1 // pred_check
      _
    $region71: #{text_encoder_forward.1} parent=1 // pred_check_branch
      %216 = sbr.rel (0) target = $region73
    $region72: #{text_encoder_forward.1} parent=1 // pred_region
      %218 = dma.done [#allocation5], 576
    $region73: #{text_encoder_forward.1} parent=1 // pred_fallthru
      _
    // Predicated region
    $region74: #{text_encoder_forward.1} parent=1 // pred_check
      _
    $region75: #{text_encoder_forward.1} parent=1 // pred_check_branch
      %220 = sbr.rel (0) target = $region77
    $region76: #{text_encoder_forward.1} parent=1 // pred_region
      %222 = dma.done [#allocation5], 12288
    $region77: #{text_encoder_forward.1} parent=1 // pred_fallthru
      _
    // Predicated region
    $region78: #{text_encoder_forward.1} parent=1 // pred_check
      _
    $region79: #{text_encoder_forward.1} parent=1 // pred_check_branch
      %224 = sbr.rel (0) target = $region81
    $region80: #{text_encoder_forward.1} parent=1 // pred_region
      %226 = dma.done [#allocation8], 64
    $region81: #{text_encoder_forward.1} parent=1 // pred_fallthru
      _
    // Predicated region
    $region82: #{text_encoder_forward.1} parent=1 // pred_check
      _
    $region83: #{text_encoder_forward.1} parent=1 // pred_check_branch
      %228 = sbr.rel (0) target = $region85
    $region84: #{text_encoder_forward.1} parent=1 // pred_region
      %230 = dma.done [#allocation8], 4096
    $region85: #{text_encoder_forward.1} parent=1 // pred_fallthru
      _
    // Predicated region
    $region86: #{text_encoder_forward.1} parent=1 // pred_check
      _
    $region87: #{text_encoder_forward.1} parent=1 // pred_check_branch
      %232 = sbr.rel (0) target = $region89
    $region88: #{text_encoder_forward.1} parent=1 // pred_region
      %234 = dma.done [#allocation11], 64
    $region89: #{text_encoder_forward.1} parent=1 // pred_fallthru
      _
    // Predicated region
    $region90: #{text_encoder_forward.1} parent=1 // pred_check
      _
    $region91: #{text_encoder_forward.1} parent=1 // pred_check_branch
      %236 = sbr.rel (0) target = $region93
    $region92: #{text_encoder_forward.1} parent=1 // pred_region
      %238 = dma.done [#allocation11], 4096
    $region93: #{text_encoder_forward.1} parent=1 // pred_fallthru
      _
    // Predicated region
    $region94: #{text_encoder_forward.1} parent=1 // pred_check
      _
    $region95: #{text_encoder_forward.1} parent=1 // pred_check_branch
      %240 = sbr.rel (0) target = $region97
    $region96: #{text_encoder_forward.1} parent=1 // pred_region
      %242 = dma.done [#allocation14], 64
    $region97: #{text_encoder_forward.1} parent=1 // pred_fallthru
      _
    // Predicated region
    $region98: #{text_encoder_forward.1} parent=1 // pred_check
      _
    $region99: #{text_encoder_forward.1} parent=1 // pred_check_branch
      %244 = sbr.rel (0) target = $region101
    $region100: #{text_encoder_forward.1} parent=1 // pred_region
      %246 = dma.done [#allocation14], 64
    $region101: #{text_encoder_forward.1} parent=1 // pred_fallthru
      _
    // Predicated region
    $region102: #{text_encoder_forward.1} parent=1 // pred_check
      _
    $region103: #{text_encoder_forward.1} parent=1 // pred_check_branch
      %248 = sbr.rel (0) target = $region105
    $region104: #{text_encoder_forward.1} parent=1 // pred_region
      %250 = dma.done [#allocation17], 64
    $region105: #{text_encoder_forward.1} parent=1 // pred_fallthru
      _
    // Predicated region
    $region106: #{text_encoder_forward.1} parent=1 // pred_check
      _
    $region107: #{text_encoder_forward.1} parent=1 // pred_check_branch
      %252 = sbr.rel (0) target = $region109
    $region108: #{text_encoder_forward.1} parent=1 // pred_region
      %254 = dma.done [#allocation17], 64
    $region109: #{text_encoder_forward.1} parent=1 // pred_fallthru
      _
    // Predicated region
    $region110: #{text_encoder_forward.1} parent=1 // pred_check
      _
    $region111: #{text_encoder_forward.1} parent=1 // pred_check_branch
      %256 = sbr.rel (0) target = $region113
    $region112: #{text_encoder_forward.1} parent=1 // pred_region
      %258 = dma.done [#allocation20], 64
    $region113: #{text_encoder_forward.1} parent=1 // pred_fallthru
      _
    // Predicated region
    $region114: #{text_encoder_forward.1} parent=1 // pred_check
      _
    $region115: #{text_encoder_forward.1} parent=1 // pred_check_branch
      %260 = sbr.rel (0) target = $region117
    $region116: #{text_encoder_forward.1} parent=1 // pred_region
      %262 = dma.done [#allocation20], 16
    $region117: #{text_encoder_forward.1} parent=1 // pred_fallthru
      _
    // Predicated region
    $region118: #{text_encoder_forward.1} parent=1 // pred_check
      _
    $region119: #{text_encoder_forward.1} parent=1 // pred_check_branch
      %264 = sbr.rel (0) target = $region121
    $region120: #{text_encoder_forward.1} parent=1 // pred_region
      %266 = dma.done [#allocation23], 16
    $region121: #{text_encoder_forward.1} parent=1 // pred_fallthru
      _
    %v268 = vlaneseq
    %v269 = vand.u32 %v268, 127
    %vm270 = vcmp.lt.s32.totalorder %v269, 48
    %v271 = vld [vmem:[%s0] sm:$0xff]
    %v272 = vld [vmem:[%s0 + $0x8] sm:$0xff]
    %v273 = vld [vmem:[%s1] sm:$0xff]
    %v274 = vld [vmem:[%s1 + $0x8] sm:$0xff]
    %v275 = vld [vmem:[#allocation15] sm:$0x1]
    %v276 = vld [vmem:[#allocation16] sm:$0x1]
    %277 = vadd.xlane.f32.xlu0 %v271
    %v278 = vpop.xlane.xlu0 %277
    %279 = vadd.xlane.f32.xlu0 %v272
    %v280 = vpop.xlane.xlu0 %279
    %v281 = vmul.f32 %v278, 0.020833334
    %v282 = vmul.f32 %v280, 0.020833334
    %v283 = vsub.f32 %v271, %v281
    %v284 = vsub.f32 %v272, %v282
    %v285 = vsel %vm270, %v283, 0.0
    %v286 = vsel %vm270, %v284, 0.0
    %v287 = vmul.f32 %v285, %v285
    %v288 = vmul.f32 %v286, %v286
    %289 = vadd.xlane.f32.xlu0 %v287
    %v290 = vpop.xlane.xlu0 %289
    %291 = vadd.xlane.f32.xlu0 %v288
    %v292 = vpop.xlane.xlu0 %291
    %v293 = vmul.f32 %v290, 0.021276595
    %v294 = vmul.f32 %v292, 0.021276595
    %v295 = vrsqrt.pop %v293
    %v296 = vmul.f32 %v295, %v293
    %v297 = vmul.f32 %v296, %v295
    %v298 = vmul.f32 0.5, %v297
    %v299 = vsub.f32 1.5, %v298
    %v300 = vmul.f32 %v295, %v299
    %v301 = vmul.f32 %v293, %v300
    %vm302 = vcmp.eq.f32.partialorder %v293, inf
    %v303 = vsel %vm302, %v293, %v301
    %vm304 = vcmp.eq.f32.partialorder %v293, 0.0
    %v305 = vand.u32 %v293, 2147483648
    %v306 = vsel %vm304, %v305, %v303
    %v307 = vrsqrt.pop %v294
    %v308 = vmul.f32 %v307, %v294
    %v309 = vmul.f32 %v308, %v307
    %v310 = vmul.f32 0.5, %v309
    %v311 = vsub.f32 1.5, %v310
    %v312 = vmul.f32 %v307, %v311
    %v313 = vmul.f32 %v294, %v312
    %vm314 = vcmp.eq.f32.partialorder %v294, inf
    %v315 = vsel %vm314, %v294, %v313
    %vm316 = vcmp.eq.f32.partialorder %v294, 0.0
    %v317 = vand.u32 %v294, 2147483648
    %v318 = vsel %vm316, %v317, %v315
    %v319 = vadd.f32 %v306, 1e-06
    %v320 = vadd.f32 %v318, 1e-06
    %v321 = vrcp.pop %v319
    %v322 = vmul.f32 %v319, %v321
    %v323 = vsub.f32 1.0, %v322
    %v324 = vmul.f32 %v321, %v323
    %v325 = vadd.f32 %v321, %v324
    %vm326 = vweird.f32 %v319
    %vm327 = vweird.f32 %v321
    %vm328 = vmor %vm326, %vm327
    %v329 = vsel %vm328, %v321, %v325
    %v330 = vand.u32 2147483647, %v319
    %vm331 = vcmp.eq.f32.partialorder %v330, 8.507059e+37
    %v332 = vand.u32 %v319, 2147483648
    %v333 = vor.u32 1.1754944e-38, %v332
    %v334 = vsel %vm331, %v333, %v329
    %v335 = vmul.f32 1.0, %v334
    %v336 = vrcp.pop %v320
    %v337 = vmul.f32 %v320, %v336
    %v338 = vsub.f32 1.0, %v337
    %v339 = vmul.f32 %v336, %v338
    %v340 = vadd.f32 %v336, %v339
    %vm341 = vweird.f32 %v320
    %vm342 = vweird.f32 %v336
    %vm343 = vmor %vm341, %vm342
    %v344 = vsel %vm343, %v336, %v340
    %v345 = vand.u32 2147483647, %v320
    %vm346 = vcmp.eq.f32.partialorder %v345, 8.507059e+37
    %v347 = vand.u32 %v320, 2147483648
    %v348 = vor.u32 1.1754944e-38, %v347
    %v349 = vsel %vm346, %v348, %v344
    %v350 = vmul.f32 1.0, %v349
    %v351 = vmul.f32 %v285, %v335
    %v352 = vmul.f32 %v286, %v350
    %v354 = vperm.slane %v275, 0
    %v356 = vmul.f32 %v354, %v351
    %v357 = vmul.f32 %v354, %v352
    %v359 = vperm.slane %v276, 0
    %v361 = vadd.f32 %v356, %v359
    %v362 = vadd.f32 %v357, %v359
    %v363 = vpack.c.bf16 %v362, %v361
    %v364 = vld [vmem:[#allocation2] sm:$0xff]
    %v365 = vld [vmem:[#allocation2 + $0x8] sm:$0xff]
    %v366 = vld [vmem:[#allocation2 + $0x10] sm:$0xff]
    %v367 = vld [vmem:[#allocation2 + $0x18] sm:$0xff]
    %v368 = vld [vmem:[#allocation2 + $0x20] sm:$0xf]
    %v369 = vld [vmem:[#allocation2 + $0x24] sm:$0xff]
    %v370 = vld [vmem:[#allocation2 + $0x2c] sm:$0xff]
    %v371 = vld [vmem:[#allocation2 + $0x34] sm:$0xff]
    %v372 = vld [vmem:[#allocation2 + $0x3c] sm:$0xff]
    %v373 = vld [vmem:[#allocation2 + $0x44] sm:$0xf]
    %v374 = vld [vmem:[#allocation2 + $0x48] sm:$0xff]
    %v375 = vld [vmem:[#allocation2 + $0x50] sm:$0xff]
    %v376 = vld [vmem:[#allocation2 + $0x58] sm:$0xff]
    %v377 = vld [vmem:[#allocation2 + $0x60] sm:$0xff]
    %v378 = vld [vmem:[#allocation2 + $0x68] sm:$0xf]
    %v379 = vld [vmem:[#allocation2 + $0x6c] sm:$0xff]
    %v380 = vld [vmem:[#allocation2 + $0x74] sm:$0xff]
    %v381 = vld [vmem:[#allocation2 + $0x7c] sm:$0xff]
    %v382 = vld [vmem:[#allocation2 + $0x84] sm:$0xff]
    %v383 = vld [vmem:[#allocation2 + $0x8c] sm:$0xf]
    %v384 = vld [vmem:[#allocation2 + $0x90] sm:$0xff]
    %v385 = vld [vmem:[#allocation2 + $0x98] sm:$0xff]
    %v386 = vld [vmem:[#allocation2 + $0xa0] sm:$0xff]
    %v387 = vld [vmem:[#allocation2 + $0xa8] sm:$0xff]
    %v388 = vld [vmem:[#allocation2 + $0xb0] sm:$0xf]
    %v389 = vld [vmem:[#allocation2 + $0xb4] sm:$0xff]
    %v390 = vld [vmem:[#allocation2 + $0xbc] sm:$0xff]
    %v391 = vld [vmem:[#allocation2 + $0xc4] sm:$0xff]
    %v392 = vld [vmem:[#allocation2 + $0xcc] sm:$0xff]
    %v393 = vld [vmem:[#allocation2 + $0xd4] sm:$0xf]
    %v394 = vld [vmem:[#allocation2 + $0xd8] sm:$0xff]
    %v395 = vld [vmem:[#allocation2 + $0xe0] sm:$0xff]
    %v396 = vld [vmem:[#allocation2 + $0xe8] sm:$0xff]
    %v397 = vld [vmem:[#allocation2 + $0xf0] sm:$0xff]
    %v398 = vld [vmem:[#allocation2 + $0xf8] sm:$0xf]
    %v399 = vld [vmem:[#allocation2 + $0xfc] sm:$0xff]
    %v400 = vld [vmem:[#allocation2 + $0x104] sm:$0xff]
    %v401 = vld [vmem:[#allocation2 + $0x10c] sm:$0xff]
    %v402 = vld [vmem:[#allocation2 + $0x114] sm:$0xff]
    %v403 = vld [vmem:[#allocation2 + $0x11c] sm:$0xf]
    %v404 = vld [vmem:[#allocation2 + $0x120] sm:$0xff]
    %v405 = vld [vmem:[#allocation2 + $0x128] sm:$0xff]
    %v406 = vld [vmem:[#allocation2 + $0x130] sm:$0xff]
    %v407 = vld [vmem:[#allocation2 + $0x138] sm:$0xff]
    %v408 = vld [vmem:[#allocation2 + $0x140] sm:$0xf]
    %v409 = vld [vmem:[#allocation2 + $0x144] sm:$0xff]
    %v410 = vld [vmem:[#allocation2 + $0x14c] sm:$0xff]
    %v411 = vld [vmem:[#allocation2 + $0x154] sm:$0xff]
    %v412 = vld [vmem:[#allocation2 + $0x15c] sm:$0xff]
    %v413 = vld [vmem:[#allocation2 + $0x164] sm:$0xf]
    %v414 = vld [vmem:[#allocation2 + $0x168] sm:$0xff]
    %v415 = vld [vmem:[#allocation2 + $0x170] sm:$0xff]
    %v416 = vld [vmem:[#allocation2 + $0x178] sm:$0xff]
    %v417 = vld [vmem:[#allocation2 + $0x180] sm:$0xff]
    %v418 = vld [vmem:[#allocation2 + $0x188] sm:$0xf]
    %v419 = vld [vmem:[#allocation2 + $0x18c] sm:$0xff]
    %v420 = vld [vmem:[#allocation2 + $0x194] sm:$0xff]
    %v421 = vld [vmem:[#allocation2 + $0x19c] sm:$0xff]
    %v422 = vld [vmem:[#allocation2 + $0x1a4] sm:$0xff]
    %v423 = vld [vmem:[#allocation2 + $0x1ac] sm:$0xf]
    %v424 = vld [vmem:[#allocation2 + $0x1b0] sm:$0xff]
    %v425 = vld [vmem:[#allocation2 + $0x1b8] sm:$0xff]
    %v426 = vld [vmem:[#allocation2 + $0x1c0] sm:$0xff]
    %v427 = vld [vmem:[#allocation2 + $0x1c8] sm:$0xff]
    %v428 = vld [vmem:[#allocation2 + $0x1d0] sm:$0xf]
    %v429 = vld [vmem:[#allocation2 + $0x1d4] sm:$0xff]
    %v430 = vld [vmem:[#allocation2 + $0x1dc] sm:$0xff]
    %v431 = vld [vmem:[#allocation2 + $0x1e4] sm:$0xff]
    %v432 = vld [vmem:[#allocation2 + $0x1ec] sm:$0xff]
    %v433 = vld [vmem:[#allocation2 + $0x1f4] sm:$0xf]
    %v434 = vld [vmem:[#allocation2 + $0x1f8] sm:$0xff]
    %v435 = vld [vmem:[#allocation2 + $0x200] sm:$0xff]
    %v436 = vld [vmem:[#allocation2 + $0x208] sm:$0xff]
    %v437 = vld [vmem:[#allocation2 + $0x210] sm:$0xff]
    %v438 = vld [vmem:[#allocation2 + $0x218] sm:$0xf]
    %v439 = vld [vmem:[#allocation2 + $0x21c] sm:$0xff]
    %v440 = vld [vmem:[#allocation2 + $0x224] sm:$0xff]
    %v441 = vld [vmem:[#allocation2 + $0x22c] sm:$0xff]
    %v442 = vld [vmem:[#allocation2 + $0x234] sm:$0xff]
    %v443 = vld [vmem:[#allocation2 + $0x23c] sm:$0xf]
    %v444 = vld [vmem:[#allocation4] sm:$0xff]
    %v445 = vld [vmem:[#allocation4 + $0x8] sm:$0x1]
    %v448 = vperm.slane %v444, 0
    %v449 = vperm.slane %v444, 1
    %v450 = vperm.slane %v444, 2
    %v451 = vperm.slane %v444, 3
    %v452 = vperm.slane %v444, 4
    %v453 = vperm.slane %v444, 5
    %v454 = vperm.slane %v444, 6
    %v455 = vperm.slane %v444, 7
    %v456 = vperm.slane %v445, 0
    %v546 = vunpack.c.l.b16 %v364
    %v547 = vunpack.c.h.b16 %v364
    %v548 = vunpack.c.l.b16 %v365
    %v549 = vunpack.c.h.b16 %v365
    %v550 = vunpack.c.l.b16 %v366
    %v551 = vunpack.c.h.b16 %v366
    %v552 = vunpack.c.l.b16 %v367
    %v553 = vunpack.c.h.b16 %v367
    %v554 = vunpack.c.l.b16 %v368
    %v555 = vunpack.c.l.b16 %v369
    %v556 = vunpack.c.h.b16 %v369
    %v557 = vunpack.c.l.b16 %v370
    %v558 = vunpack.c.h.b16 %v370
    %v559 = vunpack.c.l.b16 %v371
    %v560 = vunpack.c.h.b16 %v371
    %v561 = vunpack.c.l.b16 %v372
    %v562 = vunpack.c.h.b16 %v372
    %v563 = vunpack.c.l.b16 %v373
    %v564 = vunpack.c.l.b16 %v374
    %v565 = vunpack.c.h.b16 %v374
    %v566 = vunpack.c.l.b16 %v375
    %v567 = vunpack.c.h.b16 %v375
    %v568 = vunpack.c.l.b16 %v376
    %v569 = vunpack.c.h.b16 %v376
    %v570 = vunpack.c.l.b16 %v377
    %v571 = vunpack.c.h.b16 %v377
    %v572 = vunpack.c.l.b16 %v378
    %v573 = vunpack.c.l.b16 %v379
    %v574 = vunpack.c.h.b16 %v379
    %v575 = vunpack.c.l.b16 %v380
    %v576 = vunpack.c.h.b16 %v380
    %v577 = vunpack.c.l.b16 %v381
    %v578 = vunpack.c.h.b16 %v381
    %v579 = vunpack.c.l.b16 %v382
    %v580 = vunpack.c.h.b16 %v382
    %v581 = vunpack.c.l.b16 %v383
    %v582 = vunpack.c.l.b16 %v384
    %v583 = vunpack.c.h.b16 %v384
    %v584 = vunpack.c.l.b16 %v385
    %v585 = vunpack.c.h.b16 %v385
    %v586 = vunpack.c.l.b16 %v386
    %v587 = vunpack.c.h.b16 %v386
    %v588 = vunpack.c.l.b16 %v387
    %v589 = vunpack.c.h.b16 %v387
    %v590 = vunpack.c.l.b16 %v388
    %v591 = vunpack.c.l.b16 %v389
    %v592 = vunpack.c.h.b16 %v389
    %v593 = vunpack.c.l.b16 %v390
    %v594 = vunpack.c.h.b16 %v390
    %v595 = vunpack.c.l.b16 %v391
    %v596 = vunpack.c.h.b16 %v391
    %v597 = vunpack.c.l.b16 %v392
    %v598 = vunpack.c.h.b16 %v392
    %v599 = vunpack.c.l.b16 %v393
    %v600 = vunpack.c.l.b16 %v394
    %v601 = vunpack.c.h.b16 %v394
    %v602 = vunpack.c.l.b16 %v395
    %v603 = vunpack.c.h.b16 %v395
    %v604 = vunpack.c.l.b16 %v396
    %v605 = vunpack.c.h.b16 %v396
    %v606 = vunpack.c.l.b16 %v397
    %v607 = vunpack.c.h.b16 %v397
    %v608 = vunpack.c.l.b16 %v398
    %v609 = vunpack.c.l.b16 %v399
    %v610 = vunpack.c.h.b16 %v399
    %v611 = vunpack.c.l.b16 %v400
    %v612 = vunpack.c.h.b16 %v400
    %v613 = vunpack.c.l.b16 %v401
    %v614 = vunpack.c.h.b16 %v401
    %v615 = vunpack.c.l.b16 %v402
    %v616 = vunpack.c.h.b16 %v402
    %v617 = vunpack.c.l.b16 %v403
    %v618 = vunpack.c.l.b16 %v404
    %v619 = vunpack.c.h.b16 %v404
    %v620 = vunpack.c.l.b16 %v405
    %v621 = vunpack.c.h.b16 %v405
    %v622 = vunpack.c.l.b16 %v406
    %v623 = vunpack.c.h.b16 %v406
    %v624 = vunpack.c.l.b16 %v407
    %v625 = vunpack.c.h.b16 %v407
    %v626 = vunpack.c.l.b16 %v408
    %v627 = vunpack.c.l.b16 %v409
    %v628 = vunpack.c.h.b16 %v409
    %v629 = vunpack.c.l.b16 %v410
    %v630 = vunpack.c.h.b16 %v410
    %v631 = vunpack.c.l.b16 %v411
    %v632 = vunpack.c.h.b16 %v411
    %v633 = vunpack.c.l.b16 %v412
    %v634 = vunpack.c.h.b16 %v412
    %v635 = vunpack.c.l.b16 %v413
    %v636 = vunpack.c.l.b16 %v414
    %v637 = vunpack.c.h.b16 %v414
    %v638 = vunpack.c.l.b16 %v415
    %v639 = vunpack.c.h.b16 %v415
    %v640 = vunpack.c.l.b16 %v416
    %v641 = vunpack.c.h.b16 %v416
    %v642 = vunpack.c.l.b16 %v417
    %v643 = vunpack.c.h.b16 %v417
    %v644 = vunpack.c.l.b16 %v418
    %v645 = vunpack.c.l.b16 %v419
    %v646 = vunpack.c.h.b16 %v419
    %v647 = vunpack.c.l.b16 %v420
    %v648 = vunpack.c.h.b16 %v420
    %v649 = vunpack.c.l.b16 %v421
    %v650 = vunpack.c.h.b16 %v421
    %v651 = vunpack.c.l.b16 %v422
    %v652 = vunpack.c.h.b16 %v422
    %v653 = vunpack.c.l.b16 %v423
    %v654 = vunpack.c.l.b16 %v424
    %v655 = vunpack.c.h.b16 %v424
    %v656 = vunpack.c.l.b16 %v425
    %v657 = vunpack.c.h.b16 %v425
    %v658 = vunpack.c.l.b16 %v426
    %v659 = vunpack.c.h.b16 %v426
    %v660 = vunpack.c.l.b16 %v427
    %v661 = vunpack.c.h.b16 %v427
    %v662 = vunpack.c.l.b16 %v428
    %v663 = vunpack.c.l.b16 %v429
    %v664 = vunpack.c.h.b16 %v429
    %v665 = vunpack.c.l.b16 %v430
    %v666 = vunpack.c.h.b16 %v430
    %v667 = vunpack.c.l.b16 %v431
    %v668 = vunpack.c.h.b16 %v431
    %v669 = vunpack.c.l.b16 %v432
    %v670 = vunpack.c.h.b16 %v432
    %v671 = vunpack.c.l.b16 %v433
    %v672 = vunpack.c.l.b16 %v434
    %v673 = vunpack.c.h.b16 %v434
    %v674 = vunpack.c.l.b16 %v435
    %v675 = vunpack.c.h.b16 %v435
    %v676 = vunpack.c.l.b16 %v436
    %v677 = vunpack.c.h.b16 %v436
    %v678 = vunpack.c.l.b16 %v437
    %v679 = vunpack.c.h.b16 %v437
    %v680 = vunpack.c.l.b16 %v438
    %v681 = vunpack.c.l.b16 %v439
    %v682 = vunpack.c.h.b16 %v439
    %v683 = vunpack.c.l.b16 %v440
    %v684 = vunpack.c.h.b16 %v440
    %v685 = vunpack.c.l.b16 %v441
    %v686 = vunpack.c.h.b16 %v441
    %v687 = vunpack.c.l.b16 %v442
    %v688 = vunpack.c.h.b16 %v442
    %v689 = vunpack.c.l.b16 %v443
    %v690 = vpack.c.b16 %v555, %v546
    %v691 = vpack.c.b16 %v556, %v547
    %v692 = vpack.c.b16 %v557, %v548
    %v693 = vpack.c.b16 %v558, %v549
    %v694 = vpack.c.b16 %v559, %v550
    %v695 = vpack.c.b16 %v560, %v551
    %v696 = vpack.c.b16 %v561, %v552
    %v697 = vpack.c.b16 %v562, %v553
    %v698 = vpack.c.b16 %v563, %v554
    %v699 = vpack.c.b16 %v573, %v564
    %v700 = vpack.c.b16 %v574, %v565
    %v701 = vpack.c.b16 %v575, %v566
    %v702 = vpack.c.b16 %v576, %v567
    %v703 = vpack.c.b16 %v577, %v568
    %v704 = vpack.c.b16 %v578, %v569
    %v705 = vpack.c.b16 %v579, %v570
    %v706 = vpack.c.b16 %v580, %v571
    %v707 = vpack.c.b16 %v581, %v572
    %v708 = vpack.c.b16 %v591, %v582
    %v709 = vpack.c.b16 %v592, %v583
    %v710 = vpack.c.b16 %v593, %v584
    %v711 = vpack.c.b16 %v594, %v585
    %v712 = vpack.c.b16 %v595, %v586
    %v713 = vpack.c.b16 %v596, %v587
    %v714 = vpack.c.b16 %v597, %v588
    %v715 = vpack.c.b16 %v598, %v589
    %v716 = vpack.c.b16 %v599, %v590
    %v717 = vpack.c.b16 %v609, %v600
    %v718 = vpack.c.b16 %v610, %v601
    %v719 = vpack.c.b16 %v611, %v602
    %v720 = vpack.c.b16 %v612, %v603
    %v721 = vpack.c.b16 %v613, %v604
    %v722 = vpack.c.b16 %v614, %v605
    %v723 = vpack.c.b16 %v615, %v606
    %v724 = vpack.c.b16 %v616, %v607
    %v725 = vpack.c.b16 %v617, %v608
    %v726 = vpack.c.b16 %v627, %v618
    %v727 = vpack.c.b16 %v628, %v619
    %v728 = vpack.c.b16 %v629, %v620
    %v729 = vpack.c.b16 %v630, %v621
    %v730 = vpack.c.b16 %v631, %v622
    %v731 = vpack.c.b16 %v632, %v623
    %v732 = vpack.c.b16 %v633, %v624
    %v733 = vpack.c.b16 %v634, %v625
    %v734 = vpack.c.b16 %v635, %v626
    %v735 = vpack.c.b16 %v645, %v636
    %v736 = vpack.c.b16 %v646, %v637
    %v737 = vpack.c.b16 %v647, %v638
    %v738 = vpack.c.b16 %v648, %v639
    %v739 = vpack.c.b16 %v649, %v640
    %v740 = vpack.c.b16 %v650, %v641
    %v741 = vpack.c.b16 %v651, %v642
    %v742 = vpack.c.b16 %v652, %v643
    %v743 = vpack.c.b16 %v653, %v644
    %v744 = vpack.c.b16 %v663, %v654
    %v745 = vpack.c.b16 %v664, %v655
    %v746 = vpack.c.b16 %v665, %v656
    %v747 = vpack.c.b16 %v666, %v657
    %v748 = vpack.c.b16 %v667, %v658
    %v749 = vpack.c.b16 %v668, %v659
    %v750 = vpack.c.b16 %v669, %v660
    %v751 = vpack.c.b16 %v670, %v661
    %v752 = vpack.c.b16 %v671, %v662
    %v753 = vpack.c.b16 %v681, %v672
    %v754 = vpack.c.b16 %v682, %v673
    %v755 = vpack.c.b16 %v683, %v674
    %v756 = vpack.c.b16 %v684, %v675
    %v757 = vpack.c.b16 %v685, %v676
    %v758 = vpack.c.b16 %v686, %v677
    %v759 = vpack.c.b16 %v687, %v678
    %v760 = vpack.c.b16 %v688, %v679
    %v761 = vpack.c.b16 %v689, %v680
    %834 = vmatpush.bf16.msra.mxu0 %v753
    %835 = vmatpush.bf16.msra.mxu0 %v744
    %836 = vmatpush.bf16.msra.mxu0 %v735
    %837 = vmatpush.bf16.msra.mxu0 %v726
    %838 = vmatpush.bf16.msra.mxu0 %v717
    %839 = vmatpush.bf16.msra.mxu0 %v708
    %840 = vmatpush.bf16.msra.mxu0 %v699
    %841 = vmatpush.bf16.msra.mxu0 %v690
    %842 = vmatmul.bf16.gmra.mxu0 %v363
    %v843 = vpop.f32.mrf.mxu0
    %v844 = vadd.f32 %v448, %v843
    %v845 = vpop.f32.mrf.mxu0
    %v846 = vadd.f32 %v448, %v845
    %847 = vdwg.mxu0
    %848 = vmatpush.bf16.msra.mxu0 %v754
    %849 = vmatpush.bf16.msra.mxu0 %v745
    %850 = vmatpush.bf16.msra.mxu0 %v736
    %851 = vmatpush.bf16.msra.mxu0 %v727
    %852 = vmatpush.bf16.msra.mxu0 %v718
    %853 = vmatpush.bf16.msra.mxu0 %v709
    %854 = vmatpush.bf16.msra.mxu0 %v700
    %855 = vmatpush.bf16.msra.mxu0 %v691
    %856 = vmatmul.bf16.gmra.mxu0 %v363
    %v857 = vpop.f32.mrf.mxu0
    %v858 = vadd.f32 %v449, %v857
    %v859 = vpop.f32.mrf.mxu0
    %v860 = vadd.f32 %v449, %v859
    %861 = vdwg.mxu0
    %862 = vmatpush.bf16.msra.mxu0 %v755
    %863 = vmatpush.bf16.msra.mxu0 %v746
    %864 = vmatpush.bf16.msra.mxu0 %v737
    %865 = vmatpush.bf16.msra.mxu0 %v728
    %866 = vmatpush.bf16.msra.mxu0 %v719
    %867 = vmatpush.bf16.msra.mxu0 %v710
    %868 = vmatpush.bf16.msra.mxu0 %v701
    %869 = vmatpush.bf16.msra.mxu0 %v692
    %870 = vmatmul.bf16.gmra.mxu0 %v363
    %v871 = vpop.f32.mrf.mxu0
    %v872 = vadd.f32 %v450, %v871
    %v873 = vpop.f32.mrf.mxu0
    %v874 = vadd.f32 %v450, %v873
    %875 = vdwg.mxu0
    %876 = vmatpush.bf16.msra.mxu0 %v756
    %877 = vmatpush.bf16.msra.mxu0 %v747
    %878 = vmatpush.bf16.msra.mxu0 %v738
    %879 = vmatpush.bf16.msra.mxu0 %v729
    %880 = vmatpush.bf16.msra.mxu0 %v720
    %881 = vmatpush.bf16.msra.mxu0 %v711
    %882 = vmatpush.bf16.msra.mxu0 %v702
    %883 = vmatpush.bf16.msra.mxu0 %v693
    %884 = vmatmul.bf16.gmra.mxu0 %v363
    %v885 = vpop.f32.mrf.mxu0
    %v886 = vadd.f32 %v451, %v885
    %v887 = vpop.f32.mrf.mxu0
    %v888 = vadd.f32 %v451, %v887
    %889 = vdwg.mxu0
    %890 = vmatpush.bf16.msra.mxu0 %v757
    %891 = vmatpush.bf16.msra.mxu0 %v748
    %892 = vmatpush.bf16.msra.mxu0 %v739
    %893 = vmatpush.bf16.msra.mxu0 %v730
    %894 = vmatpush.bf16.msra.mxu0 %v721
    %895 = vmatpush.bf16.msra.mxu0 %v712
    %896 = vmatpush.bf16.msra.mxu0 %v703
    %897 = vmatpush.bf16.msra.mxu0 %v694
    %898 = vmatmul.bf16.gmra.mxu0 %v363
    %v899 = vpop.f32.mrf.mxu0
    %v900 = vadd.f32 %v452, %v899
    %v901 = vpop.f32.mrf.mxu0
    %v902 = vadd.f32 %v452, %v901
    %903 = vdwg.mxu0
    %904 = vmatpush.bf16.msra.mxu0 %v758
    %905 = vmatpush.bf16.msra.mxu0 %v749
    %906 = vmatpush.bf16.msra.mxu0 %v740
    %907 = vmatpush.bf16.msra.mxu0 %v731
    %908 = vmatpush.bf16.msra.mxu0 %v722
    %909 = vmatpush.bf16.msra.mxu0 %v713
    %910 = vmatpush.bf16.msra.mxu0 %v704
    %911 = vmatpush.bf16.msra.mxu0 %v695
    %912 = vmatmul.bf16.gmra.mxu0 %v363
    %v913 = vpop.f32.mrf.mxu0
    %v914 = vadd.f32 %v453, %v913
    %v915 = vpop.f32.mrf.mxu0
    %v916 = vadd.f32 %v453, %v915
    %917 = vdwg.mxu0
    %918 = vmatpush.bf16.msra.mxu0 %v759
    %919 = vmatpush.bf16.msra.mxu0 %v750
    %920 = vmatpush.bf16.msra.mxu0 %v741
    %921 = vmatpush.bf16.msra.mxu0 %v732
    %922 = vmatpush.bf16.msra.mxu0 %v723
    %923 = vmatpush.bf16.msra.mxu0 %v714
    %924 = vmatpush.bf16.msra.mxu0 %v705
    %925 = vmatpush.bf16.msra.mxu0 %v696
    %926 = vmatmul.bf16.gmra.mxu0 %v363
    %v927 = vpop.f32.mrf.mxu0
    %v928 = vadd.f32 %v454, %v927
    %v929 = vpop.f32.mrf.mxu0
    %v930 = vadd.f32 %v454, %v929
    %931 = vdwg.mxu0
    %932 = vmatpush.bf16.msra.mxu0 %v760
    %933 = vmatpush.bf16.msra.mxu0 %v751
    %934 = vmatpush.bf16.msra.mxu0 %v742
    %935 = vmatpush.bf16.msra.mxu0 %v733
    %936 = vmatpush.bf16.msra.mxu0 %v724
    %937 = vmatpush.bf16.msra.mxu0 %v715
    %938 = vmatpush.bf16.msra.mxu0 %v706
    %939 = vmatpush.bf16.msra.mxu0 %v697
    %940 = vmatmul.bf16.gmra.mxu0 %v363
    %v941 = vpop.f32.mrf.mxu0
    %v942 = vadd.f32 %v455, %v941
    %v943 = vpop.f32.mrf.mxu0
    %v944 = vadd.f32 %v455, %v943
    %945 = vdwg.mxu0
    %946 = vmatpush.bf16.msra.mxu0 %v761
    %947 = vmatpush.bf16.msra.mxu0 %v752
    %948 = vmatpush.bf16.msra.mxu0 %v743
    %949 = vmatpush.bf16.msra.mxu0 %v734
    %950 = vmatpush.bf16.msra.mxu0 %v725
    %951 = vmatpush.bf16.msra.mxu0 %v716
    %952 = vmatpush.bf16.msra.mxu0 %v707
    %953 = vmatpush.bf16.msra.mxu0 %v698
    %954 = vmatmul.bf16.gmra.mxu0 %v363
    %v955 = vpop.f32.mrf.mxu0
    %v956 = vadd.f32 %v456, %v955
    %v957 = vpop.f32.mrf.mxu0
    %v958 = vadd.f32 %v456, %v957
    %959 = vdwg.mxu0
    %v960 = vpack.c.bf16 %v858, %v844
    %v961 = vpack.c.bf16 %v886, %v872
    %v962 = vpack.c.bf16 %v914, %v900
    %v963 = vpack.c.bf16 %v942, %v928
    %v964 = vpack.c.bf16 %v956, %v956
    %v965 = vpack.c.bf16 %v860, %v846
    %v966 = vpack.c.bf16 %v888, %v874
    %v967 = vpack.c.bf16 %v916, %v902
    %v968 = vpack.c.bf16 %v944, %v930
    %v969 = vpack.c.bf16 %v958, %v958
    %v972 = vunpack.c.l.b16 %v960
    %v973 = vunpack.c.l.b16 %v965
    %v974 = vpack.c.b16 %v973, %v972
    %v978 = vunpack.c.h.b16 %v961
    %v979 = vunpack.c.h.b16 %v966
    %v980 = vpack.c.b16 %v979, %v978
    %982 = vmatpush.bf16.xpose.msra.mxu0 0
    %983 = vmatpush.bf16.xpose.msra.mxu0 0
    %984 = vmatpush.bf16.xpose.msra.mxu0 0
    %985 = vmatpush.bf16.xpose.msra.mxu0 0
    %986 = vmatpush.bf16.xpose.msra.mxu0 0
    %987 = vmatpush.bf16.xpose.msra.mxu0 0
    %988 = vmatpush.bf16.xpose.msra.mxu0 0
    %989 = vmatpush.bf16.xpose.msra.mxu0 %v980
    %990 = vmatmul.bf16.gmra.mxu0 %v974
    %v991 = vpop.f32.mrf.mxu0
    %v992 = vadd.f32 %v273, %v991
    %v993 = vpop.f32.mrf.mxu0
    %v994 = vadd.f32 %v274, %v993
    %995 = vdwg.mxu0
    %vm996 = vcmask 130048
    %v997 = vsel %vm996, %v992, -inf
    %998 = vmax.xlane.f32.xlu0 %v997
    %v999 = vpop.xlane.xlu0 %998
    %v1000 = vsel %vm996, %v994, -inf
    %1001 = vmax.xlane.f32.xlu0 %v1000
    %v1002 = vpop.xlane.xlu0 %1001
    %v1003 = vsub.f32 %v992, %v999
    %v1004 = vsub.f32 %v994, %v1002
    %v1005 = vmul.f32 %v1003, 1.442695
    %v1006 = vpow.pop %v1005
    %v1007 = vmul.f32 %v1004, 1.442695
    %v1008 = vpow.pop %v1007
    %v1009 = vsel %vm996, %v1006, 0.0
    %1010 = vadd.xlane.f32.xlu0 %v1009
    %v1011 = vpop.xlane.xlu0 %1010
    %v1012 = vsel %vm996, %v1008, 0.0
    %1013 = vadd.xlane.f32.xlu0 %v1012
    %v1014 = vpop.xlane.xlu0 %1013
    %v1015 = vrcp.pop %v1011
    %v1016 = vrcp.pop %v1014
    %v1017 = vmul.f32 %v1006, %v1015
    %v1018 = vmul.f32 %v1008, %v1016
    %v1019 = vpack.c.bf16 %v1018, %v1017
    %v1022 = vunpack.c.l.b16 %v963
    %v1023 = vunpack.c.l.b16 %v968
    %v1024 = vpack.c.b16 %v1023, %v1022
    %v1027 = vsel %vm996, %v1019, 0
    %1029 = vmatpush.bf16.msra.mxu0 0
    %1030 = vmatpush.bf16.msra.mxu0 0
    %1031 = vmatpush.bf16.msra.mxu0 0
    %1032 = vmatpush.bf16.msra.mxu0 0
    %1033 = vmatpush.bf16.msra.mxu0 0
    %1034 = vmatpush.bf16.msra.mxu0 0
    %1035 = vmatpush.bf16.msra.mxu0 0
    %1036 = vmatpush.bf16.msra.mxu0 %v1024
    %1037 = vmatmul.bf16.gmra.mxu0 %v1027
    %v1038 = vpop.f32.mrf.mxu0
    %v1039 = vadd.f32 0.0, %v1038
    %v1040 = vpop.f32.mrf.mxu0
    %v1041 = vadd.f32 0.0, %v1040
    %1042 = vdwg.mxu0
    %v1043 = vpack.c.bf16 %v1041, %v1039
    %v1044 = vld [vmem:[#allocation6] sm:$0xf]
    %v1045 = vld [vmem:[#allocation6 + $0x4] sm:$0xf]
    %v1046 = vld [vmem:[#allocation6 + $0x8] sm:$0xf]
    %v1047 = vld [vmem:[#allocation6 + $0xc] sm:$0xf]
    %v1048 = vld [vmem:[#allocation6 + $0x10] sm:$0xf]
    %v1049 = vld [vmem:[#allocation6 + $0x14] sm:$0xf]
    %v1050 = vld [vmem:[#allocation6 + $0x18] sm:$0xf]
    %v1051 = vld [vmem:[#allocation6 + $0x1c] sm:$0xf]
    %v1052 = vld [vmem:[#allocation6 + $0x20] sm:$0xf]
    %v1053 = vld [vmem:[#allocation6 + $0x24] sm:$0xf]
    %v1054 = vld [vmem:[#allocation6 + $0x28] sm:$0xf]
    %v1055 = vld [vmem:[#allocation6 + $0x2c] sm:$0xf]
    %v1056 = vld [vmem:[#allocation6 + $0x30] sm:$0xf]
    %v1057 = vld [vmem:[#allocation6 + $0x34] sm:$0xf]
    %v1058 = vld [vmem:[#allocation6 + $0x38] sm:$0xf]
    %v1059 = vld [vmem:[#allocation6 + $0x3c] sm:$0xf]
    %v1060 = vunpack.c.h.b16 %v960
    %v1061 = vunpack.c.h.b16 %v965
    %v1062 = vpack.c.b16 %v1061, %v1060
    %v1066 = vunpack.c.l.b16 %v962
    %v1067 = vunpack.c.l.b16 %v967
    %v1068 = vpack.c.b16 %v1067, %v1066
    %1070 = vmatpush.bf16.xpose.msra.mxu0 0
    %1071 = vmatpush.bf16.xpose.msra.mxu0 0
    %1072 = vmatpush.bf16.xpose.msra.mxu0 0
    %1073 = vmatpush.bf16.xpose.msra.mxu0 0
    %1074 = vmatpush.bf16.xpose.msra.mxu0 0
    %1075 = vmatpush.bf16.xpose.msra.mxu0 0
    %1076 = vmatpush.bf16.xpose.msra.mxu0 0
    %1077 = vmatpush.bf16.xpose.msra.mxu0 %v1068
    %1078 = vmatmul.bf16.gmra.mxu0 %v1062
    %v1079 = vpop.f32.mrf.mxu0
    %v1080 = vadd.f32 %v273, %v1079
    %v1081 = vpop.f32.mrf.mxu0
    %v1082 = vadd.f32 %v274, %v1081
    %1083 = vdwg.mxu0
    %v1084 = vsel %vm996, %v1080, -inf
    %1085 = vmax.xlane.f32.xlu0 %v1084
    %v1086 = vpop.xlane.xlu0 %1085
    %v1087 = vsel %vm996, %v1082, -inf
    %1088 = vmax.xlane.f32.xlu0 %v1087
    %v1089 = vpop.xlane.xlu0 %1088
    %v1090 = vsub.f32 %v1080, %v1086
    %v1091 = vsub.f32 %v1082, %v1089
    %v1092 = vmul.f32 %v1090, 1.442695
    %v1093 = vpow.pop %v1092
    %v1094 = vmul.f32 %v1091, 1.442695
    %v1095 = vpow.pop %v1094
    %v1096 = vsel %vm996, %v1093, 0.0
    %1097 = vadd.xlane.f32.xlu0 %v1096
    %v1098 = vpop.xlane.xlu0 %1097
    %v1099 = vsel %vm996, %v1095, 0.0
    %1100 = vadd.xlane.f32.xlu0 %v1099
    %v1101 = vpop.xlane.xlu0 %1100
    %v1102 = vrcp.pop %v1098
    %v1103 = vrcp.pop %v1101
    %v1104 = vmul.f32 %v1093, %v1102
    %v1105 = vmul.f32 %v1095, %v1103
    %v1106 = vpack.c.bf16 %v1105, %v1104
    %v1107 = vunpack.c.h.b16 %v963
    %v1108 = vunpack.c.h.b16 %v968
    %v1109 = vpack.c.b16 %v1108, %v1107
    %v1112 = vsel %vm996, %v1106, 0
    %1114 = vmatpush.bf16.msra.mxu0 0
    %1115 = vmatpush.bf16.msra.mxu0 0
    %1116 = vmatpush.bf16.msra.mxu0 0
    %1117 = vmatpush.bf16.msra.mxu0 0
    %1118 = vmatpush.bf16.msra.mxu0 0
    %1119 = vmatpush.bf16.msra.mxu0 0
    %1120 = vmatpush.bf16.msra.mxu0 0
    %1121 = vmatpush.bf16.msra.mxu0 %v1109
    %1122 = vmatmul.bf16.gmra.mxu0 %v1112
    %v1123 = vpop.f32.mrf.mxu0
    %v1124 = vadd.f32 0.0, %v1123
    %v1125 = vpop.f32.mrf.mxu0
    %v1126 = vadd.f32 0.0, %v1125
    %1127 = vdwg.mxu0
    %v1128 = vpack.c.bf16 %v1126, %v1124
    %s1129 = scalar_lea.vmem [#allocation6], 64
    %v1130 = vld [vmem:[%s1129] sm:$0xf]
    %v1131 = vld [vmem:[%s1129 + $0x4] sm:$0xf]
    %v1132 = vld [vmem:[%s1129 + $0x8] sm:$0xf]
    %v1133 = vld [vmem:[%s1129 + $0xc] sm:$0xf]
    %v1134 = vld [vmem:[%s1129 + $0x10] sm:$0xf]
    %v1135 = vld [vmem:[%s1129 + $0x14] sm:$0xf]
    %v1136 = vld [vmem:[%s1129 + $0x18] sm:$0xf]
    %v1137 = vld [vmem:[%s1129 + $0x1c] sm:$0xf]
    %v1138 = vld [vmem:[%s1129 + $0x20] sm:$0xf]
    %v1139 = vld [vmem:[%s1129 + $0x24] sm:$0xf]
    %v1140 = vld [vmem:[%s1129 + $0x28] sm:$0xf]
    %v1141 = vld [vmem:[%s1129 + $0x2c] sm:$0xf]
    %v1142 = vld [vmem:[%s1129 + $0x30] sm:$0xf]
    %v1143 = vld [vmem:[%s1129 + $0x34] sm:$0xf]
    %v1144 = vld [vmem:[%s1129 + $0x38] sm:$0xf]
    %v1145 = vld [vmem:[%s1129 + $0x3c] sm:$0xf]
    %v1162 = vunpack.c.l.b16 %v1130
    %v1163 = vunpack.c.l.b16 %v1131
    %v1164 = vunpack.c.l.b16 %v1132
    %v1165 = vunpack.c.l.b16 %v1133
    %v1166 = vunpack.c.l.b16 %v1134
    %v1167 = vunpack.c.l.b16 %v1135
    %v1168 = vunpack.c.l.b16 %v1136
    %v1169 = vunpack.c.l.b16 %v1137
    %v1170 = vunpack.c.l.b16 %v1138
    %v1171 = vunpack.c.l.b16 %v1139
    %v1172 = vunpack.c.l.b16 %v1140
    %v1173 = vunpack.c.l.b16 %v1141
    %v1174 = vunpack.c.l.b16 %v1142
    %v1175 = vunpack.c.l.b16 %v1143
    %v1176 = vunpack.c.l.b16 %v1144
    %v1177 = vunpack.c.l.b16 %v1145
    %v1178 = vpack.c.b16 %v1163, %v1162
    %v1179 = vpack.c.b16 %v1165, %v1164
    %v1180 = vpack.c.b16 %v1167, %v1166
    %v1181 = vpack.c.b16 %v1169, %v1168
    %v1182 = vpack.c.b16 %v1171, %v1170
    %v1183 = vpack.c.b16 %v1173, %v1172
    %v1184 = vpack.c.b16 %v1175, %v1174
    %v1185 = vpack.c.b16 %v1177, %v1176
    %1194 = vmatpush.bf16.msra.mxu0 %v1185
    %1195 = vmatpush.bf16.msra.mxu0 %v1184
    %1196 = vmatpush.bf16.msra.mxu0 %v1183
    %1197 = vmatpush.bf16.msra.mxu0 %v1182
    %1198 = vmatpush.bf16.msra.mxu0 %v1181
    %1199 = vmatpush.bf16.msra.mxu0 %v1180
    %1200 = vmatpush.bf16.msra.mxu0 %v1179
    %1201 = vmatpush.bf16.msra.mxu0 %v1178
    %1202 = vmatmul.bf16.gmra.mxu0 %v1128
    %v1203 = vpop.f32.mrf.mxu0
    %v1204 = vadd.f32 0.0, %v1203
    %v1205 = vpop.f32.mrf.mxu0
    %v1206 = vadd.f32 0.0, %v1205
    %1207 = vdwg.mxu0
    %v1224 = vunpack.c.l.b16 %v1044
    %v1225 = vunpack.c.l.b16 %v1045
    %v1226 = vunpack.c.l.b16 %v1046
    %v1227 = vunpack.c.l.b16 %v1047
    %v1228 = vunpack.c.l.b16 %v1048
    %v1229 = vunpack.c.l.b16 %v1049
    %v1230 = vunpack.c.l.b16 %v1050
    %v1231 = vunpack.c.l.b16 %v1051
    %v1232 = vunpack.c.l.b16 %v1052
    %v1233 = vunpack.c.l.b16 %v1053
    %v1234 = vunpack.c.l.b16 %v1054
    %v1235 = vunpack.c.l.b16 %v1055
    %v1236 = vunpack.c.l.b16 %v1056
    %v1237 = vunpack.c.l.b16 %v1057
    %v1238 = vunpack.c.l.b16 %v1058
    %v1239 = vunpack.c.l.b16 %v1059
    %v1240 = vpack.c.b16 %v1225, %v1224
    %v1241 = vpack.c.b16 %v1227, %v1226
    %v1242 = vpack.c.b16 %v1229, %v1228
    %v1243 = vpack.c.b16 %v1231, %v1230
    %v1244 = vpack.c.b16 %v1233, %v1232
    %v1245 = vpack.c.b16 %v1235, %v1234
    %v1246 = vpack.c.b16 %v1237, %v1236
    %v1247 = vpack.c.b16 %v1239, %v1238
    %1256 = vmatpush.bf16.msra.mxu0 %v1247
    %1257 = vmatpush.bf16.msra.mxu0 %v1246
    %1258 = vmatpush.bf16.msra.mxu0 %v1245
    %1259 = vmatpush.bf16.msra.mxu0 %v1244
    %1260 = vmatpush.bf16.msra.mxu0 %v1243
    %1261 = vmatpush.bf16.msra.mxu0 %v1242
    %1262 = vmatpush.bf16.msra.mxu0 %v1241
    %1263 = vmatpush.bf16.msra.mxu0 %v1240
    %1264 = vmatmul.bf16.gmra.mxu0 %v1043
    %v1265 = vpop.f32.mrf.mxu0
    %v1266 = vadd.f32 %v1204, %v1265
    %v1267 = vpop.f32.mrf.mxu0
    %v1268 = vadd.f32 %v1206, %v1267
    %1269 = vdwg.mxu0
    %v1270 = vunpack.c.l.b16 %v961
    %v1271 = vunpack.c.l.b16 %v966
    %v1272 = vpack.c.b16 %v1271, %v1270
    %v1274 = vunpack.c.h.b16 %v962
    %v1275 = vunpack.c.h.b16 %v967
    %v1276 = vpack.c.b16 %v1275, %v1274
    %1278 = vmatpush.bf16.xpose.msra.mxu0 0
    %1279 = vmatpush.bf16.xpose.msra.mxu0 0
    %1280 = vmatpush.bf16.xpose.msra.mxu0 0
    %1281 = vmatpush.bf16.xpose.msra.mxu0 0
    %1282 = vmatpush.bf16.xpose.msra.mxu0 0
    %1283 = vmatpush.bf16.xpose.msra.mxu0 0
    %1284 = vmatpush.bf16.xpose.msra.mxu0 0
    %1285 = vmatpush.bf16.xpose.msra.mxu0 %v1276
    %1286 = vmatmul.bf16.gmra.mxu0 %v1272
    %v1287 = vpop.f32.mrf.mxu0
    %v1288 = vadd.f32 %v273, %v1287
    %v1289 = vpop.f32.mrf.mxu0
    %v1290 = vadd.f32 %v274, %v1289
    %1291 = vdwg.mxu0
    %v1292 = vsel %vm996, %v1288, -inf
    %1293 = vmax.xlane.f32.xlu0 %v1292
    %v1294 = vpop.xlane.xlu0 %1293
    %v1295 = vsel %vm996, %v1290, -inf
    %1296 = vmax.xlane.f32.xlu0 %v1295
    %v1297 = vpop.xlane.xlu0 %1296
    %v1298 = vsub.f32 %v1288, %v1294
    %v1299 = vsub.f32 %v1290, %v1297
    %v1300 = vmul.f32 %v1298, 1.442695
    %v1301 = vpow.pop %v1300
    %v1302 = vmul.f32 %v1299, 1.442695
    %v1303 = vpow.pop %v1302
    %v1304 = vsel %vm996, %v1301, 0.0
    %1305 = vadd.xlane.f32.xlu0 %v1304
    %v1306 = vpop.xlane.xlu0 %1305
    %v1307 = vsel %vm996, %v1303, 0.0
    %1308 = vadd.xlane.f32.xlu0 %v1307
    %v1309 = vpop.xlane.xlu0 %1308
    %v1310 = vrcp.pop %v1306
    %v1311 = vrcp.pop %v1309
    %v1312 = vmul.f32 %v1301, %v1310
    %v1313 = vmul.f32 %v1303, %v1311
    %v1314 = vpack.c.bf16 %v1313, %v1312
    %v1317 = vunpack.c.l.b16 %v964
    %v1318 = vunpack.c.l.b16 %v969
    %v1319 = vpack.c.b16 %v1318, %v1317
    %v1322 = vsel %vm996, %v1314, 0
    %1324 = vmatpush.bf16.msra.mxu0 0
    %1325 = vmatpush.bf16.msra.mxu0 0
    %1326 = vmatpush.bf16.msra.mxu0 0
    %1327 = vmatpush.bf16.msra.mxu0 0
    %1328 = vmatpush.bf16.msra.mxu0 0
    %1329 = vmatpush.bf16.msra.mxu0 0
    %1330 = vmatpush.bf16.msra.mxu0 0
    %1331 = vmatpush.bf16.msra.mxu0 %v1319
    %1332 = vmatmul.bf16.gmra.mxu0 %v1322
    %v1333 = vpop.f32.mrf.mxu0
    %v1334 = vadd.f32 0.0, %v1333
    %v1335 = vpop.f32.mrf.mxu0
    %v1336 = vadd.f32 0.0, %v1335
    %1337 = vdwg.mxu0
    %v1338 = vpack.c.bf16 %v1336, %v1334
    %s1339 = scalar_lea.vmem [#allocation6], 128
    %v1340 = vld [vmem:[%s1339] sm:$0xf]
    %v1341 = vld [vmem:[%s1339 + $0x4] sm:$0xf]
    %v1342 = vld [vmem:[%s1339 + $0x8] sm:$0xf]
    %v1343 = vld [vmem:[%s1339 + $0xc] sm:$0xf]
    %v1344 = vld [vmem:[%s1339 + $0x10] sm:$0xf]
    %v1345 = vld [vmem:[%s1339 + $0x14] sm:$0xf]
    %v1346 = vld [vmem:[%s1339 + $0x18] sm:$0xf]
    %v1347 = vld [vmem:[%s1339 + $0x1c] sm:$0xf]
    %v1348 = vld [vmem:[%s1339 + $0x20] sm:$0xf]
    %v1349 = vld [vmem:[%s1339 + $0x24] sm:$0xf]
    %v1350 = vld [vmem:[%s1339 + $0x28] sm:$0xf]
    %v1351 = vld [vmem:[%s1339 + $0x2c] sm:$0xf]
    %v1352 = vld [vmem:[%s1339 + $0x30] sm:$0xf]
    %v1353 = vld [vmem:[%s1339 + $0x34] sm:$0xf]
    %v1354 = vld [vmem:[%s1339 + $0x38] sm:$0xf]
    %v1355 = vld [vmem:[%s1339 + $0x3c] sm:$0xf]
    %v1372 = vunpack.c.l.b16 %v1340
    %v1373 = vunpack.c.l.b16 %v1341
    %v1374 = vunpack.c.l.b16 %v1342
    %v1375 = vunpack.c.l.b16 %v1343
    %v1376 = vunpack.c.l.b16 %v1344
    %v1377 = vunpack.c.l.b16 %v1345
    %v1378 = vunpack.c.l.b16 %v1346
    %v1379 = vunpack.c.l.b16 %v1347
    %v1380 = vunpack.c.l.b16 %v1348
    %v1381 = vunpack.c.l.b16 %v1349
    %v1382 = vunpack.c.l.b16 %v1350
    %v1383 = vunpack.c.l.b16 %v1351
    %v1384 = vunpack.c.l.b16 %v1352
    %v1385 = vunpack.c.l.b16 %v1353
    %v1386 = vunpack.c.l.b16 %v1354
    %v1387 = vunpack.c.l.b16 %v1355
    %v1388 = vpack.c.b16 %v1373, %v1372
    %v1389 = vpack.c.b16 %v1375, %v1374
    %v1390 = vpack.c.b16 %v1377, %v1376
    %v1391 = vpack.c.b16 %v1379, %v1378
    %v1392 = vpack.c.b16 %v1381, %v1380
    %v1393 = vpack.c.b16 %v1383, %v1382
    %v1394 = vpack.c.b16 %v1385, %v1384
    %v1395 = vpack.c.b16 %v1387, %v1386
    %1404 = vmatpush.bf16.msra.mxu0 %v1395
    %1405 = vmatpush.bf16.msra.mxu0 %v1394
    %1406 = vmatpush.bf16.msra.mxu0 %v1393
    %1407 = vmatpush.bf16.msra.mxu0 %v1392
    %1408 = vmatpush.bf16.msra.mxu0 %v1391
    %1409 = vmatpush.bf16.msra.mxu0 %v1390
    %1410 = vmatpush.bf16.msra.mxu0 %v1389
    %1411 = vmatpush.bf16.msra.mxu0 %v1388
    %1412 = vmatmul.bf16.gmra.mxu0 %v1338
    %v1413 = vpop.f32.mrf.mxu0
    %v1414 = vadd.f32 0.0, %v1413
    %v1415 = vpop.f32.mrf.mxu0
    %v1416 = vadd.f32 0.0, %v1415
    %1417 = vdwg.mxu0
    %v1418 = vadd.f32 %v1266, %v1414
    %v1419 = vadd.f32 %v1268, %v1416
    %v1420 = vadd.f32 %v271, %v1418
    %v1421 = vadd.f32 %v272, %v1419
    %v1422 = vld [vmem:[#allocation7] sm:$0x1]
    %v1424 = vperm.slane %v1422, 0
    %v1426 = vadd.f32 %v1420, %v1424
    %v1427 = vadd.f32 %v1421, %v1424
    %v1428 = vld [vmem:[#allocation18] sm:$0x1]
    %v1429 = vld [vmem:[#allocation19] sm:$0x1]
    %1430 = vadd.xlane.f32.xlu0 %v1426
    %v1431 = vpop.xlane.xlu0 %1430
    %1432 = vadd.xlane.f32.xlu0 %v1427
    %v1433 = vpop.xlane.xlu0 %1432
    %v1434 = vmul.f32 %v1431, 0.020833334
    %v1435 = vmul.f32 %v1433, 0.020833334
    %v1436 = vsub.f32 %v1426, %v1434
    %v1437 = vsub.f32 %v1427, %v1435
    %v1438 = vsel %vm270, %v1436, 0.0
    %v1439 = vsel %vm270, %v1437, 0.0
    %v1440 = vmul.f32 %v1438, %v1438
    %v1441 = vmul.f32 %v1439, %v1439
    %1442 = vadd.xlane.f32.xlu0 %v1440
    %v1443 = vpop.xlane.xlu0 %1442
    %1444 = vadd.xlane.f32.xlu0 %v1441
    %v1445 = vpop.xlane.xlu0 %1444
    %v1446 = vmul.f32 %v1443, 0.021276595
    %v1447 = vmul.f32 %v1445, 0.021276595
    %v1448 = vrsqrt.pop %v1446
    %v1449 = vmul.f32 %v1448, %v1446
    %v1450 = vmul.f32 %v1449, %v1448
    %v1451 = vmul.f32 0.5, %v1450
    %v1452 = vsub.f32 1.5, %v1451
    %v1453 = vmul.f32 %v1448, %v1452
    %v1454 = vmul.f32 %v1446, %v1453
    %vm1455 = vcmp.eq.f32.partialorder %v1446, inf
    %v1456 = vsel %vm1455, %v1446, %v1454
    %vm1457 = vcmp.eq.f32.partialorder %v1446, 0.0
    %v1458 = vand.u32 %v1446, 2147483648
    %v1459 = vsel %vm1457, %v1458, %v1456
    %v1460 = vrsqrt.pop %v1447
    %v1461 = vmul.f32 %v1460, %v1447
    %v1462 = vmul.f32 %v1461, %v1460
    %v1463 = vmul.f32 0.5, %v1462
    %v1464 = vsub.f32 1.5, %v1463
    %v1465 = vmul.f32 %v1460, %v1464
    %v1466 = vmul.f32 %v1447, %v1465
    %vm1467 = vcmp.eq.f32.partialorder %v1447, inf
    %v1468 = vsel %vm1467, %v1447, %v1466
    %vm1469 = vcmp.eq.f32.partialorder %v1447, 0.0
    %v1470 = vand.u32 %v1447, 2147483648
    %v1471 = vsel %vm1469, %v1470, %v1468
    %v1472 = vadd.f32 %v1459, 1e-06
    %v1473 = vadd.f32 %v1471, 1e-06
    %v1474 = vrcp.pop %v1472
    %v1475 = vmul.f32 %v1472, %v1474
    %v1476 = vsub.f32 1.0, %v1475
    %v1477 = vmul.f32 %v1474, %v1476
    %v1478 = vadd.f32 %v1474, %v1477
    %vm1479 = vweird.f32 %v1472
    %vm1480 = vweird.f32 %v1474
    %vm1481 = vmor %vm1479, %vm1480
    %v1482 = vsel %vm1481, %v1474, %v1478
    %v1483 = vand.u32 2147483647, %v1472
    %vm1484 = vcmp.eq.f32.partialorder %v1483, 8.507059e+37
    %v1485 = vand.u32 %v1472, 2147483648
    %v1486 = vor.u32 1.1754944e-38, %v1485
    %v1487 = vsel %vm1484, %v1486, %v1482
    %v1488 = vmul.f32 1.0, %v1487
    %v1489 = vrcp.pop %v1473
    %v1490 = vmul.f32 %v1473, %v1489
    %v1491 = vsub.f32 1.0, %v1490
    %v1492 = vmul.f32 %v1489, %v1491
    %v1493 = vadd.f32 %v1489, %v1492
    %vm1494 = vweird.f32 %v1473
    %vm1495 = vweird.f32 %v1489
    %vm1496 = vmor %vm1494, %vm1495
    %v1497 = vsel %vm1496, %v1489, %v1493
    %v1498 = vand.u32 2147483647, %v1473
    %vm1499 = vcmp.eq.f32.partialorder %v1498, 8.507059e+37
    %v1500 = vand.u32 %v1473, 2147483648
    %v1501 = vor.u32 1.1754944e-38, %v1500
    %v1502 = vsel %vm1499, %v1501, %v1497
    %v1503 = vmul.f32 1.0, %v1502
    %v1504 = vmul.f32 %v1438, %v1488
    %v1505 = vmul.f32 %v1439, %v1503
    %v1507 = vperm.slane %v1428, 0
    %v1509 = vmul.f32 %v1507, %v1504
    %v1510 = vmul.f32 %v1507, %v1505
    %v1512 = vperm.slane %v1429, 0
    %v1514 = vadd.f32 %v1509, %v1512
    %v1515 = vadd.f32 %v1510, %v1512
    %v1516 = vpack.c.bf16 %v1515, %v1514
    %v1517 = vld [vmem:[#allocation9] sm:$0xf]
    %v1518 = vld [vmem:[#allocation9 + $0x4] sm:$0xf]
    %v1519 = vld [vmem:[#allocation9 + $0x8] sm:$0xf]
    %v1520 = vld [vmem:[#allocation9 + $0xc] sm:$0xf]
    %v1521 = vld [vmem:[#allocation9 + $0x10] sm:$0xf]
    %v1522 = vld [vmem:[#allocation9 + $0x14] sm:$0xf]
    %v1523 = vld [vmem:[#allocation9 + $0x18] sm:$0xf]
    %v1524 = vld [vmem:[#allocation9 + $0x1c] sm:$0xf]
    %v1525 = vld [vmem:[#allocation9 + $0x20] sm:$0xf]
    %v1526 = vld [vmem:[#allocation9 + $0x24] sm:$0xf]
    %v1527 = vld [vmem:[#allocation9 + $0x28] sm:$0xf]
    %v1528 = vld [vmem:[#allocation9 + $0x2c] sm:$0xf]
    %v1529 = vld [vmem:[#allocation9 + $0x30] sm:$0xf]
    %v1530 = vld [vmem:[#allocation9 + $0x34] sm:$0xf]
    %v1531 = vld [vmem:[#allocation9 + $0x38] sm:$0xf]
    %v1532 = vld [vmem:[#allocation9 + $0x3c] sm:$0xf]
    %v1533 = vld [vmem:[#allocation10] sm:$0x1]
    %v1535 = vperm.slane %v1533, 0
    %v1553 = vunpack.c.l.b16 %v1517
    %v1554 = vunpack.c.l.b16 %v1518
    %v1555 = vunpack.c.l.b16 %v1519
    %v1556 = vunpack.c.l.b16 %v1520
    %v1557 = vunpack.c.l.b16 %v1521
    %v1558 = vunpack.c.l.b16 %v1522
    %v1559 = vunpack.c.l.b16 %v1523
    %v1560 = vunpack.c.l.b16 %v1524
    %v1561 = vunpack.c.l.b16 %v1525
    %v1562 = vunpack.c.l.b16 %v1526
    %v1563 = vunpack.c.l.b16 %v1527
    %v1564 = vunpack.c.l.b16 %v1528
    %v1565 = vunpack.c.l.b16 %v1529
    %v1566 = vunpack.c.l.b16 %v1530
    %v1567 = vunpack.c.l.b16 %v1531
    %v1568 = vunpack.c.l.b16 %v1532
    %v1569 = vpack.c.b16 %v1554, %v1553
    %v1570 = vpack.c.b16 %v1556, %v1555
    %v1571 = vpack.c.b16 %v1558, %v1557
    %v1572 = vpack.c.b16 %v1560, %v1559
    %v1573 = vpack.c.b16 %v1562, %v1561
    %v1574 = vpack.c.b16 %v1564, %v1563
    %v1575 = vpack.c.b16 %v1566, %v1565
    %v1576 = vpack.c.b16 %v1568, %v1567
    %1585 = vmatpush.bf16.msra.mxu0 %v1576
    %1586 = vmatpush.bf16.msra.mxu0 %v1575
    %1587 = vmatpush.bf16.msra.mxu0 %v1574
    %1588 = vmatpush.bf16.msra.mxu0 %v1573
    %1589 = vmatpush.bf16.msra.mxu0 %v1572
    %1590 = vmatpush.bf16.msra.mxu0 %v1571
    %1591 = vmatpush.bf16.msra.mxu0 %v1570
    %1592 = vmatpush.bf16.msra.mxu0 %v1569
    %1593 = vmatmul.bf16.gmra.mxu0 %v1516
    %v1594 = vpop.f32.mrf.mxu0
    %v1595 = vadd.f32 %v1535, %v1594
    %v1596 = vpop.f32.mrf.mxu0
    %v1597 = vadd.f32 %v1535, %v1596
    %1598 = vdwg.mxu0
    %v1599 = vmax.f32 %v1595, 0.0
    %v1600 = vmax.f32 %v1597, 0.0
    %v1601 = vpack.c.bf16 %v1600, %v1599
    %v1602 = vld [vmem:[#allocation12] sm:$0xf]
    %v1603 = vld [vmem:[#allocation12 + $0x4] sm:$0xf]
    %v1604 = vld [vmem:[#allocation12 + $0x8] sm:$0xf]
    %v1605 = vld [vmem:[#allocation12 + $0xc] sm:$0xf]
    %v1606 = vld [vmem:[#allocation12 + $0x10] sm:$0xf]
    %v1607 = vld [vmem:[#allocation12 + $0x14] sm:$0xf]
    %v1608 = vld [vmem:[#allocation12 + $0x18] sm:$0xf]
    %v1609 = vld [vmem:[#allocation12 + $0x1c] sm:$0xf]
    %v1610 = vld [vmem:[#allocation12 + $0x20] sm:$0xf]
    %v1611 = vld [vmem:[#allocation12 + $0x24] sm:$0xf]
    %v1612 = vld [vmem:[#allocation12 + $0x28] sm:$0xf]
    %v1613 = vld [vmem:[#allocation12 + $0x2c] sm:$0xf]
    %v1614 = vld [vmem:[#allocation12 + $0x30] sm:$0xf]
    %v1615 = vld [vmem:[#allocation12 + $0x34] sm:$0xf]
    %v1616 = vld [vmem:[#allocation12 + $0x38] sm:$0xf]
    %v1617 = vld [vmem:[#allocation12 + $0x3c] sm:$0xf]
    %v1634 = vunpack.c.l.b16 %v1602
    %v1635 = vunpack.c.l.b16 %v1603
    %v1636 = vunpack.c.l.b16 %v1604
    %v1637 = vunpack.c.l.b16 %v1605
    %v1638 = vunpack.c.l.b16 %v1606
    %v1639 = vunpack.c.l.b16 %v1607
    %v1640 = vunpack.c.l.b16 %v1608
    %v1641 = vunpack.c.l.b16 %v1609
    %v1642 = vunpack.c.l.b16 %v1610
    %v1643 = vunpack.c.l.b16 %v1611
    %v1644 = vunpack.c.l.b16 %v1612
    %v1645 = vunpack.c.l.b16 %v1613
    %v1646 = vunpack.c.l.b16 %v1614
    %v1647 = vunpack.c.l.b16 %v1615
    %v1648 = vunpack.c.l.b16 %v1616
    %v1649 = vunpack.c.l.b16 %v1617
    %v1650 = vpack.c.b16 %v1635, %v1634
    %v1651 = vpack.c.b16 %v1637, %v1636
    %v1652 = vpack.c.b16 %v1639, %v1638
    %v1653 = vpack.c.b16 %v1641, %v1640
    %v1654 = vpack.c.b16 %v1643, %v1642
    %v1655 = vpack.c.b16 %v1645, %v1644
    %v1656 = vpack.c.b16 %v1647, %v1646
    %v1657 = vpack.c.b16 %v1649, %v1648
    %1666 = vmatpush.bf16.msra.mxu0 %v1657
    %1667 = vmatpush.bf16.msra.mxu0 %v1656
    %1668 = vmatpush.bf16.msra.mxu0 %v1655
    %1669 = vmatpush.bf16.msra.mxu0 %v1654
    %1670 = vmatpush.bf16.msra.mxu0 %v1653
    %1671 = vmatpush.bf16.msra.mxu0 %v1652
    %1672 = vmatpush.bf16.msra.mxu0 %v1651
    %1673 = vmatpush.bf16.msra.mxu0 %v1650
    %1674 = vmatmul.bf16.gmra.mxu0 %v1601
    %v1675 = vpop.f32.mrf.mxu0
    %v1676 = vadd.f32 0.0, %v1675
    %v1677 = vpop.f32.mrf.mxu0
    %v1678 = vadd.f32 0.0, %v1677
    %1679 = vdwg.mxu0
    %v1680 = vadd.f32 %v1426, %v1676
    %v1681 = vadd.f32 %v1427, %v1678
    %v1682 = vld [vmem:[#allocation13] sm:$0x1]
    %v1684 = vperm.slane %v1682, 0
    %v1686 = vadd.f32 %v1680, %v1684
    %v1687 = vadd.f32 %v1681, %v1684
    %s1688 = scalar_lea.vmem [#allocation15], 1
    %v1689 = vld [vmem:[%s1688] sm:$0x1]
    %s1690 = scalar_lea.vmem [#allocation16], 1
    %v1691 = vld [vmem:[%s1690] sm:$0x1]
    %1692 = vadd.xlane.f32.xlu0 %v1686
    %v1693 = vpop.xlane.xlu0 %1692
    %1694 = vadd.xlane.f32.xlu0 %v1687
    %v1695 = vpop.xlane.xlu0 %1694
    %v1696 = vmul.f32 %v1693, 0.020833334
    %v1697 = vmul.f32 %v1695, 0.020833334
    %v1698 = vsub.f32 %v1686, %v1696
    %v1699 = vsub.f32 %v1687, %v1697
    %v1700 = vsel %vm270, %v1698, 0.0
    %v1701 = vsel %vm270, %v1699, 0.0
    %v1702 = vmul.f32 %v1700, %v1700
    %v1703 = vmul.f32 %v1701, %v1701
    %1704 = vadd.xlane.f32.xlu0 %v1702
    %v1705 = vpop.xlane.xlu0 %1704
    %1706 = vadd.xlane.f32.xlu0 %v1703
    %v1707 = vpop.xlane.xlu0 %1706
    %v1708 = vmul.f32 %v1705, 0.021276595
    %v1709 = vmul.f32 %v1707, 0.021276595
    %v1710 = vrsqrt.pop %v1708
    %v1711 = vmul.f32 %v1710, %v1708
    %v1712 = vmul.f32 %v1711, %v1710
    %v1713 = vmul.f32 0.5, %v1712
    %v1714 = vsub.f32 1.5, %v1713
    %v1715 = vmul.f32 %v1710, %v1714
    %v1716 = vmul.f32 %v1708, %v1715
    %vm1717 = vcmp.eq.f32.partialorder %v1708, inf
    %v1718 = vsel %vm1717, %v1708, %v1716
    %vm1719 = vcmp.eq.f32.partialorder %v1708, 0.0
    %v1720 = vand.u32 %v1708, 2147483648
    %v1721 = vsel %vm1719, %v1720, %v1718
    %v1722 = vrsqrt.pop %v1709
    %v1723 = vmul.f32 %v1722, %v1709
    %v1724 = vmul.f32 %v1723, %v1722
    %v1725 = vmul.f32 0.5, %v1724
    %v1726 = vsub.f32 1.5, %v1725
    %v1727 = vmul.f32 %v1722, %v1726
    %v1728 = vmul.f32 %v1709, %v1727
    %vm1729 = vcmp.eq.f32.partialorder %v1709, inf
    %v1730 = vsel %vm1729, %v1709, %v1728
    %vm1731 = vcmp.eq.f32.partialorder %v1709, 0.0
    %v1732 = vand.u32 %v1709, 2147483648
    %v1733 = vsel %vm1731, %v1732, %v1730
    %v1734 = vadd.f32 %v1721, 1e-06
    %v1735 = vadd.f32 %v1733, 1e-06
    %v1736 = vrcp.pop %v1734
    %v1737 = vmul.f32 %v1734, %v1736
    %v1738 = vsub.f32 1.0, %v1737
    %v1739 = vmul.f32 %v1736, %v1738
    %v1740 = vadd.f32 %v1736, %v1739
    %vm1741 = vweird.f32 %v1734
    %vm1742 = vweird.f32 %v1736
    %vm1743 = vmor %vm1741, %vm1742
    %v1744 = vsel %vm1743, %v1736, %v1740
    %v1745 = vand.u32 2147483647, %v1734
    %vm1746 = vcmp.eq.f32.partialorder %v1745, 8.507059e+37
    %v1747 = vand.u32 %v1734, 2147483648
    %v1748 = vor.u32 1.1754944e-38, %v1747
    %v1749 = vsel %vm1746, %v1748, %v1744
    %v1750 = vmul.f32 1.0, %v1749
    %v1751 = vrcp.pop %v1735
    %v1752 = vmul.f32 %v1735, %v1751
    %v1753 = vsub.f32 1.0, %v1752
    %v1754 = vmul.f32 %v1751, %v1753
    %v1755 = vadd.f32 %v1751, %v1754
    %vm1756 = vweird.f32 %v1735
    %vm1757 = vweird.f32 %v1751
    %vm1758 = vmor %vm1756, %vm1757
    %v1759 = vsel %vm1758, %v1751, %v1755
    %v1760 = vand.u32 2147483647, %v1735
    %vm1761 = vcmp.eq.f32.partialorder %v1760, 8.507059e+37
    %v1762 = vand.u32 %v1735, 2147483648
    %v1763 = vor.u32 1.1754944e-38, %v1762
    %v1764 = vsel %vm1761, %v1763, %v1759
    %v1765 = vmul.f32 1.0, %v1764
    %v1766 = vmul.f32 %v1700, %v1750
    %v1767 = vmul.f32 %v1701, %v1765
    %v1769 = vperm.slane %v1689, 0
    %v1771 = vmul.f32 %v1769, %v1766
    %v1772 = vmul.f32 %v1769, %v1767
    %v1774 = vperm.slane %v1691, 0
    %v1776 = vadd.f32 %v1771, %v1774
    %v1777 = vadd.f32 %v1772, %v1774
    %v1778 = vpack.c.bf16 %v1777, %v1776
    %s1779 = scalar_lea.vmem [#allocation2], 576
    %v1780 = vld [vmem:[%s1779] sm:$0xff]
    %v1781 = vld [vmem:[%s1779 + $0x8] sm:$0xff]
    %v1782 = vld [vmem:[%s1779 + $0x10] sm:$0xff]
    %v1783 = vld [vmem:[%s1779 + $0x18] sm:$0xff]
    %v1784 = vld [vmem:[%s1779 + $0x20] sm:$0xf]
    %v1785 = vld [vmem:[%s1779 + $0x24] sm:$0xff]
    %v1786 = vld [vmem:[%s1779 + $0x2c] sm:$0xff]
    %v1787 = vld [vmem:[%s1779 + $0x34] sm:$0xff]
    %v1788 = vld [vmem:[%s1779 + $0x3c] sm:$0xff]
    %v1789 = vld [vmem:[%s1779 + $0x44] sm:$0xf]
    %v1790 = vld [vmem:[%s1779 + $0x48] sm:$0xff]
    %v1791 = vld [vmem:[%s1779 + $0x50] sm:$0xff]
    %v1792 = vld [vmem:[%s1779 + $0x58] sm:$0xff]
    %v1793 = vld [vmem:[%s1779 + $0x60] sm:$0xff]
    %v1794 = vld [vmem:[%s1779 + $0x68] sm:$0xf]
    %v1795 = vld [vmem:[%s1779 + $0x6c] sm:$0xff]
    %v1796 = vld [vmem:[%s1779 + $0x74] sm:$0xff]
    %v1797 = vld [vmem:[%s1779 + $0x7c] sm:$0xff]
    %v1798 = vld [vmem:[%s1779 + $0x84] sm:$0xff]
    %v1799 = vld [vmem:[%s1779 + $0x8c] sm:$0xf]
    %v1800 = vld [vmem:[%s1779 + $0x90] sm:$0xff]
    %v1801 = vld [vmem:[%s1779 + $0x98] sm:$0xff]
    %v1802 = vld [vmem:[%s1779 + $0xa0] sm:$0xff]
    %v1803 = vld [vmem:[%s1779 + $0xa8] sm:$0xff]
    %v1804 = vld [vmem:[%s1779 + $0xb0] sm:$0xf]
    %v1805 = vld [vmem:[%s1779 + $0xb4] sm:$0xff]
    %v1806 = vld [vmem:[%s1779 + $0xbc] sm:$0xff]
    %v1807 = vld [vmem:[%s1779 + $0xc4] sm:$0xff]
    %v1808 = vld [vmem:[%s1779 + $0xcc] sm:$0xff]
    %v1809 = vld [vmem:[%s1779 + $0xd4] sm:$0xf]
    %v1810 = vld [vmem:[%s1779 + $0xd8] sm:$0xff]
    %v1811 = vld [vmem:[%s1779 + $0xe0] sm:$0xff]
    %v1812 = vld [vmem:[%s1779 + $0xe8] sm:$0xff]
    %v1813 = vld [vmem:[%s1779 + $0xf0] sm:$0xff]
    %v1814 = vld [vmem:[%s1779 + $0xf8] sm:$0xf]
    %v1815 = vld [vmem:[%s1779 + $0xfc] sm:$0xff]
    %v1816 = vld [vmem:[%s1779 + $0x104] sm:$0xff]
    %v1817 = vld [vmem:[%s1779 + $0x10c] sm:$0xff]
    %v1818 = vld [vmem:[%s1779 + $0x114] sm:$0xff]
    %v1819 = vld [vmem:[%s1779 + $0x11c] sm:$0xf]
    %v1820 = vld [vmem:[%s1779 + $0x120] sm:$0xff]
    %v1821 = vld [vmem:[%s1779 + $0x128] sm:$0xff]
    %v1822 = vld [vmem:[%s1779 + $0x130] sm:$0xff]
    %v1823 = vld [vmem:[%s1779 + $0x138] sm:$0xff]
    %v1824 = vld [vmem:[%s1779 + $0x140] sm:$0xf]
    %v1825 = vld [vmem:[%s1779 + $0x144] sm:$0xff]
    %v1826 = vld [vmem:[%s1779 + $0x14c] sm:$0xff]
    %v1827 = vld [vmem:[%s1779 + $0x154] sm:$0xff]
    %v1828 = vld [vmem:[%s1779 + $0x15c] sm:$0xff]
    %v1829 = vld [vmem:[%s1779 + $0x164] sm:$0xf]
    %v1830 = vld [vmem:[%s1779 + $0x168] sm:$0xff]
    %v1831 = vld [vmem:[%s1779 + $0x170] sm:$0xff]
    %v1832 = vld [vmem:[%s1779 + $0x178] sm:$0xff]
    %v1833 = vld [vmem:[%s1779 + $0x180] sm:$0xff]
    %v1834 = vld [vmem:[%s1779 + $0x188] sm:$0xf]
    %v1835 = vld [vmem:[%s1779 + $0x18c] sm:$0xff]
    %v1836 = vld [vmem:[%s1779 + $0x194] sm:$0xff]
    %v1837 = vld [vmem:[%s1779 + $0x19c] sm:$0xff]
    %v1838 = vld [vmem:[%s1779 + $0x1a4] sm:$0xff]
    %v1839 = vld [vmem:[%s1779 + $0x1ac] sm:$0xf]
    %v1840 = vld [vmem:[%s1779 + $0x1b0] sm:$0xff]
    %v1841 = vld [vmem:[%s1779 + $0x1b8] sm:$0xff]
    %v1842 = vld [vmem:[%s1779 + $0x1c0] sm:$0xff]
    %v1843 = vld [vmem:[%s1779 + $0x1c8] sm:$0xff]
    %v1844 = vld [vmem:[%s1779 + $0x1d0] sm:$0xf]
    %v1845 = vld [vmem:[%s1779 + $0x1d4] sm:$0xff]
    %v1846 = vld [vmem:[%s1779 + $0x1dc] sm:$0xff]
    %v1847 = vld [vmem:[%s1779 + $0x1e4] sm:$0xff]
    %v1848 = vld [vmem:[%s1779 + $0x1ec] sm:$0xff]
    %v1849 = vld [vmem:[%s1779 + $0x1f4] sm:$0xf]
    %v1850 = vld [vmem:[%s1779 + $0x1f8] sm:$0xff]
    %v1851 = vld [vmem:[%s1779 + $0x200] sm:$0xff]
    %v1852 = vld [vmem:[%s1779 + $0x208] sm:$0xff]
    %v1853 = vld [vmem:[%s1779 + $0x210] sm:$0xff]
    %v1854 = vld [vmem:[%s1779 + $0x218] sm:$0xf]
    %v1855 = vld [vmem:[%s1779 + $0x21c] sm:$0xff]
    %v1856 = vld [vmem:[%s1779 + $0x224] sm:$0xff]
    %v1857 = vld [vmem:[%s1779 + $0x22c] sm:$0xff]
    %v1858 = vld [vmem:[%s1779 + $0x234] sm:$0xff]
    %v1859 = vld [vmem:[%s1779 + $0x23c] sm:$0xf]
    %s1860 = scalar_lea.vmem [#allocation4], 9
    %v1861 = vld [vmem:[%s1860] sm:$0xff]
    %v1862 = vld [vmem:[%s1860 + $0x8] sm:$0x1]
    %v1865 = vperm.slane %v1861, 0
    %v1866 = vperm.slane %v1861, 1
    %v1867 = vperm.slane %v1861, 2
    %v1868 = vperm.slane %v1861, 3
    %v1869 = vperm.slane %v1861, 4
    %v1870 = vperm.slane %v1861, 5
    %v1871 = vperm.slane %v1861, 6
    %v1872 = vperm.slane %v1861, 7
    %v1873 = vperm.slane %v1862, 0
    %v1963 = vunpack.c.l.b16 %v1780
    %v1964 = vunpack.c.h.b16 %v1780
    %v1965 = vunpack.c.l.b16 %v1781
    %v1966 = vunpack.c.h.b16 %v1781
    %v1967 = vunpack.c.l.b16 %v1782
    %v1968 = vunpack.c.h.b16 %v1782
    %v1969 = vunpack.c.l.b16 %v1783
    %v1970 = vunpack.c.h.b16 %v1783
    %v1971 = vunpack.c.l.b16 %v1784
    %v1972 = vunpack.c.l.b16 %v1785
    %v1973 = vunpack.c.h.b16 %v1785
    %v1974 = vunpack.c.l.b16 %v1786
    %v1975 = vunpack.c.h.b16 %v1786
    %v1976 = vunpack.c.l.b16 %v1787
    %v1977 = vunpack.c.h.b16 %v1787
    %v1978 = vunpack.c.l.b16 %v1788
    %v1979 = vunpack.c.h.b16 %v1788
    %v1980 = vunpack.c.l.b16 %v1789
    %v1981 = vunpack.c.l.b16 %v1790
    %v1982 = vunpack.c.h.b16 %v1790
    %v1983 = vunpack.c.l.b16 %v1791
    %v1984 = vunpack.c.h.b16 %v1791
    %v1985 = vunpack.c.l.b16 %v1792
    %v1986 = vunpack.c.h.b16 %v1792
    %v1987 = vunpack.c.l.b16 %v1793
    %v1988 = vunpack.c.h.b16 %v1793
    %v1989 = vunpack.c.l.b16 %v1794
    %v1990 = vunpack.c.l.b16 %v1795
    %v1991 = vunpack.c.h.b16 %v1795
    %v1992 = vunpack.c.l.b16 %v1796
    %v1993 = vunpack.c.h.b16 %v1796
    %v1994 = vunpack.c.l.b16 %v1797
    %v1995 = vunpack.c.h.b16 %v1797
    %v1996 = vunpack.c.l.b16 %v1798
    %v1997 = vunpack.c.h.b16 %v1798
    %v1998 = vunpack.c.l.b16 %v1799
    %v1999 = vunpack.c.l.b16 %v1800
    %v2000 = vunpack.c.h.b16 %v1800
    %v2001 = vunpack.c.l.b16 %v1801
    %v2002 = vunpack.c.h.b16 %v1801
    %v2003 = vunpack.c.l.b16 %v1802
    %v2004 = vunpack.c.h.b16 %v1802
    %v2005 = vunpack.c.l.b16 %v1803
    %v2006 = vunpack.c.h.b16 %v1803
    %v2007 = vunpack.c.l.b16 %v1804
    %v2008 = vunpack.c.l.b16 %v1805
    %v2009 = vunpack.c.h.b16 %v1805
    %v2010 = vunpack.c.l.b16 %v1806
    %v2011 = vunpack.c.h.b16 %v1806
    %v2012 = vunpack.c.l.b16 %v1807
    %v2013 = vunpack.c.h.b16 %v1807
    %v2014 = vunpack.c.l.b16 %v1808
    %v2015 = vunpack.c.h.b16 %v1808
    %v2016 = vunpack.c.l.b16 %v1809
    %v2017 = vunpack.c.l.b16 %v1810
    %v2018 = vunpack.c.h.b16 %v1810
    %v2019 = vunpack.c.l.b16 %v1811
    %v2020 = vunpack.c.h.b16 %v1811
    %v2021 = vunpack.c.l.b16 %v1812
    %v2022 = vunpack.c.h.b16 %v1812
    %v2023 = vunpack.c.l.b16 %v1813
    %v2024 = vunpack.c.h.b16 %v1813
    %v2025 = vunpack.c.l.b16 %v1814
    %v2026 = vunpack.c.l.b16 %v1815
    %v2027 = vunpack.c.h.b16 %v1815
    %v2028 = vunpack.c.l.b16 %v1816
    %v2029 = vunpack.c.h.b16 %v1816
    %v2030 = vunpack.c.l.b16 %v1817
    %v2031 = vunpack.c.h.b16 %v1817
    %v2032 = vunpack.c.l.b16 %v1818
    %v2033 = vunpack.c.h.b16 %v1818
    %v2034 = vunpack.c.l.b16 %v1819
    %v2035 = vunpack.c.l.b16 %v1820
    %v2036 = vunpack.c.h.b16 %v1820
    %v2037 = vunpack.c.l.b16 %v1821
    %v2038 = vunpack.c.h.b16 %v1821
    %v2039 = vunpack.c.l.b16 %v1822
    %v2040 = vunpack.c.h.b16 %v1822
    %v2041 = vunpack.c.l.b16 %v1823
    %v2042 = vunpack.c.h.b16 %v1823
    %v2043 = vunpack.c.l.b16 %v1824
    %v2044 = vunpack.c.l.b16 %v1825
    %v2045 = vunpack.c.h.b16 %v1825
    %v2046 = vunpack.c.l.b16 %v1826
    %v2047 = vunpack.c.h.b16 %v1826
    %v2048 = vunpack.c.l.b16 %v1827
    %v2049 = vunpack.c.h.b16 %v1827
    %v2050 = vunpack.c.l.b16 %v1828
    %v2051 = vunpack.c.h.b16 %v1828
    %v2052 = vunpack.c.l.b16 %v1829
    %v2053 = vunpack.c.l.b16 %v1830
    %v2054 = vunpack.c.h.b16 %v1830
    %v2055 = vunpack.c.l.b16 %v1831
    %v2056 = vunpack.c.h.b16 %v1831
    %v2057 = vunpack.c.l.b16 %v1832
    %v2058 = vunpack.c.h.b16 %v1832
    %v2059 = vunpack.c.l.b16 %v1833
    %v2060 = vunpack.c.h.b16 %v1833
    %v2061 = vunpack.c.l.b16 %v1834
    %v2062 = vunpack.c.l.b16 %v1835
    %v2063 = vunpack.c.h.b16 %v1835
    %v2064 = vunpack.c.l.b16 %v1836
    %v2065 = vunpack.c.h.b16 %v1836
    %v2066 = vunpack.c.l.b16 %v1837
    %v2067 = vunpack.c.h.b16 %v1837
    %v2068 = vunpack.c.l.b16 %v1838
    %v2069 = vunpack.c.h.b16 %v1838
    %v2070 = vunpack.c.l.b16 %v1839
    %v2071 = vunpack.c.l.b16 %v1840
    %v2072 = vunpack.c.h.b16 %v1840
    %v2073 = vunpack.c.l.b16 %v1841
    %v2074 = vunpack.c.h.b16 %v1841
    %v2075 = vunpack.c.l.b16 %v1842
    %v2076 = vunpack.c.h.b16 %v1842
    %v2077 = vunpack.c.l.b16 %v1843
    %v2078 = vunpack.c.h.b16 %v1843
    %v2079 = vunpack.c.l.b16 %v1844
    %v2080 = vunpack.c.l.b16 %v1845
    %v2081 = vunpack.c.h.b16 %v1845
    %v2082 = vunpack.c.l.b16 %v1846
    %v2083 = vunpack.c.h.b16 %v1846
    %v2084 = vunpack.c.l.b16 %v1847
    %v2085 = vunpack.c.h.b16 %v1847
    %v2086 = vunpack.c.l.b16 %v1848
    %v2087 = vunpack.c.h.b16 %v1848
    %v2088 = vunpack.c.l.b16 %v1849
    %v2089 = vunpack.c.l.b16 %v1850
    %v2090 = vunpack.c.h.b16 %v1850
    %v2091 = vunpack.c.l.b16 %v1851
    %v2092 = vunpack.c.h.b16 %v1851
    %v2093 = vunpack.c.l.b16 %v1852
    %v2094 = vunpack.c.h.b16 %v1852
    %v2095 = vunpack.c.l.b16 %v1853
    %v2096 = vunpack.c.h.b16 %v1853
    %v2097 = vunpack.c.l.b16 %v1854
    %v2098 = vunpack.c.l.b16 %v1855
    %v2099 = vunpack.c.h.b16 %v1855
    %v2100 = vunpack.c.l.b16 %v1856
    %v2101 = vunpack.c.h.b16 %v1856
    %v2102 = vunpack.c.l.b16 %v1857
    %v2103 = vunpack.c.h.b16 %v1857
    %v2104 = vunpack.c.l.b16 %v1858
    %v2105 = vunpack.c.h.b16 %v1858
    %v2106 = vunpack.c.l.b16 %v1859
    %v2107 = vpack.c.b16 %v1972, %v1963
    %v2108 = vpack.c.b16 %v1973, %v1964
    %v2109 = vpack.c.b16 %v1974, %v1965
    %v2110 = vpack.c.b16 %v1975, %v1966
    %v2111 = vpack.c.b16 %v1976, %v1967
    %v2112 = vpack.c.b16 %v1977, %v1968
    %v2113 = vpack.c.b16 %v1978, %v1969
    %v2114 = vpack.c.b16 %v1979, %v1970
    %v2115 = vpack.c.b16 %v1980, %v1971
    %v2116 = vpack.c.b16 %v1990, %v1981
    %v2117 = vpack.c.b16 %v1991, %v1982
    %v2118 = vpack.c.b16 %v1992, %v1983
    %v2119 = vpack.c.b16 %v1993, %v1984
    %v2120 = vpack.c.b16 %v1994, %v1985
    %v2121 = vpack.c.b16 %v1995, %v1986
    %v2122 = vpack.c.b16 %v1996, %v1987
    %v2123 = vpack.c.b16 %v1997, %v1988
    %v2124 = vpack.c.b16 %v1998, %v1989
    %v2125 = vpack.c.b16 %v2008, %v1999
    %v2126 = vpack.c.b16 %v2009, %v2000
    %v2127 = vpack.c.b16 %v2010, %v2001
    %v2128 = vpack.c.b16 %v2011, %v2002
    %v2129 = vpack.c.b16 %v2012, %v2003
    %v2130 = vpack.c.b16 %v2013, %v2004
    %v2131 = vpack.c.b16 %v2014, %v2005
    %v2132 = vpack.c.b16 %v2015, %v2006
    %v2133 = vpack.c.b16 %v2016, %v2007
    %v2134 = vpack.c.b16 %v2026, %v2017
    %v2135 = vpack.c.b16 %v2027, %v2018
    %v2136 = vpack.c.b16 %v2028, %v2019
    %v2137 = vpack.c.b16 %v2029, %v2020
    %v2138 = vpack.c.b16 %v2030, %v2021
    %v2139 = vpack.c.b16 %v2031, %v2022
    %v2140 = vpack.c.b16 %v2032, %v2023
    %v2141 = vpack.c.b16 %v2033, %v2024
    %v2142 = vpack.c.b16 %v2034, %v2025
    %v2143 = vpack.c.b16 %v2044, %v2035
    %v2144 = vpack.c.b16 %v2045, %v2036
    %v2145 = vpack.c.b16 %v2046, %v2037
    %v2146 = vpack.c.b16 %v2047, %v2038
    %v2147 = vpack.c.b16 %v2048, %v2039
    %v2148 = vpack.c.b16 %v2049, %v2040
    %v2149 = vpack.c.b16 %v2050, %v2041
    %v2150 = vpack.c.b16 %v2051, %v2042
    %v2151 = vpack.c.b16 %v2052, %v2043
    %v2152 = vpack.c.b16 %v2062, %v2053
    %v2153 = vpack.c.b16 %v2063, %v2054
    %v2154 = vpack.c.b16 %v2064, %v2055
    %v2155 = vpack.c.b16 %v2065, %v2056
    %v2156 = vpack.c.b16 %v2066, %v2057
    %v2157 = vpack.c.b16 %v2067, %v2058
    %v2158 = vpack.c.b16 %v2068, %v2059
    %v2159 = vpack.c.b16 %v2069, %v2060
    %v2160 = vpack.c.b16 %v2070, %v2061
    %v2161 = vpack.c.b16 %v2080, %v2071
    %v2162 = vpack.c.b16 %v2081, %v2072
    %v2163 = vpack.c.b16 %v2082, %v2073
    %v2164 = vpack.c.b16 %v2083, %v2074
    %v2165 = vpack.c.b16 %v2084, %v2075
    %v2166 = vpack.c.b16 %v2085, %v2076
    %v2167 = vpack.c.b16 %v2086, %v2077
    %v2168 = vpack.c.b16 %v2087, %v2078
    %v2169 = vpack.c.b16 %v2088, %v2079
    %v2170 = vpack.c.b16 %v2098, %v2089
    %v2171 = vpack.c.b16 %v2099, %v2090
    %v2172 = vpack.c.b16 %v2100, %v2091
    %v2173 = vpack.c.b16 %v2101, %v2092
    %v2174 = vpack.c.b16 %v2102, %v2093
    %v2175 = vpack.c.b16 %v2103, %v2094
    %v2176 = vpack.c.b16 %v2104, %v2095
    %v2177 = vpack.c.b16 %v2105, %v2096
    %v2178 = vpack.c.b16 %v2106, %v2097
    %2251 = vmatpush.bf16.msra.mxu0 %v2170
    %2252 = vmatpush.bf16.msra.mxu0 %v2161
    %2253 = vmatpush.bf16.msra.mxu0 %v2152
    %2254 = vmatpush.bf16.msra.mxu0 %v2143
    %2255 = vmatpush.bf16.msra.mxu0 %v2134
    %2256 = vmatpush.bf16.msra.mxu0 %v2125
    %2257 = vmatpush.bf16.msra.mxu0 %v2116
    %2258 = vmatpush.bf16.msra.mxu0 %v2107
    %2259 = vmatmul.bf16.gmra.mxu0 %v1778
    %v2260 = vpop.f32.mrf.mxu0
    %v2261 = vadd.f32 %v1865, %v2260
    %v2262 = vpop.f32.mrf.mxu0
    %v2263 = vadd.f32 %v1865, %v2262
    %2264 = vdwg.mxu0
    %2265 = vmatpush.bf16.msra.mxu0 %v2171
    %2266 = vmatpush.bf16.msra.mxu0 %v2162
    %2267 = vmatpush.bf16.msra.mxu0 %v2153
    %2268 = vmatpush.bf16.msra.mxu0 %v2144
    %2269 = vmatpush.bf16.msra.mxu0 %v2135
    %2270 = vmatpush.bf16.msra.mxu0 %v2126
    %2271 = vmatpush.bf16.msra.mxu0 %v2117
    %2272 = vmatpush.bf16.msra.mxu0 %v2108
    %2273 = vmatmul.bf16.gmra.mxu0 %v1778
    %v2274 = vpop.f32.mrf.mxu0
    %v2275 = vadd.f32 %v1866, %v2274
    %v2276 = vpop.f32.mrf.mxu0
    %v2277 = vadd.f32 %v1866, %v2276
    %2278 = vdwg.mxu0
    %2279 = vmatpush.bf16.msra.mxu0 %v2172
    %2280 = vmatpush.bf16.msra.mxu0 %v2163
    %2281 = vmatpush.bf16.msra.mxu0 %v2154
    %2282 = vmatpush.bf16.msra.mxu0 %v2145
    %2283 = vmatpush.bf16.msra.mxu0 %v2136
    %2284 = vmatpush.bf16.msra.mxu0 %v2127
    %2285 = vmatpush.bf16.msra.mxu0 %v2118
    %2286 = vmatpush.bf16.msra.mxu0 %v2109
    %2287 = vmatmul.bf16.gmra.mxu0 %v1778
    %v2288 = vpop.f32.mrf.mxu0
    %v2289 = vadd.f32 %v1867, %v2288
    %v2290 = vpop.f32.mrf.mxu0
    %v2291 = vadd.f32 %v1867, %v2290
    %2292 = vdwg.mxu0
    %2293 = vmatpush.bf16.msra.mxu0 %v2173
    %2294 = vmatpush.bf16.msra.mxu0 %v2164
    %2295 = vmatpush.bf16.msra.mxu0 %v2155
    %2296 = vmatpush.bf16.msra.mxu0 %v2146
    %2297 = vmatpush.bf16.msra.mxu0 %v2137
    %2298 = vmatpush.bf16.msra.mxu0 %v2128
    %2299 = vmatpush.bf16.msra.mxu0 %v2119
    %2300 = vmatpush.bf16.msra.mxu0 %v2110
    %2301 = vmatmul.bf16.gmra.mxu0 %v1778
    %v2302 = vpop.f32.mrf.mxu0
    %v2303 = vadd.f32 %v1868, %v2302
    %v2304 = vpop.f32.mrf.mxu0
    %v2305 = vadd.f32 %v1868, %v2304
    %2306 = vdwg.mxu0
    %2307 = vmatpush.bf16.msra.mxu0 %v2174
    %2308 = vmatpush.bf16.msra.mxu0 %v2165
    %2309 = vmatpush.bf16.msra.mxu0 %v2156
    %2310 = vmatpush.bf16.msra.mxu0 %v2147
    %2311 = vmatpush.bf16.msra.mxu0 %v2138
    %2312 = vmatpush.bf16.msra.mxu0 %v2129
    %2313 = vmatpush.bf16.msra.mxu0 %v2120
    %2314 = vmatpush.bf16.msra.mxu0 %v2111
    %2315 = vmatmul.bf16.gmra.mxu0 %v1778
    %v2316 = vpop.f32.mrf.mxu0
    %v2317 = vadd.f32 %v1869, %v2316
    %v2318 = vpop.f32.mrf.mxu0
    %v2319 = vadd.f32 %v1869, %v2318
    %2320 = vdwg.mxu0
    %2321 = vmatpush.bf16.msra.mxu0 %v2175
    %2322 = vmatpush.bf16.msra.mxu0 %v2166
    %2323 = vmatpush.bf16.msra.mxu0 %v2157
    %2324 = vmatpush.bf16.msra.mxu0 %v2148
    %2325 = vmatpush.bf16.msra.mxu0 %v2139
    %2326 = vmatpush.bf16.msra.mxu0 %v2130
    %2327 = vmatpush.bf16.msra.mxu0 %v2121
    %2328 = vmatpush.bf16.msra.mxu0 %v2112
    %2329 = vmatmul.bf16.gmra.mxu0 %v1778
    %v2330 = vpop.f32.mrf.mxu0
    %v2331 = vadd.f32 %v1870, %v2330
    %v2332 = vpop.f32.mrf.mxu0
    %v2333 = vadd.f32 %v1870, %v2332
    %2334 = vdwg.mxu0
    %2335 = vmatpush.bf16.msra.mxu0 %v2176
    %2336 = vmatpush.bf16.msra.mxu0 %v2167
    %2337 = vmatpush.bf16.msra.mxu0 %v2158
    %2338 = vmatpush.bf16.msra.mxu0 %v2149
    %2339 = vmatpush.bf16.msra.mxu0 %v2140
    %2340 = vmatpush.bf16.msra.mxu0 %v2131
    %2341 = vmatpush.bf16.msra.mxu0 %v2122
    %2342 = vmatpush.bf16.msra.mxu0 %v2113
    %2343 = vmatmul.bf16.gmra.mxu0 %v1778
    %v2344 = vpop.f32.mrf.mxu0
    %v2345 = vadd.f32 %v1871, %v2344
    %v2346 = vpop.f32.mrf.mxu0
    %v2347 = vadd.f32 %v1871, %v2346
    %2348 = vdwg.mxu0
    %2349 = vmatpush.bf16.msra.mxu0 %v2177
    %2350 = vmatpush.bf16.msra.mxu0 %v2168
    %2351 = vmatpush.bf16.msra.mxu0 %v2159
    %2352 = vmatpush.bf16.msra.mxu0 %v2150
    %2353 = vmatpush.bf16.msra.mxu0 %v2141
    %2354 = vmatpush.bf16.msra.mxu0 %v2132
    %2355 = vmatpush.bf16.msra.mxu0 %v2123
    %2356 = vmatpush.bf16.msra.mxu0 %v2114
    %2357 = vmatmul.bf16.gmra.mxu0 %v1778
    %v2358 = vpop.f32.mrf.mxu0
    %v2359 = vadd.f32 %v1872, %v2358
    %v2360 = vpop.f32.mrf.mxu0
    %v2361 = vadd.f32 %v1872, %v2360
    %2362 = vdwg.mxu0
    %2363 = vmatpush.bf16.msra.mxu0 %v2178
    %2364 = vmatpush.bf16.msra.mxu0 %v2169
    %2365 = vmatpush.bf16.msra.mxu0 %v2160
    %2366 = vmatpush.bf16.msra.mxu0 %v2151
    %2367 = vmatpush.bf16.msra.mxu0 %v2142
    %2368 = vmatpush.bf16.msra.mxu0 %v2133
    %2369 = vmatpush.bf16.msra.mxu0 %v2124
    %2370 = vmatpush.bf16.msra.mxu0 %v2115
    %2371 = vmatmul.bf16.gmra.mxu0 %v1778
    %v2372 = vpop.f32.mrf.mxu0
    %v2373 = vadd.f32 %v1873, %v2372
    %v2374 = vpop.f32.mrf.mxu0
    %v2375 = vadd.f32 %v1873, %v2374
    %2376 = vdwg.mxu0
    %v2377 = vpack.c.bf16 %v2275, %v2261
    %v2378 = vpack.c.bf16 %v2303, %v2289
    %v2379 = vpack.c.bf16 %v2331, %v2317
    %v2380 = vpack.c.bf16 %v2359, %v2345
    %v2381 = vpack.c.bf16 %v2373, %v2373
    %v2382 = vpack.c.bf16 %v2277, %v2263
    %v2383 = vpack.c.bf16 %v2305, %v2291
    %v2384 = vpack.c.bf16 %v2333, %v2319
    %v2385 = vpack.c.bf16 %v2361, %v2347
    %v2386 = vpack.c.bf16 %v2375, %v2375
    %v2389 = vunpack.c.l.b16 %v2377
    %v2390 = vunpack.c.l.b16 %v2382
    %v2391 = vpack.c.b16 %v2390, %v2389
    %v2395 = vunpack.c.h.b16 %v2378
    %v2396 = vunpack.c.h.b16 %v2383
    %v2397 = vpack.c.b16 %v2396, %v2395
    %2399 = vmatpush.bf16.xpose.msra.mxu0 0
    %2400 = vmatpush.bf16.xpose.msra.mxu0 0
    %2401 = vmatpush.bf16.xpose.msra.mxu0 0
    %2402 = vmatpush.bf16.xpose.msra.mxu0 0
    %2403 = vmatpush.bf16.xpose.msra.mxu0 0
    %2404 = vmatpush.bf16.xpose.msra.mxu0 0
    %2405 = vmatpush.bf16.xpose.msra.mxu0 0
    %2406 = vmatpush.bf16.xpose.msra.mxu0 %v2397
    %2407 = vmatmul.bf16.gmra.mxu0 %v2391
    %v2408 = vpop.f32.mrf.mxu0
    %v2409 = vadd.f32 %v273, %v2408
    %v2410 = vpop.f32.mrf.mxu0
    %v2411 = vadd.f32 %v274, %v2410
    %2412 = vdwg.mxu0
    %v2413 = vsel %vm996, %v2409, -inf
    %2414 = vmax.xlane.f32.xlu0 %v2413
    %v2415 = vpop.xlane.xlu0 %2414
    %v2416 = vsel %vm996, %v2411, -inf
    %2417 = vmax.xlane.f32.xlu0 %v2416
    %v2418 = vpop.xlane.xlu0 %2417
    %v2419 = vsub.f32 %v2409, %v2415
    %v2420 = vsub.f32 %v2411, %v2418
    %v2421 = vmul.f32 %v2419, 1.442695
    %v2422 = vpow.pop %v2421
    %v2423 = vmul.f32 %v2420, 1.442695
    %v2424 = vpow.pop %v2423
    %v2425 = vsel %vm996, %v2422, 0.0
    %2426 = vadd.xlane.f32.xlu0 %v2425
    %v2427 = vpop.xlane.xlu0 %2426
    %v2428 = vsel %vm996, %v2424, 0.0
    %2429 = vadd.xlane.f32.xlu0 %v2428
    %v2430 = vpop.xlane.xlu0 %2429
    %v2431 = vrcp.pop %v2427
    %v2432 = vrcp.pop %v2430
    %v2433 = vmul.f32 %v2422, %v2431
    %v2434 = vmul.f32 %v2424, %v2432
    %v2435 = vpack.c.bf16 %v2434, %v2433
    %v2438 = vunpack.c.l.b16 %v2380
    %v2439 = vunpack.c.l.b16 %v2385
    %v2440 = vpack.c.b16 %v2439, %v2438
    %v2443 = vsel %vm996, %v2435, 0
    %2445 = vmatpush.bf16.msra.mxu0 0
    %2446 = vmatpush.bf16.msra.mxu0 0
    %2447 = vmatpush.bf16.msra.mxu0 0
    %2448 = vmatpush.bf16.msra.mxu0 0
    %2449 = vmatpush.bf16.msra.mxu0 0
    %2450 = vmatpush.bf16.msra.mxu0 0
    %2451 = vmatpush.bf16.msra.mxu0 0
    %2452 = vmatpush.bf16.msra.mxu0 %v2440
    %2453 = vmatmul.bf16.gmra.mxu0 %v2443
    %v2454 = vpop.f32.mrf.mxu0
    %v2455 = vadd.f32 0.0, %v2454
    %v2456 = vpop.f32.mrf.mxu0
    %v2457 = vadd.f32 0.0, %v2456
    %2458 = vdwg.mxu0
    %v2459 = vpack.c.bf16 %v2457, %v2455
    %s2460 = scalar_lea.vmem [#allocation6], 192
    %v2461 = vld [vmem:[%s2460] sm:$0xf]
    %v2462 = vld [vmem:[%s2460 + $0x4] sm:$0xf]
    %v2463 = vld [vmem:[%s2460 + $0x8] sm:$0xf]
    %v2464 = vld [vmem:[%s2460 + $0xc] sm:$0xf]
    %v2465 = vld [vmem:[%s2460 + $0x10] sm:$0xf]
    %v2466 = vld [vmem:[%s2460 + $0x14] sm:$0xf]
    %v2467 = vld [vmem:[%s2460 + $0x18] sm:$0xf]
    %v2468 = vld [vmem:[%s2460 + $0x1c] sm:$0xf]
    %v2469 = vld [vmem:[%s2460 + $0x20] sm:$0xf]
    %v2470 = vld [vmem:[%s2460 + $0x24] sm:$0xf]
    %v2471 = vld [vmem:[%s2460 + $0x28] sm:$0xf]
    %v2472 = vld [vmem:[%s2460 + $0x2c] sm:$0xf]
    %v2473 = vld [vmem:[%s2460 + $0x30] sm:$0xf]
    %v2474 = vld [vmem:[%s2460 + $0x34] sm:$0xf]
    %v2475 = vld [vmem:[%s2460 + $0x38] sm:$0xf]
    %v2476 = vld [vmem:[%s2460 + $0x3c] sm:$0xf]
    %v2477 = vunpack.c.h.b16 %v2377
    %v2478 = vunpack.c.h.b16 %v2382
    %v2479 = vpack.c.b16 %v2478, %v2477
    %v2483 = vunpack.c.l.b16 %v2379
    %v2484 = vunpack.c.l.b16 %v2384
    %v2485 = vpack.c.b16 %v2484, %v2483
    %2487 = vmatpush.bf16.xpose.msra.mxu0 0
    %2488 = vmatpush.bf16.xpose.msra.mxu0 0
    %2489 = vmatpush.bf16.xpose.msra.mxu0 0
    %2490 = vmatpush.bf16.xpose.msra.mxu0 0
    %2491 = vmatpush.bf16.xpose.msra.mxu0 0
    %2492 = vmatpush.bf16.xpose.msra.mxu0 0
    %2493 = vmatpush.bf16.xpose.msra.mxu0 0
    %2494 = vmatpush.bf16.xpose.msra.mxu0 %v2485
    %2495 = vmatmul.bf16.gmra.mxu0 %v2479
    %v2496 = vpop.f32.mrf.mxu0
    %v2497 = vadd.f32 %v273, %v2496
    %v2498 = vpop.f32.mrf.mxu0
    %v2499 = vadd.f32 %v274, %v2498
    %2500 = vdwg.mxu0
    %v2501 = vsel %vm996, %v2497, -inf
    %2502 = vmax.xlane.f32.xlu0 %v2501
    %v2503 = vpop.xlane.xlu0 %2502
    %v2504 = vsel %vm996, %v2499, -inf
    %2505 = vmax.xlane.f32.xlu0 %v2504
    %v2506 = vpop.xlane.xlu0 %2505
    %v2507 = vsub.f32 %v2497, %v2503
    %v2508 = vsub.f32 %v2499, %v2506
    %v2509 = vmul.f32 %v2507, 1.442695
    %v2510 = vpow.pop %v2509
    %v2511 = vmul.f32 %v2508, 1.442695
    %v2512 = vpow.pop %v2511
    %v2513 = vsel %vm996, %v2510, 0.0
    %2514 = vadd.xlane.f32.xlu0 %v2513
    %v2515 = vpop.xlane.xlu0 %2514
    %v2516 = vsel %vm996, %v2512, 0.0
    %2517 = vadd.xlane.f32.xlu0 %v2516
    %v2518 = vpop.xlane.xlu0 %2517
    %v2519 = vrcp.pop %v2515
    %v2520 = vrcp.pop %v2518
    %v2521 = vmul.f32 %v2510, %v2519
    %v2522 = vmul.f32 %v2512, %v2520
    %v2523 = vpack.c.bf16 %v2522, %v2521
    %v2524 = vunpack.c.h.b16 %v2380
    %v2525 = vunpack.c.h.b16 %v2385
    %v2526 = vpack.c.b16 %v2525, %v2524
    %v2529 = vsel %vm996, %v2523, 0
    %2531 = vmatpush.bf16.msra.mxu0 0
    %2532 = vmatpush.bf16.msra.mxu0 0
    %2533 = vmatpush.bf16.msra.mxu0 0
    %2534 = vmatpush.bf16.msra.mxu0 0
    %2535 = vmatpush.bf16.msra.mxu0 0
    %2536 = vmatpush.bf16.msra.mxu0 0
    %2537 = vmatpush.bf16.msra.mxu0 0
    %2538 = vmatpush.bf16.msra.mxu0 %v2526
    %2539 = vmatmul.bf16.gmra.mxu0 %v2529
    %v2540 = vpop.f32.mrf.mxu0
    %v2541 = vadd.f32 0.0, %v2540
    %v2542 = vpop.f32.mrf.mxu0
    %v2543 = vadd.f32 0.0, %v2542
    %2544 = vdwg.mxu0
    %v2545 = vpack.c.bf16 %v2543, %v2541
    %s2546 = scalar_lea.vmem [#allocation6], 256
    %v2547 = vld [vmem:[%s2546] sm:$0xf]
    %v2548 = vld [vmem:[%s2546 + $0x4] sm:$0xf]
    %v2549 = vld [vmem:[%s2546 + $0x8] sm:$0xf]
    %v2550 = vld [vmem:[%s2546 + $0xc] sm:$0xf]
    %v2551 = vld [vmem:[%s2546 + $0x10] sm:$0xf]
    %v2552 = vld [vmem:[%s2546 + $0x14] sm:$0xf]
    %v2553 = vld [vmem:[%s2546 + $0x18] sm:$0xf]
    %v2554 = vld [vmem:[%s2546 + $0x1c] sm:$0xf]
    %v2555 = vld [vmem:[%s2546 + $0x20] sm:$0xf]
    %v2556 = vld [vmem:[%s2546 + $0x24] sm:$0xf]
    %v2557 = vld [vmem:[%s2546 + $0x28] sm:$0xf]
    %v2558 = vld [vmem:[%s2546 + $0x2c] sm:$0xf]
    %v2559 = vld [vmem:[%s2546 + $0x30] sm:$0xf]
    %v2560 = vld [vmem:[%s2546 + $0x34] sm:$0xf]
    %v2561 = vld [vmem:[%s2546 + $0x38] sm:$0xf]
    %v2562 = vld [vmem:[%s2546 + $0x3c] sm:$0xf]
    %v2579 = vunpack.c.l.b16 %v2547
    %v2580 = vunpack.c.l.b16 %v2548
    %v2581 = vunpack.c.l.b16 %v2549
    %v2582 = vunpack.c.l.b16 %v2550
    %v2583 = vunpack.c.l.b16 %v2551
    %v2584 = vunpack.c.l.b16 %v2552
    %v2585 = vunpack.c.l.b16 %v2553
    %v2586 = vunpack.c.l.b16 %v2554
    %v2587 = vunpack.c.l.b16 %v2555
    %v2588 = vunpack.c.l.b16 %v2556
    %v2589 = vunpack.c.l.b16 %v2557
    %v2590 = vunpack.c.l.b16 %v2558
    %v2591 = vunpack.c.l.b16 %v2559
    %v2592 = vunpack.c.l.b16 %v2560
    %v2593 = vunpack.c.l.b16 %v2561
    %v2594 = vunpack.c.l.b16 %v2562
    %v2595 = vpack.c.b16 %v2580, %v2579
    %v2596 = vpack.c.b16 %v2582, %v2581
    %v2597 = vpack.c.b16 %v2584, %v2583
    %v2598 = vpack.c.b16 %v2586, %v2585
    %v2599 = vpack.c.b16 %v2588, %v2587
    %v2600 = vpack.c.b16 %v2590, %v2589
    %v2601 = vpack.c.b16 %v2592, %v2591
    %v2602 = vpack.c.b16 %v2594, %v2593
    %2611 = vmatpush.bf16.msra.mxu0 %v2602
    %2612 = vmatpush.bf16.msra.mxu0 %v2601
    %2613 = vmatpush.bf16.msra.mxu0 %v2600
    %2614 = vmatpush.bf16.msra.mxu0 %v2599
    %2615 = vmatpush.bf16.msra.mxu0 %v2598
    %2616 = vmatpush.bf16.msra.mxu0 %v2597
    %2617 = vmatpush.bf16.msra.mxu0 %v2596
    %2618 = vmatpush.bf16.msra.mxu0 %v2595
    %2619 = vmatmul.bf16.gmra.mxu0 %v2545
    %v2620 = vpop.f32.mrf.mxu0
    %v2621 = vadd.f32 0.0, %v2620
    %v2622 = vpop.f32.mrf.mxu0
    %v2623 = vadd.f32 0.0, %v2622
    %2624 = vdwg.mxu0
    %v2641 = vunpack.c.l.b16 %v2461
    %v2642 = vunpack.c.l.b16 %v2462
    %v2643 = vunpack.c.l.b16 %v2463
    %v2644 = vunpack.c.l.b16 %v2464
    %v2645 = vunpack.c.l.b16 %v2465
    %v2646 = vunpack.c.l.b16 %v2466
    %v2647 = vunpack.c.l.b16 %v2467
    %v2648 = vunpack.c.l.b16 %v2468
    %v2649 = vunpack.c.l.b16 %v2469
    %v2650 = vunpack.c.l.b16 %v2470
    %v2651 = vunpack.c.l.b16 %v2471
    %v2652 = vunpack.c.l.b16 %v2472
    %v2653 = vunpack.c.l.b16 %v2473
    %v2654 = vunpack.c.l.b16 %v2474
    %v2655 = vunpack.c.l.b16 %v2475
    %v2656 = vunpack.c.l.b16 %v2476
    %v2657 = vpack.c.b16 %v2642, %v2641
    %v2658 = vpack.c.b16 %v2644, %v2643
    %v2659 = vpack.c.b16 %v2646, %v2645
    %v2660 = vpack.c.b16 %v2648, %v2647
    %v2661 = vpack.c.b16 %v2650, %v2649
    %v2662 = vpack.c.b16 %v2652, %v2651
    %v2663 = vpack.c.b16 %v2654, %v2653
    %v2664 = vpack.c.b16 %v2656, %v2655
    %2673 = vmatpush.bf16.msra.mxu0 %v2664
    %2674 = vmatpush.bf16.msra.mxu0 %v2663
    %2675 = vmatpush.bf16.msra.mxu0 %v2662
    %2676 = vmatpush.bf16.msra.mxu0 %v2661
    %2677 = vmatpush.bf16.msra.mxu0 %v2660
    %2678 = vmatpush.bf16.msra.mxu0 %v2659
    %2679 = vmatpush.bf16.msra.mxu0 %v2658
    %2680 = vmatpush.bf16.msra.mxu0 %v2657
    %2681 = vmatmul.bf16.gmra.mxu0 %v2459
    %v2682 = vpop.f32.mrf.mxu0
    %v2683 = vadd.f32 %v2621, %v2682
    %v2684 = vpop.f32.mrf.mxu0
    %v2685 = vadd.f32 %v2623, %v2684
    %2686 = vdwg.mxu0
    %v2687 = vunpack.c.l.b16 %v2378
    %v2688 = vunpack.c.l.b16 %v2383
    %v2689 = vpack.c.b16 %v2688, %v2687
    %v2691 = vunpack.c.h.b16 %v2379
    %v2692 = vunpack.c.h.b16 %v2384
    %v2693 = vpack.c.b16 %v2692, %v2691
    %2695 = vmatpush.bf16.xpose.msra.mxu0 0
    %2696 = vmatpush.bf16.xpose.msra.mxu0 0
    %2697 = vmatpush.bf16.xpose.msra.mxu0 0
    %2698 = vmatpush.bf16.xpose.msra.mxu0 0
    %2699 = vmatpush.bf16.xpose.msra.mxu0 0
    %2700 = vmatpush.bf16.xpose.msra.mxu0 0
    %2701 = vmatpush.bf16.xpose.msra.mxu0 0
    %2702 = vmatpush.bf16.xpose.msra.mxu0 %v2693
    %2703 = vmatmul.bf16.gmra.mxu0 %v2689
    %v2704 = vpop.f32.mrf.mxu0
    %v2705 = vadd.f32 %v273, %v2704
    %v2706 = vpop.f32.mrf.mxu0
    %v2707 = vadd.f32 %v274, %v2706
    %2708 = vdwg.mxu0
    %v2709 = vsel %vm996, %v2705, -inf
    %2710 = vmax.xlane.f32.xlu0 %v2709
    %v2711 = vpop.xlane.xlu0 %2710
    %v2712 = vsel %vm996, %v2707, -inf
    %2713 = vmax.xlane.f32.xlu0 %v2712
    %v2714 = vpop.xlane.xlu0 %2713
    %v2715 = vsub.f32 %v2705, %v2711
    %v2716 = vsub.f32 %v2707, %v2714
    %v2717 = vmul.f32 %v2715, 1.442695
    %v2718 = vpow.pop %v2717
    %v2719 = vmul.f32 %v2716, 1.442695
    %v2720 = vpow.pop %v2719
    %v2721 = vsel %vm996, %v2718, 0.0
    %2722 = vadd.xlane.f32.xlu0 %v2721
    %v2723 = vpop.xlane.xlu0 %2722
    %v2724 = vsel %vm996, %v2720, 0.0
    %2725 = vadd.xlane.f32.xlu0 %v2724
    %v2726 = vpop.xlane.xlu0 %2725
    %v2727 = vrcp.pop %v2723
    %v2728 = vrcp.pop %v2726
    %v2729 = vmul.f32 %v2718, %v2727
    %v2730 = vmul.f32 %v2720, %v2728
    %v2731 = vpack.c.bf16 %v2730, %v2729
    %v2734 = vunpack.c.l.b16 %v2381
    %v2735 = vunpack.c.l.b16 %v2386
    %v2736 = vpack.c.b16 %v2735, %v2734
    %v2739 = vsel %vm996, %v2731, 0
    %2741 = vmatpush.bf16.msra.mxu0 0
    %2742 = vmatpush.bf16.msra.mxu0 0
    %2743 = vmatpush.bf16.msra.mxu0 0
    %2744 = vmatpush.bf16.msra.mxu0 0
    %2745 = vmatpush.bf16.msra.mxu0 0
    %2746 = vmatpush.bf16.msra.mxu0 0
    %2747 = vmatpush.bf16.msra.mxu0 0
    %2748 = vmatpush.bf16.msra.mxu0 %v2736
    %2749 = vmatmul.bf16.gmra.mxu0 %v2739
    %v2750 = vpop.f32.mrf.mxu0
    %v2751 = vadd.f32 0.0, %v2750
    %v2752 = vpop.f32.mrf.mxu0
    %v2753 = vadd.f32 0.0, %v2752
    %2754 = vdwg.mxu0
    %v2755 = vpack.c.bf16 %v2753, %v2751
    %s2756 = scalar_lea.vmem [#allocation6], 320
    %v2757 = vld [vmem:[%s2756] sm:$0xf]
    %v2758 = vld [vmem:[%s2756 + $0x4] sm:$0xf]
    %v2759 = vld [vmem:[%s2756 + $0x8] sm:$0xf]
    %v2760 = vld [vmem:[%s2756 + $0xc] sm:$0xf]
    %v2761 = vld [vmem:[%s2756 + $0x10] sm:$0xf]
    %v2762 = vld [vmem:[%s2756 + $0x14] sm:$0xf]
    %v2763 = vld [vmem:[%s2756 + $0x18] sm:$0xf]
    %v2764 = vld [vmem:[%s2756 + $0x1c] sm:$0xf]
    %v2765 = vld [vmem:[%s2756 + $0x20] sm:$0xf]
    %v2766 = vld [vmem:[%s2756 + $0x24] sm:$0xf]
    %v2767 = vld [vmem:[%s2756 + $0x28] sm:$0xf]
    %v2768 = vld [vmem:[%s2756 + $0x2c] sm:$0xf]
    %v2769 = vld [vmem:[%s2756 + $0x30] sm:$0xf]
    %v2770 = vld [vmem:[%s2756 + $0x34] sm:$0xf]
    %v2771 = vld [vmem:[%s2756 + $0x38] sm:$0xf]
    %v2772 = vld [vmem:[%s2756 + $0x3c] sm:$0xf]
    %v2789 = vunpack.c.l.b16 %v2757
    %v2790 = vunpack.c.l.b16 %v2758
    %v2791 = vunpack.c.l.b16 %v2759
    %v2792 = vunpack.c.l.b16 %v2760
    %v2793 = vunpack.c.l.b16 %v2761
    %v2794 = vunpack.c.l.b16 %v2762
    %v2795 = vunpack.c.l.b16 %v2763
    %v2796 = vunpack.c.l.b16 %v2764
    %v2797 = vunpack.c.l.b16 %v2765
    %v2798 = vunpack.c.l.b16 %v2766
    %v2799 = vunpack.c.l.b16 %v2767
    %v2800 = vunpack.c.l.b16 %v2768
    %v2801 = vunpack.c.l.b16 %v2769
    %v2802 = vunpack.c.l.b16 %v2770
    %v2803 = vunpack.c.l.b16 %v2771
    %v2804 = vunpack.c.l.b16 %v2772
    %v2805 = vpack.c.b16 %v2790, %v2789
    %v2806 = vpack.c.b16 %v2792, %v2791
    %v2807 = vpack.c.b16 %v2794, %v2793
    %v2808 = vpack.c.b16 %v2796, %v2795
    %v2809 = vpack.c.b16 %v2798, %v2797
    %v2810 = vpack.c.b16 %v2800, %v2799
    %v2811 = vpack.c.b16 %v2802, %v2801
    %v2812 = vpack.c.b16 %v2804, %v2803
    %2821 = vmatpush.bf16.msra.mxu0 %v2812
    %2822 = vmatpush.bf16.msra.mxu0 %v2811
    %2823 = vmatpush.bf16.msra.mxu0 %v2810
    %2824 = vmatpush.bf16.msra.mxu0 %v2809
    %2825 = vmatpush.bf16.msra.mxu0 %v2808
    %2826 = vmatpush.bf16.msra.mxu0 %v2807
    %2827 = vmatpush.bf16.msra.mxu0 %v2806
    %2828 = vmatpush.bf16.msra.mxu0 %v2805
    %2829 = vmatmul.bf16.gmra.mxu0 %v2755
    %v2830 = vpop.f32.mrf.mxu0
    %v2831 = vadd.f32 0.0, %v2830
    %v2832 = vpop.f32.mrf.mxu0
    %v2833 = vadd.f32 0.0, %v2832
    %2834 = vdwg.mxu0
    %v2835 = vadd.f32 %v2683, %v2831
    %v2836 = vadd.f32 %v2685, %v2833
    %v2837 = vadd.f32 %v1686, %v2835
    %v2838 = vadd.f32 %v1687, %v2836
    %s2839 = scalar_lea.vmem [#allocation7], 1
    %v2840 = vld [vmem:[%s2839] sm:$0x1]
    %v2842 = vperm.slane %v2840, 0
    %v2844 = vadd.f32 %v2837, %v2842
    %v2845 = vadd.f32 %v2838, %v2842
    %s2846 = scalar_lea.vmem [#allocation18], 1
    %v2847 = vld [vmem:[%s2846] sm:$0x1]
    %s2848 = scalar_lea.vmem [#allocation19], 1
    %v2849 = vld [vmem:[%s2848] sm:$0x1]
    %2850 = vadd.xlane.f32.xlu0 %v2844
    %v2851 = vpop.xlane.xlu0 %2850
    %2852 = vadd.xlane.f32.xlu0 %v2845
    %v2853 = vpop.xlane.xlu0 %2852
    %v2854 = vmul.f32 %v2851, 0.020833334
    %v2855 = vmul.f32 %v2853, 0.020833334
    %v2856 = vsub.f32 %v2844, %v2854
    %v2857 = vsub.f32 %v2845, %v2855
    %v2858 = vsel %vm270, %v2856, 0.0
    %v2859 = vsel %vm270, %v2857, 0.0
    %v2860 = vmul.f32 %v2858, %v2858
    %v2861 = vmul.f32 %v2859, %v2859
    %2862 = vadd.xlane.f32.xlu0 %v2860
    %v2863 = vpop.xlane.xlu0 %2862
    %2864 = vadd.xlane.f32.xlu0 %v2861
    %v2865 = vpop.xlane.xlu0 %2864
    %v2866 = vmul.f32 %v2863, 0.021276595
    %v2867 = vmul.f32 %v2865, 0.021276595
    %v2868 = vrsqrt.pop %v2866
    %v2869 = vmul.f32 %v2868, %v2866
    %v2870 = vmul.f32 %v2869, %v2868
    %v2871 = vmul.f32 0.5, %v2870
    %v2872 = vsub.f32 1.5, %v2871
    %v2873 = vmul.f32 %v2868, %v2872
    %v2874 = vmul.f32 %v2866, %v2873
    %vm2875 = vcmp.eq.f32.partialorder %v2866, inf
    %v2876 = vsel %vm2875, %v2866, %v2874
    %vm2877 = vcmp.eq.f32.partialorder %v2866, 0.0
    %v2878 = vand.u32 %v2866, 2147483648
    %v2879 = vsel %vm2877, %v2878, %v2876
    %v2880 = vrsqrt.pop %v2867
    %v2881 = vmul.f32 %v2880, %v2867
    %v2882 = vmul.f32 %v2881, %v2880
    %v2883 = vmul.f32 0.5, %v2882
    %v2884 = vsub.f32 1.5, %v2883
    %v2885 = vmul.f32 %v2880, %v2884
    %v2886 = vmul.f32 %v2867, %v2885
    %vm2887 = vcmp.eq.f32.partialorder %v2867, inf
    %v2888 = vsel %vm2887, %v2867, %v2886
    %vm2889 = vcmp.eq.f32.partialorder %v2867, 0.0
    %v2890 = vand.u32 %v2867, 2147483648
    %v2891 = vsel %vm2889, %v2890, %v2888
    %v2892 = vadd.f32 %v2879, 1e-06
    %v2893 = vadd.f32 %v2891, 1e-06
    %v2894 = vrcp.pop %v2892
    %v2895 = vmul.f32 %v2892, %v2894
    %v2896 = vsub.f32 1.0, %v2895
    %v2897 = vmul.f32 %v2894, %v2896
    %v2898 = vadd.f32 %v2894, %v2897
    %vm2899 = vweird.f32 %v2892
    %vm2900 = vweird.f32 %v2894
    %vm2901 = vmor %vm2899, %vm2900
    %v2902 = vsel %vm2901, %v2894, %v2898
    %v2903 = vand.u32 2147483647, %v2892
    %vm2904 = vcmp.eq.f32.partialorder %v2903, 8.507059e+37
    %v2905 = vand.u32 %v2892, 2147483648
    %v2906 = vor.u32 1.1754944e-38, %v2905
    %v2907 = vsel %vm2904, %v2906, %v2902
    %v2908 = vmul.f32 1.0, %v2907
    %v2909 = vrcp.pop %v2893
    %v2910 = vmul.f32 %v2893, %v2909
    %v2911 = vsub.f32 1.0, %v2910
    %v2912 = vmul.f32 %v2909, %v2911
    %v2913 = vadd.f32 %v2909, %v2912
    %vm2914 = vweird.f32 %v2893
    %vm2915 = vweird.f32 %v2909
    %vm2916 = vmor %vm2914, %vm2915
    %v2917 = vsel %vm2916, %v2909, %v2913
    %v2918 = vand.u32 2147483647, %v2893
    %vm2919 = vcmp.eq.f32.partialorder %v2918, 8.507059e+37
    %v2920 = vand.u32 %v2893, 2147483648
    %v2921 = vor.u32 1.1754944e-38, %v2920
    %v2922 = vsel %vm2919, %v2921, %v2917
    %v2923 = vmul.f32 1.0, %v2922
    %v2924 = vmul.f32 %v2858, %v2908
    %v2925 = vmul.f32 %v2859, %v2923
    %v2927 = vperm.slane %v2847, 0
    %v2929 = vmul.f32 %v2927, %v2924
    %v2930 = vmul.f32 %v2927, %v2925
    %v2932 = vperm.slane %v2849, 0
    %v2934 = vadd.f32 %v2929, %v2932
    %v2935 = vadd.f32 %v2930, %v2932
    %v2936 = vpack.c.bf16 %v2935, %v2934
    %s2937 = scalar_lea.vmem [#allocation9], 64
    %v2938 = vld [vmem:[%s2937] sm:$0xf]
    %v2939 = vld [vmem:[%s2937 + $0x4] sm:$0xf]
    %v2940 = vld [vmem:[%s2937 + $0x8] sm:$0xf]
    %v2941 = vld [vmem:[%s2937 + $0xc] sm:$0xf]
    %v2942 = vld [vmem:[%s2937 + $0x10] sm:$0xf]
    %v2943 = vld [vmem:[%s2937 + $0x14] sm:$0xf]
    %v2944 = vld [vmem:[%s2937 + $0x18] sm:$0xf]
    %v2945 = vld [vmem:[%s2937 + $0x1c] sm:$0xf]
    %v2946 = vld [vmem:[%s2937 + $0x20] sm:$0xf]
    %v2947 = vld [vmem:[%s2937 + $0x24] sm:$0xf]
    %v2948 = vld [vmem:[%s2937 + $0x28] sm:$0xf]
    %v2949 = vld [vmem:[%s2937 + $0x2c] sm:$0xf]
    %v2950 = vld [vmem:[%s2937 + $0x30] sm:$0xf]
    %v2951 = vld [vmem:[%s2937 + $0x34] sm:$0xf]
    %v2952 = vld [vmem:[%s2937 + $0x38] sm:$0xf]
    %v2953 = vld [vmem:[%s2937 + $0x3c] sm:$0xf]
    %s2954 = scalar_lea.vmem [#allocation10], 1
    %v2955 = vld [vmem:[%s2954] sm:$0x1]
    %v2957 = vperm.slane %v2955, 0
    %v2975 = vunpack.c.l.b16 %v2938
    %v2976 = vunpack.c.l.b16 %v2939
    %v2977 = vunpack.c.l.b16 %v2940
    %v2978 = vunpack.c.l.b16 %v2941
    %v2979 = vunpack.c.l.b16 %v2942
    %v2980 = vunpack.c.l.b16 %v2943
    %v2981 = vunpack.c.l.b16 %v2944
    %v2982 = vunpack.c.l.b16 %v2945
    %v2983 = vunpack.c.l.b16 %v2946
    %v2984 = vunpack.c.l.b16 %v2947
    %v2985 = vunpack.c.l.b16 %v2948
    %v2986 = vunpack.c.l.b16 %v2949
    %v2987 = vunpack.c.l.b16 %v2950
    %v2988 = vunpack.c.l.b16 %v2951
    %v2989 = vunpack.c.l.b16 %v2952
    %v2990 = vunpack.c.l.b16 %v2953
    %v2991 = vpack.c.b16 %v2976, %v2975
    %v2992 = vpack.c.b16 %v2978, %v2977
    %v2993 = vpack.c.b16 %v2980, %v2979
    %v2994 = vpack.c.b16 %v2982, %v2981
    %v2995 = vpack.c.b16 %v2984, %v2983
    %v2996 = vpack.c.b16 %v2986, %v2985
    %v2997 = vpack.c.b16 %v2988, %v2987
    %v2998 = vpack.c.b16 %v2990, %v2989
    %3007 = vmatpush.bf16.msra.mxu0 %v2998
    %3008 = vmatpush.bf16.msra.mxu0 %v2997
    %3009 = vmatpush.bf16.msra.mxu0 %v2996
    %3010 = vmatpush.bf16.msra.mxu0 %v2995
    %3011 = vmatpush.bf16.msra.mxu0 %v2994
    %3012 = vmatpush.bf16.msra.mxu0 %v2993
    %3013 = vmatpush.bf16.msra.mxu0 %v2992
    %3014 = vmatpush.bf16.msra.mxu0 %v2991
    %3015 = vmatmul.bf16.gmra.mxu0 %v2936
    %v3016 = vpop.f32.mrf.mxu0
    %v3017 = vadd.f32 %v2957, %v3016
    %v3018 = vpop.f32.mrf.mxu0
    %v3019 = vadd.f32 %v2957, %v3018
    %3020 = vdwg.mxu0
    %v3021 = vmax.f32 %v3017, 0.0
    %v3022 = vmax.f32 %v3019, 0.0
    %v3023 = vpack.c.bf16 %v3022, %v3021
    %s3024 = scalar_lea.vmem [#allocation12], 64
    %v3025 = vld [vmem:[%s3024] sm:$0xf]
    %v3026 = vld [vmem:[%s3024 + $0x4] sm:$0xf]
    %v3027 = vld [vmem:[%s3024 + $0x8] sm:$0xf]
    %v3028 = vld [vmem:[%s3024 + $0xc] sm:$0xf]
    %v3029 = vld [vmem:[%s3024 + $0x10] sm:$0xf]
    %v3030 = vld [vmem:[%s3024 + $0x14] sm:$0xf]
    %v3031 = vld [vmem:[%s3024 + $0x18] sm:$0xf]
    %v3032 = vld [vmem:[%s3024 + $0x1c] sm:$0xf]
    %v3033 = vld [vmem:[%s3024 + $0x20] sm:$0xf]
    %v3034 = vld [vmem:[%s3024 + $0x24] sm:$0xf]
    %v3035 = vld [vmem:[%s3024 + $0x28] sm:$0xf]
    %v3036 = vld [vmem:[%s3024 + $0x2c] sm:$0xf]
    %v3037 = vld [vmem:[%s3024 + $0x30] sm:$0xf]
    %v3038 = vld [vmem:[%s3024 + $0x34] sm:$0xf]
    %v3039 = vld [vmem:[%s3024 + $0x38] sm:$0xf]
    %v3040 = vld [vmem:[%s3024 + $0x3c] sm:$0xf]
    %v3057 = vunpack.c.l.b16 %v3025
    %v3058 = vunpack.c.l.b16 %v3026
    %v3059 = vunpack.c.l.b16 %v3027
    %v3060 = vunpack.c.l.b16 %v3028
    %v3061 = vunpack.c.l.b16 %v3029
    %v3062 = vunpack.c.l.b16 %v3030
    %v3063 = vunpack.c.l.b16 %v3031
    %v3064 = vunpack.c.l.b16 %v3032
    %v3065 = vunpack.c.l.b16 %v3033
    %v3066 = vunpack.c.l.b16 %v3034
    %v3067 = vunpack.c.l.b16 %v3035
    %v3068 = vunpack.c.l.b16 %v3036
    %v3069 = vunpack.c.l.b16 %v3037
    %v3070 = vunpack.c.l.b16 %v3038
    %v3071 = vunpack.c.l.b16 %v3039
    %v3072 = vunpack.c.l.b16 %v3040
    %v3073 = vpack.c.b16 %v3058, %v3057
    %v3074 = vpack.c.b16 %v3060, %v3059
    %v3075 = vpack.c.b16 %v3062, %v3061
    %v3076 = vpack.c.b16 %v3064, %v3063
    %v3077 = vpack.c.b16 %v3066, %v3065
    %v3078 = vpack.c.b16 %v3068, %v3067
    %v3079 = vpack.c.b16 %v3070, %v3069
    %v3080 = vpack.c.b16 %v3072, %v3071
    %3089 = vmatpush.bf16.msra.mxu0 %v3080
    %3090 = vmatpush.bf16.msra.mxu0 %v3079
    %3091 = vmatpush.bf16.msra.mxu0 %v3078
    %3092 = vmatpush.bf16.msra.mxu0 %v3077
    %3093 = vmatpush.bf16.msra.mxu0 %v3076
    %3094 = vmatpush.bf16.msra.mxu0 %v3075
    %3095 = vmatpush.bf16.msra.mxu0 %v3074
    %3096 = vmatpush.bf16.msra.mxu0 %v3073
    %3097 = vmatmul.bf16.gmra.mxu0 %v3023
    %v3098 = vpop.f32.mrf.mxu0
    %v3099 = vadd.f32 0.0, %v3098
    %v3100 = vpop.f32.mrf.mxu0
    %v3101 = vadd.f32 0.0, %v3100
    %3102 = vdwg.mxu0
    %v3103 = vadd.f32 %v2844, %v3099
    %v3104 = vadd.f32 %v2845, %v3101
    %s3105 = scalar_lea.vmem [#allocation13], 1
    %v3106 = vld [vmem:[%s3105] sm:$0x1]
    %v3108 = vperm.slane %v3106, 0
    %v3110 = vadd.f32 %v3103, %v3108
    %v3111 = vadd.f32 %v3104, %v3108
    %s3112 = scalar_lea.vmem [#allocation15], 2
    %v3113 = vld [vmem:[%s3112] sm:$0x1]
    %s3114 = scalar_lea.vmem [#allocation16], 2
    %v3115 = vld [vmem:[%s3114] sm:$0x1]
    %3116 = vadd.xlane.f32.xlu0 %v3110
    %v3117 = vpop.xlane.xlu0 %3116
    %3118 = vadd.xlane.f32.xlu0 %v3111
    %v3119 = vpop.xlane.xlu0 %3118
    %v3120 = vmul.f32 %v3117, 0.020833334
    %v3121 = vmul.f32 %v3119, 0.020833334
    %v3122 = vsub.f32 %v3110, %v3120
    %v3123 = vsub.f32 %v3111, %v3121
    %v3124 = vsel %vm270, %v3122, 0.0
    %v3125 = vsel %vm270, %v3123, 0.0
    %v3126 = vmul.f32 %v3124, %v3124
    %v3127 = vmul.f32 %v3125, %v3125
    %3128 = vadd.xlane.f32.xlu0 %v3126
    %v3129 = vpop.xlane.xlu0 %3128
    %3130 = vadd.xlane.f32.xlu0 %v3127
    %v3131 = vpop.xlane.xlu0 %3130
    %v3132 = vmul.f32 %v3129, 0.021276595
    %v3133 = vmul.f32 %v3131, 0.021276595
    %v3134 = vrsqrt.pop %v3132
    %v3135 = vmul.f32 %v3134, %v3132
    %v3136 = vmul.f32 %v3135, %v3134
    %v3137 = vmul.f32 0.5, %v3136
    %v3138 = vsub.f32 1.5, %v3137
    %v3139 = vmul.f32 %v3134, %v3138
    %v3140 = vmul.f32 %v3132, %v3139
    %vm3141 = vcmp.eq.f32.partialorder %v3132, inf
    %v3142 = vsel %vm3141, %v3132, %v3140
    %vm3143 = vcmp.eq.f32.partialorder %v3132, 0.0
    %v3144 = vand.u32 %v3132, 2147483648
    %v3145 = vsel %vm3143, %v3144, %v3142
    %v3146 = vrsqrt.pop %v3133
    %v3147 = vmul.f32 %v3146, %v3133
    %v3148 = vmul.f32 %v3147, %v3146
    %v3149 = vmul.f32 0.5, %v3148
    %v3150 = vsub.f32 1.5, %v3149
    %v3151 = vmul.f32 %v3146, %v3150
    %v3152 = vmul.f32 %v3133, %v3151
    %vm3153 = vcmp.eq.f32.partialorder %v3133, inf
    %v3154 = vsel %vm3153, %v3133, %v3152
    %vm3155 = vcmp.eq.f32.partialorder %v3133, 0.0
    %v3156 = vand.u32 %v3133, 2147483648
    %v3157 = vsel %vm3155, %v3156, %v3154
    %v3158 = vadd.f32 %v3145, 1e-06
    %v3159 = vadd.f32 %v3157, 1e-06
    %v3160 = vrcp.pop %v3158
    %v3161 = vmul.f32 %v3158, %v3160
    %v3162 = vsub.f32 1.0, %v3161
    %v3163 = vmul.f32 %v3160, %v3162
    %v3164 = vadd.f32 %v3160, %v3163
    %vm3165 = vweird.f32 %v3158
    %vm3166 = vweird.f32 %v3160
    %vm3167 = vmor %vm3165, %vm3166
    %v3168 = vsel %vm3167, %v3160, %v3164
    %v3169 = vand.u32 2147483647, %v3158
    %vm3170 = vcmp.eq.f32.partialorder %v3169, 8.507059e+37
    %v3171 = vand.u32 %v3158, 2147483648
    %v3172 = vor.u32 1.1754944e-38, %v3171
    %v3173 = vsel %vm3170, %v3172, %v3168
    %v3174 = vmul.f32 1.0, %v3173
    %v3175 = vrcp.pop %v3159
    %v3176 = vmul.f32 %v3159, %v3175
    %v3177 = vsub.f32 1.0, %v3176
    %v3178 = vmul.f32 %v3175, %v3177
    %v3179 = vadd.f32 %v3175, %v3178
    %vm3180 = vweird.f32 %v3159
    %vm3181 = vweird.f32 %v3175
    %vm3182 = vmor %vm3180, %vm3181
    %v3183 = vsel %vm3182, %v3175, %v3179
    %v3184 = vand.u32 2147483647, %v3159
    %vm3185 = vcmp.eq.f32.partialorder %v3184, 8.507059e+37
    %v3186 = vand.u32 %v3159, 2147483648
    %v3187 = vor.u32 1.1754944e-38, %v3186
    %v3188 = vsel %vm3185, %v3187, %v3183
    %v3189 = vmul.f32 1.0, %v3188
    %v3190 = vmul.f32 %v3124, %v3174
    %v3191 = vmul.f32 %v3125, %v3189
    %v3193 = vperm.slane %v3113, 0
    %v3195 = vmul.f32 %v3193, %v3190
    %v3196 = vmul.f32 %v3193, %v3191
    %v3198 = vperm.slane %v3115, 0
    %v3200 = vadd.f32 %v3195, %v3198
    %v3201 = vadd.f32 %v3196, %v3198
    %v3202 = vpack.c.bf16 %v3201, %v3200
    %s3203 = scalar_lea.vmem [#allocation2], 1152
    %v3204 = vld [vmem:[%s3203] sm:$0xff]
    %v3205 = vld [vmem:[%s3203 + $0x8] sm:$0xff]
    %v3206 = vld [vmem:[%s3203 + $0x10] sm:$0xff]
    %v3207 = vld [vmem:[%s3203 + $0x18] sm:$0xff]
    %v3208 = vld [vmem:[%s3203 + $0x20] sm:$0xf]
    %v3209 = vld [vmem:[%s3203 + $0x24] sm:$0xff]
    %v3210 = vld [vmem:[%s3203 + $0x2c] sm:$0xff]
    %v3211 = vld [vmem:[%s3203 + $0x34] sm:$0xff]
    %v3212 = vld [vmem:[%s3203 + $0x3c] sm:$0xff]
    %v3213 = vld [vmem:[%s3203 + $0x44] sm:$0xf]
    %v3214 = vld [vmem:[%s3203 + $0x48] sm:$0xff]
    %v3215 = vld [vmem:[%s3203 + $0x50] sm:$0xff]
    %v3216 = vld [vmem:[%s3203 + $0x58] sm:$0xff]
    %v3217 = vld [vmem:[%s3203 + $0x60] sm:$0xff]
    %v3218 = vld [vmem:[%s3203 + $0x68] sm:$0xf]
    %v3219 = vld [vmem:[%s3203 + $0x6c] sm:$0xff]
    %v3220 = vld [vmem:[%s3203 + $0x74] sm:$0xff]
    %v3221 = vld [vmem:[%s3203 + $0x7c] sm:$0xff]
    %v3222 = vld [vmem:[%s3203 + $0x84] sm:$0xff]
    %v3223 = vld [vmem:[%s3203 + $0x8c] sm:$0xf]
    %v3224 = vld [vmem:[%s3203 + $0x90] sm:$0xff]
    %v3225 = vld [vmem:[%s3203 + $0x98] sm:$0xff]
    %v3226 = vld [vmem:[%s3203 + $0xa0] sm:$0xff]
    %v3227 = vld [vmem:[%s3203 + $0xa8] sm:$0xff]
    %v3228 = vld [vmem:[%s3203 + $0xb0] sm:$0xf]
    %v3229 = vld [vmem:[%s3203 + $0xb4] sm:$0xff]
    %v3230 = vld [vmem:[%s3203 + $0xbc] sm:$0xff]
    %v3231 = vld [vmem:[%s3203 + $0xc4] sm:$0xff]
    %v3232 = vld [vmem:[%s3203 + $0xcc] sm:$0xff]
    %v3233 = vld [vmem:[%s3203 + $0xd4] sm:$0xf]
    %v3234 = vld [vmem:[%s3203 + $0xd8] sm:$0xff]
    %v3235 = vld [vmem:[%s3203 + $0xe0] sm:$0xff]
    %v3236 = vld [vmem:[%s3203 + $0xe8] sm:$0xff]
    %v3237 = vld [vmem:[%s3203 + $0xf0] sm:$0xff]
    %v3238 = vld [vmem:[%s3203 + $0xf8] sm:$0xf]
    %v3239 = vld [vmem:[%s3203 + $0xfc] sm:$0xff]
    %v3240 = vld [vmem:[%s3203 + $0x104] sm:$0xff]
    %v3241 = vld [vmem:[%s3203 + $0x10c] sm:$0xff]
    %v3242 = vld [vmem:[%s3203 + $0x114] sm:$0xff]
    %v3243 = vld [vmem:[%s3203 + $0x11c] sm:$0xf]
    %v3244 = vld [vmem:[%s3203 + $0x120] sm:$0xff]
    %v3245 = vld [vmem:[%s3203 + $0x128] sm:$0xff]
    %v3246 = vld [vmem:[%s3203 + $0x130] sm:$0xff]
    %v3247 = vld [vmem:[%s3203 + $0x138] sm:$0xff]
    %v3248 = vld [vmem:[%s3203 + $0x140] sm:$0xf]
    %v3249 = vld [vmem:[%s3203 + $0x144] sm:$0xff]
    %v3250 = vld [vmem:[%s3203 + $0x14c] sm:$0xff]
    %v3251 = vld [vmem:[%s3203 + $0x154] sm:$0xff]
    %v3252 = vld [vmem:[%s3203 + $0x15c] sm:$0xff]
    %v3253 = vld [vmem:[%s3203 + $0x164] sm:$0xf]
    %v3254 = vld [vmem:[%s3203 + $0x168] sm:$0xff]
    %v3255 = vld [vmem:[%s3203 + $0x170] sm:$0xff]
    %v3256 = vld [vmem:[%s3203 + $0x178] sm:$0xff]
    %v3257 = vld [vmem:[%s3203 + $0x180] sm:$0xff]
    %v3258 = vld [vmem:[%s3203 + $0x188] sm:$0xf]
    %v3259 = vld [vmem:[%s3203 + $0x18c] sm:$0xff]
    %v3260 = vld [vmem:[%s3203 + $0x194] sm:$0xff]
    %v3261 = vld [vmem:[%s3203 + $0x19c] sm:$0xff]
    %v3262 = vld [vmem:[%s3203 + $0x1a4] sm:$0xff]
    %v3263 = vld [vmem:[%s3203 + $0x1ac] sm:$0xf]
    %v3264 = vld [vmem:[%s3203 + $0x1b0] sm:$0xff]
    %v3265 = vld [vmem:[%s3203 + $0x1b8] sm:$0xff]
    %v3266 = vld [vmem:[%s3203 + $0x1c0] sm:$0xff]
    %v3267 = vld [vmem:[%s3203 + $0x1c8] sm:$0xff]
    %v3268 = vld [vmem:[%s3203 + $0x1d0] sm:$0xf]
    %v3269 = vld [vmem:[%s3203 + $0x1d4] sm:$0xff]
    %v3270 = vld [vmem:[%s3203 + $0x1dc] sm:$0xff]
    %v3271 = vld [vmem:[%s3203 + $0x1e4] sm:$0xff]
    %v3272 = vld [vmem:[%s3203 + $0x1ec] sm:$0xff]
    %v3273 = vld [vmem:[%s3203 + $0x1f4] sm:$0xf]
    %v3274 = vld [vmem:[%s3203 + $0x1f8] sm:$0xff]
    %v3275 = vld [vmem:[%s3203 + $0x200] sm:$0xff]
    %v3276 = vld [vmem:[%s3203 + $0x208] sm:$0xff]
    %v3277 = vld [vmem:[%s3203 + $0x210] sm:$0xff]
    %v3278 = vld [vmem:[%s3203 + $0x218] sm:$0xf]
    %v3279 = vld [vmem:[%s3203 + $0x21c] sm:$0xff]
    %v3280 = vld [vmem:[%s3203 + $0x224] sm:$0xff]
    %v3281 = vld [vmem:[%s3203 + $0x22c] sm:$0xff]
    %v3282 = vld [vmem:[%s3203 + $0x234] sm:$0xff]
    %v3283 = vld [vmem:[%s3203 + $0x23c] sm:$0xf]
    %s3284 = scalar_lea.vmem [#allocation4], 18
    %v3285 = vld [vmem:[%s3284] sm:$0xff]
    %v3286 = vld [vmem:[%s3284 + $0x8] sm:$0x1]
    %v3289 = vperm.slane %v3285, 0
    %v3290 = vperm.slane %v3285, 1
    %v3291 = vperm.slane %v3285, 2
    %v3292 = vperm.slane %v3285, 3
    %v3293 = vperm.slane %v3285, 4
    %v3294 = vperm.slane %v3285, 5
    %v3295 = vperm.slane %v3285, 6
    %v3296 = vperm.slane %v3285, 7
    %v3297 = vperm.slane %v3286, 0
    %v3387 = vunpack.c.l.b16 %v3204
    %v3388 = vunpack.c.h.b16 %v3204
    %v3389 = vunpack.c.l.b16 %v3205
    %v3390 = vunpack.c.h.b16 %v3205
    %v3391 = vunpack.c.l.b16 %v3206
    %v3392 = vunpack.c.h.b16 %v3206
    %v3393 = vunpack.c.l.b16 %v3207
    %v3394 = vunpack.c.h.b16 %v3207
    %v3395 = vunpack.c.l.b16 %v3208
    %v3396 = vunpack.c.l.b16 %v3209
    %v3397 = vunpack.c.h.b16 %v3209
    %v3398 = vunpack.c.l.b16 %v3210
    %v3399 = vunpack.c.h.b16 %v3210
    %v3400 = vunpack.c.l.b16 %v3211
    %v3401 = vunpack.c.h.b16 %v3211
    %v3402 = vunpack.c.l.b16 %v3212
    %v3403 = vunpack.c.h.b16 %v3212
    %v3404 = vunpack.c.l.b16 %v3213
    %v3405 = vunpack.c.l.b16 %v3214
    %v3406 = vunpack.c.h.b16 %v3214
    %v3407 = vunpack.c.l.b16 %v3215
    %v3408 = vunpack.c.h.b16 %v3215
    %v3409 = vunpack.c.l.b16 %v3216
    %v3410 = vunpack.c.h.b16 %v3216
    %v3411 = vunpack.c.l.b16 %v3217
    %v3412 = vunpack.c.h.b16 %v3217
    %v3413 = vunpack.c.l.b16 %v3218
    %v3414 = vunpack.c.l.b16 %v3219
    %v3415 = vunpack.c.h.b16 %v3219
    %v3416 = vunpack.c.l.b16 %v3220
    %v3417 = vunpack.c.h.b16 %v3220
    %v3418 = vunpack.c.l.b16 %v3221
    %v3419 = vunpack.c.h.b16 %v3221
    %v3420 = vunpack.c.l.b16 %v3222
    %v3421 = vunpack.c.h.b16 %v3222
    %v3422 = vunpack.c.l.b16 %v3223
    %v3423 = vunpack.c.l.b16 %v3224
    %v3424 = vunpack.c.h.b16 %v3224
    %v3425 = vunpack.c.l.b16 %v3225
    %v3426 = vunpack.c.h.b16 %v3225
    %v3427 = vunpack.c.l.b16 %v3226
    %v3428 = vunpack.c.h.b16 %v3226
    %v3429 = vunpack.c.l.b16 %v3227
    %v3430 = vunpack.c.h.b16 %v3227
    %v3431 = vunpack.c.l.b16 %v3228
    %v3432 = vunpack.c.l.b16 %v3229
    %v3433 = vunpack.c.h.b16 %v3229
    %v3434 = vunpack.c.l.b16 %v3230
    %v3435 = vunpack.c.h.b16 %v3230
    %v3436 = vunpack.c.l.b16 %v3231
    %v3437 = vunpack.c.h.b16 %v3231
    %v3438 = vunpack.c.l.b16 %v3232
    %v3439 = vunpack.c.h.b16 %v3232
    %v3440 = vunpack.c.l.b16 %v3233
    %v3441 = vunpack.c.l.b16 %v3234
    %v3442 = vunpack.c.h.b16 %v3234
    %v3443 = vunpack.c.l.b16 %v3235
    %v3444 = vunpack.c.h.b16 %v3235
    %v3445 = vunpack.c.l.b16 %v3236
    %v3446 = vunpack.c.h.b16 %v3236
    %v3447 = vunpack.c.l.b16 %v3237
    %v3448 = vunpack.c.h.b16 %v3237
    %v3449 = vunpack.c.l.b16 %v3238
    %v3450 = vunpack.c.l.b16 %v3239
    %v3451 = vunpack.c.h.b16 %v3239
    %v3452 = vunpack.c.l.b16 %v3240
    %v3453 = vunpack.c.h.b16 %v3240
    %v3454 = vunpack.c.l.b16 %v3241
    %v3455 = vunpack.c.h.b16 %v3241
    %v3456 = vunpack.c.l.b16 %v3242
    %v3457 = vunpack.c.h.b16 %v3242
    %v3458 = vunpack.c.l.b16 %v3243
    %v3459 = vunpack.c.l.b16 %v3244
    %v3460 = vunpack.c.h.b16 %v3244
    %v3461 = vunpack.c.l.b16 %v3245
    %v3462 = vunpack.c.h.b16 %v3245
    %v3463 = vunpack.c.l.b16 %v3246
    %v3464 = vunpack.c.h.b16 %v3246
    %v3465 = vunpack.c.l.b16 %v3247
    %v3466 = vunpack.c.h.b16 %v3247
    %v3467 = vunpack.c.l.b16 %v3248
    %v3468 = vunpack.c.l.b16 %v3249
    %v3469 = vunpack.c.h.b16 %v3249
    %v3470 = vunpack.c.l.b16 %v3250
    %v3471 = vunpack.c.h.b16 %v3250
    %v3472 = vunpack.c.l.b16 %v3251
    %v3473 = vunpack.c.h.b16 %v3251
    %v3474 = vunpack.c.l.b16 %v3252
    %v3475 = vunpack.c.h.b16 %v3252
    %v3476 = vunpack.c.l.b16 %v3253
    %v3477 = vunpack.c.l.b16 %v3254
    %v3478 = vunpack.c.h.b16 %v3254
    %v3479 = vunpack.c.l.b16 %v3255
    %v3480 = vunpack.c.h.b16 %v3255
    %v3481 = vunpack.c.l.b16 %v3256
    %v3482 = vunpack.c.h.b16 %v3256
    %v3483 = vunpack.c.l.b16 %v3257
    %v3484 = vunpack.c.h.b16 %v3257
    %v3485 = vunpack.c.l.b16 %v3258
    %v3486 = vunpack.c.l.b16 %v3259
    %v3487 = vunpack.c.h.b16 %v3259
    %v3488 = vunpack.c.l.b16 %v3260
    %v3489 = vunpack.c.h.b16 %v3260
    %v3490 = vunpack.c.l.b16 %v3261
    %v3491 = vunpack.c.h.b16 %v3261
    %v3492 = vunpack.c.l.b16 %v3262
    %v3493 = vunpack.c.h.b16 %v3262
    %v3494 = vunpack.c.l.b16 %v3263
    %v3495 = vunpack.c.l.b16 %v3264
    %v3496 = vunpack.c.h.b16 %v3264
    %v3497 = vunpack.c.l.b16 %v3265
    %v3498 = vunpack.c.h.b16 %v3265
    %v3499 = vunpack.c.l.b16 %v3266
    %v3500 = vunpack.c.h.b16 %v3266
    %v3501 = vunpack.c.l.b16 %v3267
    %v3502 = vunpack.c.h.b16 %v3267
    %v3503 = vunpack.c.l.b16 %v3268
    %v3504 = vunpack.c.l.b16 %v3269
    %v3505 = vunpack.c.h.b16 %v3269
    %v3506 = vunpack.c.l.b16 %v3270
    %v3507 = vunpack.c.h.b16 %v3270
    %v3508 = vunpack.c.l.b16 %v3271
    %v3509 = vunpack.c.h.b16 %v3271
    %v3510 = vunpack.c.l.b16 %v3272
    %v3511 = vunpack.c.h.b16 %v3272
    %v3512 = vunpack.c.l.b16 %v3273
    %v3513 = vunpack.c.l.b16 %v3274
    %v3514 = vunpack.c.h.b16 %v3274
    %v3515 = vunpack.c.l.b16 %v3275
    %v3516 = vunpack.c.h.b16 %v3275
    %v3517 = vunpack.c.l.b16 %v3276
    %v3518 = vunpack.c.h.b16 %v3276
    %v3519 = vunpack.c.l.b16 %v3277
    %v3520 = vunpack.c.h.b16 %v3277
    %v3521 = vunpack.c.l.b16 %v3278
    %v3522 = vunpack.c.l.b16 %v3279
    %v3523 = vunpack.c.h.b16 %v3279
    %v3524 = vunpack.c.l.b16 %v3280
    %v3525 = vunpack.c.h.b16 %v3280
    %v3526 = vunpack.c.l.b16 %v3281
    %v3527 = vunpack.c.h.b16 %v3281
    %v3528 = vunpack.c.l.b16 %v3282
    %v3529 = vunpack.c.h.b16 %v3282
    %v3530 = vunpack.c.l.b16 %v3283
    %v3531 = vpack.c.b16 %v3396, %v3387
    %v3532 = vpack.c.b16 %v3397, %v3388
    %v3533 = vpack.c.b16 %v3398, %v3389
    %v3534 = vpack.c.b16 %v3399, %v3390
    %v3535 = vpack.c.b16 %v3400, %v3391
    %v3536 = vpack.c.b16 %v3401, %v3392
    %v3537 = vpack.c.b16 %v3402, %v3393
    %v3538 = vpack.c.b16 %v3403, %v3394
    %v3539 = vpack.c.b16 %v3404, %v3395
    %v3540 = vpack.c.b16 %v3414, %v3405
    %v3541 = vpack.c.b16 %v3415, %v3406
    %v3542 = vpack.c.b16 %v3416, %v3407
    %v3543 = vpack.c.b16 %v3417, %v3408
    %v3544 = vpack.c.b16 %v3418, %v3409
    %v3545 = vpack.c.b16 %v3419, %v3410
    %v3546 = vpack.c.b16 %v3420, %v3411
    %v3547 = vpack.c.b16 %v3421, %v3412
    %v3548 = vpack.c.b16 %v3422, %v3413
    %v3549 = vpack.c.b16 %v3432, %v3423
    %v3550 = vpack.c.b16 %v3433, %v3424
    %v3551 = vpack.c.b16 %v3434, %v3425
    %v3552 = vpack.c.b16 %v3435, %v3426
    %v3553 = vpack.c.b16 %v3436, %v3427
    %v3554 = vpack.c.b16 %v3437, %v3428
    %v3555 = vpack.c.b16 %v3438, %v3429
    %v3556 = vpack.c.b16 %v3439, %v3430
    %v3557 = vpack.c.b16 %v3440, %v3431
    %v3558 = vpack.c.b16 %v3450, %v3441
    %v3559 = vpack.c.b16 %v3451, %v3442
    %v3560 = vpack.c.b16 %v3452, %v3443
    %v3561 = vpack.c.b16 %v3453, %v3444
    %v3562 = vpack.c.b16 %v3454, %v3445
    %v3563 = vpack.c.b16 %v3455, %v3446
    %v3564 = vpack.c.b16 %v3456, %v3447
    %v3565 = vpack.c.b16 %v3457, %v3448
    %v3566 = vpack.c.b16 %v3458, %v3449
    %v3567 = vpack.c.b16 %v3468, %v3459
    %v3568 = vpack.c.b16 %v3469, %v3460
    %v3569 = vpack.c.b16 %v3470, %v3461
    %v3570 = vpack.c.b16 %v3471, %v3462
    %v3571 = vpack.c.b16 %v3472, %v3463
    %v3572 = vpack.c.b16 %v3473, %v3464
    %v3573 = vpack.c.b16 %v3474, %v3465
    %v3574 = vpack.c.b16 %v3475, %v3466
    %v3575 = vpack.c.b16 %v3476, %v3467
    %v3576 = vpack.c.b16 %v3486, %v3477
    %v3577 = vpack.c.b16 %v3487, %v3478
    %v3578 = vpack.c.b16 %v3488, %v3479
    %v3579 = vpack.c.b16 %v3489, %v3480
    %v3580 = vpack.c.b16 %v3490, %v3481
    %v3581 = vpack.c.b16 %v3491, %v3482
    %v3582 = vpack.c.b16 %v3492, %v3483
    %v3583 = vpack.c.b16 %v3493, %v3484
    %v3584 = vpack.c.b16 %v3494, %v3485
    %v3585 = vpack.c.b16 %v3504, %v3495
    %v3586 = vpack.c.b16 %v3505, %v3496
    %v3587 = vpack.c.b16 %v3506, %v3497
    %v3588 = vpack.c.b16 %v3507, %v3498
    %v3589 = vpack.c.b16 %v3508, %v3499
    %v3590 = vpack.c.b16 %v3509, %v3500
    %v3591 = vpack.c.b16 %v3510, %v3501
    %v3592 = vpack.c.b16 %v3511, %v3502
    %v3593 = vpack.c.b16 %v3512, %v3503
    %v3594 = vpack.c.b16 %v3522, %v3513
    %v3595 = vpack.c.b16 %v3523, %v3514
    %v3596 = vpack.c.b16 %v3524, %v3515
    %v3597 = vpack.c.b16 %v3525, %v3516
    %v3598 = vpack.c.b16 %v3526, %v3517
    %v3599 = vpack.c.b16 %v3527, %v3518
    %v3600 = vpack.c.b16 %v3528, %v3519
    %v3601 = vpack.c.b16 %v3529, %v3520
    %v3602 = vpack.c.b16 %v3530, %v3521
    %3675 = vmatpush.bf16.msra.mxu0 %v3594
    %3676 = vmatpush.bf16.msra.mxu0 %v3585
    %3677 = vmatpush.bf16.msra.mxu0 %v3576
    %3678 = vmatpush.bf16.msra.mxu0 %v3567
    %3679 = vmatpush.bf16.msra.mxu0 %v3558
    %3680 = vmatpush.bf16.msra.mxu0 %v3549
    %3681 = vmatpush.bf16.msra.mxu0 %v3540
    %3682 = vmatpush.bf16.msra.mxu0 %v3531
    %3683 = vmatmul.bf16.gmra.mxu0 %v3202
    %v3684 = vpop.f32.mrf.mxu0
    %v3685 = vadd.f32 %v3289, %v3684
    %v3686 = vpop.f32.mrf.mxu0
    %v3687 = vadd.f32 %v3289, %v3686
    %3688 = vdwg.mxu0
    %3689 = vmatpush.bf16.msra.mxu0 %v3595
    %3690 = vmatpush.bf16.msra.mxu0 %v3586
    %3691 = vmatpush.bf16.msra.mxu0 %v3577
    %3692 = vmatpush.bf16.msra.mxu0 %v3568
    %3693 = vmatpush.bf16.msra.mxu0 %v3559
    %3694 = vmatpush.bf16.msra.mxu0 %v3550
    %3695 = vmatpush.bf16.msra.mxu0 %v3541
    %3696 = vmatpush.bf16.msra.mxu0 %v3532
    %3697 = vmatmul.bf16.gmra.mxu0 %v3202
    %v3698 = vpop.f32.mrf.mxu0
    %v3699 = vadd.f32 %v3290, %v3698
    %v3700 = vpop.f32.mrf.mxu0
    %v3701 = vadd.f32 %v3290, %v3700
    %3702 = vdwg.mxu0
    %3703 = vmatpush.bf16.msra.mxu0 %v3596
    %3704 = vmatpush.bf16.msra.mxu0 %v3587
    %3705 = vmatpush.bf16.msra.mxu0 %v3578
    %3706 = vmatpush.bf16.msra.mxu0 %v3569
    %3707 = vmatpush.bf16.msra.mxu0 %v3560
    %3708 = vmatpush.bf16.msra.mxu0 %v3551
    %3709 = vmatpush.bf16.msra.mxu0 %v3542
    %3710 = vmatpush.bf16.msra.mxu0 %v3533
    %3711 = vmatmul.bf16.gmra.mxu0 %v3202
    %v3712 = vpop.f32.mrf.mxu0
    %v3713 = vadd.f32 %v3291, %v3712
    %v3714 = vpop.f32.mrf.mxu0
    %v3715 = vadd.f32 %v3291, %v3714
    %3716 = vdwg.mxu0
    %3717 = vmatpush.bf16.msra.mxu0 %v3597
    %3718 = vmatpush.bf16.msra.mxu0 %v3588
    %3719 = vmatpush.bf16.msra.mxu0 %v3579
    %3720 = vmatpush.bf16.msra.mxu0 %v3570
    %3721 = vmatpush.bf16.msra.mxu0 %v3561
    %3722 = vmatpush.bf16.msra.mxu0 %v3552
    %3723 = vmatpush.bf16.msra.mxu0 %v3543
    %3724 = vmatpush.bf16.msra.mxu0 %v3534
    %3725 = vmatmul.bf16.gmra.mxu0 %v3202
    %v3726 = vpop.f32.mrf.mxu0
    %v3727 = vadd.f32 %v3292, %v3726
    %v3728 = vpop.f32.mrf.mxu0
    %v3729 = vadd.f32 %v3292, %v3728
    %3730 = vdwg.mxu0
    %3731 = vmatpush.bf16.msra.mxu0 %v3598
    %3732 = vmatpush.bf16.msra.mxu0 %v3589
    %3733 = vmatpush.bf16.msra.mxu0 %v3580
    %3734 = vmatpush.bf16.msra.mxu0 %v3571
    %3735 = vmatpush.bf16.msra.mxu0 %v3562
    %3736 = vmatpush.bf16.msra.mxu0 %v3553
    %3737 = vmatpush.bf16.msra.mxu0 %v3544
    %3738 = vmatpush.bf16.msra.mxu0 %v3535
    %3739 = vmatmul.bf16.gmra.mxu0 %v3202
    %v3740 = vpop.f32.mrf.mxu0
    %v3741 = vadd.f32 %v3293, %v3740
    %v3742 = vpop.f32.mrf.mxu0
    %v3743 = vadd.f32 %v3293, %v3742
    %3744 = vdwg.mxu0
    %3745 = vmatpush.bf16.msra.mxu0 %v3599
    %3746 = vmatpush.bf16.msra.mxu0 %v3590
    %3747 = vmatpush.bf16.msra.mxu0 %v3581
    %3748 = vmatpush.bf16.msra.mxu0 %v3572
    %3749 = vmatpush.bf16.msra.mxu0 %v3563
    %3750 = vmatpush.bf16.msra.mxu0 %v3554
    %3751 = vmatpush.bf16.msra.mxu0 %v3545
    %3752 = vmatpush.bf16.msra.mxu0 %v3536
    %3753 = vmatmul.bf16.gmra.mxu0 %v3202
    %v3754 = vpop.f32.mrf.mxu0
    %v3755 = vadd.f32 %v3294, %v3754
    %v3756 = vpop.f32.mrf.mxu0
    %v3757 = vadd.f32 %v3294, %v3756
    %3758 = vdwg.mxu0
    %3759 = vmatpush.bf16.msra.mxu0 %v3600
    %3760 = vmatpush.bf16.msra.mxu0 %v3591
    %3761 = vmatpush.bf16.msra.mxu0 %v3582
    %3762 = vmatpush.bf16.msra.mxu0 %v3573
    %3763 = vmatpush.bf16.msra.mxu0 %v3564
    %3764 = vmatpush.bf16.msra.mxu0 %v3555
    %3765 = vmatpush.bf16.msra.mxu0 %v3546
    %3766 = vmatpush.bf16.msra.mxu0 %v3537
    %3767 = vmatmul.bf16.gmra.mxu0 %v3202
    %v3768 = vpop.f32.mrf.mxu0
    %v3769 = vadd.f32 %v3295, %v3768
    %v3770 = vpop.f32.mrf.mxu0
    %v3771 = vadd.f32 %v3295, %v3770
    %3772 = vdwg.mxu0
    %3773 = vmatpush.bf16.msra.mxu0 %v3601
    %3774 = vmatpush.bf16.msra.mxu0 %v3592
    %3775 = vmatpush.bf16.msra.mxu0 %v3583
    %3776 = vmatpush.bf16.msra.mxu0 %v3574
    %3777 = vmatpush.bf16.msra.mxu0 %v3565
    %3778 = vmatpush.bf16.msra.mxu0 %v3556
    %3779 = vmatpush.bf16.msra.mxu0 %v3547
    %3780 = vmatpush.bf16.msra.mxu0 %v3538
    %3781 = vmatmul.bf16.gmra.mxu0 %v3202
    %v3782 = vpop.f32.mrf.mxu0
    %v3783 = vadd.f32 %v3296, %v3782
    %v3784 = vpop.f32.mrf.mxu0
    %v3785 = vadd.f32 %v3296, %v3784
    %3786 = vdwg.mxu0
    %3787 = vmatpush.bf16.msra.mxu0 %v3602
    %3788 = vmatpush.bf16.msra.mxu0 %v3593
    %3789 = vmatpush.bf16.msra.mxu0 %v3584
    %3790 = vmatpush.bf16.msra.mxu0 %v3575
    %3791 = vmatpush.bf16.msra.mxu0 %v3566
    %3792 = vmatpush.bf16.msra.mxu0 %v3557
    %3793 = vmatpush.bf16.msra.mxu0 %v3548
    %3794 = vmatpush.bf16.msra.mxu0 %v3539
    %3795 = vmatmul.bf16.gmra.mxu0 %v3202
    %v3796 = vpop.f32.mrf.mxu0
    %v3797 = vadd.f32 %v3297, %v3796
    %v3798 = vpop.f32.mrf.mxu0
    %v3799 = vadd.f32 %v3297, %v3798
    %3800 = vdwg.mxu0
    %v3801 = vpack.c.bf16 %v3699, %v3685
    %v3802 = vpack.c.bf16 %v3727, %v3713
    %v3803 = vpack.c.bf16 %v3755, %v3741
    %v3804 = vpack.c.bf16 %v3783, %v3769
    %v3805 = vpack.c.bf16 %v3797, %v3797
    %v3806 = vpack.c.bf16 %v3701, %v3687
    %v3807 = vpack.c.bf16 %v3729, %v3715
    %v3808 = vpack.c.bf16 %v3757, %v3743
    %v3809 = vpack.c.bf16 %v3785, %v3771
    %v3810 = vpack.c.bf16 %v3799, %v3799
    %v3813 = vunpack.c.l.b16 %v3801
    %v3814 = vunpack.c.l.b16 %v3806
    %v3815 = vpack.c.b16 %v3814, %v3813
    %v3819 = vunpack.c.h.b16 %v3802
    %v3820 = vunpack.c.h.b16 %v3807
    %v3821 = vpack.c.b16 %v3820, %v3819
    %3823 = vmatpush.bf16.xpose.msra.mxu0 0
    %3824 = vmatpush.bf16.xpose.msra.mxu0 0
    %3825 = vmatpush.bf16.xpose.msra.mxu0 0
    %3826 = vmatpush.bf16.xpose.msra.mxu0 0
    %3827 = vmatpush.bf16.xpose.msra.mxu0 0
    %3828 = vmatpush.bf16.xpose.msra.mxu0 0
    %3829 = vmatpush.bf16.xpose.msra.mxu0 0
    %3830 = vmatpush.bf16.xpose.msra.mxu0 %v3821
    %3831 = vmatmul.bf16.gmra.mxu0 %v3815
    %v3832 = vpop.f32.mrf.mxu0
    %v3833 = vadd.f32 %v273, %v3832
    %v3834 = vpop.f32.mrf.mxu0
    %v3835 = vadd.f32 %v274, %v3834
    %3836 = vdwg.mxu0
    %v3837 = vsel %vm996, %v3833, -inf
    %3838 = vmax.xlane.f32.xlu0 %v3837
    %v3839 = vpop.xlane.xlu0 %3838
    %v3840 = vsel %vm996, %v3835, -inf
    %3841 = vmax.xlane.f32.xlu0 %v3840
    %v3842 = vpop.xlane.xlu0 %3841
    %v3843 = vsub.f32 %v3833, %v3839
    %v3844 = vsub.f32 %v3835, %v3842
    %v3845 = vmul.f32 %v3843, 1.442695
    %v3846 = vpow.pop %v3845
    %v3847 = vmul.f32 %v3844, 1.442695
    %v3848 = vpow.pop %v3847
    %v3849 = vsel %vm996, %v3846, 0.0
    %3850 = vadd.xlane.f32.xlu0 %v3849
    %v3851 = vpop.xlane.xlu0 %3850
    %v3852 = vsel %vm996, %v3848, 0.0
    %3853 = vadd.xlane.f32.xlu0 %v3852
    %v3854 = vpop.xlane.xlu0 %3853
    %v3855 = vrcp.pop %v3851
    %v3856 = vrcp.pop %v3854
    %v3857 = vmul.f32 %v3846, %v3855
    %v3858 = vmul.f32 %v3848, %v3856
    %v3859 = vpack.c.bf16 %v3858, %v3857
    %v3862 = vunpack.c.l.b16 %v3804
    %v3863 = vunpack.c.l.b16 %v3809
    %v3864 = vpack.c.b16 %v3863, %v3862
    %v3867 = vsel %vm996, %v3859, 0
    %3869 = vmatpush.bf16.msra.mxu0 0
    %3870 = vmatpush.bf16.msra.mxu0 0
    %3871 = vmatpush.bf16.msra.mxu0 0
    %3872 = vmatpush.bf16.msra.mxu0 0
    %3873 = vmatpush.bf16.msra.mxu0 0
    %3874 = vmatpush.bf16.msra.mxu0 0
    %3875 = vmatpush.bf16.msra.mxu0 0
    %3876 = vmatpush.bf16.msra.mxu0 %v3864
    %3877 = vmatmul.bf16.gmra.mxu0 %v3867
    %v3878 = vpop.f32.mrf.mxu0
    %v3879 = vadd.f32 0.0, %v3878
    %v3880 = vpop.f32.mrf.mxu0
    %v3881 = vadd.f32 0.0, %v3880
    %3882 = vdwg.mxu0
    %v3883 = vpack.c.bf16 %v3881, %v3879
    %s3884 = scalar_lea.vmem [#allocation6], 384
    %v3885 = vld [vmem:[%s3884] sm:$0xf]
    %v3886 = vld [vmem:[%s3884 + $0x4] sm:$0xf]
    %v3887 = vld [vmem:[%s3884 + $0x8] sm:$0xf]
    %v3888 = vld [vmem:[%s3884 + $0xc] sm:$0xf]
    %v3889 = vld [vmem:[%s3884 + $0x10] sm:$0xf]
    %v3890 = vld [vmem:[%s3884 + $0x14] sm:$0xf]
    %v3891 = vld [vmem:[%s3884 + $0x18] sm:$0xf]
    %v3892 = vld [vmem:[%s3884 + $0x1c] sm:$0xf]
    %v3893 = vld [vmem:[%s3884 + $0x20] sm:$0xf]
    %v3894 = vld [vmem:[%s3884 + $0x24] sm:$0xf]
    %v3895 = vld [vmem:[%s3884 + $0x28] sm:$0xf]
    %v3896 = vld [vmem:[%s3884 + $0x2c] sm:$0xf]
    %v3897 = vld [vmem:[%s3884 + $0x30] sm:$0xf]
    %v3898 = vld [vmem:[%s3884 + $0x34] sm:$0xf]
    %v3899 = vld [vmem:[%s3884 + $0x38] sm:$0xf]
    %v3900 = vld [vmem:[%s3884 + $0x3c] sm:$0xf]
    %v3901 = vunpack.c.h.b16 %v3801
    %v3902 = vunpack.c.h.b16 %v3806
    %v3903 = vpack.c.b16 %v3902, %v3901
    %v3907 = vunpack.c.l.b16 %v3803
    %v3908 = vunpack.c.l.b16 %v3808
    %v3909 = vpack.c.b16 %v3908, %v3907
    %3911 = vmatpush.bf16.xpose.msra.mxu0 0
    %3912 = vmatpush.bf16.xpose.msra.mxu0 0
    %3913 = vmatpush.bf16.xpose.msra.mxu0 0
    %3914 = vmatpush.bf16.xpose.msra.mxu0 0
    %3915 = vmatpush.bf16.xpose.msra.mxu0 0
    %3916 = vmatpush.bf16.xpose.msra.mxu0 0
    %3917 = vmatpush.bf16.xpose.msra.mxu0 0
    %3918 = vmatpush.bf16.xpose.msra.mxu0 %v3909
    %3919 = vmatmul.bf16.gmra.mxu0 %v3903
    %v3920 = vpop.f32.mrf.mxu0
    %v3921 = vadd.f32 %v273, %v3920
    %v3922 = vpop.f32.mrf.mxu0
    %v3923 = vadd.f32 %v274, %v3922
    %3924 = vdwg.mxu0
    %v3925 = vsel %vm996, %v3921, -inf
    %3926 = vmax.xlane.f32.xlu0 %v3925
    %v3927 = vpop.xlane.xlu0 %3926
    %v3928 = vsel %vm996, %v3923, -inf
    %3929 = vmax.xlane.f32.xlu0 %v3928
    %v3930 = vpop.xlane.xlu0 %3929
    %v3931 = vsub.f32 %v3921, %v3927
    %v3932 = vsub.f32 %v3923, %v3930
    %v3933 = vmul.f32 %v3931, 1.442695
    %v3934 = vpow.pop %v3933
    %v3935 = vmul.f32 %v3932, 1.442695
    %v3936 = vpow.pop %v3935
    %v3937 = vsel %vm996, %v3934, 0.0
    %3938 = vadd.xlane.f32.xlu0 %v3937
    %v3939 = vpop.xlane.xlu0 %3938
    %v3940 = vsel %vm996, %v3936, 0.0
    %3941 = vadd.xlane.f32.xlu0 %v3940
    %v3942 = vpop.xlane.xlu0 %3941
    %v3943 = vrcp.pop %v3939
    %v3944 = vrcp.pop %v3942
    %v3945 = vmul.f32 %v3934, %v3943
    %v3946 = vmul.f32 %v3936, %v3944
    %v3947 = vpack.c.bf16 %v3946, %v3945
    %v3948 = vunpack.c.h.b16 %v3804
    %v3949 = vunpack.c.h.b16 %v3809
    %v3950 = vpack.c.b16 %v3949, %v3948
    %v3953 = vsel %vm996, %v3947, 0
    %3955 = vmatpush.bf16.msra.mxu0 0
    %3956 = vmatpush.bf16.msra.mxu0 0
    %3957 = vmatpush.bf16.msra.mxu0 0
    %3958 = vmatpush.bf16.msra.mxu0 0
    %3959 = vmatpush.bf16.msra.mxu0 0
    %3960 = vmatpush.bf16.msra.mxu0 0
    %3961 = vmatpush.bf16.msra.mxu0 0
    %3962 = vmatpush.bf16.msra.mxu0 %v3950
    %3963 = vmatmul.bf16.gmra.mxu0 %v3953
    %v3964 = vpop.f32.mrf.mxu0
    %v3965 = vadd.f32 0.0, %v3964
    %v3966 = vpop.f32.mrf.mxu0
    %v3967 = vadd.f32 0.0, %v3966
    %3968 = vdwg.mxu0
    %v3969 = vpack.c.bf16 %v3967, %v3965
    %s3970 = scalar_lea.vmem [#allocation6], 448
    %v3971 = vld [vmem:[%s3970] sm:$0xf]
    %v3972 = vld [vmem:[%s3970 + $0x4] sm:$0xf]
    %v3973 = vld [vmem:[%s3970 + $0x8] sm:$0xf]
    %v3974 = vld [vmem:[%s3970 + $0xc] sm:$0xf]
    %v3975 = vld [vmem:[%s3970 + $0x10] sm:$0xf]
    %v3976 = vld [vmem:[%s3970 + $0x14] sm:$0xf]
    %v3977 = vld [vmem:[%s3970 + $0x18] sm:$0xf]
    %v3978 = vld [vmem:[%s3970 + $0x1c] sm:$0xf]
    %v3979 = vld [vmem:[%s3970 + $0x20] sm:$0xf]
    %v3980 = vld [vmem:[%s3970 + $0x24] sm:$0xf]
    %v3981 = vld [vmem:[%s3970 + $0x28] sm:$0xf]
    %v3982 = vld [vmem:[%s3970 + $0x2c] sm:$0xf]
    %v3983 = vld [vmem:[%s3970 + $0x30] sm:$0xf]
    %v3984 = vld [vmem:[%s3970 + $0x34] sm:$0xf]
    %v3985 = vld [vmem:[%s3970 + $0x38] sm:$0xf]
    %v3986 = vld [vmem:[%s3970 + $0x3c] sm:$0xf]
    %v4003 = vunpack.c.l.b16 %v3971
    %v4004 = vunpack.c.l.b16 %v3972
    %v4005 = vunpack.c.l.b16 %v3973
    %v4006 = vunpack.c.l.b16 %v3974
    %v4007 = vunpack.c.l.b16 %v3975
    %v4008 = vunpack.c.l.b16 %v3976
    %v4009 = vunpack.c.l.b16 %v3977
    %v4010 = vunpack.c.l.b16 %v3978
    %v4011 = vunpack.c.l.b16 %v3979
    %v4012 = vunpack.c.l.b16 %v3980
    %v4013 = vunpack.c.l.b16 %v3981
    %v4014 = vunpack.c.l.b16 %v3982
    %v4015 = vunpack.c.l.b16 %v3983
    %v4016 = vunpack.c.l.b16 %v3984
    %v4017 = vunpack.c.l.b16 %v3985
    %v4018 = vunpack.c.l.b16 %v3986
    %v4019 = vpack.c.b16 %v4004, %v4003
    %v4020 = vpack.c.b16 %v4006, %v4005
    %v4021 = vpack.c.b16 %v4008, %v4007
    %v4022 = vpack.c.b16 %v4010, %v4009
    %v4023 = vpack.c.b16 %v4012, %v4011
    %v4024 = vpack.c.b16 %v4014, %v4013
    %v4025 = vpack.c.b16 %v4016, %v4015
    %v4026 = vpack.c.b16 %v4018, %v4017
    %4035 = vmatpush.bf16.msra.mxu0 %v4026
    %4036 = vmatpush.bf16.msra.mxu0 %v4025
    %4037 = vmatpush.bf16.msra.mxu0 %v4024
    %4038 = vmatpush.bf16.msra.mxu0 %v4023
    %4039 = vmatpush.bf16.msra.mxu0 %v4022
    %4040 = vmatpush.bf16.msra.mxu0 %v4021
    %4041 = vmatpush.bf16.msra.mxu0 %v4020
    %4042 = vmatpush.bf16.msra.mxu0 %v4019
    %4043 = vmatmul.bf16.gmra.mxu0 %v3969
    %v4044 = vpop.f32.mrf.mxu0
    %v4045 = vadd.f32 0.0, %v4044
    %v4046 = vpop.f32.mrf.mxu0
    %v4047 = vadd.f32 0.0, %v4046
    %4048 = vdwg.mxu0
    %v4065 = vunpack.c.l.b16 %v3885
    %v4066 = vunpack.c.l.b16 %v3886
    %v4067 = vunpack.c.l.b16 %v3887
    %v4068 = vunpack.c.l.b16 %v3888
    %v4069 = vunpack.c.l.b16 %v3889
    %v4070 = vunpack.c.l.b16 %v3890
    %v4071 = vunpack.c.l.b16 %v3891
    %v4072 = vunpack.c.l.b16 %v3892
    %v4073 = vunpack.c.l.b16 %v3893
    %v4074 = vunpack.c.l.b16 %v3894
    %v4075 = vunpack.c.l.b16 %v3895
    %v4076 = vunpack.c.l.b16 %v3896
    %v4077 = vunpack.c.l.b16 %v3897
    %v4078 = vunpack.c.l.b16 %v3898
    %v4079 = vunpack.c.l.b16 %v3899
    %v4080 = vunpack.c.l.b16 %v3900
    %v4081 = vpack.c.b16 %v4066, %v4065
    %v4082 = vpack.c.b16 %v4068, %v4067
    %v4083 = vpack.c.b16 %v4070, %v4069
    %v4084 = vpack.c.b16 %v4072, %v4071
    %v4085 = vpack.c.b16 %v4074, %v4073
    %v4086 = vpack.c.b16 %v4076, %v4075
    %v4087 = vpack.c.b16 %v4078, %v4077
    %v4088 = vpack.c.b16 %v4080, %v4079
    %4097 = vmatpush.bf16.msra.mxu0 %v4088
    %4098 = vmatpush.bf16.msra.mxu0 %v4087
    %4099 = vmatpush.bf16.msra.mxu0 %v4086
    %4100 = vmatpush.bf16.msra.mxu0 %v4085
    %4101 = vmatpush.bf16.msra.mxu0 %v4084
    %4102 = vmatpush.bf16.msra.mxu0 %v4083
    %4103 = vmatpush.bf16.msra.mxu0 %v4082
    %4104 = vmatpush.bf16.msra.mxu0 %v4081
    %4105 = vmatmul.bf16.gmra.mxu0 %v3883
    %v4106 = vpop.f32.mrf.mxu0
    %v4107 = vadd.f32 %v4045, %v4106
    %v4108 = vpop.f32.mrf.mxu0
    %v4109 = vadd.f32 %v4047, %v4108
    %4110 = vdwg.mxu0
    %v4111 = vunpack.c.l.b16 %v3802
    %v4112 = vunpack.c.l.b16 %v3807
    %v4113 = vpack.c.b16 %v4112, %v4111
    %v4115 = vunpack.c.h.b16 %v3803
    %v4116 = vunpack.c.h.b16 %v3808
    %v4117 = vpack.c.b16 %v4116, %v4115
    %4119 = vmatpush.bf16.xpose.msra.mxu0 0
    %4120 = vmatpush.bf16.xpose.msra.mxu0 0
    %4121 = vmatpush.bf16.xpose.msra.mxu0 0
    %4122 = vmatpush.bf16.xpose.msra.mxu0 0
    %4123 = vmatpush.bf16.xpose.msra.mxu0 0
    %4124 = vmatpush.bf16.xpose.msra.mxu0 0
    %4125 = vmatpush.bf16.xpose.msra.mxu0 0
    %4126 = vmatpush.bf16.xpose.msra.mxu0 %v4117
    %4127 = vmatmul.bf16.gmra.mxu0 %v4113
    %v4128 = vpop.f32.mrf.mxu0
    %v4129 = vadd.f32 %v273, %v4128
    %v4130 = vpop.f32.mrf.mxu0
    %v4131 = vadd.f32 %v274, %v4130
    %4132 = vdwg.mxu0
    %v4133 = vsel %vm996, %v4129, -inf
    %4134 = vmax.xlane.f32.xlu0 %v4133
    %v4135 = vpop.xlane.xlu0 %4134
    %v4136 = vsel %vm996, %v4131, -inf
    %4137 = vmax.xlane.f32.xlu0 %v4136
    %v4138 = vpop.xlane.xlu0 %4137
    %v4139 = vsub.f32 %v4129, %v4135
    %v4140 = vsub.f32 %v4131, %v4138
    %v4141 = vmul.f32 %v4139, 1.442695
    %v4142 = vpow.pop %v4141
    %v4143 = vmul.f32 %v4140, 1.442695
    %v4144 = vpow.pop %v4143
    %v4145 = vsel %vm996, %v4142, 0.0
    %4146 = vadd.xlane.f32.xlu0 %v4145
    %v4147 = vpop.xlane.xlu0 %4146
    %v4148 = vsel %vm996, %v4144, 0.0
    %4149 = vadd.xlane.f32.xlu0 %v4148
    %v4150 = vpop.xlane.xlu0 %4149
    %v4151 = vrcp.pop %v4147
    %v4152 = vrcp.pop %v4150
    %v4153 = vmul.f32 %v4142, %v4151
    %v4154 = vmul.f32 %v4144, %v4152
    %v4155 = vpack.c.bf16 %v4154, %v4153
    %v4158 = vunpack.c.l.b16 %v3805
    %v4159 = vunpack.c.l.b16 %v3810
    %v4160 = vpack.c.b16 %v4159, %v4158
    %v4163 = vsel %vm996, %v4155, 0
    %4165 = vmatpush.bf16.msra.mxu0 0
    %4166 = vmatpush.bf16.msra.mxu0 0
    %4167 = vmatpush.bf16.msra.mxu0 0
    %4168 = vmatpush.bf16.msra.mxu0 0
    %4169 = vmatpush.bf16.msra.mxu0 0
    %4170 = vmatpush.bf16.msra.mxu0 0
    %4171 = vmatpush.bf16.msra.mxu0 0
    %4172 = vmatpush.bf16.msra.mxu0 %v4160
    %4173 = vmatmul.bf16.gmra.mxu0 %v4163
    %v4174 = vpop.f32.mrf.mxu0
    %v4175 = vadd.f32 0.0, %v4174
    %v4176 = vpop.f32.mrf.mxu0
    %v4177 = vadd.f32 0.0, %v4176
    %4178 = vdwg.mxu0
    %v4179 = vpack.c.bf16 %v4177, %v4175
    %s4180 = scalar_lea.vmem [#allocation6], 512
    %v4181 = vld [vmem:[%s4180] sm:$0xf]
    %v4182 = vld [vmem:[%s4180 + $0x4] sm:$0xf]
    %v4183 = vld [vmem:[%s4180 + $0x8] sm:$0xf]
    %v4184 = vld [vmem:[%s4180 + $0xc] sm:$0xf]
    %v4185 = vld [vmem:[%s4180 + $0x10] sm:$0xf]
    %v4186 = vld [vmem:[%s4180 + $0x14] sm:$0xf]
    %v4187 = vld [vmem:[%s4180 + $0x18] sm:$0xf]
    %v4188 = vld [vmem:[%s4180 + $0x1c] sm:$0xf]
    %v4189 = vld [vmem:[%s4180 + $0x20] sm:$0xf]
    %v4190 = vld [vmem:[%s4180 + $0x24] sm:$0xf]
    %v4191 = vld [vmem:[%s4180 + $0x28] sm:$0xf]
    %v4192 = vld [vmem:[%s4180 + $0x2c] sm:$0xf]
    %v4193 = vld [vmem:[%s4180 + $0x30] sm:$0xf]
    %v4194 = vld [vmem:[%s4180 + $0x34] sm:$0xf]
    %v4195 = vld [vmem:[%s4180 + $0x38] sm:$0xf]
    %v4196 = vld [vmem:[%s4180 + $0x3c] sm:$0xf]
    %v4213 = vunpack.c.l.b16 %v4181
    %v4214 = vunpack.c.l.b16 %v4182
    %v4215 = vunpack.c.l.b16 %v4183
    %v4216 = vunpack.c.l.b16 %v4184
    %v4217 = vunpack.c.l.b16 %v4185
    %v4218 = vunpack.c.l.b16 %v4186
    %v4219 = vunpack.c.l.b16 %v4187
    %v4220 = vunpack.c.l.b16 %v4188
    %v4221 = vunpack.c.l.b16 %v4189
    %v4222 = vunpack.c.l.b16 %v4190
    %v4223 = vunpack.c.l.b16 %v4191
    %v4224 = vunpack.c.l.b16 %v4192
    %v4225 = vunpack.c.l.b16 %v4193
    %v4226 = vunpack.c.l.b16 %v4194
    %v4227 = vunpack.c.l.b16 %v4195
    %v4228 = vunpack.c.l.b16 %v4196
    %v4229 = vpack.c.b16 %v4214, %v4213
    %v4230 = vpack.c.b16 %v4216, %v4215
    %v4231 = vpack.c.b16 %v4218, %v4217
    %v4232 = vpack.c.b16 %v4220, %v4219
    %v4233 = vpack.c.b16 %v4222, %v4221
    %v4234 = vpack.c.b16 %v4224, %v4223
    %v4235 = vpack.c.b16 %v4226, %v4225
    %v4236 = vpack.c.b16 %v4228, %v4227
    %4245 = vmatpush.bf16.msra.mxu0 %v4236
    %4246 = vmatpush.bf16.msra.mxu0 %v4235
    %4247 = vmatpush.bf16.msra.mxu0 %v4234
    %4248 = vmatpush.bf16.msra.mxu0 %v4233
    %4249 = vmatpush.bf16.msra.mxu0 %v4232
    %4250 = vmatpush.bf16.msra.mxu0 %v4231
    %4251 = vmatpush.bf16.msra.mxu0 %v4230
    %4252 = vmatpush.bf16.msra.mxu0 %v4229
    %4253 = vmatmul.bf16.gmra.mxu0 %v4179
    %v4254 = vpop.f32.mrf.mxu0
    %v4255 = vadd.f32 0.0, %v4254
    %v4256 = vpop.f32.mrf.mxu0
    %v4257 = vadd.f32 0.0, %v4256
    %4258 = vdwg.mxu0
    %v4259 = vadd.f32 %v4107, %v4255
    %v4260 = vadd.f32 %v4109, %v4257
    %v4261 = vadd.f32 %v3110, %v4259
    %v4262 = vadd.f32 %v3111, %v4260
    %s4263 = scalar_lea.vmem [#allocation7], 2
    %v4264 = vld [vmem:[%s4263] sm:$0x1]
    %v4266 = vperm.slane %v4264, 0
    %v4268 = vadd.f32 %v4261, %v4266
    %v4269 = vadd.f32 %v4262, %v4266
    %s4270 = scalar_lea.vmem [#allocation18], 2
    %v4271 = vld [vmem:[%s4270] sm:$0x1]
    %s4272 = scalar_lea.vmem [#allocation19], 2
    %v4273 = vld [vmem:[%s4272] sm:$0x1]
    %4274 = vadd.xlane.f32.xlu0 %v4268
    %v4275 = vpop.xlane.xlu0 %4274
    %4276 = vadd.xlane.f32.xlu0 %v4269
    %v4277 = vpop.xlane.xlu0 %4276
    %v4278 = vmul.f32 %v4275, 0.020833334
    %v4279 = vmul.f32 %v4277, 0.020833334
    %v4280 = vsub.f32 %v4268, %v4278
    %v4281 = vsub.f32 %v4269, %v4279
    %v4282 = vsel %vm270, %v4280, 0.0
    %v4283 = vsel %vm270, %v4281, 0.0
    %v4284 = vmul.f32 %v4282, %v4282
    %v4285 = vmul.f32 %v4283, %v4283
    %4286 = vadd.xlane.f32.xlu0 %v4284
    %v4287 = vpop.xlane.xlu0 %4286
    %4288 = vadd.xlane.f32.xlu0 %v4285
    %v4289 = vpop.xlane.xlu0 %4288
    %v4290 = vmul.f32 %v4287, 0.021276595
    %v4291 = vmul.f32 %v4289, 0.021276595
    %v4292 = vrsqrt.pop %v4290
    %v4293 = vmul.f32 %v4292, %v4290
    %v4294 = vmul.f32 %v4293, %v4292
    %v4295 = vmul.f32 0.5, %v4294
    %v4296 = vsub.f32 1.5, %v4295
    %v4297 = vmul.f32 %v4292, %v4296
    %v4298 = vmul.f32 %v4290, %v4297
    %vm4299 = vcmp.eq.f32.partialorder %v4290, inf
    %v4300 = vsel %vm4299, %v4290, %v4298
    %vm4301 = vcmp.eq.f32.partialorder %v4290, 0.0
    %v4302 = vand.u32 %v4290, 2147483648
    %v4303 = vsel %vm4301, %v4302, %v4300
    %v4304 = vrsqrt.pop %v4291
    %v4305 = vmul.f32 %v4304, %v4291
    %v4306 = vmul.f32 %v4305, %v4304
    %v4307 = vmul.f32 0.5, %v4306
    %v4308 = vsub.f32 1.5, %v4307
    %v4309 = vmul.f32 %v4304, %v4308
    %v4310 = vmul.f32 %v4291, %v4309
    %vm4311 = vcmp.eq.f32.partialorder %v4291, inf
    %v4312 = vsel %vm4311, %v4291, %v4310
    %vm4313 = vcmp.eq.f32.partialorder %v4291, 0.0
    %v4314 = vand.u32 %v4291, 2147483648
    %v4315 = vsel %vm4313, %v4314, %v4312
    %v4316 = vadd.f32 %v4303, 1e-06
    %v4317 = vadd.f32 %v4315, 1e-06
    %v4318 = vrcp.pop %v4316
    %v4319 = vmul.f32 %v4316, %v4318
    %v4320 = vsub.f32 1.0, %v4319
    %v4321 = vmul.f32 %v4318, %v4320
    %v4322 = vadd.f32 %v4318, %v4321
    %vm4323 = vweird.f32 %v4316
    %vm4324 = vweird.f32 %v4318
    %vm4325 = vmor %vm4323, %vm4324
    %v4326 = vsel %vm4325, %v4318, %v4322
    %v4327 = vand.u32 2147483647, %v4316
    %vm4328 = vcmp.eq.f32.partialorder %v4327, 8.507059e+37
    %v4329 = vand.u32 %v4316, 2147483648
    %v4330 = vor.u32 1.1754944e-38, %v4329
    %v4331 = vsel %vm4328, %v4330, %v4326
    %v4332 = vmul.f32 1.0, %v4331
    %v4333 = vrcp.pop %v4317
    %v4334 = vmul.f32 %v4317, %v4333
    %v4335 = vsub.f32 1.0, %v4334
    %v4336 = vmul.f32 %v4333, %v4335
    %v4337 = vadd.f32 %v4333, %v4336
    %vm4338 = vweird.f32 %v4317
    %vm4339 = vweird.f32 %v4333
    %vm4340 = vmor %vm4338, %vm4339
    %v4341 = vsel %vm4340, %v4333, %v4337
    %v4342 = vand.u32 2147483647, %v4317
    %vm4343 = vcmp.eq.f32.partialorder %v4342, 8.507059e+37
    %v4344 = vand.u32 %v4317, 2147483648
    %v4345 = vor.u32 1.1754944e-38, %v4344
    %v4346 = vsel %vm4343, %v4345, %v4341
    %v4347 = vmul.f32 1.0, %v4346
    %v4348 = vmul.f32 %v4282, %v4332
    %v4349 = vmul.f32 %v4283, %v4347
    %v4351 = vperm.slane %v4271, 0
    %v4353 = vmul.f32 %v4351, %v4348
    %v4354 = vmul.f32 %v4351, %v4349
    %v4356 = vperm.slane %v4273, 0
    %v4358 = vadd.f32 %v4353, %v4356
    %v4359 = vadd.f32 %v4354, %v4356
    %v4360 = vpack.c.bf16 %v4359, %v4358
    %s4361 = scalar_lea.vmem [#allocation9], 128
    %v4362 = vld [vmem:[%s4361] sm:$0xf]
    %v4363 = vld [vmem:[%s4361 + $0x4] sm:$0xf]
    %v4364 = vld [vmem:[%s4361 + $0x8] sm:$0xf]
    %v4365 = vld [vmem:[%s4361 + $0xc] sm:$0xf]
    %v4366 = vld [vmem:[%s4361 + $0x10] sm:$0xf]
    %v4367 = vld [vmem:[%s4361 + $0x14] sm:$0xf]
    %v4368 = vld [vmem:[%s4361 + $0x18] sm:$0xf]
    %v4369 = vld [vmem:[%s4361 + $0x1c] sm:$0xf]
    %v4370 = vld [vmem:[%s4361 + $0x20] sm:$0xf]
    %v4371 = vld [vmem:[%s4361 + $0x24] sm:$0xf]
    %v4372 = vld [vmem:[%s4361 + $0x28] sm:$0xf]
    %v4373 = vld [vmem:[%s4361 + $0x2c] sm:$0xf]
    %v4374 = vld [vmem:[%s4361 + $0x30] sm:$0xf]
    %v4375 = vld [vmem:[%s4361 + $0x34] sm:$0xf]
    %v4376 = vld [vmem:[%s4361 + $0x38] sm:$0xf]
    %v4377 = vld [vmem:[%s4361 + $0x3c] sm:$0xf]
    %s4378 = scalar_lea.vmem [#allocation10], 2
    %v4379 = vld [vmem:[%s4378] sm:$0x1]
    %v4381 = vperm.slane %v4379, 0
    %v4399 = vunpack.c.l.b16 %v4362
    %v4400 = vunpack.c.l.b16 %v4363
    %v4401 = vunpack.c.l.b16 %v4364
    %v4402 = vunpack.c.l.b16 %v4365
    %v4403 = vunpack.c.l.b16 %v4366
    %v4404 = vunpack.c.l.b16 %v4367
    %v4405 = vunpack.c.l.b16 %v4368
    %v4406 = vunpack.c.l.b16 %v4369
    %v4407 = vunpack.c.l.b16 %v4370
    %v4408 = vunpack.c.l.b16 %v4371
    %v4409 = vunpack.c.l.b16 %v4372
    %v4410 = vunpack.c.l.b16 %v4373
    %v4411 = vunpack.c.l.b16 %v4374
    %v4412 = vunpack.c.l.b16 %v4375
    %v4413 = vunpack.c.l.b16 %v4376
    %v4414 = vunpack.c.l.b16 %v4377
    %v4415 = vpack.c.b16 %v4400, %v4399
    %v4416 = vpack.c.b16 %v4402, %v4401
    %v4417 = vpack.c.b16 %v4404, %v4403
    %v4418 = vpack.c.b16 %v4406, %v4405
    %v4419 = vpack.c.b16 %v4408, %v4407
    %v4420 = vpack.c.b16 %v4410, %v4409
    %v4421 = vpack.c.b16 %v4412, %v4411
    %v4422 = vpack.c.b16 %v4414, %v4413
    %4431 = vmatpush.bf16.msra.mxu0 %v4422
    %4432 = vmatpush.bf16.msra.mxu0 %v4421
    %4433 = vmatpush.bf16.msra.mxu0 %v4420
    %4434 = vmatpush.bf16.msra.mxu0 %v4419
    %4435 = vmatpush.bf16.msra.mxu0 %v4418
    %4436 = vmatpush.bf16.msra.mxu0 %v4417
    %4437 = vmatpush.bf16.msra.mxu0 %v4416
    %4438 = vmatpush.bf16.msra.mxu0 %v4415
    %4439 = vmatmul.bf16.gmra.mxu0 %v4360
    %v4440 = vpop.f32.mrf.mxu0
    %v4441 = vadd.f32 %v4381, %v4440
    %v4442 = vpop.f32.mrf.mxu0
    %v4443 = vadd.f32 %v4381, %v4442
    %4444 = vdwg.mxu0
    %v4445 = vmax.f32 %v4441, 0.0
    %v4446 = vmax.f32 %v4443, 0.0
    %v4447 = vpack.c.bf16 %v4446, %v4445
    %s4448 = scalar_lea.vmem [#allocation12], 128
    %v4449 = vld [vmem:[%s4448] sm:$0xf]
    %v4450 = vld [vmem:[%s4448 + $0x4] sm:$0xf]
    %v4451 = vld [vmem:[%s4448 + $0x8] sm:$0xf]
    %v4452 = vld [vmem:[%s4448 + $0xc] sm:$0xf]
    %v4453 = vld [vmem:[%s4448 + $0x10] sm:$0xf]
    %v4454 = vld [vmem:[%s4448 + $0x14] sm:$0xf]
    %v4455 = vld [vmem:[%s4448 + $0x18] sm:$0xf]
    %v4456 = vld [vmem:[%s4448 + $0x1c] sm:$0xf]
    %v4457 = vld [vmem:[%s4448 + $0x20] sm:$0xf]
    %v4458 = vld [vmem:[%s4448 + $0x24] sm:$0xf]
    %v4459 = vld [vmem:[%s4448 + $0x28] sm:$0xf]
    %v4460 = vld [vmem:[%s4448 + $0x2c] sm:$0xf]
    %v4461 = vld [vmem:[%s4448 + $0x30] sm:$0xf]
    %v4462 = vld [vmem:[%s4448 + $0x34] sm:$0xf]
    %v4463 = vld [vmem:[%s4448 + $0x38] sm:$0xf]
    %v4464 = vld [vmem:[%s4448 + $0x3c] sm:$0xf]
    %v4481 = vunpack.c.l.b16 %v4449
    %v4482 = vunpack.c.l.b16 %v4450
    %v4483 = vunpack.c.l.b16 %v4451
    %v4484 = vunpack.c.l.b16 %v4452
    %v4485 = vunpack.c.l.b16 %v4453
    %v4486 = vunpack.c.l.b16 %v4454
    %v4487 = vunpack.c.l.b16 %v4455
    %v4488 = vunpack.c.l.b16 %v4456
    %v4489 = vunpack.c.l.b16 %v4457
    %v4490 = vunpack.c.l.b16 %v4458
    %v4491 = vunpack.c.l.b16 %v4459
    %v4492 = vunpack.c.l.b16 %v4460
    %v4493 = vunpack.c.l.b16 %v4461
    %v4494 = vunpack.c.l.b16 %v4462
    %v4495 = vunpack.c.l.b16 %v4463
    %v4496 = vunpack.c.l.b16 %v4464
    %v4497 = vpack.c.b16 %v4482, %v4481
    %v4498 = vpack.c.b16 %v4484, %v4483
    %v4499 = vpack.c.b16 %v4486, %v4485
    %v4500 = vpack.c.b16 %v4488, %v4487
    %v4501 = vpack.c.b16 %v4490, %v4489
    %v4502 = vpack.c.b16 %v4492, %v4491
    %v4503 = vpack.c.b16 %v4494, %v4493
    %v4504 = vpack.c.b16 %v4496, %v4495
    %4513 = vmatpush.bf16.msra.mxu0 %v4504
    %4514 = vmatpush.bf16.msra.mxu0 %v4503
    %4515 = vmatpush.bf16.msra.mxu0 %v4502
    %4516 = vmatpush.bf16.msra.mxu0 %v4501
    %4517 = vmatpush.bf16.msra.mxu0 %v4500
    %4518 = vmatpush.bf16.msra.mxu0 %v4499
    %4519 = vmatpush.bf16.msra.mxu0 %v4498
    %4520 = vmatpush.bf16.msra.mxu0 %v4497
    %4521 = vmatmul.bf16.gmra.mxu0 %v4447
    %v4522 = vpop.f32.mrf.mxu0
    %v4523 = vadd.f32 0.0, %v4522
    %v4524 = vpop.f32.mrf.mxu0
    %v4525 = vadd.f32 0.0, %v4524
    %4526 = vdwg.mxu0
    %v4527 = vadd.f32 %v4268, %v4523
    %v4528 = vadd.f32 %v4269, %v4525
    %s4529 = scalar_lea.vmem [#allocation13], 2
    %v4530 = vld [vmem:[%s4529] sm:$0x1]
    %v4532 = vperm.slane %v4530, 0
    %v4534 = vadd.f32 %v4527, %v4532
    %v4535 = vadd.f32 %v4528, %v4532
    %s4536 = scalar_lea.vmem [#allocation15], 3
    %v4537 = vld [vmem:[%s4536] sm:$0x1]
    %s4538 = scalar_lea.vmem [#allocation16], 3
    %v4539 = vld [vmem:[%s4538] sm:$0x1]
    %4540 = vadd.xlane.f32.xlu0 %v4534
    %v4541 = vpop.xlane.xlu0 %4540
    %4542 = vadd.xlane.f32.xlu0 %v4535
    %v4543 = vpop.xlane.xlu0 %4542
    %v4544 = vmul.f32 %v4541, 0.020833334
    %v4545 = vmul.f32 %v4543, 0.020833334
    %v4546 = vsub.f32 %v4534, %v4544
    %v4547 = vsub.f32 %v4535, %v4545
    %v4548 = vsel %vm270, %v4546, 0.0
    %v4549 = vsel %vm270, %v4547, 0.0
    %v4550 = vmul.f32 %v4548, %v4548
    %v4551 = vmul.f32 %v4549, %v4549
    %4552 = vadd.xlane.f32.xlu0 %v4550
    %v4553 = vpop.xlane.xlu0 %4552
    %4554 = vadd.xlane.f32.xlu0 %v4551
    %v4555 = vpop.xlane.xlu0 %4554
    %v4556 = vmul.f32 %v4553, 0.021276595
    %v4557 = vmul.f32 %v4555, 0.021276595
    %v4558 = vrsqrt.pop %v4556
    %v4559 = vmul.f32 %v4558, %v4556
    %v4560 = vmul.f32 %v4559, %v4558
    %v4561 = vmul.f32 0.5, %v4560
    %v4562 = vsub.f32 1.5, %v4561
    %v4563 = vmul.f32 %v4558, %v4562
    %v4564 = vmul.f32 %v4556, %v4563
    %vm4565 = vcmp.eq.f32.partialorder %v4556, inf
    %v4566 = vsel %vm4565, %v4556, %v4564
    %vm4567 = vcmp.eq.f32.partialorder %v4556, 0.0
    %v4568 = vand.u32 %v4556, 2147483648
    %v4569 = vsel %vm4567, %v4568, %v4566
    %v4570 = vrsqrt.pop %v4557
    %v4571 = vmul.f32 %v4570, %v4557
    %v4572 = vmul.f32 %v4571, %v4570
    %v4573 = vmul.f32 0.5, %v4572
    %v4574 = vsub.f32 1.5, %v4573
    %v4575 = vmul.f32 %v4570, %v4574
    %v4576 = vmul.f32 %v4557, %v4575
    %vm4577 = vcmp.eq.f32.partialorder %v4557, inf
    %v4578 = vsel %vm4577, %v4557, %v4576
    %vm4579 = vcmp.eq.f32.partialorder %v4557, 0.0
    %v4580 = vand.u32 %v4557, 2147483648
    %v4581 = vsel %vm4579, %v4580, %v4578
    %v4582 = vadd.f32 %v4569, 1e-06
    %v4583 = vadd.f32 %v4581, 1e-06
    %v4584 = vrcp.pop %v4582
    %v4585 = vmul.f32 %v4582, %v4584
    %v4586 = vsub.f32 1.0, %v4585
    %v4587 = vmul.f32 %v4584, %v4586
    %v4588 = vadd.f32 %v4584, %v4587
    %vm4589 = vweird.f32 %v4582
    %vm4590 = vweird.f32 %v4584
    %vm4591 = vmor %vm4589, %vm4590
    %v4592 = vsel %vm4591, %v4584, %v4588
    %v4593 = vand.u32 2147483647, %v4582
    %vm4594 = vcmp.eq.f32.partialorder %v4593, 8.507059e+37
    %v4595 = vand.u32 %v4582, 2147483648
    %v4596 = vor.u32 1.1754944e-38, %v4595
    %v4597 = vsel %vm4594, %v4596, %v4592
    %v4598 = vmul.f32 1.0, %v4597
    %v4599 = vrcp.pop %v4583
    %v4600 = vmul.f32 %v4583, %v4599
    %v4601 = vsub.f32 1.0, %v4600
    %v4602 = vmul.f32 %v4599, %v4601
    %v4603 = vadd.f32 %v4599, %v4602
    %vm4604 = vweird.f32 %v4583
    %vm4605 = vweird.f32 %v4599
    %vm4606 = vmor %vm4604, %vm4605
    %v4607 = vsel %vm4606, %v4599, %v4603
    %v4608 = vand.u32 2147483647, %v4583
    %vm4609 = vcmp.eq.f32.partialorder %v4608, 8.507059e+37
    %v4610 = vand.u32 %v4583, 2147483648
    %v4611 = vor.u32 1.1754944e-38, %v4610
    %v4612 = vsel %vm4609, %v4611, %v4607
    %v4613 = vmul.f32 1.0, %v4612
    %v4614 = vmul.f32 %v4548, %v4598
    %v4615 = vmul.f32 %v4549, %v4613
    %v4617 = vperm.slane %v4537, 0
    %v4619 = vmul.f32 %v4617, %v4614
    %v4620 = vmul.f32 %v4617, %v4615
    %v4622 = vperm.slane %v4539, 0
    %v4624 = vadd.f32 %v4619, %v4622
    %v4625 = vadd.f32 %v4620, %v4622
    %v4626 = vpack.c.bf16 %v4625, %v4624
    %s4627 = scalar_lea.vmem [#allocation2], 1728
    %v4628 = vld [vmem:[%s4627] sm:$0xff]
    %v4629 = vld [vmem:[%s4627 + $0x8] sm:$0xff]
    %v4630 = vld [vmem:[%s4627 + $0x10] sm:$0xff]
    %v4631 = vld [vmem:[%s4627 + $0x18] sm:$0xff]
    %v4632 = vld [vmem:[%s4627 + $0x20] sm:$0xf]
    %v4633 = vld [vmem:[%s4627 + $0x24] sm:$0xff]
    %v4634 = vld [vmem:[%s4627 + $0x2c] sm:$0xff]
    %v4635 = vld [vmem:[%s4627 + $0x34] sm:$0xff]
    %v4636 = vld [vmem:[%s4627 + $0x3c] sm:$0xff]
    %v4637 = vld [vmem:[%s4627 + $0x44] sm:$0xf]
    %v4638 = vld [vmem:[%s4627 + $0x48] sm:$0xff]
    %v4639 = vld [vmem:[%s4627 + $0x50] sm:$0xff]
    %v4640 = vld [vmem:[%s4627 + $0x58] sm:$0xff]
    %v4641 = vld [vmem:[%s4627 + $0x60] sm:$0xff]
    %v4642 = vld [vmem:[%s4627 + $0x68] sm:$0xf]
    %v4643 = vld [vmem:[%s4627 + $0x6c] sm:$0xff]
    %v4644 = vld [vmem:[%s4627 + $0x74] sm:$0xff]
    %v4645 = vld [vmem:[%s4627 + $0x7c] sm:$0xff]
    %v4646 = vld [vmem:[%s4627 + $0x84] sm:$0xff]
    %v4647 = vld [vmem:[%s4627 + $0x8c] sm:$0xf]
    %v4648 = vld [vmem:[%s4627 + $0x90] sm:$0xff]
    %v4649 = vld [vmem:[%s4627 + $0x98] sm:$0xff]
    %v4650 = vld [vmem:[%s4627 + $0xa0] sm:$0xff]
    %v4651 = vld [vmem:[%s4627 + $0xa8] sm:$0xff]
    %v4652 = vld [vmem:[%s4627 + $0xb0] sm:$0xf]
    %v4653 = vld [vmem:[%s4627 + $0xb4] sm:$0xff]
    %v4654 = vld [vmem:[%s4627 + $0xbc] sm:$0xff]
    %v4655 = vld [vmem:[%s4627 + $0xc4] sm:$0xff]
    %v4656 = vld [vmem:[%s4627 + $0xcc] sm:$0xff]
    %v4657 = vld [vmem:[%s4627 + $0xd4] sm:$0xf]
    %v4658 = vld [vmem:[%s4627 + $0xd8] sm:$0xff]
    %v4659 = vld [vmem:[%s4627 + $0xe0] sm:$0xff]
    %v4660 = vld [vmem:[%s4627 + $0xe8] sm:$0xff]
    %v4661 = vld [vmem:[%s4627 + $0xf0] sm:$0xff]
    %v4662 = vld [vmem:[%s4627 + $0xf8] sm:$0xf]
    %v4663 = vld [vmem:[%s4627 + $0xfc] sm:$0xff]
    %v4664 = vld [vmem:[%s4627 + $0x104] sm:$0xff]
    %v4665 = vld [vmem:[%s4627 + $0x10c] sm:$0xff]
    %v4666 = vld [vmem:[%s4627 + $0x114] sm:$0xff]
    %v4667 = vld [vmem:[%s4627 + $0x11c] sm:$0xf]
    %v4668 = vld [vmem:[%s4627 + $0x120] sm:$0xff]
    %v4669 = vld [vmem:[%s4627 + $0x128] sm:$0xff]
    %v4670 = vld [vmem:[%s4627 + $0x130] sm:$0xff]
    %v4671 = vld [vmem:[%s4627 + $0x138] sm:$0xff]
    %v4672 = vld [vmem:[%s4627 + $0x140] sm:$0xf]
    %v4673 = vld [vmem:[%s4627 + $0x144] sm:$0xff]
    %v4674 = vld [vmem:[%s4627 + $0x14c] sm:$0xff]
    %v4675 = vld [vmem:[%s4627 + $0x154] sm:$0xff]
    %v4676 = vld [vmem:[%s4627 + $0x15c] sm:$0xff]
    %v4677 = vld [vmem:[%s4627 + $0x164] sm:$0xf]
    %v4678 = vld [vmem:[%s4627 + $0x168] sm:$0xff]
    %v4679 = vld [vmem:[%s4627 + $0x170] sm:$0xff]
    %v4680 = vld [vmem:[%s4627 + $0x178] sm:$0xff]
    %v4681 = vld [vmem:[%s4627 + $0x180] sm:$0xff]
    %v4682 = vld [vmem:[%s4627 + $0x188] sm:$0xf]
    %v4683 = vld [vmem:[%s4627 + $0x18c] sm:$0xff]
    %v4684 = vld [vmem:[%s4627 + $0x194] sm:$0xff]
    %v4685 = vld [vmem:[%s4627 + $0x19c] sm:$0xff]
    %v4686 = vld [vmem:[%s4627 + $0x1a4] sm:$0xff]
    %v4687 = vld [vmem:[%s4627 + $0x1ac] sm:$0xf]
    %v4688 = vld [vmem:[%s4627 + $0x1b0] sm:$0xff]
    %v4689 = vld [vmem:[%s4627 + $0x1b8] sm:$0xff]
    %v4690 = vld [vmem:[%s4627 + $0x1c0] sm:$0xff]
    %v4691 = vld [vmem:[%s4627 + $0x1c8] sm:$0xff]
    %v4692 = vld [vmem:[%s4627 + $0x1d0] sm:$0xf]
    %v4693 = vld [vmem:[%s4627 + $0x1d4] sm:$0xff]
    %v4694 = vld [vmem:[%s4627 + $0x1dc] sm:$0xff]
    %v4695 = vld [vmem:[%s4627 + $0x1e4] sm:$0xff]
    %v4696 = vld [vmem:[%s4627 + $0x1ec] sm:$0xff]
    %v4697 = vld [vmem:[%s4627 + $0x1f4] sm:$0xf]
    %v4698 = vld [vmem:[%s4627 + $0x1f8] sm:$0xff]
    %v4699 = vld [vmem:[%s4627 + $0x200] sm:$0xff]
    %v4700 = vld [vmem:[%s4627 + $0x208] sm:$0xff]
    %v4701 = vld [vmem:[%s4627 + $0x210] sm:$0xff]
    %v4702 = vld [vmem:[%s4627 + $0x218] sm:$0xf]
    %v4703 = vld [vmem:[%s4627 + $0x21c] sm:$0xff]
    %v4704 = vld [vmem:[%s4627 + $0x224] sm:$0xff]
    %v4705 = vld [vmem:[%s4627 + $0x22c] sm:$0xff]
    %v4706 = vld [vmem:[%s4627 + $0x234] sm:$0xff]
    %v4707 = vld [vmem:[%s4627 + $0x23c] sm:$0xf]
    %s4708 = scalar_lea.vmem [#allocation4], 27
    %v4709 = vld [vmem:[%s4708] sm:$0xff]
    %v4710 = vld [vmem:[%s4708 + $0x8] sm:$0x1]
    %v4713 = vperm.slane %v4709, 0
    %v4714 = vperm.slane %v4709, 1
    %v4715 = vperm.slane %v4709, 2
    %v4716 = vperm.slane %v4709, 3
    %v4717 = vperm.slane %v4709, 4
    %v4718 = vperm.slane %v4709, 5
    %v4719 = vperm.slane %v4709, 6
    %v4720 = vperm.slane %v4709, 7
    %v4721 = vperm.slane %v4710, 0
    %v4811 = vunpack.c.l.b16 %v4628
    %v4812 = vunpack.c.h.b16 %v4628
    %v4813 = vunpack.c.l.b16 %v4629
    %v4814 = vunpack.c.h.b16 %v4629
    %v4815 = vunpack.c.l.b16 %v4630
    %v4816 = vunpack.c.h.b16 %v4630
    %v4817 = vunpack.c.l.b16 %v4631
    %v4818 = vunpack.c.h.b16 %v4631
    %v4819 = vunpack.c.l.b16 %v4632
    %v4820 = vunpack.c.l.b16 %v4633
    %v4821 = vunpack.c.h.b16 %v4633
    %v4822 = vunpack.c.l.b16 %v4634
    %v4823 = vunpack.c.h.b16 %v4634
    %v4824 = vunpack.c.l.b16 %v4635
    %v4825 = vunpack.c.h.b16 %v4635
    %v4826 = vunpack.c.l.b16 %v4636
    %v4827 = vunpack.c.h.b16 %v4636
    %v4828 = vunpack.c.l.b16 %v4637
    %v4829 = vunpack.c.l.b16 %v4638
    %v4830 = vunpack.c.h.b16 %v4638
    %v4831 = vunpack.c.l.b16 %v4639
    %v4832 = vunpack.c.h.b16 %v4639
    %v4833 = vunpack.c.l.b16 %v4640
    %v4834 = vunpack.c.h.b16 %v4640
    %v4835 = vunpack.c.l.b16 %v4641
    %v4836 = vunpack.c.h.b16 %v4641
    %v4837 = vunpack.c.l.b16 %v4642
    %v4838 = vunpack.c.l.b16 %v4643
    %v4839 = vunpack.c.h.b16 %v4643
    %v4840 = vunpack.c.l.b16 %v4644
    %v4841 = vunpack.c.h.b16 %v4644
    %v4842 = vunpack.c.l.b16 %v4645
    %v4843 = vunpack.c.h.b16 %v4645
    %v4844 = vunpack.c.l.b16 %v4646
    %v4845 = vunpack.c.h.b16 %v4646
    %v4846 = vunpack.c.l.b16 %v4647
    %v4847 = vunpack.c.l.b16 %v4648
    %v4848 = vunpack.c.h.b16 %v4648
    %v4849 = vunpack.c.l.b16 %v4649
    %v4850 = vunpack.c.h.b16 %v4649
    %v4851 = vunpack.c.l.b16 %v4650
    %v4852 = vunpack.c.h.b16 %v4650
    %v4853 = vunpack.c.l.b16 %v4651
    %v4854 = vunpack.c.h.b16 %v4651
    %v4855 = vunpack.c.l.b16 %v4652
    %v4856 = vunpack.c.l.b16 %v4653
    %v4857 = vunpack.c.h.b16 %v4653
    %v4858 = vunpack.c.l.b16 %v4654
    %v4859 = vunpack.c.h.b16 %v4654
    %v4860 = vunpack.c.l.b16 %v4655
    %v4861 = vunpack.c.h.b16 %v4655
    %v4862 = vunpack.c.l.b16 %v4656
    %v4863 = vunpack.c.h.b16 %v4656
    %v4864 = vunpack.c.l.b16 %v4657
    %v4865 = vunpack.c.l.b16 %v4658
    %v4866 = vunpack.c.h.b16 %v4658
    %v4867 = vunpack.c.l.b16 %v4659
    %v4868 = vunpack.c.h.b16 %v4659
    %v4869 = vunpack.c.l.b16 %v4660
    %v4870 = vunpack.c.h.b16 %v4660
    %v4871 = vunpack.c.l.b16 %v4661
    %v4872 = vunpack.c.h.b16 %v4661
    %v4873 = vunpack.c.l.b16 %v4662
    %v4874 = vunpack.c.l.b16 %v4663
    %v4875 = vunpack.c.h.b16 %v4663
    %v4876 = vunpack.c.l.b16 %v4664
    %v4877 = vunpack.c.h.b16 %v4664
    %v4878 = vunpack.c.l.b16 %v4665
    %v4879 = vunpack.c.h.b16 %v4665
    %v4880 = vunpack.c.l.b16 %v4666
    %v4881 = vunpack.c.h.b16 %v4666
    %v4882 = vunpack.c.l.b16 %v4667
    %v4883 = vunpack.c.l.b16 %v4668
    %v4884 = vunpack.c.h.b16 %v4668
    %v4885 = vunpack.c.l.b16 %v4669
    %v4886 = vunpack.c.h.b16 %v4669
    %v4887 = vunpack.c.l.b16 %v4670
    %v4888 = vunpack.c.h.b16 %v4670
    %v4889 = vunpack.c.l.b16 %v4671
    %v4890 = vunpack.c.h.b16 %v4671
    %v4891 = vunpack.c.l.b16 %v4672
    %v4892 = vunpack.c.l.b16 %v4673
    %v4893 = vunpack.c.h.b16 %v4673
    %v4894 = vunpack.c.l.b16 %v4674
    %v4895 = vunpack.c.h.b16 %v4674
    %v4896 = vunpack.c.l.b16 %v4675
    %v4897 = vunpack.c.h.b16 %v4675
    %v4898 = vunpack.c.l.b16 %v4676
    %v4899 = vunpack.c.h.b16 %v4676
    %v4900 = vunpack.c.l.b16 %v4677
    %v4901 = vunpack.c.l.b16 %v4678
    %v4902 = vunpack.c.h.b16 %v4678
    %v4903 = vunpack.c.l.b16 %v4679
    %v4904 = vunpack.c.h.b16 %v4679
    %v4905 = vunpack.c.l.b16 %v4680
    %v4906 = vunpack.c.h.b16 %v4680
    %v4907 = vunpack.c.l.b16 %v4681
    %v4908 = vunpack.c.h.b16 %v4681
    %v4909 = vunpack.c.l.b16 %v4682
    %v4910 = vunpack.c.l.b16 %v4683
    %v4911 = vunpack.c.h.b16 %v4683
    %v4912 = vunpack.c.l.b16 %v4684
    %v4913 = vunpack.c.h.b16 %v4684
    %v4914 = vunpack.c.l.b16 %v4685
    %v4915 = vunpack.c.h.b16 %v4685
    %v4916 = vunpack.c.l.b16 %v4686
    %v4917 = vunpack.c.h.b16 %v4686
    %v4918 = vunpack.c.l.b16 %v4687
    %v4919 = vunpack.c.l.b16 %v4688
    %v4920 = vunpack.c.h.b16 %v4688
    %v4921 = vunpack.c.l.b16 %v4689
    %v4922 = vunpack.c.h.b16 %v4689
    %v4923 = vunpack.c.l.b16 %v4690
    %v4924 = vunpack.c.h.b16 %v4690
    %v4925 = vunpack.c.l.b16 %v4691
    %v4926 = vunpack.c.h.b16 %v4691
    %v4927 = vunpack.c.l.b16 %v4692
    %v4928 = vunpack.c.l.b16 %v4693
    %v4929 = vunpack.c.h.b16 %v4693
    %v4930 = vunpack.c.l.b16 %v4694
    %v4931 = vunpack.c.h.b16 %v4694
    %v4932 = vunpack.c.l.b16 %v4695
    %v4933 = vunpack.c.h.b16 %v4695
    %v4934 = vunpack.c.l.b16 %v4696
    %v4935 = vunpack.c.h.b16 %v4696
    %v4936 = vunpack.c.l.b16 %v4697
    %v4937 = vunpack.c.l.b16 %v4698
    %v4938 = vunpack.c.h.b16 %v4698
    %v4939 = vunpack.c.l.b16 %v4699
    %v4940 = vunpack.c.h.b16 %v4699
    %v4941 = vunpack.c.l.b16 %v4700
    %v4942 = vunpack.c.h.b16 %v4700
    %v4943 = vunpack.c.l.b16 %v4701
    %v4944 = vunpack.c.h.b16 %v4701
    %v4945 = vunpack.c.l.b16 %v4702
    %v4946 = vunpack.c.l.b16 %v4703
    %v4947 = vunpack.c.h.b16 %v4703
    %v4948 = vunpack.c.l.b16 %v4704
    %v4949 = vunpack.c.h.b16 %v4704
    %v4950 = vunpack.c.l.b16 %v4705
    %v4951 = vunpack.c.h.b16 %v4705
    %v4952 = vunpack.c.l.b16 %v4706
    %v4953 = vunpack.c.h.b16 %v4706
    %v4954 = vunpack.c.l.b16 %v4707
    %v4955 = vpack.c.b16 %v4820, %v4811
    %v4956 = vpack.c.b16 %v4821, %v4812
    %v4957 = vpack.c.b16 %v4822, %v4813
    %v4958 = vpack.c.b16 %v4823, %v4814
    %v4959 = vpack.c.b16 %v4824, %v4815
    %v4960 = vpack.c.b16 %v4825, %v4816
    %v4961 = vpack.c.b16 %v4826, %v4817
    %v4962 = vpack.c.b16 %v4827, %v4818
    %v4963 = vpack.c.b16 %v4828, %v4819
    %v4964 = vpack.c.b16 %v4838, %v4829
    %v4965 = vpack.c.b16 %v4839, %v4830
    %v4966 = vpack.c.b16 %v4840, %v4831
    %v4967 = vpack.c.b16 %v4841, %v4832
    %v4968 = vpack.c.b16 %v4842, %v4833
    %v4969 = vpack.c.b16 %v4843, %v4834
    %v4970 = vpack.c.b16 %v4844, %v4835
    %v4971 = vpack.c.b16 %v4845, %v4836
    %v4972 = vpack.c.b16 %v4846, %v4837
    %v4973 = vpack.c.b16 %v4856, %v4847
    %v4974 = vpack.c.b16 %v4857, %v4848
    %v4975 = vpack.c.b16 %v4858, %v4849
    %v4976 = vpack.c.b16 %v4859, %v4850
    %v4977 = vpack.c.b16 %v4860, %v4851
    %v4978 = vpack.c.b16 %v4861, %v4852
    %v4979 = vpack.c.b16 %v4862, %v4853
    %v4980 = vpack.c.b16 %v4863, %v4854
    %v4981 = vpack.c.b16 %v4864, %v4855
    %v4982 = vpack.c.b16 %v4874, %v4865
    %v4983 = vpack.c.b16 %v4875, %v4866
    %v4984 = vpack.c.b16 %v4876, %v4867
    %v4985 = vpack.c.b16 %v4877, %v4868
    %v4986 = vpack.c.b16 %v4878, %v4869
    %v4987 = vpack.c.b16 %v4879, %v4870
    %v4988 = vpack.c.b16 %v4880, %v4871
    %v4989 = vpack.c.b16 %v4881, %v4872
    %v4990 = vpack.c.b16 %v4882, %v4873
    %v4991 = vpack.c.b16 %v4892, %v4883
    %v4992 = vpack.c.b16 %v4893, %v4884
    %v4993 = vpack.c.b16 %v4894, %v4885
    %v4994 = vpack.c.b16 %v4895, %v4886
    %v4995 = vpack.c.b16 %v4896, %v4887
    %v4996 = vpack.c.b16 %v4897, %v4888
    %v4997 = vpack.c.b16 %v4898, %v4889
    %v4998 = vpack.c.b16 %v4899, %v4890
    %v4999 = vpack.c.b16 %v4900, %v4891
    %v5000 = vpack.c.b16 %v4910, %v4901
    %v5001 = vpack.c.b16 %v4911, %v4902
    %v5002 = vpack.c.b16 %v4912, %v4903
    %v5003 = vpack.c.b16 %v4913, %v4904
    %v5004 = vpack.c.b16 %v4914, %v4905
    %v5005 = vpack.c.b16 %v4915, %v4906
    %v5006 = vpack.c.b16 %v4916, %v4907
    %v5007 = vpack.c.b16 %v4917, %v4908
    %v5008 = vpack.c.b16 %v4918, %v4909
    %v5009 = vpack.c.b16 %v4928, %v4919
    %v5010 = vpack.c.b16 %v4929, %v4920
    %v5011 = vpack.c.b16 %v4930, %v4921
    %v5012 = vpack.c.b16 %v4931, %v4922
    %v5013 = vpack.c.b16 %v4932, %v4923
    %v5014 = vpack.c.b16 %v4933, %v4924
    %v5015 = vpack.c.b16 %v4934, %v4925
    %v5016 = vpack.c.b16 %v4935, %v4926
    %v5017 = vpack.c.b16 %v4936, %v4927
    %v5018 = vpack.c.b16 %v4946, %v4937
    %v5019 = vpack.c.b16 %v4947, %v4938
    %v5020 = vpack.c.b16 %v4948, %v4939
    %v5021 = vpack.c.b16 %v4949, %v4940
    %v5022 = vpack.c.b16 %v4950, %v4941
    %v5023 = vpack.c.b16 %v4951, %v4942
    %v5024 = vpack.c.b16 %v4952, %v4943
    %v5025 = vpack.c.b16 %v4953, %v4944
    %v5026 = vpack.c.b16 %v4954, %v4945
    %5099 = vmatpush.bf16.msra.mxu0 %v5018
    %5100 = vmatpush.bf16.msra.mxu0 %v5009
    %5101 = vmatpush.bf16.msra.mxu0 %v5000
    %5102 = vmatpush.bf16.msra.mxu0 %v4991
    %5103 = vmatpush.bf16.msra.mxu0 %v4982
    %5104 = vmatpush.bf16.msra.mxu0 %v4973
    %5105 = vmatpush.bf16.msra.mxu0 %v4964
    %5106 = vmatpush.bf16.msra.mxu0 %v4955
    %5107 = vmatmul.bf16.gmra.mxu0 %v4626
    %v5108 = vpop.f32.mrf.mxu0
    %v5109 = vadd.f32 %v4713, %v5108
    %v5110 = vpop.f32.mrf.mxu0
    %v5111 = vadd.f32 %v4713, %v5110
    %5112 = vdwg.mxu0
    %5113 = vmatpush.bf16.msra.mxu0 %v5019
    %5114 = vmatpush.bf16.msra.mxu0 %v5010
    %5115 = vmatpush.bf16.msra.mxu0 %v5001
    %5116 = vmatpush.bf16.msra.mxu0 %v4992
    %5117 = vmatpush.bf16.msra.mxu0 %v4983
    %5118 = vmatpush.bf16.msra.mxu0 %v4974
    %5119 = vmatpush.bf16.msra.mxu0 %v4965
    %5120 = vmatpush.bf16.msra.mxu0 %v4956
    %5121 = vmatmul.bf16.gmra.mxu0 %v4626
    %v5122 = vpop.f32.mrf.mxu0
    %v5123 = vadd.f32 %v4714, %v5122
    %v5124 = vpop.f32.mrf.mxu0
    %v5125 = vadd.f32 %v4714, %v5124
    %5126 = vdwg.mxu0
    %5127 = vmatpush.bf16.msra.mxu0 %v5020
    %5128 = vmatpush.bf16.msra.mxu0 %v5011
    %5129 = vmatpush.bf16.msra.mxu0 %v5002
    %5130 = vmatpush.bf16.msra.mxu0 %v4993
    %5131 = vmatpush.bf16.msra.mxu0 %v4984
    %5132 = vmatpush.bf16.msra.mxu0 %v4975
    %5133 = vmatpush.bf16.msra.mxu0 %v4966
    %5134 = vmatpush.bf16.msra.mxu0 %v4957
    %5135 = vmatmul.bf16.gmra.mxu0 %v4626
    %v5136 = vpop.f32.mrf.mxu0
    %v5137 = vadd.f32 %v4715, %v5136
    %v5138 = vpop.f32.mrf.mxu0
    %v5139 = vadd.f32 %v4715, %v5138
    %5140 = vdwg.mxu0
    %5141 = vmatpush.bf16.msra.mxu0 %v5021
    %5142 = vmatpush.bf16.msra.mxu0 %v5012
    %5143 = vmatpush.bf16.msra.mxu0 %v5003
    %5144 = vmatpush.bf16.msra.mxu0 %v4994
    %5145 = vmatpush.bf16.msra.mxu0 %v4985
    %5146 = vmatpush.bf16.msra.mxu0 %v4976
    %5147 = vmatpush.bf16.msra.mxu0 %v4967
    %5148 = vmatpush.bf16.msra.mxu0 %v4958
    %5149 = vmatmul.bf16.gmra.mxu0 %v4626
    %v5150 = vpop.f32.mrf.mxu0
    %v5151 = vadd.f32 %v4716, %v5150
    %v5152 = vpop.f32.mrf.mxu0
    %v5153 = vadd.f32 %v4716, %v5152
    %5154 = vdwg.mxu0
    %5155 = vmatpush.bf16.msra.mxu0 %v5022
    %5156 = vmatpush.bf16.msra.mxu0 %v5013
    %5157 = vmatpush.bf16.msra.mxu0 %v5004
    %5158 = vmatpush.bf16.msra.mxu0 %v4995
    %5159 = vmatpush.bf16.msra.mxu0 %v4986
    %5160 = vmatpush.bf16.msra.mxu0 %v4977
    %5161 = vmatpush.bf16.msra.mxu0 %v4968
    %5162 = vmatpush.bf16.msra.mxu0 %v4959
    %5163 = vmatmul.bf16.gmra.mxu0 %v4626
    %v5164 = vpop.f32.mrf.mxu0
    %v5165 = vadd.f32 %v4717, %v5164
    %v5166 = vpop.f32.mrf.mxu0
    %v5167 = vadd.f32 %v4717, %v5166
    %5168 = vdwg.mxu0
    %5169 = vmatpush.bf16.msra.mxu0 %v5023
    %5170 = vmatpush.bf16.msra.mxu0 %v5014
    %5171 = vmatpush.bf16.msra.mxu0 %v5005
    %5172 = vmatpush.bf16.msra.mxu0 %v4996
    %5173 = vmatpush.bf16.msra.mxu0 %v4987
    %5174 = vmatpush.bf16.msra.mxu0 %v4978
    %5175 = vmatpush.bf16.msra.mxu0 %v4969
    %5176 = vmatpush.bf16.msra.mxu0 %v4960
    %5177 = vmatmul.bf16.gmra.mxu0 %v4626
    %v5178 = vpop.f32.mrf.mxu0
    %v5179 = vadd.f32 %v4718, %v5178
    %v5180 = vpop.f32.mrf.mxu0
    %v5181 = vadd.f32 %v4718, %v5180
    %5182 = vdwg.mxu0
    %5183 = vmatpush.bf16.msra.mxu0 %v5024
    %5184 = vmatpush.bf16.msra.mxu0 %v5015
    %5185 = vmatpush.bf16.msra.mxu0 %v5006
    %5186 = vmatpush.bf16.msra.mxu0 %v4997
    %5187 = vmatpush.bf16.msra.mxu0 %v4988
    %5188 = vmatpush.bf16.msra.mxu0 %v4979
    %5189 = vmatpush.bf16.msra.mxu0 %v4970
    %5190 = vmatpush.bf16.msra.mxu0 %v4961
    %5191 = vmatmul.bf16.gmra.mxu0 %v4626
    %v5192 = vpop.f32.mrf.mxu0
    %v5193 = vadd.f32 %v4719, %v5192
    %v5194 = vpop.f32.mrf.mxu0
    %v5195 = vadd.f32 %v4719, %v5194
    %5196 = vdwg.mxu0
    %5197 = vmatpush.bf16.msra.mxu0 %v5025
    %5198 = vmatpush.bf16.msra.mxu0 %v5016
    %5199 = vmatpush.bf16.msra.mxu0 %v5007
    %5200 = vmatpush.bf16.msra.mxu0 %v4998
    %5201 = vmatpush.bf16.msra.mxu0 %v4989
    %5202 = vmatpush.bf16.msra.mxu0 %v4980
    %5203 = vmatpush.bf16.msra.mxu0 %v4971
    %5204 = vmatpush.bf16.msra.mxu0 %v4962
    %5205 = vmatmul.bf16.gmra.mxu0 %v4626
    %v5206 = vpop.f32.mrf.mxu0
    %v5207 = vadd.f32 %v4720, %v5206
    %v5208 = vpop.f32.mrf.mxu0
    %v5209 = vadd.f32 %v4720, %v5208
    %5210 = vdwg.mxu0
    %5211 = vmatpush.bf16.msra.mxu0 %v5026
    %5212 = vmatpush.bf16.msra.mxu0 %v5017
    %5213 = vmatpush.bf16.msra.mxu0 %v5008
    %5214 = vmatpush.bf16.msra.mxu0 %v4999
    %5215 = vmatpush.bf16.msra.mxu0 %v4990
    %5216 = vmatpush.bf16.msra.mxu0 %v4981
    %5217 = vmatpush.bf16.msra.mxu0 %v4972
    %5218 = vmatpush.bf16.msra.mxu0 %v4963
    %5219 = vmatmul.bf16.gmra.mxu0 %v4626
    %v5220 = vpop.f32.mrf.mxu0
    %v5221 = vadd.f32 %v4721, %v5220
    %v5222 = vpop.f32.mrf.mxu0
    %v5223 = vadd.f32 %v4721, %v5222
    %5224 = vdwg.mxu0
    %v5225 = vpack.c.bf16 %v5123, %v5109
    %v5226 = vpack.c.bf16 %v5151, %v5137
    %v5227 = vpack.c.bf16 %v5179, %v5165
    %v5228 = vpack.c.bf16 %v5207, %v5193
    %v5229 = vpack.c.bf16 %v5221, %v5221
    %v5230 = vpack.c.bf16 %v5125, %v5111
    %v5231 = vpack.c.bf16 %v5153, %v5139
    %v5232 = vpack.c.bf16 %v5181, %v5167
    %v5233 = vpack.c.bf16 %v5209, %v5195
    %v5234 = vpack.c.bf16 %v5223, %v5223
    %v5237 = vunpack.c.l.b16 %v5225
    %v5238 = vunpack.c.l.b16 %v5230
    %v5239 = vpack.c.b16 %v5238, %v5237
    %v5243 = vunpack.c.h.b16 %v5226
    %v5244 = vunpack.c.h.b16 %v5231
    %v5245 = vpack.c.b16 %v5244, %v5243
    %5247 = vmatpush.bf16.xpose.msra.mxu0 0
    %5248 = vmatpush.bf16.xpose.msra.mxu0 0
    %5249 = vmatpush.bf16.xpose.msra.mxu0 0
    %5250 = vmatpush.bf16.xpose.msra.mxu0 0
    %5251 = vmatpush.bf16.xpose.msra.mxu0 0
    %5252 = vmatpush.bf16.xpose.msra.mxu0 0
    %5253 = vmatpush.bf16.xpose.msra.mxu0 0
    %5254 = vmatpush.bf16.xpose.msra.mxu0 %v5245
    %5255 = vmatmul.bf16.gmra.mxu0 %v5239
    %v5256 = vpop.f32.mrf.mxu0
    %v5257 = vadd.f32 %v273, %v5256
    %v5258 = vpop.f32.mrf.mxu0
    %v5259 = vadd.f32 %v274, %v5258
    %5260 = vdwg.mxu0
    %v5261 = vsel %vm996, %v5257, -inf
    %5262 = vmax.xlane.f32.xlu0 %v5261
    %v5263 = vpop.xlane.xlu0 %5262
    %v5264 = vsel %vm996, %v5259, -inf
    %5265 = vmax.xlane.f32.xlu0 %v5264
    %v5266 = vpop.xlane.xlu0 %5265
    %v5267 = vsub.f32 %v5257, %v5263
    %v5268 = vsub.f32 %v5259, %v5266
    %v5269 = vmul.f32 %v5267, 1.442695
    %v5270 = vpow.pop %v5269
    %v5271 = vmul.f32 %v5268, 1.442695
    %v5272 = vpow.pop %v5271
    %v5273 = vsel %vm996, %v5270, 0.0
    %5274 = vadd.xlane.f32.xlu0 %v5273
    %v5275 = vpop.xlane.xlu0 %5274
    %v5276 = vsel %vm996, %v5272, 0.0
    %5277 = vadd.xlane.f32.xlu0 %v5276
    %v5278 = vpop.xlane.xlu0 %5277
    %v5279 = vrcp.pop %v5275
    %v5280 = vrcp.pop %v5278
    %v5281 = vmul.f32 %v5270, %v5279
    %v5282 = vmul.f32 %v5272, %v5280
    %v5283 = vpack.c.bf16 %v5282, %v5281
    %v5286 = vunpack.c.l.b16 %v5228
    %v5287 = vunpack.c.l.b16 %v5233
    %v5288 = vpack.c.b16 %v5287, %v5286
    %v5291 = vsel %vm996, %v5283, 0
    %5293 = vmatpush.bf16.msra.mxu0 0
    %5294 = vmatpush.bf16.msra.mxu0 0
    %5295 = vmatpush.bf16.msra.mxu0 0
    %5296 = vmatpush.bf16.msra.mxu0 0
    %5297 = vmatpush.bf16.msra.mxu0 0
    %5298 = vmatpush.bf16.msra.mxu0 0
    %5299 = vmatpush.bf16.msra.mxu0 0
    %5300 = vmatpush.bf16.msra.mxu0 %v5288
    %5301 = vmatmul.bf16.gmra.mxu0 %v5291
    %v5302 = vpop.f32.mrf.mxu0
    %v5303 = vadd.f32 0.0, %v5302
    %v5304 = vpop.f32.mrf.mxu0
    %v5305 = vadd.f32 0.0, %v5304
    %5306 = vdwg.mxu0
    %v5307 = vpack.c.bf16 %v5305, %v5303
    %s5308 = scalar_lea.vmem [#allocation6], 576
    %v5309 = vld [vmem:[%s5308] sm:$0xf]
    %v5310 = vld [vmem:[%s5308 + $0x4] sm:$0xf]
    %v5311 = vld [vmem:[%s5308 + $0x8] sm:$0xf]
    %v5312 = vld [vmem:[%s5308 + $0xc] sm:$0xf]
    %v5313 = vld [vmem:[%s5308 + $0x10] sm:$0xf]
    %v5314 = vld [vmem:[%s5308 + $0x14] sm:$0xf]
    %v5315 = vld [vmem:[%s5308 + $0x18] sm:$0xf]
    %v5316 = vld [vmem:[%s5308 + $0x1c] sm:$0xf]
    %v5317 = vld [vmem:[%s5308 + $0x20] sm:$0xf]
    %v5318 = vld [vmem:[%s5308 + $0x24] sm:$0xf]
    %v5319 = vld [vmem:[%s5308 + $0x28] sm:$0xf]
    %v5320 = vld [vmem:[%s5308 + $0x2c] sm:$0xf]
    %v5321 = vld [vmem:[%s5308 + $0x30] sm:$0xf]
    %v5322 = vld [vmem:[%s5308 + $0x34] sm:$0xf]
    %v5323 = vld [vmem:[%s5308 + $0x38] sm:$0xf]
    %v5324 = vld [vmem:[%s5308 + $0x3c] sm:$0xf]
    %v5325 = vunpack.c.h.b16 %v5225
    %v5326 = vunpack.c.h.b16 %v5230
    %v5327 = vpack.c.b16 %v5326, %v5325
    %v5331 = vunpack.c.l.b16 %v5227
    %v5332 = vunpack.c.l.b16 %v5232
    %v5333 = vpack.c.b16 %v5332, %v5331
    %5335 = vmatpush.bf16.xpose.msra.mxu0 0
    %5336 = vmatpush.bf16.xpose.msra.mxu0 0
    %5337 = vmatpush.bf16.xpose.msra.mxu0 0
    %5338 = vmatpush.bf16.xpose.msra.mxu0 0
    %5339 = vmatpush.bf16.xpose.msra.mxu0 0
    %5340 = vmatpush.bf16.xpose.msra.mxu0 0
    %5341 = vmatpush.bf16.xpose.msra.mxu0 0
    %5342 = vmatpush.bf16.xpose.msra.mxu0 %v5333
    %5343 = vmatmul.bf16.gmra.mxu0 %v5327
    %v5344 = vpop.f32.mrf.mxu0
    %v5345 = vadd.f32 %v273, %v5344
    %v5346 = vpop.f32.mrf.mxu0
    %v5347 = vadd.f32 %v274, %v5346
    %5348 = vdwg.mxu0
    %v5349 = vsel %vm996, %v5345, -inf
    %5350 = vmax.xlane.f32.xlu0 %v5349
    %v5351 = vpop.xlane.xlu0 %5350
    %v5352 = vsel %vm996, %v5347, -inf
    %5353 = vmax.xlane.f32.xlu0 %v5352
    %v5354 = vpop.xlane.xlu0 %5353
    %v5355 = vsub.f32 %v5345, %v5351
    %v5356 = vsub.f32 %v5347, %v5354
    %v5357 = vmul.f32 %v5355, 1.442695
    %v5358 = vpow.pop %v5357
    %v5359 = vmul.f32 %v5356, 1.442695
    %v5360 = vpow.pop %v5359
    %v5361 = vsel %vm996, %v5358, 0.0
    %5362 = vadd.xlane.f32.xlu0 %v5361
    %v5363 = vpop.xlane.xlu0 %5362
    %v5364 = vsel %vm996, %v5360, 0.0
    %5365 = vadd.xlane.f32.xlu0 %v5364
    %v5366 = vpop.xlane.xlu0 %5365
    %v5367 = vrcp.pop %v5363
    %v5368 = vrcp.pop %v5366
    %v5369 = vmul.f32 %v5358, %v5367
    %v5370 = vmul.f32 %v5360, %v5368
    %v5371 = vpack.c.bf16 %v5370, %v5369
    %v5372 = vunpack.c.h.b16 %v5228
    %v5373 = vunpack.c.h.b16 %v5233
    %v5374 = vpack.c.b16 %v5373, %v5372
    %v5377 = vsel %vm996, %v5371, 0
    %5379 = vmatpush.bf16.msra.mxu0 0
    %5380 = vmatpush.bf16.msra.mxu0 0
    %5381 = vmatpush.bf16.msra.mxu0 0
    %5382 = vmatpush.bf16.msra.mxu0 0
    %5383 = vmatpush.bf16.msra.mxu0 0
    %5384 = vmatpush.bf16.msra.mxu0 0
    %5385 = vmatpush.bf16.msra.mxu0 0
    %5386 = vmatpush.bf16.msra.mxu0 %v5374
    %5387 = vmatmul.bf16.gmra.mxu0 %v5377
    %v5388 = vpop.f32.mrf.mxu0
    %v5389 = vadd.f32 0.0, %v5388
    %v5390 = vpop.f32.mrf.mxu0
    %v5391 = vadd.f32 0.0, %v5390
    %5392 = vdwg.mxu0
    %v5393 = vpack.c.bf16 %v5391, %v5389
    %s5394 = scalar_lea.vmem [#allocation6], 640
    %v5395 = vld [vmem:[%s5394] sm:$0xf]
    %v5396 = vld [vmem:[%s5394 + $0x4] sm:$0xf]
    %v5397 = vld [vmem:[%s5394 + $0x8] sm:$0xf]
    %v5398 = vld [vmem:[%s5394 + $0xc] sm:$0xf]
    %v5399 = vld [vmem:[%s5394 + $0x10] sm:$0xf]
    %v5400 = vld [vmem:[%s5394 + $0x14] sm:$0xf]
    %v5401 = vld [vmem:[%s5394 + $0x18] sm:$0xf]
    %v5402 = vld [vmem:[%s5394 + $0x1c] sm:$0xf]
    %v5403 = vld [vmem:[%s5394 + $0x20] sm:$0xf]
    %v5404 = vld [vmem:[%s5394 + $0x24] sm:$0xf]
    %v5405 = vld [vmem:[%s5394 + $0x28] sm:$0xf]
    %v5406 = vld [vmem:[%s5394 + $0x2c] sm:$0xf]
    %v5407 = vld [vmem:[%s5394 + $0x30] sm:$0xf]
    %v5408 = vld [vmem:[%s5394 + $0x34] sm:$0xf]
    %v5409 = vld [vmem:[%s5394 + $0x38] sm:$0xf]
    %v5410 = vld [vmem:[%s5394 + $0x3c] sm:$0xf]
    %v5427 = vunpack.c.l.b16 %v5395
    %v5428 = vunpack.c.l.b16 %v5396
    %v5429 = vunpack.c.l.b16 %v5397
    %v5430 = vunpack.c.l.b16 %v5398
    %v5431 = vunpack.c.l.b16 %v5399
    %v5432 = vunpack.c.l.b16 %v5400
    %v5433 = vunpack.c.l.b16 %v5401
    %v5434 = vunpack.c.l.b16 %v5402
    %v5435 = vunpack.c.l.b16 %v5403
    %v5436 = vunpack.c.l.b16 %v5404
    %v5437 = vunpack.c.l.b16 %v5405
    %v5438 = vunpack.c.l.b16 %v5406
    %v5439 = vunpack.c.l.b16 %v5407
    %v5440 = vunpack.c.l.b16 %v5408
    %v5441 = vunpack.c.l.b16 %v5409
    %v5442 = vunpack.c.l.b16 %v5410
    %v5443 = vpack.c.b16 %v5428, %v5427
    %v5444 = vpack.c.b16 %v5430, %v5429
    %v5445 = vpack.c.b16 %v5432, %v5431
    %v5446 = vpack.c.b16 %v5434, %v5433
    %v5447 = vpack.c.b16 %v5436, %v5435
    %v5448 = vpack.c.b16 %v5438, %v5437
    %v5449 = vpack.c.b16 %v5440, %v5439
    %v5450 = vpack.c.b16 %v5442, %v5441
    %5459 = vmatpush.bf16.msra.mxu0 %v5450
    %5460 = vmatpush.bf16.msra.mxu0 %v5449
    %5461 = vmatpush.bf16.msra.mxu0 %v5448
    %5462 = vmatpush.bf16.msra.mxu0 %v5447
    %5463 = vmatpush.bf16.msra.mxu0 %v5446
    %5464 = vmatpush.bf16.msra.mxu0 %v5445
    %5465 = vmatpush.bf16.msra.mxu0 %v5444
    %5466 = vmatpush.bf16.msra.mxu0 %v5443
    %5467 = vmatmul.bf16.gmra.mxu0 %v5393
    %v5468 = vpop.f32.mrf.mxu0
    %v5469 = vadd.f32 0.0, %v5468
    %v5470 = vpop.f32.mrf.mxu0
    %v5471 = vadd.f32 0.0, %v5470
    %5472 = vdwg.mxu0
    %v5489 = vunpack.c.l.b16 %v5309
    %v5490 = vunpack.c.l.b16 %v5310
    %v5491 = vunpack.c.l.b16 %v5311
    %v5492 = vunpack.c.l.b16 %v5312
    %v5493 = vunpack.c.l.b16 %v5313
    %v5494 = vunpack.c.l.b16 %v5314
    %v5495 = vunpack.c.l.b16 %v5315
    %v5496 = vunpack.c.l.b16 %v5316
    %v5497 = vunpack.c.l.b16 %v5317
    %v5498 = vunpack.c.l.b16 %v5318
    %v5499 = vunpack.c.l.b16 %v5319
    %v5500 = vunpack.c.l.b16 %v5320
    %v5501 = vunpack.c.l.b16 %v5321
    %v5502 = vunpack.c.l.b16 %v5322
    %v5503 = vunpack.c.l.b16 %v5323
    %v5504 = vunpack.c.l.b16 %v5324
    %v5505 = vpack.c.b16 %v5490, %v5489
    %v5506 = vpack.c.b16 %v5492, %v5491
    %v5507 = vpack.c.b16 %v5494, %v5493
    %v5508 = vpack.c.b16 %v5496, %v5495
    %v5509 = vpack.c.b16 %v5498, %v5497
    %v5510 = vpack.c.b16 %v5500, %v5499
    %v5511 = vpack.c.b16 %v5502, %v5501
    %v5512 = vpack.c.b16 %v5504, %v5503
    %5521 = vmatpush.bf16.msra.mxu0 %v5512
    %5522 = vmatpush.bf16.msra.mxu0 %v5511
    %5523 = vmatpush.bf16.msra.mxu0 %v5510
    %5524 = vmatpush.bf16.msra.mxu0 %v5509
    %5525 = vmatpush.bf16.msra.mxu0 %v5508
    %5526 = vmatpush.bf16.msra.mxu0 %v5507
    %5527 = vmatpush.bf16.msra.mxu0 %v5506
    %5528 = vmatpush.bf16.msra.mxu0 %v5505
    %5529 = vmatmul.bf16.gmra.mxu0 %v5307
    %v5530 = vpop.f32.mrf.mxu0
    %v5531 = vadd.f32 %v5469, %v5530
    %v5532 = vpop.f32.mrf.mxu0
    %v5533 = vadd.f32 %v5471, %v5532
    %5534 = vdwg.mxu0
    %v5535 = vunpack.c.l.b16 %v5226
    %v5536 = vunpack.c.l.b16 %v5231
    %v5537 = vpack.c.b16 %v5536, %v5535
    %v5539 = vunpack.c.h.b16 %v5227
    %v5540 = vunpack.c.h.b16 %v5232
    %v5541 = vpack.c.b16 %v5540, %v5539
    %5543 = vmatpush.bf16.xpose.msra.mxu0 0
    %5544 = vmatpush.bf16.xpose.msra.mxu0 0
    %5545 = vmatpush.bf16.xpose.msra.mxu0 0
    %5546 = vmatpush.bf16.xpose.msra.mxu0 0
    %5547 = vmatpush.bf16.xpose.msra.mxu0 0
    %5548 = vmatpush.bf16.xpose.msra.mxu0 0
    %5549 = vmatpush.bf16.xpose.msra.mxu0 0
    %5550 = vmatpush.bf16.xpose.msra.mxu0 %v5541
    %5551 = vmatmul.bf16.gmra.mxu0 %v5537
    %v5552 = vpop.f32.mrf.mxu0
    %v5553 = vadd.f32 %v273, %v5552
    %v5554 = vpop.f32.mrf.mxu0
    %v5555 = vadd.f32 %v274, %v5554
    %5556 = vdwg.mxu0
    %v5557 = vsel %vm996, %v5553, -inf
    %5558 = vmax.xlane.f32.xlu0 %v5557
    %v5559 = vpop.xlane.xlu0 %5558
    %v5560 = vsel %vm996, %v5555, -inf
    %5561 = vmax.xlane.f32.xlu0 %v5560
    %v5562 = vpop.xlane.xlu0 %5561
    %v5563 = vsub.f32 %v5553, %v5559
    %v5564 = vsub.f32 %v5555, %v5562
    %v5565 = vmul.f32 %v5563, 1.442695
    %v5566 = vpow.pop %v5565
    %v5567 = vmul.f32 %v5564, 1.442695
    %v5568 = vpow.pop %v5567
    %v5569 = vsel %vm996, %v5566, 0.0
    %5570 = vadd.xlane.f32.xlu0 %v5569
    %v5571 = vpop.xlane.xlu0 %5570
    %v5572 = vsel %vm996, %v5568, 0.0
    %5573 = vadd.xlane.f32.xlu0 %v5572
    %v5574 = vpop.xlane.xlu0 %5573
    %v5575 = vrcp.pop %v5571
    %v5576 = vrcp.pop %v5574
    %v5577 = vmul.f32 %v5566, %v5575
    %v5578 = vmul.f32 %v5568, %v5576
    %v5579 = vpack.c.bf16 %v5578, %v5577
    %v5582 = vunpack.c.l.b16 %v5229
    %v5583 = vunpack.c.l.b16 %v5234
    %v5584 = vpack.c.b16 %v5583, %v5582
    %v5587 = vsel %vm996, %v5579, 0
    %5589 = vmatpush.bf16.msra.mxu0 0
    %5590 = vmatpush.bf16.msra.mxu0 0
    %5591 = vmatpush.bf16.msra.mxu0 0
    %5592 = vmatpush.bf16.msra.mxu0 0
    %5593 = vmatpush.bf16.msra.mxu0 0
    %5594 = vmatpush.bf16.msra.mxu0 0
    %5595 = vmatpush.bf16.msra.mxu0 0
    %5596 = vmatpush.bf16.msra.mxu0 %v5584
    %5597 = vmatmul.bf16.gmra.mxu0 %v5587
    %v5598 = vpop.f32.mrf.mxu0
    %v5599 = vadd.f32 0.0, %v5598
    %v5600 = vpop.f32.mrf.mxu0
    %v5601 = vadd.f32 0.0, %v5600
    %5602 = vdwg.mxu0
    %v5603 = vpack.c.bf16 %v5601, %v5599
    %s5604 = scalar_lea.vmem [#allocation6], 704
    %v5605 = vld [vmem:[%s5604] sm:$0xf]
    %v5606 = vld [vmem:[%s5604 + $0x4] sm:$0xf]
    %v5607 = vld [vmem:[%s5604 + $0x8] sm:$0xf]
    %v5608 = vld [vmem:[%s5604 + $0xc] sm:$0xf]
    %v5609 = vld [vmem:[%s5604 + $0x10] sm:$0xf]
    %v5610 = vld [vmem:[%s5604 + $0x14] sm:$0xf]
    %v5611 = vld [vmem:[%s5604 + $0x18] sm:$0xf]
    %v5612 = vld [vmem:[%s5604 + $0x1c] sm:$0xf]
    %v5613 = vld [vmem:[%s5604 + $0x20] sm:$0xf]
    %v5614 = vld [vmem:[%s5604 + $0x24] sm:$0xf]
    %v5615 = vld [vmem:[%s5604 + $0x28] sm:$0xf]
    %v5616 = vld [vmem:[%s5604 + $0x2c] sm:$0xf]
    %v5617 = vld [vmem:[%s5604 + $0x30] sm:$0xf]
    %v5618 = vld [vmem:[%s5604 + $0x34] sm:$0xf]
    %v5619 = vld [vmem:[%s5604 + $0x38] sm:$0xf]
    %v5620 = vld [vmem:[%s5604 + $0x3c] sm:$0xf]
    %v5637 = vunpack.c.l.b16 %v5605
    %v5638 = vunpack.c.l.b16 %v5606
    %v5639 = vunpack.c.l.b16 %v5607
    %v5640 = vunpack.c.l.b16 %v5608
    %v5641 = vunpack.c.l.b16 %v5609
    %v5642 = vunpack.c.l.b16 %v5610
    %v5643 = vunpack.c.l.b16 %v5611
    %v5644 = vunpack.c.l.b16 %v5612
    %v5645 = vunpack.c.l.b16 %v5613
    %v5646 = vunpack.c.l.b16 %v5614
    %v5647 = vunpack.c.l.b16 %v5615
    %v5648 = vunpack.c.l.b16 %v5616
    %v5649 = vunpack.c.l.b16 %v5617
    %v5650 = vunpack.c.l.b16 %v5618
    %v5651 = vunpack.c.l.b16 %v5619
    %v5652 = vunpack.c.l.b16 %v5620
    %v5653 = vpack.c.b16 %v5638, %v5637
    %v5654 = vpack.c.b16 %v5640, %v5639
    %v5655 = vpack.c.b16 %v5642, %v5641
    %v5656 = vpack.c.b16 %v5644, %v5643
    %v5657 = vpack.c.b16 %v5646, %v5645
    %v5658 = vpack.c.b16 %v5648, %v5647
    %v5659 = vpack.c.b16 %v5650, %v5649
    %v5660 = vpack.c.b16 %v5652, %v5651
    %5669 = vmatpush.bf16.msra.mxu0 %v5660
    %5670 = vmatpush.bf16.msra.mxu0 %v5659
    %5671 = vmatpush.bf16.msra.mxu0 %v5658
    %5672 = vmatpush.bf16.msra.mxu0 %v5657
    %5673 = vmatpush.bf16.msra.mxu0 %v5656
    %5674 = vmatpush.bf16.msra.mxu0 %v5655
    %5675 = vmatpush.bf16.msra.mxu0 %v5654
    %5676 = vmatpush.bf16.msra.mxu0 %v5653
    %5677 = vmatmul.bf16.gmra.mxu0 %v5603
    %v5678 = vpop.f32.mrf.mxu0
    %v5679 = vadd.f32 0.0, %v5678
    %v5680 = vpop.f32.mrf.mxu0
    %v5681 = vadd.f32 0.0, %v5680
    %5682 = vdwg.mxu0
    %v5683 = vadd.f32 %v5531, %v5679
    %v5684 = vadd.f32 %v5533, %v5681
    %v5685 = vadd.f32 %v4534, %v5683
    %v5686 = vadd.f32 %v4535, %v5684
    %s5687 = scalar_lea.vmem [#allocation7], 3
    %v5688 = vld [vmem:[%s5687] sm:$0x1]
    %v5690 = vperm.slane %v5688, 0
    %v5692 = vadd.f32 %v5685, %v5690
    %v5693 = vadd.f32 %v5686, %v5690
    %s5694 = scalar_lea.vmem [#allocation18], 3
    %v5695 = vld [vmem:[%s5694] sm:$0x1]
    %s5696 = scalar_lea.vmem [#allocation19], 3
    %v5697 = vld [vmem:[%s5696] sm:$0x1]
    %5698 = vadd.xlane.f32.xlu0 %v5692
    %v5699 = vpop.xlane.xlu0 %5698
    %5700 = vadd.xlane.f32.xlu0 %v5693
    %v5701 = vpop.xlane.xlu0 %5700
    %v5702 = vmul.f32 %v5699, 0.020833334
    %v5703 = vmul.f32 %v5701, 0.020833334
    %v5704 = vsub.f32 %v5692, %v5702
    %v5705 = vsub.f32 %v5693, %v5703
    %v5706 = vsel %vm270, %v5704, 0.0
    %v5707 = vsel %vm270, %v5705, 0.0
    %v5708 = vmul.f32 %v5706, %v5706
    %v5709 = vmul.f32 %v5707, %v5707
    %5710 = vadd.xlane.f32.xlu0 %v5708
    %v5711 = vpop.xlane.xlu0 %5710
    %5712 = vadd.xlane.f32.xlu0 %v5709
    %v5713 = vpop.xlane.xlu0 %5712
    %v5714 = vmul.f32 %v5711, 0.021276595
    %v5715 = vmul.f32 %v5713, 0.021276595
    %v5716 = vrsqrt.pop %v5714
    %v5717 = vmul.f32 %v5716, %v5714
    %v5718 = vmul.f32 %v5717, %v5716
    %v5719 = vmul.f32 0.5, %v5718
    %v5720 = vsub.f32 1.5, %v5719
    %v5721 = vmul.f32 %v5716, %v5720
    %v5722 = vmul.f32 %v5714, %v5721
    %vm5723 = vcmp.eq.f32.partialorder %v5714, inf
    %v5724 = vsel %vm5723, %v5714, %v5722
    %vm5725 = vcmp.eq.f32.partialorder %v5714, 0.0
    %v5726 = vand.u32 %v5714, 2147483648
    %v5727 = vsel %vm5725, %v5726, %v5724
    %v5728 = vrsqrt.pop %v5715
    %v5729 = vmul.f32 %v5728, %v5715
    %v5730 = vmul.f32 %v5729, %v5728
    %v5731 = vmul.f32 0.5, %v5730
    %v5732 = vsub.f32 1.5, %v5731
    %v5733 = vmul.f32 %v5728, %v5732
    %v5734 = vmul.f32 %v5715, %v5733
    %vm5735 = vcmp.eq.f32.partialorder %v5715, inf
    %v5736 = vsel %vm5735, %v5715, %v5734
    %vm5737 = vcmp.eq.f32.partialorder %v5715, 0.0
    %v5738 = vand.u32 %v5715, 2147483648
    %v5739 = vsel %vm5737, %v5738, %v5736
    %v5740 = vadd.f32 %v5727, 1e-06
    %v5741 = vadd.f32 %v5739, 1e-06
    %v5742 = vrcp.pop %v5740
    %v5743 = vmul.f32 %v5740, %v5742
    %v5744 = vsub.f32 1.0, %v5743
    %v5745 = vmul.f32 %v5742, %v5744
    %v5746 = vadd.f32 %v5742, %v5745
    %vm5747 = vweird.f32 %v5740
    %vm5748 = vweird.f32 %v5742
    %vm5749 = vmor %vm5747, %vm5748
    %v5750 = vsel %vm5749, %v5742, %v5746
    %v5751 = vand.u32 2147483647, %v5740
    %vm5752 = vcmp.eq.f32.partialorder %v5751, 8.507059e+37
    %v5753 = vand.u32 %v5740, 2147483648
    %v5754 = vor.u32 1.1754944e-38, %v5753
    %v5755 = vsel %vm5752, %v5754, %v5750
    %v5756 = vmul.f32 1.0, %v5755
    %v5757 = vrcp.pop %v5741
    %v5758 = vmul.f32 %v5741, %v5757
    %v5759 = vsub.f32 1.0, %v5758
    %v5760 = vmul.f32 %v5757, %v5759
    %v5761 = vadd.f32 %v5757, %v5760
    %vm5762 = vweird.f32 %v5741
    %vm5763 = vweird.f32 %v5757
    %vm5764 = vmor %vm5762, %vm5763
    %v5765 = vsel %vm5764, %v5757, %v5761
    %v5766 = vand.u32 2147483647, %v5741
    %vm5767 = vcmp.eq.f32.partialorder %v5766, 8.507059e+37
    %v5768 = vand.u32 %v5741, 2147483648
    %v5769 = vor.u32 1.1754944e-38, %v5768
    %v5770 = vsel %vm5767, %v5769, %v5765
    %v5771 = vmul.f32 1.0, %v5770
    %v5772 = vmul.f32 %v5706, %v5756
    %v5773 = vmul.f32 %v5707, %v5771
    %v5775 = vperm.slane %v5695, 0
    %v5777 = vmul.f32 %v5775, %v5772
    %v5778 = vmul.f32 %v5775, %v5773
    %v5780 = vperm.slane %v5697, 0
    %v5782 = vadd.f32 %v5777, %v5780
    %v5783 = vadd.f32 %v5778, %v5780
    %v5784 = vpack.c.bf16 %v5783, %v5782
    %s5785 = scalar_lea.vmem [#allocation9], 192
    %v5786 = vld [vmem:[%s5785] sm:$0xf]
    %v5787 = vld [vmem:[%s5785 + $0x4] sm:$0xf]
    %v5788 = vld [vmem:[%s5785 + $0x8] sm:$0xf]
    %v5789 = vld [vmem:[%s5785 + $0xc] sm:$0xf]
    %v5790 = vld [vmem:[%s5785 + $0x10] sm:$0xf]
    %v5791 = vld [vmem:[%s5785 + $0x14] sm:$0xf]
    %v5792 = vld [vmem:[%s5785 + $0x18] sm:$0xf]
    %v5793 = vld [vmem:[%s5785 + $0x1c] sm:$0xf]
    %v5794 = vld [vmem:[%s5785 + $0x20] sm:$0xf]
    %v5795 = vld [vmem:[%s5785 + $0x24] sm:$0xf]
    %v5796 = vld [vmem:[%s5785 + $0x28] sm:$0xf]
    %v5797 = vld [vmem:[%s5785 + $0x2c] sm:$0xf]
    %v5798 = vld [vmem:[%s5785 + $0x30] sm:$0xf]
    %v5799 = vld [vmem:[%s5785 + $0x34] sm:$0xf]
    %v5800 = vld [vmem:[%s5785 + $0x38] sm:$0xf]
    %v5801 = vld [vmem:[%s5785 + $0x3c] sm:$0xf]
    %s5802 = scalar_lea.vmem [#allocation10], 3
    %v5803 = vld [vmem:[%s5802] sm:$0x1]
    %v5805 = vperm.slane %v5803, 0
    %v5823 = vunpack.c.l.b16 %v5786
    %v5824 = vunpack.c.l.b16 %v5787
    %v5825 = vunpack.c.l.b16 %v5788
    %v5826 = vunpack.c.l.b16 %v5789
    %v5827 = vunpack.c.l.b16 %v5790
    %v5828 = vunpack.c.l.b16 %v5791
    %v5829 = vunpack.c.l.b16 %v5792
    %v5830 = vunpack.c.l.b16 %v5793
    %v5831 = vunpack.c.l.b16 %v5794
    %v5832 = vunpack.c.l.b16 %v5795
    %v5833 = vunpack.c.l.b16 %v5796
    %v5834 = vunpack.c.l.b16 %v5797
    %v5835 = vunpack.c.l.b16 %v5798
    %v5836 = vunpack.c.l.b16 %v5799
    %v5837 = vunpack.c.l.b16 %v5800
    %v5838 = vunpack.c.l.b16 %v5801
    %v5839 = vpack.c.b16 %v5824, %v5823
    %v5840 = vpack.c.b16 %v5826, %v5825
    %v5841 = vpack.c.b16 %v5828, %v5827
    %v5842 = vpack.c.b16 %v5830, %v5829
    %v5843 = vpack.c.b16 %v5832, %v5831
    %v5844 = vpack.c.b16 %v5834, %v5833
    %v5845 = vpack.c.b16 %v5836, %v5835
    %v5846 = vpack.c.b16 %v5838, %v5837
    %5855 = vmatpush.bf16.msra.mxu0 %v5846
    %5856 = vmatpush.bf16.msra.mxu0 %v5845
    %5857 = vmatpush.bf16.msra.mxu0 %v5844
    %5858 = vmatpush.bf16.msra.mxu0 %v5843
    %5859 = vmatpush.bf16.msra.mxu0 %v5842
    %5860 = vmatpush.bf16.msra.mxu0 %v5841
    %5861 = vmatpush.bf16.msra.mxu0 %v5840
    %5862 = vmatpush.bf16.msra.mxu0 %v5839
    %5863 = vmatmul.bf16.gmra.mxu0 %v5784
    %v5864 = vpop.f32.mrf.mxu0
    %v5865 = vadd.f32 %v5805, %v5864
    %v5866 = vpop.f32.mrf.mxu0
    %v5867 = vadd.f32 %v5805, %v5866
    %5868 = vdwg.mxu0
    %v5869 = vmax.f32 %v5865, 0.0
    %v5870 = vmax.f32 %v5867, 0.0
    %v5871 = vpack.c.bf16 %v5870, %v5869
    %s5872 = scalar_lea.vmem [#allocation12], 192
    %v5873 = vld [vmem:[%s5872] sm:$0xf]
    %v5874 = vld [vmem:[%s5872 + $0x4] sm:$0xf]
    %v5875 = vld [vmem:[%s5872 + $0x8] sm:$0xf]
    %v5876 = vld [vmem:[%s5872 + $0xc] sm:$0xf]
    %v5877 = vld [vmem:[%s5872 + $0x10] sm:$0xf]
    %v5878 = vld [vmem:[%s5872 + $0x14] sm:$0xf]
    %v5879 = vld [vmem:[%s5872 + $0x18] sm:$0xf]
    %v5880 = vld [vmem:[%s5872 + $0x1c] sm:$0xf]
    %v5881 = vld [vmem:[%s5872 + $0x20] sm:$0xf]
    %v5882 = vld [vmem:[%s5872 + $0x24] sm:$0xf]
    %v5883 = vld [vmem:[%s5872 + $0x28] sm:$0xf]
    %v5884 = vld [vmem:[%s5872 + $0x2c] sm:$0xf]
    %v5885 = vld [vmem:[%s5872 + $0x30] sm:$0xf]
    %v5886 = vld [vmem:[%s5872 + $0x34] sm:$0xf]
    %v5887 = vld [vmem:[%s5872 + $0x38] sm:$0xf]
    %v5888 = vld [vmem:[%s5872 + $0x3c] sm:$0xf]
    %v5905 = vunpack.c.l.b16 %v5873
    %v5906 = vunpack.c.l.b16 %v5874
    %v5907 = vunpack.c.l.b16 %v5875
    %v5908 = vunpack.c.l.b16 %v5876
    %v5909 = vunpack.c.l.b16 %v5877
    %v5910 = vunpack.c.l.b16 %v5878
    %v5911 = vunpack.c.l.b16 %v5879
    %v5912 = vunpack.c.l.b16 %v5880
    %v5913 = vunpack.c.l.b16 %v5881
    %v5914 = vunpack.c.l.b16 %v5882
    %v5915 = vunpack.c.l.b16 %v5883
    %v5916 = vunpack.c.l.b16 %v5884
    %v5917 = vunpack.c.l.b16 %v5885
    %v5918 = vunpack.c.l.b16 %v5886
    %v5919 = vunpack.c.l.b16 %v5887
    %v5920 = vunpack.c.l.b16 %v5888
    %v5921 = vpack.c.b16 %v5906, %v5905
    %v5922 = vpack.c.b16 %v5908, %v5907
    %v5923 = vpack.c.b16 %v5910, %v5909
    %v5924 = vpack.c.b16 %v5912, %v5911
    %v5925 = vpack.c.b16 %v5914, %v5913
    %v5926 = vpack.c.b16 %v5916, %v5915
    %v5927 = vpack.c.b16 %v5918, %v5917
    %v5928 = vpack.c.b16 %v5920, %v5919
    %5937 = vmatpush.bf16.msra.mxu0 %v5928
    %5938 = vmatpush.bf16.msra.mxu0 %v5927
    %5939 = vmatpush.bf16.msra.mxu0 %v5926
    %5940 = vmatpush.bf16.msra.mxu0 %v5925
    %5941 = vmatpush.bf16.msra.mxu0 %v5924
    %5942 = vmatpush.bf16.msra.mxu0 %v5923
    %5943 = vmatpush.bf16.msra.mxu0 %v5922
    %5944 = vmatpush.bf16.msra.mxu0 %v5921
    %5945 = vmatmul.bf16.gmra.mxu0 %v5871
    %v5946 = vpop.f32.mrf.mxu0
    %v5947 = vadd.f32 0.0, %v5946
    %v5948 = vpop.f32.mrf.mxu0
    %v5949 = vadd.f32 0.0, %v5948
    %5950 = vdwg.mxu0
    %v5951 = vadd.f32 %v5692, %v5947
    %v5952 = vadd.f32 %v5693, %v5949
    %s5953 = scalar_lea.vmem [#allocation13], 3
    %v5954 = vld [vmem:[%s5953] sm:$0x1]
    %v5956 = vperm.slane %v5954, 0
    %v5958 = vadd.f32 %v5951, %v5956
    %v5959 = vadd.f32 %v5952, %v5956
    %v5960 = vld [vmem:[#allocation21] sm:$0x1]
    %v5961 = vld [vmem:[#allocation22] sm:$0x1]
    %5962 = vadd.xlane.f32.xlu0 %v5958
    %v5963 = vpop.xlane.xlu0 %5962
    %5964 = vadd.xlane.f32.xlu0 %v5959
    %v5965 = vpop.xlane.xlu0 %5964
    %v5966 = vmul.f32 %v5963, 0.020833334
    %v5967 = vmul.f32 %v5965, 0.020833334
    %v5968 = vsub.f32 %v5958, %v5966
    %v5969 = vsub.f32 %v5959, %v5967
    %v5970 = vsel %vm270, %v5968, 0.0
    %v5971 = vsel %vm270, %v5969, 0.0
    %v5972 = vmul.f32 %v5970, %v5970
    %v5973 = vmul.f32 %v5971, %v5971
    %5974 = vadd.xlane.f32.xlu0 %v5972
    %v5975 = vpop.xlane.xlu0 %5974
    %5976 = vadd.xlane.f32.xlu0 %v5973
    %v5977 = vpop.xlane.xlu0 %5976
    %v5978 = vmul.f32 %v5975, 0.021276595
    %v5979 = vmul.f32 %v5977, 0.021276595
    %v5980 = vrsqrt.pop %v5978
    %v5981 = vmul.f32 %v5980, %v5978
    %v5982 = vmul.f32 %v5981, %v5980
    %v5983 = vmul.f32 0.5, %v5982
    %v5984 = vsub.f32 1.5, %v5983
    %v5985 = vmul.f32 %v5980, %v5984
    %v5986 = vmul.f32 %v5978, %v5985
    %vm5987 = vcmp.eq.f32.partialorder %v5978, inf
    %v5988 = vsel %vm5987, %v5978, %v5986
    %vm5989 = vcmp.eq.f32.partialorder %v5978, 0.0
    %v5990 = vand.u32 %v5978, 2147483648
    %v5991 = vsel %vm5989, %v5990, %v5988
    %v5992 = vrsqrt.pop %v5979
    %v5993 = vmul.f32 %v5992, %v5979
    %v5994 = vmul.f32 %v5993, %v5992
    %v5995 = vmul.f32 0.5, %v5994
    %v5996 = vsub.f32 1.5, %v5995
    %v5997 = vmul.f32 %v5992, %v5996
    %v5998 = vmul.f32 %v5979, %v5997
    %vm5999 = vcmp.eq.f32.partialorder %v5979, inf
    %v6000 = vsel %vm5999, %v5979, %v5998
    %vm6001 = vcmp.eq.f32.partialorder %v5979, 0.0
    %v6002 = vand.u32 %v5979, 2147483648
    %v6003 = vsel %vm6001, %v6002, %v6000
    %v6004 = vadd.f32 %v5991, 1e-06
    %v6005 = vadd.f32 %v6003, 1e-06
    %v6006 = vrcp.pop %v6004
    %v6007 = vmul.f32 %v6004, %v6006
    %v6008 = vsub.f32 1.0, %v6007
    %v6009 = vmul.f32 %v6006, %v6008
    %v6010 = vadd.f32 %v6006, %v6009
    %vm6011 = vweird.f32 %v6004
    %vm6012 = vweird.f32 %v6006
    %vm6013 = vmor %vm6011, %vm6012
    %v6014 = vsel %vm6013, %v6006, %v6010
    %v6015 = vand.u32 2147483647, %v6004
    %vm6016 = vcmp.eq.f32.partialorder %v6015, 8.507059e+37
    %v6017 = vand.u32 %v6004, 2147483648
    %v6018 = vor.u32 1.1754944e-38, %v6017
    %v6019 = vsel %vm6016, %v6018, %v6014
    %v6020 = vmul.f32 1.0, %v6019
    %v6021 = vrcp.pop %v6005
    %v6022 = vmul.f32 %v6005, %v6021
    %v6023 = vsub.f32 1.0, %v6022
    %v6024 = vmul.f32 %v6021, %v6023
    %v6025 = vadd.f32 %v6021, %v6024
    %vm6026 = vweird.f32 %v6005
    %vm6027 = vweird.f32 %v6021
    %vm6028 = vmor %vm6026, %vm6027
    %v6029 = vsel %vm6028, %v6021, %v6025
    %v6030 = vand.u32 2147483647, %v6005
    %vm6031 = vcmp.eq.f32.partialorder %v6030, 8.507059e+37
    %v6032 = vand.u32 %v6005, 2147483648
    %v6033 = vor.u32 1.1754944e-38, %v6032
    %v6034 = vsel %vm6031, %v6033, %v6029
    %v6035 = vmul.f32 1.0, %v6034
    %v6036 = vmul.f32 %v5970, %v6020
    %v6037 = vmul.f32 %v5971, %v6035
    %v6039 = vperm.slane %v5960, 0
    %v6041 = vmul.f32 %v6039, %v6036
    %v6042 = vmul.f32 %v6039, %v6037
    %v6044 = vperm.slane %v5961, 0
    %v6046 = vadd.f32 %v6041, %v6044
    %v6047 = vadd.f32 %v6042, %v6044
    %6048 = vst [vmem:[%s16] sm:$0xff] %v6046
    %6049 = vst [vmem:[%s16 + $0x8] sm:$0xff] %v6047
    // Predicated region
    $region122: #{text_encoder_forward.1} parent=1 // pred_check
      _
    $region123: #{text_encoder_forward.1} parent=1 // pred_check_branch
      %6051 = sbr.rel (0) target = $region125
    $region124: #{text_encoder_forward.1} parent=1 // pred_region
      _
    $region125: #{text_encoder_forward.1} parent=1 // pred_fallthru
      _
    // Predicated region
    $region126: #{text_encoder_forward.1} parent=1 // pred_check
      _
    $region127: #{text_encoder_forward.1} parent=1 // pred_check_branch
      %6053 = sbr.rel (0) target = $region129
    $region128: #{text_encoder_forward.1} parent=1 // pred_region
      _
    $region129: #{text_encoder_forward.1} parent=1 // pred_fallthru
      _
    %6054 = vsyncpa [#allocation3], 1
    %6055 = vsyncpa [#allocation5], 1
    %6056 = vsyncpa [#allocation8], 1
    %6057 = vsyncpa [#allocation11], 1
    %6058 = vsyncpa [#allocation14], 1
    %6059 = vsyncpa [#allocation17], 1
    %6060 = vsyncpa [#allocation20], 1
    %6061 = vsyncpa [#allocation23], 1

</llo_original>
